<compile_context>
chip_gen: v7x
topology: tpu7x:2x2x1
jax: 0.10.0
libtpu: 0.0.40
codegen_flags: <defaults>
</compile_context>

<pallas_src>
import functools

import jax
import jax.numpy as jnp
from jax.experimental import pallas as pl
from jax.experimental.pallas import tpu as pltpu


# ----------------------------------------------------------------------------
# Pallas MXU matmul kernel with fused bias (+ optional LeakyReLU) epilogue
# ----------------------------------------------------------------------------
def _matmul_bias_act_kernel(a_ref, b_ref, bias_ref, o_ref, acc_ref, *, slope):
    @pl.when(pl.program_id(2) == 0)
    def _():
        acc_ref[...] = jnp.zeros_like(acc_ref)

    acc_ref[...] += jnp.dot(a_ref[...], b_ref[...],
                            preferred_element_type=jnp.float32)

    @pl.when(pl.program_id(2) == pl.num_programs(2) - 1)
    def _():
        y = acc_ref[...] + bias_ref[...]          # (TM,TN) + (1,TN) broadcast
        if slope is not None:                     # fused LeakyReLU epilogue
            y = jnp.where(y >= 0, y, slope * y)
        o_ref[...] = y.astype(o_ref.dtype)


def _round_up(x, m):
    return ((x + m - 1) // m) * m


def matmul_bias_act(a, w, bias, *, slope=None):
    """a: [M, K] f32, w: [K, N] f32, bias: [N] f32 -> [M, N] f32.

    bf16 operands / f32 MXU accumulation; weight block covers full (padded)
    K and N so it is fetched once and stays VMEM-resident; only A streams.
    """
    M, K = a.shape
    N = w.shape[1]

    Mp = _round_up(M, 8)
    Kp = _round_up(K, 128)
    Np = _round_up(N, 128)

    TM = Mp if Mp <= 256 else 256
    Mp = _round_up(Mp, TM)
    TN = Np if Np <= 512 else 512
    Np = _round_up(Np, TN)
    TK = Kp if Kp <= 4608 else 2048               # all layers here: one K block
    Kp = _round_up(Kp, TK)

    a_p = jnp.pad(a, ((0, Mp - M), (0, Kp - K))).astype(jnp.bfloat16)
    w_p = jnp.pad(w, ((0, Kp - K), (0, Np - N))).astype(jnp.bfloat16)
    b_p = jnp.pad(bias.reshape(1, N), ((0, 0), (0, Np - N))).astype(jnp.float32)

    out = pl.pallas_call(
        functools.partial(_matmul_bias_act_kernel, slope=slope),
        out_shape=jax.ShapeDtypeStruct((Mp, Np), jnp.float32),
        grid_spec=pltpu.PrefetchScalarGridSpec(
            num_scalar_prefetch=0,
            grid=(Mp // TM, Np // TN, Kp // TK),
            in_specs=[pl.BlockSpec((TM, TK), lambda i, j, k: (i, k)),
                      pl.BlockSpec((TK, TN), lambda i, j, k: (k, j)),
                      pl.BlockSpec((1, TN), lambda i, j, k: (0, j))],
            out_specs=pl.BlockSpec((TM, TN), lambda i, j, k: (i, j)),
            scratch_shapes=[pltpu.VMEM((TM, TN), jnp.float32)]),
        compiler_params=pltpu.CompilerParams(
            dimension_semantics=("parallel", "parallel", "arbitrary")),
    )(a_p, w_p, b_p)
    return out[:M, :N]


# ----------------------------------------------------------------------------
# Pallas InstanceNorm + LeakyReLU kernel on (N, H*W, C) views (no transposes)
# ----------------------------------------------------------------------------
def _inorm_lrelu_kernel(x_ref, o_ref, *, eps, slope):
    x = x_ref[...]                                     # (1, HW, C) f32
    mean = jnp.mean(x, axis=1, keepdims=True)          # sublane-axis reduction
    var = jnp.mean(jnp.square(x - mean), axis=1, keepdims=True)
    y = (x - mean) * jax.lax.rsqrt(var + eps)
    o_ref[...] = jnp.where(y >= 0, y, slope * y)


def instnorm_lrelu(x_nhwc, slope=0.2, eps=1e-5):
    N, H, W, C = x_nhwc.shape
    x2 = x_nhwc.reshape(N, H * W, C)                   # free reshape (NHWC)
    out = pl.pallas_call(
        functools.partial(_inorm_lrelu_kernel, eps=eps, slope=slope),
        out_shape=jax.ShapeDtypeStruct(x2.shape, x2.dtype),
        grid=(N,),
        in_specs=[pl.BlockSpec((1, H * W, C), lambda n: (n, 0, 0))],
        out_specs=pl.BlockSpec((1, H * W, C), lambda n: (n, 0, 0)),
    )(x2)
    return out.reshape(N, H, W, C)


# ----------------------------------------------------------------------------
# 3x3 conv (stride 1 or 2, pad 1) via im2col + Pallas matmul
# ----------------------------------------------------------------------------
def conv3x3(x, w, b, *, stride, slope=None):
    """x: NHWC f32, w: torch Conv2d layout [Cout, Cin, 3, 3], b: [Cout]."""
    N, H, W, C = x.shape
    Cout = w.shape[0]
    xp = jnp.pad(x, ((0, 0), (1, 1), (1, 1), (0, 0)))
    if stride == 2:
        Ho = (H - 1) // 2 + 1
        Wo = (W - 1) // 2 + 1
    else:
        Ho, Wo = H, W
    cols = []
    for kh in range(3):
        for kw in range(3):
            if stride == 2:
                cols.append(xp[:, kh:kh + 2 * Ho - 1:2, kw:kw + 2 * Wo - 1:2, :])
            else:
                cols.append(xp[:, kh:kh + Ho, kw:kw + Wo, :])
    pat = jnp.concatenate(cols, axis=-1).reshape(N * Ho * Wo, 9 * C)
    w2 = jnp.transpose(w, (2, 3, 1, 0)).reshape(9 * C, Cout)   # (kh,kw,ci)->co
    out = matmul_bias_act(pat, w2, b, slope=slope)
    return out.reshape(N, Ho, Wo, Cout)


# ----------------------------------------------------------------------------
# Discriminator forward
# ----------------------------------------------------------------------------
def discriminator_forward(x_nchw, cond_nchw, p):
    x = jnp.transpose(x_nchw, (0, 2, 3, 1))            # NCHW -> NHWC
    c = jnp.transpose(cond_nchw, (0, 2, 3, 1))
    y = jnp.concatenate([x, c], axis=-1)               # torch.cat(dim=1)

    # d1: conv + LeakyReLU(0.2) fused into the matmul epilogue (no norm)
    y = conv3x3(y, p["d1_w"], p["d1_b"], stride=2, slope=0.2)
    # d2-d4: conv(+bias fused) -> InstanceNorm -> LeakyReLU(0.2)
    y = conv3x3(y, p["d2_w"], p["d2_b"], stride=2)
    y = instnorm_lrelu(y, slope=0.2)
    y = conv3x3(y, p["d3_w"], p["d3_b"], stride=2)
    y = instnorm_lrelu(y, slope=0.2)
    y = conv3x3(y, p["d4_w"], p["d4_b"], stride=2)
    y = instnorm_lrelu(y, slope=0.2)
    # patch head: 3x3 stride-1 conv, bias fused, no activation
    y = conv3x3(y, p["patch_w"], p["patch_b"], stride=1)

    return jnp.transpose(y, (0, 3, 1, 2))              # NHWC -> NCHW


def init_params(key, in_channels=3):
    def conv(k, cout, cin):
        kw, kb = jax.random.split(k)
        return (0.02 * jax.random.normal(kw, (cout, cin, 3, 3), jnp.float32),
                0.02 * jax.random.normal(kb, (cout,), jnp.float32))

    ks = jax.random.split(key, 5)
    d1_w, d1_b = conv(ks[0], 64, in_channels * 2)
    d2_w, d2_b = conv(ks[1], 128, 64)
    d3_w, d3_b = conv(ks[2], 256, 128)
    d4_w, d4_b = conv(ks[3], 512, 256)
    pw, pb = conv(ks[4], 1, 512)
    return {"d1_w": d1_w, "d1_b": d1_b,
            "d2_w": d2_w, "d2_b": d2_b,
            "d3_w": d3_w, "d3_b": d3_b,
            "d4_w": d4_w, "d4_b": d4_b,
            "patch_w": pw, "patch_b": pb}


if __name__ == "__main__":
    key = jax.random.PRNGKey(0)
    k_param, k_x, k_c = jax.random.split(key, 3)
    params = init_params(k_param, in_channels=3)

    # Small shapes: batch=2, 3 channels, 32x32 spatial (NCHW).
    x = jax.random.normal(k_x, (2, 3, 32, 32), jnp.float32)
    cond = jax.random.normal(k_c, (2, 3, 32, 32), jnp.float32)

    fwd = jax.jit(discriminator_forward)
    y = fwd(x, cond, params)
    jax.block_until_ready(y)

    # 32 -> 16 -> 8 -> 4 -> 2 (four stride-2 convs), patch conv keeps 2x2.
    assert y.shape == (2, 1, 2, 2), y.shape
    assert bool(jnp.all(jnp.isfinite(y)))
    print("KERNEL_OK")
</pallas_src>

<mosaic_0001>
module attributes {stable_mosaic.version = 11 : i64} {
  func.func @_matmul_bias_act_kernel(%arg0: i32, %arg1: i32, %arg2: i32, %arg3: memref<256x128xbf16, #tpu.memory_space<vmem>>, %arg4: memref<128x128xbf16, #tpu.memory_space<vmem>>, %arg5: memref<1x128xf32, #tpu.memory_space<vmem>>, %arg6: memref<256x128xf32, #tpu.memory_space<vmem>>, %arg7: memref<256x128xf32, #tpu.memory_space<vmem>>) attributes {dimension_semantics = [#tpu.dimension_semantics<parallel>, #tpu.dimension_semantics<parallel>, #tpu.dimension_semantics<arbitrary>], iteration_bounds = array<i64: 2, 1, 1>, scalar_prefetch = 0 : i64, scratch_operands = 1 : i64, tpu.core_type = #tpu.core_type<tc>, window_params = [{transform_indices = @transform_0, window_bounds = array<i64: 256, 128>}, {transform_indices = @transform_1, window_bounds = array<i64: 128, 128>}, {transform_indices = @transform_2, window_bounds = array<i64: 1, 128>}, {transform_indices = @transform_3, window_bounds = array<i64: 256, 128>}]} {
    %c0_i32 = arith.constant 0 : i32
    %0 = arith.cmpi eq, %arg2, %c0_i32 : i32
    %1 = arith.extui %0 : i1 to i32
    %c0_i32_0 = arith.constant 0 : i32
    %2 = arith.cmpi ne, %1, %c0_i32_0 : i32
    scf.if %2 {
      %cst_10 = arith.constant 0.000000e+00 : f32
      %12 = vector.broadcast %cst_10 : f32 to vector<256x128xf32>
      %c0_11 = arith.constant 0 : index
      %c0_12 = arith.constant 0 : index
      %13 = vector.load %arg7[%c0_11, %c0_12] : memref<256x128xf32, #tpu.memory_space<vmem>>, vector<256x128xf32>
      tpu.vector_store %arg7[%c0_11, %c0_12], %12 {strides = array<i32>} : memref<256x128xf32, #tpu.memory_space<vmem>>, vector<256x128xf32>,
    } else {
    }
    %c0 = arith.constant 0 : index
    %c0_1 = arith.constant 0 : index
    %3 = vector.load %arg7[%c0, %c0_1] : memref<256x128xf32, #tpu.memory_space<vmem>>, vector<256x128xf32>
    %c0_2 = arith.constant 0 : index
    %c0_3 = arith.constant 0 : index
    %4 = vector.load %arg3[%c0_2, %c0_3] : memref<256x128xbf16, #tpu.memory_space<vmem>>, vector<256x128xbf16>
    %c0_4 = arith.constant 0 : index
    %c0_5 = arith.constant 0 : index
    %5 = vector.load %arg4[%c0_4, %c0_5] : memref<128x128xbf16, #tpu.memory_space<vmem>>, vector<128x128xbf16>
    %cst = arith.constant dense<0.000000e+00> : vector<256x128xf32>
    %6 = tpu.matmul %4, %5, %cst {dimension_numbers = #tpu.dot_dimension_numbers<[1], [0], [0], [1], [0, 0, 1, 1], [], []>} : vector<256x128xbf16>, vector<128x128xbf16>, vector<256x128xf32> -> vector<256x128xf32>
    %7 = arith.addf %3, %6 : vector<256x128xf32>
    %c0_6 = arith.constant 0 : index
    %c0_7 = arith.constant 0 : index
    %8 = vector.load %arg7[%c0_6, %c0_7] : memref<256x128xf32, #tpu.memory_space<vmem>>, vector<256x128xf32>
    tpu.vector_store %arg7[%c0_6, %c0_7], %7 {strides = array<i32>} : memref<256x128xf32, #tpu.memory_space<vmem>>, vector<256x128xf32>,
    %c0_i32_8 = arith.constant 0 : i32
    %9 = arith.cmpi eq, %arg2, %c0_i32_8 : i32
    %10 = arith.extui %9 : i1 to i32
    %c0_i32_9 = arith.constant 0 : i32
    %11 = arith.cmpi ne, %10, %c0_i32_9 : i32
    scf.if %11 {
      %c0_10 = arith.constant 0 : index
      %c0_11 = arith.constant 0 : index
      %12 = vector.load %arg7[%c0_10, %c0_11] : memref<256x128xf32, #tpu.memory_space<vmem>>, vector<256x128xf32>
      %c0_12 = arith.constant 0 : index
      %c0_13 = arith.constant 0 : index
      %13 = vector.load %arg5[%c0_12, %c0_13] : memref<1x128xf32, #tpu.memory_space<vmem>>, vector<1x128xf32>
      %14 = vector.broadcast %13 : vector<1x128xf32> to vector<256x128xf32>
      %15 = arith.addf %12, %14 : vector<256x128xf32>
      %cst_14 = arith.constant 0.000000e+00 : f32
      %16 = vector.broadcast %cst_14 : f32 to vector<256x128xf32>
      %17 = arith.cmpf oge, %15, %16 : vector<256x128xf32>
      %cst_15 = arith.constant 2.000000e-01 : f32
      %18 = vector.broadcast %cst_15 : f32 to vector<256x128xf32>
      %19 = arith.mulf %18, %15 : vector<256x128xf32>
      %20 = arith.select %17, %15, %19 : vector<256x128xi1>, vector<256x128xf32>
      %c0_16 = arith.constant 0 : index
      %c0_17 = arith.constant 0 : index
      %21 = vector.load %arg6[%c0_16, %c0_17] : memref<256x128xf32, #tpu.memory_space<vmem>>, vector<256x128xf32>
      tpu.vector_store %arg6[%c0_16, %c0_17], %20 {strides = array<i32>} : memref<256x128xf32, #tpu.memory_space<vmem>>, vector<256x128xf32>,
    } else {
    }
    return
  }
  func.func @transform_0(%arg0: i32, %arg1: i32, %arg2: i32) -> (i32, i32) {
    %c0_i32 = arith.constant 0 : i32
    return %arg0, %arg2 : i32, i32
  }
  func.func @transform_1(%arg0: i32, %arg1: i32, %arg2: i32) -> (i32, i32) {
    %c0_i32 = arith.constant 0 : i32
    return %arg2, %arg1 : i32, i32
  }
  func.func @transform_2(%arg0: i32, %arg1: i32, %arg2: i32) -> (i32, i32) {
    %c0_i32 = arith.constant 0 : i32
    %c0_i32_0 = arith.constant 0 : i32
    return %c0_i32, %arg1 : i32, i32
  }
  func.func @transform_3(%arg0: i32, %arg1: i32, %arg2: i32) -> (i32, i32) {
    %c0_i32 = arith.constant 0 : i32
    return %arg0, %arg1 : i32, i32
  }
}

module attributes {stable_mosaic.version = 11 : i64} {
  func.func @_inorm_lrelu_kernel(%arg0: i32, %arg1: memref<1x64x128xf32, #tpu.memory_space<vmem>>, %arg2: memref<1x64x128xf32, #tpu.memory_space<vmem>>) attributes {dimension_semantics = [#tpu.dimension_semantics<arbitrary>], iteration_bounds = array<i64: 2>, scalar_prefetch = 0 : i64, scratch_operands = 0 : i64, tpu.core_type = #tpu.core_type<tc>, window_params = [{transform_indices = @transform_0, window_bounds = array<i64: 1, 64, 128>}, {transform_indices = @transform_1, window_bounds = array<i64: 1, 64, 128>}]} {
    %c0 = arith.constant 0 : index
    %c0_0 = arith.constant 0 : index
    %c0_1 = arith.constant 0 : index
    %0 = vector.load %arg1[%c0, %c0_0, %c0_1] : memref<1x64x128xf32, #tpu.memory_space<vmem>>, vector<1x64x128xf32>
    %cst = arith.constant dense<0.000000e+00> : vector<1x128xf32>
    %1 = vector.multi_reduction <add>, %0, %cst [1] : vector<1x64x128xf32> to vector<1x128xf32>
    %2 = vector.shape_cast %1 : vector<1x128xf32> to vector<1x1x128xf32>
    %cst_2 = arith.constant 6.400000e+01 : f32
    %3 = vector.broadcast %cst_2 : f32 to vector<1x1x128xf32>
    %4 = arith.divf %2, %3 : vector<1x1x128xf32>
    %5 = vector.broadcast %4 : vector<1x1x128xf32> to vector<1x64x128xf32>
    %6 = arith.subf %0, %5 : vector<1x64x128xf32>
    %7 = arith.mulf %6, %6 : vector<1x64x128xf32>
    %cst_3 = arith.constant dense<0.000000e+00> : vector<1x128xf32>
    %8 = vector.multi_reduction <add>, %7, %cst_3 [1] : vector<1x64x128xf32> to vector<1x128xf32>
    %9 = vector.shape_cast %8 : vector<1x128xf32> to vector<1x1x128xf32>
    %cst_4 = arith.constant 6.400000e+01 : f32
    %10 = vector.broadcast %cst_4 : f32 to vector<1x1x128xf32>
    %11 = arith.divf %9, %10 : vector<1x1x128xf32>
    %12 = vector.broadcast %4 : vector<1x1x128xf32> to vector<1x64x128xf32>
    %13 = arith.subf %0, %12 : vector<1x64x128xf32>
    %cst_5 = arith.constant 9.99999974E-6 : f32
    %14 = vector.broadcast %cst_5 : f32 to vector<1x1x128xf32>
    %15 = arith.addf %11, %14 : vector<1x1x128xf32>
    %16 = math.rsqrt %15 : vector<1x1x128xf32>
    %17 = vector.broadcast %16 : vector<1x1x128xf32> to vector<1x64x128xf32>
    %18 = arith.mulf %13, %17 : vector<1x64x128xf32>
    %cst_6 = arith.constant 0.000000e+00 : f32
    %19 = vector.broadcast %cst_6 : f32 to vector<1x64x128xf32>
    %20 = arith.cmpf oge, %18, %19 : vector<1x64x128xf32>
    %cst_7 = arith.constant 2.000000e-01 : f32
    %21 = vector.broadcast %cst_7 : f32 to vector<1x64x128xf32>
    %22 = arith.mulf %21, %18 : vector<1x64x128xf32>
    %23 = arith.select %20, %18, %22 : vector<1x64x128xi1>, vector<1x64x128xf32>
    %c0_8 = arith.constant 0 : index
    %c0_9 = arith.constant 0 : index
    %c0_10 = arith.constant 0 : index
    %24 = vector.load %arg2[%c0_8, %c0_9, %c0_10] : memref<1x64x128xf32, #tpu.memory_space<vmem>>, vector<1x64x128xf32>
    tpu.vector_store %arg2[%c0_8, %c0_9, %c0_10], %23 {strides = array<i32>} : memref<1x64x128xf32, #tpu.memory_space<vmem>>, vector<1x64x128xf32>,
    return
  }
  func.func @transform_0(%arg0: i32) -> (i32, i32, i32) {
    %c0_i32 = arith.constant 0 : i32
    %c0_i32_0 = arith.constant 0 : i32
    %c0_i32_1 = arith.constant 0 : i32
    return %arg0, %c0_i32, %c0_i32_0 : i32, i32, i32
  }
  func.func @transform_1(%arg0: i32) -> (i32, i32, i32) {
    %c0_i32 = arith.constant 0 : i32
    %c0_i32_0 = arith.constant 0 : i32
    %c0_i32_1 = arith.constant 0 : i32
    return %arg0, %c0_i32, %c0_i32_0 : i32, i32, i32
  }
}

module attributes {stable_mosaic.version = 11 : i64} {
  func.func @_matmul_bias_act_kernel(%arg0: i32, %arg1: i32, %arg2: i32, %arg3: memref<128x640xbf16, #tpu.memory_space<vmem>>, %arg4: memref<640x128xbf16, #tpu.memory_space<vmem>>, %arg5: memref<1x128xf32, #tpu.memory_space<vmem>>, %arg6: memref<128x128xf32, #tpu.memory_space<vmem>>, %arg7: memref<128x128xf32, #tpu.memory_space<vmem>>) attributes {dimension_semantics = [#tpu.dimension_semantics<parallel>, #tpu.dimension_semantics<parallel>, #tpu.dimension_semantics<arbitrary>], iteration_bounds = array<i64: 1, 1, 1>, scalar_prefetch = 0 : i64, scratch_operands = 1 : i64, tpu.core_type = #tpu.core_type<tc>, window_params = [{transform_indices = @transform_0, window_bounds = array<i64: 128, 640>}, {transform_indices = @transform_1, window_bounds = array<i64: 640, 128>}, {transform_indices = @transform_2, window_bounds = array<i64: 1, 128>}, {transform_indices = @transform_3, window_bounds = array<i64: 128, 128>}]} {
    %c0_i32 = arith.constant 0 : i32
    %0 = arith.cmpi eq, %arg2, %c0_i32 : i32
    %1 = arith.extui %0 : i1 to i32
    %c0_i32_0 = arith.constant 0 : i32
    %2 = arith.cmpi ne, %1, %c0_i32_0 : i32
    scf.if %2 {
      %cst_10 = arith.constant 0.000000e+00 : f32
      %12 = vector.broadcast %cst_10 : f32 to vector<128x128xf32>
      %c0_11 = arith.constant 0 : index
      %c0_12 = arith.constant 0 : index
      %13 = vector.load %arg7[%c0_11, %c0_12] : memref<128x128xf32, #tpu.memory_space<vmem>>, vector<128x128xf32>
      tpu.vector_store %arg7[%c0_11, %c0_12], %12 {strides = array<i32>} : memref<128x128xf32, #tpu.memory_space<vmem>>, vector<128x128xf32>,
    } else {
    }
    %c0 = arith.constant 0 : index
    %c0_1 = arith.constant 0 : index
    %3 = vector.load %arg7[%c0, %c0_1] : memref<128x128xf32, #tpu.memory_space<vmem>>, vector<128x128xf32>
    %c0_2 = arith.constant 0 : index
    %c0_3 = arith.constant 0 : index
    %4 = vector.load %arg3[%c0_2, %c0_3] : memref<128x640xbf16, #tpu.memory_space<vmem>>, vector<128x640xbf16>
    %c0_4 = arith.constant 0 : index
    %c0_5 = arith.constant 0 : index
    %5 = vector.load %arg4[%c0_4, %c0_5] : memref<640x128xbf16, #tpu.memory_space<vmem>>, vector<640x128xbf16>
    %cst = arith.constant dense<0.000000e+00> : vector<128x128xf32>
    %6 = tpu.matmul %4, %5, %cst {dimension_numbers = #tpu.dot_dimension_numbers<[1], [0], [0], [1], [0, 0, 1, 1], [], []>} : vector<128x640xbf16>, vector<640x128xbf16>, vector<128x128xf32> -> vector<128x128xf32>
    %7 = arith.addf %3, %6 : vector<128x128xf32>
    %c0_6 = arith.constant 0 : index
    %c0_7 = arith.constant 0 : index
    %8 = vector.load %arg7[%c0_6, %c0_7] : memref<128x128xf32, #tpu.memory_space<vmem>>, vector<128x128xf32>
    tpu.vector_store %arg7[%c0_6, %c0_7], %7 {strides = array<i32>} : memref<128x128xf32, #tpu.memory_space<vmem>>, vector<128x128xf32>,
    %c0_i32_8 = arith.constant 0 : i32
    %9 = arith.cmpi eq, %arg2, %c0_i32_8 : i32
    %10 = arith.extui %9 : i1 to i32
    %c0_i32_9 = arith.constant 0 : i32
    %11 = arith.cmpi ne, %10, %c0_i32_9 : i32
    scf.if %11 {
      %c0_10 = arith.constant 0 : index
      %c0_11 = arith.constant 0 : index
      %12 = vector.load %arg7[%c0_10, %c0_11] : memref<128x128xf32, #tpu.memory_space<vmem>>, vector<128x128xf32>
      %c0_12 = arith.constant 0 : index
      %c0_13 = arith.constant 0 : index
      %13 = vector.load %arg5[%c0_12, %c0_13] : memref<1x128xf32, #tpu.memory_space<vmem>>, vector<1x128xf32>
      %14 = vector.broadcast %13 : vector<1x128xf32> to vector<128x128xf32>
      %15 = arith.addf %12, %14 : vector<128x128xf32>
      %c0_14 = arith.constant 0 : index
      %c0_15 = arith.constant 0 : index
      %16 = vector.load %arg6[%c0_14, %c0_15] : memref<128x128xf32, #tpu.memory_space<vmem>>, vector<128x128xf32>
      tpu.vector_store %arg6[%c0_14, %c0_15], %15 {strides = array<i32>} : memref<128x128xf32, #tpu.memory_space<vmem>>, vector<128x128xf32>,
    } else {
    }
    return
  }
  func.func @transform_0(%arg0: i32, %arg1: i32, %arg2: i32) -> (i32, i32) {
    %c0_i32 = arith.constant 0 : i32
    return %arg0, %arg2 : i32, i32
  }
  func.func @transform_1(%arg0: i32, %arg1: i32, %arg2: i32) -> (i32, i32) {
    %c0_i32 = arith.constant 0 : i32
    return %arg2, %arg1 : i32, i32
  }
  func.func @transform_2(%arg0: i32, %arg1: i32, %arg2: i32) -> (i32, i32) {
    %c0_i32 = arith.constant 0 : i32
    %c0_i32_0 = arith.constant 0 : i32
    return %c0_i32, %arg1 : i32, i32
  }
  func.func @transform_3(%arg0: i32, %arg1: i32, %arg2: i32) -> (i32, i32) {
    %c0_i32 = arith.constant 0 : i32
    return %arg0, %arg1 : i32, i32
  }
}

module attributes {stable_mosaic.version = 11 : i64} {
  func.func @_matmul_bias_act_kernel(%arg0: i32, %arg1: i32, %arg2: i32, %arg3: memref<32x1152xbf16, #tpu.memory_space<vmem>>, %arg4: memref<1152x256xbf16, #tpu.memory_space<vmem>>, %arg5: memref<1x256xf32, #tpu.memory_space<vmem>>, %arg6: memref<32x256xf32, #tpu.memory_space<vmem>>, %arg7: memref<32x256xf32, #tpu.memory_space<vmem>>) attributes {dimension_semantics = [#tpu.dimension_semantics<parallel>, #tpu.dimension_semantics<parallel>, #tpu.dimension_semantics<arbitrary>], iteration_bounds = array<i64: 1, 1, 1>, scalar_prefetch = 0 : i64, scratch_operands = 1 : i64, tpu.core_type = #tpu.core_type<tc>, window_params = [{transform_indices = @transform_0, window_bounds = array<i64: 32, 1152>}, {transform_indices = @transform_1, window_bounds = array<i64: 1152, 256>}, {transform_indices = @transform_2, window_bounds = array<i64: 1, 256>}, {transform_indices = @transform_3, window_bounds = array<i64: 32, 256>}]} {
    %c0_i32 = arith.constant 0 : i32
    %0 = arith.cmpi eq, %arg2, %c0_i32 : i32
    %1 = arith.extui %0 : i1 to i32
    %c0_i32_0 = arith.constant 0 : i32
    %2 = arith.cmpi ne, %1, %c0_i32_0 : i32
    scf.if %2 {
      %cst_10 = arith.constant 0.000000e+00 : f32
      %12 = vector.broadcast %cst_10 : f32 to vector<32x256xf32>
      %c0_11 = arith.constant 0 : index
      %c0_12 = arith.constant 0 : index
      %13 = vector.load %arg7[%c0_11, %c0_12] : memref<32x256xf32, #tpu.memory_space<vmem>>, vector<32x256xf32>
      tpu.vector_store %arg7[%c0_11, %c0_12], %12 {strides = array<i32>} : memref<32x256xf32, #tpu.memory_space<vmem>>, vector<32x256xf32>,
    } else {
    }
    %c0 = arith.constant 0 : index
    %c0_1 = arith.constant 0 : index
    %3 = vector.load %arg7[%c0, %c0_1] : memref<32x256xf32, #tpu.memory_space<vmem>>, vector<32x256xf32>
    %c0_2 = arith.constant 0 : index
    %c0_3 = arith.constant 0 : index
    %4 = vector.load %arg3[%c0_2, %c0_3] : memref<32x1152xbf16, #tpu.memory_space<vmem>>, vector<32x1152xbf16>
    %c0_4 = arith.constant 0 : index
    %c0_5 = arith.constant 0 : index
    %5 = vector.load %arg4[%c0_4, %c0_5] : memref<1152x256xbf16, #tpu.memory_space<vmem>>, vector<1152x256xbf16>
    %cst = arith.constant dense<0.000000e+00> : vector<32x256xf32>
    %6 = tpu.matmul %4, %5, %cst {dimension_numbers = #tpu.dot_dimension_numbers<[1], [0], [0], [1], [0, 0, 1, 1], [], []>} : vector<32x1152xbf16>, vector<1152x256xbf16>, vector<32x256xf32> -> vector<32x256xf32>
    %7 = arith.addf %3, %6 : vector<32x256xf32>
    %c0_6 = arith.constant 0 : index
    %c0_7 = arith.constant 0 : index
    %8 = vector.load %arg7[%c0_6, %c0_7] : memref<32x256xf32, #tpu.memory_space<vmem>>, vector<32x256xf32>
    tpu.vector_store %arg7[%c0_6, %c0_7], %7 {strides = array<i32>} : memref<32x256xf32, #tpu.memory_space<vmem>>, vector<32x256xf32>,
    %c0_i32_8 = arith.constant 0 : i32
    %9 = arith.cmpi eq, %arg2, %c0_i32_8 : i32
    %10 = arith.extui %9 : i1 to i32
    %c0_i32_9 = arith.constant 0 : i32
    %11 = arith.cmpi ne, %10, %c0_i32_9 : i32
    scf.if %11 {
      %c0_10 = arith.constant 0 : index
      %c0_11 = arith.constant 0 : index
      %12 = vector.load %arg7[%c0_10, %c0_11] : memref<32x256xf32, #tpu.memory_space<vmem>>, vector<32x256xf32>
      %c0_12 = arith.constant 0 : index
      %c0_13 = arith.constant 0 : index
      %13 = vector.load %arg5[%c0_12, %c0_13] : memref<1x256xf32, #tpu.memory_space<vmem>>, vector<1x256xf32>
      %14 = vector.broadcast %13 : vector<1x256xf32> to vector<32x256xf32>
      %15 = arith.addf %12, %14 : vector<32x256xf32>
      %c0_14 = arith.constant 0 : index
      %c0_15 = arith.constant 0 : index
      %16 = vector.load %arg6[%c0_14, %c0_15] : memref<32x256xf32, #tpu.memory_space<vmem>>, vector<32x256xf32>
      tpu.vector_store %arg6[%c0_14, %c0_15], %15 {strides = array<i32>} : memref<32x256xf32, #tpu.memory_space<vmem>>, vector<32x256xf32>,
    } else {
    }
    return
  }
  func.func @transform_0(%arg0: i32, %arg1: i32, %arg2: i32) -> (i32, i32) {
    %c0_i32 = arith.constant 0 : i32
    return %arg0, %arg2 : i32, i32
  }
  func.func @transform_1(%arg0: i32, %arg1: i32, %arg2: i32) -> (i32, i32) {
    %c0_i32 = arith.constant 0 : i32
    return %arg2, %arg1 : i32, i32
  }
  func.func @transform_2(%arg0: i32, %arg1: i32, %arg2: i32) -> (i32, i32) {
    %c0_i32 = arith.constant 0 : i32
    %c0_i32_0 = arith.constant 0 : i32
    return %c0_i32, %arg1 : i32, i32
  }
  func.func @transform_3(%arg0: i32, %arg1: i32, %arg2: i32) -> (i32, i32) {
    %c0_i32 = arith.constant 0 : i32
    return %arg0, %arg1 : i32, i32
  }
}

module attributes {stable_mosaic.version = 11 : i64} {
  func.func @_inorm_lrelu_kernel(%arg0: i32, %arg1: memref<1x16x256xf32, #tpu.memory_space<vmem>>, %arg2: memref<1x16x256xf32, #tpu.memory_space<vmem>>) attributes {dimension_semantics = [#tpu.dimension_semantics<arbitrary>], iteration_bounds = array<i64: 2>, scalar_prefetch = 0 : i64, scratch_operands = 0 : i64, tpu.core_type = #tpu.core_type<tc>, window_params = [{transform_indices = @transform_0, window_bounds = array<i64: 1, 16, 256>}, {transform_indices = @transform_1, window_bounds = array<i64: 1, 16, 256>}]} {
    %c0 = arith.constant 0 : index
    %c0_0 = arith.constant 0 : index
    %c0_1 = arith.constant 0 : index
    %0 = vector.load %arg1[%c0, %c0_0, %c0_1] : memref<1x16x256xf32, #tpu.memory_space<vmem>>, vector<1x16x256xf32>
    %cst = arith.constant dense<0.000000e+00> : vector<1x256xf32>
    %1 = vector.multi_reduction <add>, %0, %cst [1] : vector<1x16x256xf32> to vector<1x256xf32>
    %2 = vector.shape_cast %1 : vector<1x256xf32> to vector<1x1x256xf32>
    %cst_2 = arith.constant 1.600000e+01 : f32
    %3 = vector.broadcast %cst_2 : f32 to vector<1x1x256xf32>
    %4 = arith.divf %2, %3 : vector<1x1x256xf32>
    %5 = vector.broadcast %4 : vector<1x1x256xf32> to vector<1x16x256xf32>
    %6 = arith.subf %0, %5 : vector<1x16x256xf32>
    %7 = arith.mulf %6, %6 : vector<1x16x256xf32>
    %cst_3 = arith.constant dense<0.000000e+00> : vector<1x256xf32>
    %8 = vector.multi_reduction <add>, %7, %cst_3 [1] : vector<1x16x256xf32> to vector<1x256xf32>
    %9 = vector.shape_cast %8 : vector<1x256xf32> to vector<1x1x256xf32>
    %cst_4 = arith.constant 1.600000e+01 : f32
    %10 = vector.broadcast %cst_4 : f32 to vector<1x1x256xf32>
    %11 = arith.divf %9, %10 : vector<1x1x256xf32>
    %12 = vector.broadcast %4 : vector<1x1x256xf32> to vector<1x16x256xf32>
    %13 = arith.subf %0, %12 : vector<1x16x256xf32>
    %cst_5 = arith.constant 9.99999974E-6 : f32
    %14 = vector.broadcast %cst_5 : f32 to vector<1x1x256xf32>
    %15 = arith.addf %11, %14 : vector<1x1x256xf32>
    %16 = math.rsqrt %15 : vector<1x1x256xf32>
    %17 = vector.broadcast %16 : vector<1x1x256xf32> to vector<1x16x256xf32>
    %18 = arith.mulf %13, %17 : vector<1x16x256xf32>
    %cst_6 = arith.constant 0.000000e+00 : f32
    %19 = vector.broadcast %cst_6 : f32 to vector<1x16x256xf32>
    %20 = arith.cmpf oge, %18, %19 : vector<1x16x256xf32>
    %cst_7 = arith.constant 2.000000e-01 : f32
    %21 = vector.broadcast %cst_7 : f32 to vector<1x16x256xf32>
    %22 = arith.mulf %21, %18 : vector<1x16x256xf32>
    %23 = arith.select %20, %18, %22 : vector<1x16x256xi1>, vector<1x16x256xf32>
    %c0_8 = arith.constant 0 : index
    %c0_9 = arith.constant 0 : index
    %c0_10 = arith.constant 0 : index
    %24 = vector.load %arg2[%c0_8, %c0_9, %c0_10] : memref<1x16x256xf32, #tpu.memory_space<vmem>>, vector<1x16x256xf32>
    tpu.vector_store %arg2[%c0_8, %c0_9, %c0_10], %23 {strides = array<i32>} : memref<1x16x256xf32, #tpu.memory_space<vmem>>, vector<1x16x256xf32>,
    return
  }
  func.func @transform_0(%arg0: i32) -> (i32, i32, i32) {
    %c0_i32 = arith.constant 0 : i32
    %c0_i32_0 = arith.constant 0 : i32
    %c0_i32_1 = arith.constant 0 : i32
    return %arg0, %c0_i32, %c0_i32_0 : i32, i32, i32
  }
  func.func @transform_1(%arg0: i32) -> (i32, i32, i32) {
    %c0_i32 = arith.constant 0 : i32
    %c0_i32_0 = arith.constant 0 : i32
    %c0_i32_1 = arith.constant 0 : i32
    return %arg0, %c0_i32, %c0_i32_0 : i32, i32, i32
  }
}

module attributes {stable_mosaic.version = 11 : i64} {
  func.func @_matmul_bias_act_kernel(%arg0: i32, %arg1: i32, %arg2: i32, %arg3: memref<8x2304xbf16, #tpu.memory_space<vmem>>, %arg4: memref<2304x512xbf16, #tpu.memory_space<vmem>>, %arg5: memref<1x512xf32, #tpu.memory_space<vmem>>, %arg6: memref<8x512xf32, #tpu.memory_space<vmem>>, %arg7: memref<8x512xf32, #tpu.memory_space<vmem>>) attributes {dimension_semantics = [#tpu.dimension_semantics<parallel>, #tpu.dimension_semantics<parallel>, #tpu.dimension_semantics<arbitrary>], iteration_bounds = array<i64: 1, 1, 1>, scalar_prefetch = 0 : i64, scratch_operands = 1 : i64, tpu.core_type = #tpu.core_type<tc>, window_params = [{transform_indices = @transform_0, window_bounds = array<i64: 8, 2304>}, {transform_indices = @transform_1, window_bounds = array<i64: 2304, 512>}, {transform_indices = @transform_2, window_bounds = array<i64: 1, 512>}, {transform_indices = @transform_3, window_bounds = array<i64: 8, 512>}]} {
    %c0_i32 = arith.constant 0 : i32
    %0 = arith.cmpi eq, %arg2, %c0_i32 : i32
    %1 = arith.extui %0 : i1 to i32
    %c0_i32_0 = arith.constant 0 : i32
    %2 = arith.cmpi ne, %1, %c0_i32_0 : i32
    scf.if %2 {
      %cst_10 = arith.constant 0.000000e+00 : f32
      %12 = vector.broadcast %cst_10 : f32 to vector<8x512xf32>
      %c0_11 = arith.constant 0 : index
      %c0_12 = arith.constant 0 : index
      %13 = vector.load %arg7[%c0_11, %c0_12] : memref<8x512xf32, #tpu.memory_space<vmem>>, vector<8x512xf32>
      tpu.vector_store %arg7[%c0_11, %c0_12], %12 {strides = array<i32>} : memref<8x512xf32, #tpu.memory_space<vmem>>, vector<8x512xf32>,
    } else {
    }
    %c0 = arith.constant 0 : index
    %c0_1 = arith.constant 0 : index
    %3 = vector.load %arg7[%c0, %c0_1] : memref<8x512xf32, #tpu.memory_space<vmem>>, vector<8x512xf32>
    %c0_2 = arith.constant 0 : index
    %c0_3 = arith.constant 0 : index
    %4 = vector.load %arg3[%c0_2, %c0_3] : memref<8x2304xbf16, #tpu.memory_space<vmem>>, vector<8x2304xbf16>
    %c0_4 = arith.constant 0 : index
    %c0_5 = arith.constant 0 : index
    %5 = vector.load %arg4[%c0_4, %c0_5] : memref<2304x512xbf16, #tpu.memory_space<vmem>>, vector<2304x512xbf16>
    %cst = arith.constant dense<0.000000e+00> : vector<8x512xf32>
    %6 = tpu.matmul %4, %5, %cst {dimension_numbers = #tpu.dot_dimension_numbers<[1], [0], [0], [1], [0, 0, 1, 1], [], []>} : vector<8x2304xbf16>, vector<2304x512xbf16>, vector<8x512xf32> -> vector<8x512xf32>
    %7 = arith.addf %3, %6 : vector<8x512xf32>
    %c0_6 = arith.constant 0 : index
    %c0_7 = arith.constant 0 : index
    %8 = vector.load %arg7[%c0_6, %c0_7] : memref<8x512xf32, #tpu.memory_space<vmem>>, vector<8x512xf32>
    tpu.vector_store %arg7[%c0_6, %c0_7], %7 {strides = array<i32>} : memref<8x512xf32, #tpu.memory_space<vmem>>, vector<8x512xf32>,
    %c0_i32_8 = arith.constant 0 : i32
    %9 = arith.cmpi eq, %arg2, %c0_i32_8 : i32
    %10 = arith.extui %9 : i1 to i32
    %c0_i32_9 = arith.constant 0 : i32
    %11 = arith.cmpi ne, %10, %c0_i32_9 : i32
    scf.if %11 {
      %c0_10 = arith.constant 0 : index
      %c0_11 = arith.constant 0 : index
      %12 = vector.load %arg7[%c0_10, %c0_11] : memref<8x512xf32, #tpu.memory_space<vmem>>, vector<8x512xf32>
      %c0_12 = arith.constant 0 : index
      %c0_13 = arith.constant 0 : index
      %13 = vector.load %arg5[%c0_12, %c0_13] : memref<1x512xf32, #tpu.memory_space<vmem>>, vector<1x512xf32>
      %14 = vector.broadcast %13 : vector<1x512xf32> to vector<8x512xf32>
      %15 = arith.addf %12, %14 : vector<8x512xf32>
      %c0_14 = arith.constant 0 : index
      %c0_15 = arith.constant 0 : index
      %16 = vector.load %arg6[%c0_14, %c0_15] : memref<8x512xf32, #tpu.memory_space<vmem>>, vector<8x512xf32>
      tpu.vector_store %arg6[%c0_14, %c0_15], %15 {strides = array<i32>} : memref<8x512xf32, #tpu.memory_space<vmem>>, vector<8x512xf32>,
    } else {
    }
    return
  }
  func.func @transform_0(%arg0: i32, %arg1: i32, %arg2: i32) -> (i32, i32) {
    %c0_i32 = arith.constant 0 : i32
    return %arg0, %arg2 : i32, i32
  }
  func.func @transform_1(%arg0: i32, %arg1: i32, %arg2: i32) -> (i32, i32) {
    %c0_i32 = arith.constant 0 : i32
    return %arg2, %arg1 : i32, i32
  }
  func.func @transform_2(%arg0: i32, %arg1: i32, %arg2: i32) -> (i32, i32) {
    %c0_i32 = arith.constant 0 : i32
    %c0_i32_0 = arith.constant 0 : i32
    return %c0_i32, %arg1 : i32, i32
  }
  func.func @transform_3(%arg0: i32, %arg1: i32, %arg2: i32) -> (i32, i32) {
    %c0_i32 = arith.constant 0 : i32
    return %arg0, %arg1 : i32, i32
  }
}

module attributes {stable_mosaic.version = 11 : i64} {
  func.func @_inorm_lrelu_kernel(%arg0: i32, %arg1: memref<1x4x512xf32, #tpu.memory_space<vmem>>, %arg2: memref<1x4x512xf32, #tpu.memory_space<vmem>>) attributes {dimension_semantics = [#tpu.dimension_semantics<arbitrary>], iteration_bounds = array<i64: 2>, scalar_prefetch = 0 : i64, scratch_operands = 0 : i64, tpu.core_type = #tpu.core_type<tc>, window_params = [{transform_indices = @transform_0, window_bounds = array<i64: 1, 4, 512>}, {transform_indices = @transform_1, window_bounds = array<i64: 1, 4, 512>}]} {
    %c0 = arith.constant 0 : index
    %c0_0 = arith.constant 0 : index
    %c0_1 = arith.constant 0 : index
    %0 = vector.load %arg1[%c0, %c0_0, %c0_1] : memref<1x4x512xf32, #tpu.memory_space<vmem>>, vector<1x4x512xf32>
    %cst = arith.constant dense<0.000000e+00> : vector<1x512xf32>
    %1 = vector.multi_reduction <add>, %0, %cst [1] : vector<1x4x512xf32> to vector<1x512xf32>
    %2 = vector.shape_cast %1 : vector<1x512xf32> to vector<1x1x512xf32>
    %cst_2 = arith.constant 4.000000e+00 : f32
    %3 = vector.broadcast %cst_2 : f32 to vector<1x1x512xf32>
    %4 = arith.divf %2, %3 : vector<1x1x512xf32>
    %5 = vector.broadcast %4 : vector<1x1x512xf32> to vector<1x4x512xf32>
    %6 = arith.subf %0, %5 : vector<1x4x512xf32>
    %7 = arith.mulf %6, %6 : vector<1x4x512xf32>
    %cst_3 = arith.constant dense<0.000000e+00> : vector<1x512xf32>
    %8 = vector.multi_reduction <add>, %7, %cst_3 [1] : vector<1x4x512xf32> to vector<1x512xf32>
    %9 = vector.shape_cast %8 : vector<1x512xf32> to vector<1x1x512xf32>
    %cst_4 = arith.constant 4.000000e+00 : f32
    %10 = vector.broadcast %cst_4 : f32 to vector<1x1x512xf32>
    %11 = arith.divf %9, %10 : vector<1x1x512xf32>
    %12 = vector.broadcast %4 : vector<1x1x512xf32> to vector<1x4x512xf32>
    %13 = arith.subf %0, %12 : vector<1x4x512xf32>
    %cst_5 = arith.constant 9.99999974E-6 : f32
    %14 = vector.broadcast %cst_5 : f32 to vector<1x1x512xf32>
    %15 = arith.addf %11, %14 : vector<1x1x512xf32>
    %16 = math.rsqrt %15 : vector<1x1x512xf32>
    %17 = vector.broadcast %16 : vector<1x1x512xf32> to vector<1x4x512xf32>
    %18 = arith.mulf %13, %17 : vector<1x4x512xf32>
    %cst_6 = arith.constant 0.000000e+00 : f32
    %19 = vector.broadcast %cst_6 : f32 to vector<1x4x512xf32>
    %20 = arith.cmpf oge, %18, %19 : vector<1x4x512xf32>
    %cst_7 = arith.constant 2.000000e-01 : f32
    %21 = vector.broadcast %cst_7 : f32 to vector<1x4x512xf32>
    %22 = arith.mulf %21, %18 : vector<1x4x512xf32>
    %23 = arith.select %20, %18, %22 : vector<1x4x512xi1>, vector<1x4x512xf32>
    %c0_8 = arith.constant 0 : index
    %c0_9 = arith.constant 0 : index
    %c0_10 = arith.constant 0 : index
    %24 = vector.load %arg2[%c0_8, %c0_9, %c0_10] : memref<1x4x512xf32, #tpu.memory_space<vmem>>, vector<1x4x512xf32>
    tpu.vector_store %arg2[%c0_8, %c0_9, %c0_10], %23 {strides = array<i32>} : memref<1x4x512xf32, #tpu.memory_space<vmem>>, vector<1x4x512xf32>,
    return
  }
  func.func @transform_0(%arg0: i32) -> (i32, i32, i32) {
    %c0_i32 = arith.constant 0 : i32
    %c0_i32_0 = arith.constant 0 : i32
    %c0_i32_1 = arith.constant 0 : i32
    return %arg0, %c0_i32, %c0_i32_0 : i32, i32, i32
  }
  func.func @transform_1(%arg0: i32) -> (i32, i32, i32) {
    %c0_i32 = arith.constant 0 : i32
    %c0_i32_0 = arith.constant 0 : i32
    %c0_i32_1 = arith.constant 0 : i32
    return %arg0, %c0_i32, %c0_i32_0 : i32, i32, i32
  }
}

module attributes {stable_mosaic.version = 11 : i64} {
  func.func @_matmul_bias_act_kernel(%arg0: i32, %arg1: i32, %arg2: i32, %arg3: memref<8x4608xbf16, #tpu.memory_space<vmem>>, %arg4: memref<4608x128xbf16, #tpu.memory_space<vmem>>, %arg5: memref<1x128xf32, #tpu.memory_space<vmem>>, %arg6: memref<8x128xf32, #tpu.memory_space<vmem>>, %arg7: memref<8x128xf32, #tpu.memory_space<vmem>>) attributes {dimension_semantics = [#tpu.dimension_semantics<parallel>, #tpu.dimension_semantics<parallel>, #tpu.dimension_semantics<arbitrary>], iteration_bounds = array<i64: 1, 1, 1>, scalar_prefetch = 0 : i64, scratch_operands = 1 : i64, tpu.core_type = #tpu.core_type<tc>, window_params = [{transform_indices = @transform_0, window_bounds = array<i64: 8, 4608>}, {transform_indices = @transform_1, window_bounds = array<i64: 4608, 128>}, {transform_indices = @transform_2, window_bounds = array<i64: 1, 128>}, {transform_indices = @transform_3, window_bounds = array<i64: 8, 128>}]} {
    %c0_i32 = arith.constant 0 : i32
    %0 = arith.cmpi eq, %arg2, %c0_i32 : i32
    %1 = arith.extui %0 : i1 to i32
    %c0_i32_0 = arith.constant 0 : i32
    %2 = arith.cmpi ne, %1, %c0_i32_0 : i32
    scf.if %2 {
      %cst_10 = arith.constant 0.000000e+00 : f32
      %12 = vector.broadcast %cst_10 : f32 to vector<8x128xf32>
      %c0_11 = arith.constant 0 : index
      %c0_12 = arith.constant 0 : index
      %13 = vector.load %arg7[%c0_11, %c0_12] : memref<8x128xf32, #tpu.memory_space<vmem>>, vector<8x128xf32>
      tpu.vector_store %arg7[%c0_11, %c0_12], %12 {strides = array<i32>} : memref<8x128xf32, #tpu.memory_space<vmem>>, vector<8x128xf32>,
    } else {
    }
    %c0 = arith.constant 0 : index
    %c0_1 = arith.constant 0 : index
    %3 = vector.load %arg7[%c0, %c0_1] : memref<8x128xf32, #tpu.memory_space<vmem>>, vector<8x128xf32>
    %c0_2 = arith.constant 0 : index
    %c0_3 = arith.constant 0 : index
    %4 = vector.load %arg3[%c0_2, %c0_3] : memref<8x4608xbf16, #tpu.memory_space<vmem>>, vector<8x4608xbf16>
    %c0_4 = arith.constant 0 : index
    %c0_5 = arith.constant 0 : index
    %5 = vector.load %arg4[%c0_4, %c0_5] : memref<4608x128xbf16, #tpu.memory_space<vmem>>, vector<4608x128xbf16>
    %cst = arith.constant dense<0.000000e+00> : vector<8x128xf32>
    %6 = tpu.matmul %4, %5, %cst {dimension_numbers = #tpu.dot_dimension_numbers<[1], [0], [0], [1], [0, 0, 1, 1], [], []>} : vector<8x4608xbf16>, vector<4608x128xbf16>, vector<8x128xf32> -> vector<8x128xf32>
    %7 = arith.addf %3, %6 : vector<8x128xf32>
    %c0_6 = arith.constant 0 : index
    %c0_7 = arith.constant 0 : index
    %8 = vector.load %arg7[%c0_6, %c0_7] : memref<8x128xf32, #tpu.memory_space<vmem>>, vector<8x128xf32>
    tpu.vector_store %arg7[%c0_6, %c0_7], %7 {strides = array<i32>} : memref<8x128xf32, #tpu.memory_space<vmem>>, vector<8x128xf32>,
    %c0_i32_8 = arith.constant 0 : i32
    %9 = arith.cmpi eq, %arg2, %c0_i32_8 : i32
    %10 = arith.extui %9 : i1 to i32
    %c0_i32_9 = arith.constant 0 : i32
    %11 = arith.cmpi ne, %10, %c0_i32_9 : i32
    scf.if %11 {
      %c0_10 = arith.constant 0 : index
      %c0_11 = arith.constant 0 : index
      %12 = vector.load %arg7[%c0_10, %c0_11] : memref<8x128xf32, #tpu.memory_space<vmem>>, vector<8x128xf32>
      %c0_12 = arith.constant 0 : index
      %c0_13 = arith.constant 0 : index
      %13 = vector.load %arg5[%c0_12, %c0_13] : memref<1x128xf32, #tpu.memory_space<vmem>>, vector<1x128xf32>
      %14 = vector.broadcast %13 : vector<1x128xf32> to vector<8x128xf32>
      %15 = arith.addf %12, %14 : vector<8x128xf32>
      %c0_14 = arith.constant 0 : index
      %c0_15 = arith.constant 0 : index
      %16 = vector.load %arg6[%c0_14, %c0_15] : memref<8x128xf32, #tpu.memory_space<vmem>>, vector<8x128xf32>
      tpu.vector_store %arg6[%c0_14, %c0_15], %15 {strides = array<i32>} : memref<8x128xf32, #tpu.memory_space<vmem>>, vector<8x128xf32>,
    } else {
    }
    return
  }
  func.func @transform_0(%arg0: i32, %arg1: i32, %arg2: i32) -> (i32, i32) {
    %c0_i32 = arith.constant 0 : i32
    return %arg0, %arg2 : i32, i32
  }
  func.func @transform_1(%arg0: i32, %arg1: i32, %arg2: i32) -> (i32, i32) {
    %c0_i32 = arith.constant 0 : i32
    return %arg2, %arg1 : i32, i32
  }
  func.func @transform_2(%arg0: i32, %arg1: i32, %arg2: i32) -> (i32, i32) {
    %c0_i32 = arith.constant 0 : i32
    %c0_i32_0 = arith.constant 0 : i32
    return %c0_i32, %arg1 : i32, i32
  }
  func.func @transform_3(%arg0: i32, %arg1: i32, %arg2: i32) -> (i32, i32) {
    %c0_i32 = arith.constant 0 : i32
    return %arg0, %arg1 : i32, i32
  }
}

</mosaic_0001>

<llo_original>
// kernel: discriminator_forward.8
$region0: #{discriminator_forward.8}
  #allocation0 [shape = 'u32[]', space=smem, size = 0x4, offset = 0x4, fixed_abs, tag = 'smem constant byte address 0x4 - core index']
  #allocation1 [shape = 'u32[144,128]{1,0:T(1,128)}', space=vmem, size = 0x12000, scoped, tag = 'internal scratch']
  #allocation2 [shape = 'f32[256,128]{1,0:T(8,128)}', space=vmem, size = 0x20000, scoped, tag = 'scratch operand']
  %s0 = inlined_call_operand.vmem [shape: bf16[512,128], index: 0, kind: input, shape index: {}]
  %s1 = inlined_call_operand.vmem [shape: bf16[128,128], index: 1, kind: input, shape index: {}]
  %s2 = inlined_call_operand.vmem [shape: f32[1,128], index: 2, kind: input, shape index: {}]
  %s3 = inlined_call_operand.vmem [shape: f32[512,128], index: 3, kind: output, shape index: {}]
  %s4 = sld [smem:[#allocation0]]
  $region53: #{discriminator_forward.8} parent=0
    _
  %s6 = ssub.s32 1, %s4
  %s7 = scalar_select 0, %s6, %s4
  loop: start=0, step=1, limit=4
  $region2: #{discriminator_forward.8} parent=0 // loop_pre_header
    _
  $region3: #{discriminator_forward.8} parent=0 // loop_header
    %s9 = sphi 0, %s13
    %p10 = scmp.ge.s32.totalorder %s9, 4
    %s16 = sphi 0, %s35
    %s17 = sphi 0, %s31
    %s18 = sphi 0, %s27
    %s19 = sphi 0, %s16
    %s20 = sphi 0, %s17
    %s21 = sphi 0, %s18
    %s22 = sphi 0, %s19
    %s23 = sphi 0, %s20
    %s24 = sphi 0, %s21
    %s40 = sphi 0, %s42
    %s43 = sphi 0, %s40
    %s44 = sphi 0, %s43
    %s60 = sphi 0, %s44
    %s68 = sphi 0, %s70
    %s71 = sphi 0, %s68
    %s72 = sphi 0, %s71
    %s88 = sphi 0, %s72
    %s94 = sphi 0, %s96
    %s97 = sphi 0, %s94
    %s98 = sphi 0, %s97
    %s114 = sphi 0, %s98
    %s122 = sphi 0, %s124
    %s125 = sphi 0, %s122
    %s126 = sphi 0, %s125
    %s142 = sphi 0, %s126
  $region4: #{discriminator_forward.8} parent=0 // loop_header_branch
    %12 = sbr.rel (%p10) target = $region8
  $region5: #{discriminator_forward.8} parent=0 // loop_body
    %s14 = ssub.s32 %s9, 1
    %s15 = ssub.s32 %s9, 2
    %s25 = sadd.s32 1, %s18
    %p26 = scmp.ge.s32.totalorder %s25, 1
    %s27 = scalar_select %p26, 0, %s25
    %s28 = sadd.s32 1, %s17
    %s29 = scalar_select %p26, %s28, %s17
    %p30 = scmp.ge.s32.totalorder %s29, 1
    %s31 = scalar_select %p30, 0, %s29
    %s32 = sadd.s32 1, %s16
    %s33 = scalar_select %p30, %s32, %s16
    %p34 = scmp.ge.s32.totalorder %s33, 2
    %s35 = scalar_select %p34, 0, %s33
    %s36 = ssub.s32 %s16, %s35
    %s37 = ssub.s32 %s18, %s27
    %s38 = sor.u32 %s36, %s37
    %p39 = scmp.eq.s32.totalorder %s38, 0
    %s41 = sadd.s32 %s40, 1
    %s42 = scalar_select %p39, %s40, %s41
    %p45 = pneg %p39
    %p46 = scmp.eq.s32.totalorder %s9, 1
    %p47 = por %p45, %p46
    %p48 = scmp.ne.s32.totalorder %s40, %s43
    %p49 = scmp.eq.s32.totalorder %s9, 0
    %p50 = por %p48, %p49
    %p51 = scmp.ne.s32.totalorder %s40, %s43
    %p52 = scmp.eq.s32.totalorder %s14, 1
    %p53 = por %p51, %p52
    %p54 = scmp.ne.s32.totalorder %s43, %s44
    %p55 = scmp.eq.s32.totalorder %s14, 0
    %p56 = por %p54, %p55
    %p57 = scmp.ne.s32.totalorder %s43, %s44
    %p58 = scmp.eq.s32.totalorder %s15, 1
    %p59 = por %p57, %p58
    %p61 = scmp.ne.s32.totalorder %s44, %s60
    %p62 = scmp.eq.s32.totalorder %s15, 0
    %p63 = por %p61, %p62
    %s64 = ssub.s32 %s18, %s27
    %s65 = ssub.s32 %s17, %s31
    %s66 = sor.u32 %s64, %s65
    %p67 = scmp.eq.s32.totalorder %s66, 0
    %s69 = sadd.s32 %s68, 1
    %s70 = scalar_select %p67, %s68, %s69
    %p73 = pneg %p67
    %p74 = scmp.eq.s32.totalorder %s9, 1
    %p75 = por %p73, %p74
    %p76 = scmp.ne.s32.totalorder %s68, %s71
    %p77 = scmp.eq.s32.totalorder %s9, 0
    %p78 = por %p76, %p77
    %p79 = scmp.ne.s32.totalorder %s68, %s71
    %p80 = scmp.eq.s32.totalorder %s14, 1
    %p81 = por %p79, %p80
    %p82 = scmp.ne.s32.totalorder %s71, %s72
    %p83 = scmp.eq.s32.totalorder %s14, 0
    %p84 = por %p82, %p83
    %p85 = scmp.ne.s32.totalorder %s71, %s72
    %p86 = scmp.eq.s32.totalorder %s15, 1
    %p87 = por %p85, %p86
    %p89 = scmp.ne.s32.totalorder %s72, %s88
    %p90 = scmp.eq.s32.totalorder %s15, 0
    %p91 = por %p89, %p90
    %s92 = ssub.s32 %s17, %s31
    %p93 = scmp.eq.s32.totalorder %s92, 0
    %s95 = sadd.s32 %s94, 1
    %s96 = scalar_select %p93, %s94, %s95
    %p99 = pneg %p93
    %p100 = scmp.eq.s32.totalorder %s9, 1
    %p101 = por %p99, %p100
    %p102 = scmp.ne.s32.totalorder %s94, %s97
    %p103 = scmp.eq.s32.totalorder %s9, 0
    %p104 = por %p102, %p103
    %p105 = scmp.ne.s32.totalorder %s94, %s97
    %p106 = scmp.eq.s32.totalorder %s14, 1
    %p107 = por %p105, %p106
    %p108 = scmp.ne.s32.totalorder %s97, %s98
    %p109 = scmp.eq.s32.totalorder %s14, 0
    %p110 = por %p108, %p109
    %p111 = scmp.ne.s32.totalorder %s97, %s98
    %p112 = scmp.eq.s32.totalorder %s15, 1
    %p113 = por %p111, %p112
    %p115 = scmp.ne.s32.totalorder %s98, %s114
    %p116 = scmp.eq.s32.totalorder %s15, 0
    %p117 = por %p115, %p116
    %s118 = ssub.s32 %s16, %s35
    %s119 = ssub.s32 %s17, %s31
    %s120 = sor.u32 %s118, %s119
    %p121 = scmp.eq.s32.totalorder %s120, 0
    %s123 = sadd.s32 %s122, 1
    %s124 = scalar_select %p121, %s122, %s123
    %p127 = pneg %p121
    %p128 = scmp.eq.s32.totalorder %s9, 1
    %p129 = por %p127, %p128
    %p130 = scmp.ne.s32.totalorder %s122, %s125
    %p131 = scmp.eq.s32.totalorder %s9, 0
    %p132 = por %p130, %p131
    %p133 = scmp.ne.s32.totalorder %s122, %s125
    %p134 = scmp.eq.s32.totalorder %s14, 1
    %p135 = por %p133, %p134
    %p136 = scmp.ne.s32.totalorder %s125, %s126
    %p137 = scmp.eq.s32.totalorder %s14, 0
    %p138 = por %p136, %p137
    %p139 = scmp.ne.s32.totalorder %s125, %s126
    %p140 = scmp.eq.s32.totalorder %s15, 1
    %p141 = por %p139, %p140
    %p143 = scmp.ne.s32.totalorder %s126, %s142
    %p144 = scmp.eq.s32.totalorder %s15, 0
    %p145 = por %p143, %p144
    %p146 = scmp.le.s32.totalorder 1, %s9
    %p147 = scmp.lt.s32.totalorder %s9, 3
    %p148 = pnand %p146, %p147
    %p149 = pneg %p148
    // Predicated region
    $region9: #{discriminator_forward.8} parent=5 // pred_check
      _
    $region10: #{discriminator_forward.8} parent=5 // pred_check_branch
      %151 = sbr.rel (%p148) target = $region12
    $region11: #{discriminator_forward.8} parent=5 // pred_region
      %s152 = ssub.s32 %s9, 1
      // Predicated region
      $region13: #{discriminator_forward.8} parent=11 // pred_check
        %p153 = pneg %p84
      $region14: #{discriminator_forward.8} parent=11 // pred_check_branch
        %155 = sbr.rel (%p153) target = $region16
      $region15: #{discriminator_forward.8} parent=11 // pred_region
        %s156 = smul.u32 16, %s21
        %p157 = scmp.lt.s32.totalorder %s156, 15
        %s158 = scalar_select %p157, %s156, 15
        %p159 = scmp.lt.s32.totalorder %s20, 0
        %s160 = scalar_select %p159, %s20, 0
        %s161 = sadd.s32 %s160, %s158
        %s162 = smul.addr %s161, 4
        %s163 = scalar_lea.vmem %s1, %s162
        %s164 = smul.u32 16, %s21
      $region16: #{discriminator_forward.8} parent=11 // pred_fallthru
        _
      // Predicated region
      $region17: #{discriminator_forward.8} parent=11 // pred_check
        %p165 = pneg %p110
      $region18: #{discriminator_forward.8} parent=11 // pred_check_branch
        %167 = sbr.rel (%p165) target = $region20
      $region19: #{discriminator_forward.8} parent=11 // pred_region
        %p168 = scmp.lt.s32.totalorder %s20, 0
        %s169 = scalar_select %p168, %s20, 0
        %s170 = scalar_lea.vmem %s2, %s169
      $region20: #{discriminator_forward.8} parent=11 // pred_fallthru
        _
    $region12: #{discriminator_forward.8} parent=5 // pred_fallthru
      _
    %p171 = scmp.lt.s32.totalorder %s9, 2
    // Predicated region
    $region21: #{discriminator_forward.8} parent=5 // pred_check
      %p172 = pneg %p171
    $region22: #{discriminator_forward.8} parent=5 // pred_check_branch
      %174 = sbr.rel (%p172) target = $region24
    $region23: #{discriminator_forward.8} parent=5 // pred_region
      // Predicated region
      $region25: #{discriminator_forward.8} parent=23 // pred_check
        %p175 = pneg %p50
      $region26: #{discriminator_forward.8} parent=23 // pred_check_branch
        %177 = sbr.rel (%p175) target = $region28
      $region27: #{discriminator_forward.8} parent=23 // pred_region
        %s178 = smul.u32 32, %s16
        %p179 = scmp.lt.s32.totalorder %s178, 63
        %s180 = scalar_select %p179, %s178, 63
        %p181 = scmp.lt.s32.totalorder %s18, 0
        %s182 = scalar_select %p181, %s18, 0
        %s183 = sadd.s32 %s182, %s180
        %s184 = smul.addr %s183, 4
        %s185 = scalar_lea.vmem %s0, %s184
        %s186 = smul.u32 32, %s16
      $region28: #{discriminator_forward.8} parent=23 // pred_fallthru
        _
    $region24: #{discriminator_forward.8} parent=5 // pred_fallthru
      _
    %p187 = scmp.le.s32.totalorder 1, %s9
    %p188 = scmp.lt.s32.totalorder %s9, 3
    %p189 = pnand %p187, %p188
    %p190 = pneg %p189
    // Predicated region
    $region29: #{discriminator_forward.8} parent=5 // pred_check
      _
    $region30: #{discriminator_forward.8} parent=5 // pred_check_branch
      %192 = sbr.rel (%p189) target = $region32
    $region31: #{discriminator_forward.8} parent=5 // pred_region
      %s193 = ssub.s32 %s9, 1
      %s194 = smul.u32 32, %s19
      %p195 = scmp.lt.s32.totalorder %s194, 63
      %s196 = scalar_select %p195, %s194, 63
      %p197 = scmp.lt.s32.totalorder %s21, 0
      %s198 = scalar_select %p197, %s21, 0
      %s199 = sadd.s32 %s198, %s196
      %s200 = smul.addr %s199, 4
      %s201 = scalar_lea.vmem %s0, %s200
      %p202 = pneg %p56
      %p203 = pneg %p53
      %s204 = smul.u32 16, %s21
      %p205 = scmp.lt.s32.totalorder %s204, 15
      %s206 = scalar_select %p205, %s204, 15
      %p207 = scmp.lt.s32.totalorder %s20, 0
      %s208 = scalar_select %p207, %s20, 0
      %s209 = sadd.s32 %s208, %s206
      %s210 = smul.addr %s209, 4
      %s211 = scalar_lea.vmem %s1, %s210
      %p212 = pneg %p84
      %p213 = pneg %p81
      %p214 = scmp.lt.s32.totalorder %s20, 0
      %s215 = scalar_select %p214, %s20, 0
      %s216 = scalar_lea.vmem %s2, %s215
      %p217 = pneg %p110
      %p218 = pneg %p107
      %p219 = pneg %p138
      %p220 = pneg %p135
      %s221 = smul.u32 32, %s19
      %p222 = scmp.lt.s32.totalorder %s221, 63
      %s223 = scalar_select %p222, %s221, 63
      %p224 = scmp.lt.s32.totalorder %s20, 0
      %s225 = scalar_select %p224, %s20, 0
      %s226 = sadd.s32 %s225, %s223
      %s227 = smul.addr %s226, 8
      %s228 = scalar_lea.vmem %s3, %s227
      %s229 = smul.u32 32, %s19
      %p230 = scmp.lt.s32.totalorder %s229, 63
      %s231 = scalar_select %p230, %s229, 63
      %p232 = scmp.lt.s32.totalorder %s21, 0
      %s233 = scalar_select %p232, %s21, 0
      %s234 = sadd.s32 %s233, %s231
      %s235 = smul.addr %s234, 4
      %s236 = scalar_lea.vmem %s0, %s235
      %s237 = smul.u32 32, %s19
      %s238 = smul.u32 16, %s21
      %p239 = scmp.lt.s32.totalorder %s238, 15
      %s240 = scalar_select %p239, %s238, 15
      %p241 = scmp.lt.s32.totalorder %s20, 0
      %s242 = scalar_select %p241, %s20, 0
      %s243 = sadd.s32 %s242, %s240
      %s244 = smul.addr %s243, 4
      %s245 = scalar_lea.vmem %s1, %s244
      %s246 = smul.u32 16, %s21
      %p247 = scmp.lt.s32.totalorder %s20, 0
      %s248 = scalar_select %p247, %s20, 0
      %s249 = scalar_lea.vmem %s2, %s248
      %s250 = smul.u32 32, %s19
      %p251 = scmp.lt.s32.totalorder %s250, 63
      %s252 = scalar_select %p251, %s250, 63
      %p253 = scmp.lt.s32.totalorder %s20, 0
      %s254 = scalar_select %p253, %s20, 0
      %s255 = sadd.s32 %s254, %s252
      %s256 = smul.addr %s255, 8
      %s257 = scalar_lea.vmem %s3, %s256
      %s258 = smul.u32 32, %s19
      %p260 = scmp.eq.s32.totalorder %s21, 0
      // Predicated region
      $region33: #{discriminator_forward.8} parent=31 // pred_check
        %p261 = pneg %p260
      $region34: #{discriminator_forward.8} parent=31 // pred_check_branch
        %263 = sbr.rel (%p261) target = $region36
      $region35: #{discriminator_forward.8} parent=31 // pred_region
        %264 = vst [vmem:[#allocation2] sm:$0xff] 0.0
        %265 = vst [vmem:[#allocation2 + $0x8] sm:$0xff] 0.0
        %266 = vst [vmem:[#allocation2 + $0x10] sm:$0xff] 0.0
        %267 = vst [vmem:[#allocation2 + $0x18] sm:$0xff] 0.0
        %268 = vst [vmem:[#allocation2 + $0x20] sm:$0xff] 0.0
        %269 = vst [vmem:[#allocation2 + $0x28] sm:$0xff] 0.0
        %270 = vst [vmem:[#allocation2 + $0x30] sm:$0xff] 0.0
        %271 = vst [vmem:[#allocation2 + $0x38] sm:$0xff] 0.0
        %272 = vst [vmem:[#allocation2 + $0x40] sm:$0xff] 0.0
        %273 = vst [vmem:[#allocation2 + $0x48] sm:$0xff] 0.0
        %274 = vst [vmem:[#allocation2 + $0x50] sm:$0xff] 0.0
        %275 = vst [vmem:[#allocation2 + $0x58] sm:$0xff] 0.0
        %276 = vst [vmem:[#allocation2 + $0x60] sm:$0xff] 0.0
        %277 = vst [vmem:[#allocation2 + $0x68] sm:$0xff] 0.0
        %278 = vst [vmem:[#allocation2 + $0x70] sm:$0xff] 0.0
        %279 = vst [vmem:[#allocation2 + $0x78] sm:$0xff] 0.0
        %280 = vst [vmem:[#allocation2 + $0x80] sm:$0xff] 0.0
        %281 = vst [vmem:[#allocation2 + $0x88] sm:$0xff] 0.0
        %282 = vst [vmem:[#allocation2 + $0x90] sm:$0xff] 0.0
        %283 = vst [vmem:[#allocation2 + $0x98] sm:$0xff] 0.0
        %284 = vst [vmem:[#allocation2 + $0xa0] sm:$0xff] 0.0
        %285 = vst [vmem:[#allocation2 + $0xa8] sm:$0xff] 0.0
        %286 = vst [vmem:[#allocation2 + $0xb0] sm:$0xff] 0.0
        %287 = vst [vmem:[#allocation2 + $0xb8] sm:$0xff] 0.0
        %288 = vst [vmem:[#allocation2 + $0xc0] sm:$0xff] 0.0
        %289 = vst [vmem:[#allocation2 + $0xc8] sm:$0xff] 0.0
        %290 = vst [vmem:[#allocation2 + $0xd0] sm:$0xff] 0.0
        %291 = vst [vmem:[#allocation2 + $0xd8] sm:$0xff] 0.0
        %292 = vst [vmem:[#allocation2 + $0xe0] sm:$0xff] 0.0
        %293 = vst [vmem:[#allocation2 + $0xe8] sm:$0xff] 0.0
        %294 = vst [vmem:[#allocation2 + $0xf0] sm:$0xff] 0.0
        %295 = vst [vmem:[#allocation2 + $0xf8] sm:$0xff] 0.0
      $region36: #{discriminator_forward.8} parent=31 // pred_fallthru
        _
      %v296 = vld [vmem:[#allocation2] sm:$0xff]
      %v297 = vld [vmem:[#allocation2 + $0x8] sm:$0xff]
      %v298 = vld [vmem:[#allocation2 + $0x10] sm:$0xff]
      %v299 = vld [vmem:[#allocation2 + $0x18] sm:$0xff]
      %v300 = vld [vmem:[#allocation2 + $0x20] sm:$0xff]
      %v301 = vld [vmem:[#allocation2 + $0x28] sm:$0xff]
      %v302 = vld [vmem:[#allocation2 + $0x30] sm:$0xff]
      %v303 = vld [vmem:[#allocation2 + $0x38] sm:$0xff]
      %v304 = vld [vmem:[#allocation2 + $0x40] sm:$0xff]
      %v305 = vld [vmem:[#allocation2 + $0x48] sm:$0xff]
      %v306 = vld [vmem:[#allocation2 + $0x50] sm:$0xff]
      %v307 = vld [vmem:[#allocation2 + $0x58] sm:$0xff]
      %v308 = vld [vmem:[#allocation2 + $0x60] sm:$0xff]
      %v309 = vld [vmem:[#allocation2 + $0x68] sm:$0xff]
      %v310 = vld [vmem:[#allocation2 + $0x70] sm:$0xff]
      %v311 = vld [vmem:[#allocation2 + $0x78] sm:$0xff]
      %v312 = vld [vmem:[#allocation2 + $0x80] sm:$0xff]
      %v313 = vld [vmem:[#allocation2 + $0x88] sm:$0xff]
      %v314 = vld [vmem:[#allocation2 + $0x90] sm:$0xff]
      %v315 = vld [vmem:[#allocation2 + $0x98] sm:$0xff]
      %v316 = vld [vmem:[#allocation2 + $0xa0] sm:$0xff]
      %v317 = vld [vmem:[#allocation2 + $0xa8] sm:$0xff]
      %v318 = vld [vmem:[#allocation2 + $0xb0] sm:$0xff]
      %v319 = vld [vmem:[#allocation2 + $0xb8] sm:$0xff]
      %v320 = vld [vmem:[#allocation2 + $0xc0] sm:$0xff]
      %v321 = vld [vmem:[#allocation2 + $0xc8] sm:$0xff]
      %v322 = vld [vmem:[#allocation2 + $0xd0] sm:$0xff]
      %v323 = vld [vmem:[#allocation2 + $0xd8] sm:$0xff]
      %v324 = vld [vmem:[#allocation2 + $0xe0] sm:$0xff]
      %v325 = vld [vmem:[#allocation2 + $0xe8] sm:$0xff]
      %v326 = vld [vmem:[#allocation2 + $0xf0] sm:$0xff]
      %v327 = vld [vmem:[#allocation2 + $0xf8] sm:$0xff]
      %v328 = vld [vmem:[%s236] sm:$0xf]
      %v329 = vld [vmem:[%s236 + $0x4] sm:$0xf]
      %v330 = vld [vmem:[%s236 + $0x8] sm:$0xf]
      %v331 = vld [vmem:[%s236 + $0xc] sm:$0xf]
      %v332 = vld [vmem:[%s236 + $0x10] sm:$0xf]
      %v333 = vld [vmem:[%s236 + $0x14] sm:$0xf]
      %v334 = vld [vmem:[%s236 + $0x18] sm:$0xf]
      %v335 = vld [vmem:[%s236 + $0x1c] sm:$0xf]
      %v336 = vld [vmem:[%s236 + $0x20] sm:$0xf]
      %v337 = vld [vmem:[%s236 + $0x24] sm:$0xf]
      %v338 = vld [vmem:[%s236 + $0x28] sm:$0xf]
      %v339 = vld [vmem:[%s236 + $0x2c] sm:$0xf]
      %v340 = vld [vmem:[%s236 + $0x30] sm:$0xf]
      %v341 = vld [vmem:[%s236 + $0x34] sm:$0xf]
      %v342 = vld [vmem:[%s236 + $0x38] sm:$0xf]
      %v343 = vld [vmem:[%s236 + $0x3c] sm:$0xf]
      %v344 = vld [vmem:[%s236 + $0x40] sm:$0xf]
      %v345 = vld [vmem:[%s236 + $0x44] sm:$0xf]
      %v346 = vld [vmem:[%s236 + $0x48] sm:$0xf]
      %v347 = vld [vmem:[%s236 + $0x4c] sm:$0xf]
      %v348 = vld [vmem:[%s236 + $0x50] sm:$0xf]
      %v349 = vld [vmem:[%s236 + $0x54] sm:$0xf]
      %v350 = vld [vmem:[%s236 + $0x58] sm:$0xf]
      %v351 = vld [vmem:[%s236 + $0x5c] sm:$0xf]
      %v352 = vld [vmem:[%s236 + $0x60] sm:$0xf]
      %v353 = vld [vmem:[%s236 + $0x64] sm:$0xf]
      %v354 = vld [vmem:[%s236 + $0x68] sm:$0xf]
      %v355 = vld [vmem:[%s236 + $0x6c] sm:$0xf]
      %v356 = vld [vmem:[%s236 + $0x70] sm:$0xf]
      %v357 = vld [vmem:[%s236 + $0x74] sm:$0xf]
      %v358 = vld [vmem:[%s236 + $0x78] sm:$0xf]
      %v359 = vld [vmem:[%s236 + $0x7c] sm:$0xf]
      %v360 = vld [vmem:[%s245] sm:$0xf]
      %v361 = vld [vmem:[%s245 + $0x4] sm:$0xf]
      %v362 = vld [vmem:[%s245 + $0x8] sm:$0xf]
      %v363 = vld [vmem:[%s245 + $0xc] sm:$0xf]
      %v364 = vld [vmem:[%s245 + $0x10] sm:$0xf]
      %v365 = vld [vmem:[%s245 + $0x14] sm:$0xf]
      %v366 = vld [vmem:[%s245 + $0x18] sm:$0xf]
      %v367 = vld [vmem:[%s245 + $0x1c] sm:$0xf]
      %v368 = vld [vmem:[%s245 + $0x20] sm:$0xf]
      %v369 = vld [vmem:[%s245 + $0x24] sm:$0xf]
      %v370 = vld [vmem:[%s245 + $0x28] sm:$0xf]
      %v371 = vld [vmem:[%s245 + $0x2c] sm:$0xf]
      %v372 = vld [vmem:[%s245 + $0x30] sm:$0xf]
      %v373 = vld [vmem:[%s245 + $0x34] sm:$0xf]
      %v374 = vld [vmem:[%s245 + $0x38] sm:$0xf]
      %v375 = vld [vmem:[%s245 + $0x3c] sm:$0xf]
      %v408 = vunpack.c.l.b16 %v328
      %v409 = vunpack.c.l.b16 %v329
      %v410 = vunpack.c.l.b16 %v330
      %v411 = vunpack.c.l.b16 %v331
      %v412 = vunpack.c.l.b16 %v332
      %v413 = vunpack.c.l.b16 %v333
      %v414 = vunpack.c.l.b16 %v334
      %v415 = vunpack.c.l.b16 %v335
      %v416 = vunpack.c.l.b16 %v336
      %v417 = vunpack.c.l.b16 %v337
      %v418 = vunpack.c.l.b16 %v338
      %v419 = vunpack.c.l.b16 %v339
      %v420 = vunpack.c.l.b16 %v340
      %v421 = vunpack.c.l.b16 %v341
      %v422 = vunpack.c.l.b16 %v342
      %v423 = vunpack.c.l.b16 %v343
      %v424 = vunpack.c.l.b16 %v344
      %v425 = vunpack.c.l.b16 %v345
      %v426 = vunpack.c.l.b16 %v346
      %v427 = vunpack.c.l.b16 %v347
      %v428 = vunpack.c.l.b16 %v348
      %v429 = vunpack.c.l.b16 %v349
      %v430 = vunpack.c.l.b16 %v350
      %v431 = vunpack.c.l.b16 %v351
      %v432 = vunpack.c.l.b16 %v352
      %v433 = vunpack.c.l.b16 %v353
      %v434 = vunpack.c.l.b16 %v354
      %v435 = vunpack.c.l.b16 %v355
      %v436 = vunpack.c.l.b16 %v356
      %v437 = vunpack.c.l.b16 %v357
      %v438 = vunpack.c.l.b16 %v358
      %v439 = vunpack.c.l.b16 %v359
      %v440 = vpack.c.b16 %v409, %v408
      %v441 = vpack.c.b16 %v411, %v410
      %v442 = vpack.c.b16 %v413, %v412
      %v443 = vpack.c.b16 %v415, %v414
      %v444 = vpack.c.b16 %v417, %v416
      %v445 = vpack.c.b16 %v419, %v418
      %v446 = vpack.c.b16 %v421, %v420
      %v447 = vpack.c.b16 %v423, %v422
      %v448 = vpack.c.b16 %v425, %v424
      %v449 = vpack.c.b16 %v427, %v426
      %v450 = vpack.c.b16 %v429, %v428
      %v451 = vpack.c.b16 %v431, %v430
      %v452 = vpack.c.b16 %v433, %v432
      %v453 = vpack.c.b16 %v435, %v434
      %v454 = vpack.c.b16 %v437, %v436
      %v455 = vpack.c.b16 %v439, %v438
      %v488 = vunpack.c.l.b16 %v360
      %v489 = vunpack.c.l.b16 %v361
      %v490 = vunpack.c.l.b16 %v362
      %v491 = vunpack.c.l.b16 %v363
      %v492 = vunpack.c.l.b16 %v364
      %v493 = vunpack.c.l.b16 %v365
      %v494 = vunpack.c.l.b16 %v366
      %v495 = vunpack.c.l.b16 %v367
      %v496 = vunpack.c.l.b16 %v368
      %v497 = vunpack.c.l.b16 %v369
      %v498 = vunpack.c.l.b16 %v370
      %v499 = vunpack.c.l.b16 %v371
      %v500 = vunpack.c.l.b16 %v372
      %v501 = vunpack.c.l.b16 %v373
      %v502 = vunpack.c.l.b16 %v374
      %v503 = vunpack.c.l.b16 %v375
      %v504 = vpack.c.b16 %v489, %v488
      %v505 = vpack.c.b16 %v491, %v490
      %v506 = vpack.c.b16 %v493, %v492
      %v507 = vpack.c.b16 %v495, %v494
      %v508 = vpack.c.b16 %v497, %v496
      %v509 = vpack.c.b16 %v499, %v498
      %v510 = vpack.c.b16 %v501, %v500
      %v511 = vpack.c.b16 %v503, %v502
      %520 = vmatprep.subr.bf16.mxu0 0
      %521 = vmatpush1.bf16.msra.mxu0 %v504
      %522 = vmatprep.subr.bf16.mxu0 0
      %523 = vmatpush1.bf16.msra.mxu0 %v505
      %524 = vmatprep.subr.bf16.mxu0 0
      %525 = vmatpush1.bf16.msra.mxu0 %v506
      %526 = vmatprep.subr.bf16.mxu0 0
      %527 = vmatpush1.bf16.msra.mxu0 %v507
      %528 = vmatprep.subr.bf16.mxu0 0
      %529 = vmatpush1.bf16.msra.mxu0 %v508
      %530 = vmatprep.subr.bf16.mxu0 0
      %531 = vmatpush1.bf16.msra.mxu0 %v509
      %532 = vmatprep.subr.bf16.mxu0 0
      %533 = vmatpush1.bf16.msra.mxu0 %v510
      %534 = vmatprep.subr.bf16.mxu0 0
      %535 = vmatpush1.bf16.msra.mxu0 %v511
      %536 = vmatprep.subr.bf16.mxu0 0
      %537 = vmatpush1.bf16.msra.mxu0 0
      %538 = vmatprep.subr.bf16.mxu0 0
      %539 = vmatpush1.bf16.msra.mxu0 0
      %540 = vmatprep.subr.bf16.mxu0 0
      %541 = vmatpush1.bf16.msra.mxu0 0
      %542 = vmatprep.subr.bf16.mxu0 0
      %543 = vmatpush1.bf16.msra.mxu0 0
      %544 = vmatprep.subr.bf16.mxu0 0
      %545 = vmatpush1.bf16.msra.mxu0 0
      %546 = vmatprep.subr.bf16.mxu0 0
      %547 = vmatpush1.bf16.msra.mxu0 0
      %548 = vmatprep.subr.bf16.mxu0 0
      %549 = vmatpush1.bf16.msra.mxu0 0
      %550 = vmatprep.subr.bf16.mxu0 0
      %551 = vmatpush1.bf16.msra.mxu0 0
      %552 = vmatprep.mubr.bf16.mxu0 0
      %553 = vmatmul.mubr.bf16.gmra.mrb[0].mxu0 %v440
      %v554 = vpop.f32.mrb[0].mxu0
      %v555 = vadd.f32 0.0, %v554
      %v556 = vpop.f32.mrb[0].mxu0
      %v557 = vpop.f32.mrb[0].mxu0
      %v558 = vadd.f32 0.0, %v557
      %v559 = vpop.f32.mrb[0].mxu0
      %560 = vmatprep.mubr.bf16.mxu0 0
      %561 = vmatmul.mubr.bf16.gmra.mrb[0].mxu0 %v441
      %v562 = vpop.f32.mrb[0].mxu0
      %v563 = vadd.f32 0.0, %v562
      %v564 = vpop.f32.mrb[0].mxu0
      %v565 = vpop.f32.mrb[0].mxu0
      %v566 = vadd.f32 0.0, %v565
      %v567 = vpop.f32.mrb[0].mxu0
      %568 = vmatprep.mubr.bf16.mxu0 0
      %569 = vmatmul.mubr.bf16.gmra.mrb[0].mxu0 %v442
      %v570 = vpop.f32.mrb[0].mxu0
      %v571 = vadd.f32 0.0, %v570
      %v572 = vpop.f32.mrb[0].mxu0
      %v573 = vpop.f32.mrb[0].mxu0
      %v574 = vadd.f32 0.0, %v573
      %v575 = vpop.f32.mrb[0].mxu0
      %576 = vmatprep.mubr.bf16.mxu0 0
      %577 = vmatmul.mubr.bf16.gmra.mrb[0].mxu0 %v443
      %v578 = vpop.f32.mrb[0].mxu0
      %v579 = vadd.f32 0.0, %v578
      %v580 = vpop.f32.mrb[0].mxu0
      %v581 = vpop.f32.mrb[0].mxu0
      %v582 = vadd.f32 0.0, %v581
      %v583 = vpop.f32.mrb[0].mxu0
      %584 = vmatprep.mubr.bf16.mxu0 0
      %585 = vmatmul.mubr.bf16.gmra.mrb[0].mxu0 %v444
      %v586 = vpop.f32.mrb[0].mxu0
      %v587 = vadd.f32 0.0, %v586
      %v588 = vpop.f32.mrb[0].mxu0
      %v589 = vpop.f32.mrb[0].mxu0
      %v590 = vadd.f32 0.0, %v589
      %v591 = vpop.f32.mrb[0].mxu0
      %592 = vmatprep.mubr.bf16.mxu0 0
      %593 = vmatmul.mubr.bf16.gmra.mrb[0].mxu0 %v445
      %v594 = vpop.f32.mrb[0].mxu0
      %v595 = vadd.f32 0.0, %v594
      %v596 = vpop.f32.mrb[0].mxu0
      %v597 = vpop.f32.mrb[0].mxu0
      %v598 = vadd.f32 0.0, %v597
      %v599 = vpop.f32.mrb[0].mxu0
      %600 = vmatprep.mubr.bf16.mxu0 0
      %601 = vmatmul.mubr.bf16.gmra.mrb[0].mxu0 %v446
      %v602 = vpop.f32.mrb[0].mxu0
      %v603 = vadd.f32 0.0, %v602
      %v604 = vpop.f32.mrb[0].mxu0
      %v605 = vpop.f32.mrb[0].mxu0
      %v606 = vadd.f32 0.0, %v605
      %v607 = vpop.f32.mrb[0].mxu0
      %608 = vmatprep.mubr.bf16.mxu0 0
      %609 = vmatmul.mubr.bf16.gmra.mrb[0].mxu0 %v447
      %v610 = vpop.f32.mrb[0].mxu0
      %v611 = vadd.f32 0.0, %v610
      %v612 = vpop.f32.mrb[0].mxu0
      %v613 = vpop.f32.mrb[0].mxu0
      %v614 = vadd.f32 0.0, %v613
      %v615 = vpop.f32.mrb[0].mxu0
      %616 = vmatprep.mubr.bf16.mxu0 0
      %617 = vmatmul.mubr.bf16.gmra.mrb[0].mxu0 %v448
      %v618 = vpop.f32.mrb[0].mxu0
      %v619 = vadd.f32 0.0, %v618
      %v620 = vpop.f32.mrb[0].mxu0
      %v621 = vpop.f32.mrb[0].mxu0
      %v622 = vadd.f32 0.0, %v621
      %v623 = vpop.f32.mrb[0].mxu0
      %624 = vmatprep.mubr.bf16.mxu0 0
      %625 = vmatmul.mubr.bf16.gmra.mrb[0].mxu0 %v449
      %v626 = vpop.f32.mrb[0].mxu0
      %v627 = vadd.f32 0.0, %v626
      %v628 = vpop.f32.mrb[0].mxu0
      %v629 = vpop.f32.mrb[0].mxu0
      %v630 = vadd.f32 0.0, %v629
      %v631 = vpop.f32.mrb[0].mxu0
      %632 = vmatprep.mubr.bf16.mxu0 0
      %633 = vmatmul.mubr.bf16.gmra.mrb[0].mxu0 %v450
      %v634 = vpop.f32.mrb[0].mxu0
      %v635 = vadd.f32 0.0, %v634
      %v636 = vpop.f32.mrb[0].mxu0
      %v637 = vpop.f32.mrb[0].mxu0
      %v638 = vadd.f32 0.0, %v637
      %v639 = vpop.f32.mrb[0].mxu0
      %640 = vmatprep.mubr.bf16.mxu0 0
      %641 = vmatmul.mubr.bf16.gmra.mrb[0].mxu0 %v451
      %v642 = vpop.f32.mrb[0].mxu0
      %v643 = vadd.f32 0.0, %v642
      %v644 = vpop.f32.mrb[0].mxu0
      %v645 = vpop.f32.mrb[0].mxu0
      %v646 = vadd.f32 0.0, %v645
      %v647 = vpop.f32.mrb[0].mxu0
      %648 = vmatprep.mubr.bf16.mxu0 0
      %649 = vmatmul.mubr.bf16.gmra.mrb[0].mxu0 %v452
      %v650 = vpop.f32.mrb[0].mxu0
      %v651 = vadd.f32 0.0, %v650
      %v652 = vpop.f32.mrb[0].mxu0
      %v653 = vpop.f32.mrb[0].mxu0
      %v654 = vadd.f32 0.0, %v653
      %v655 = vpop.f32.mrb[0].mxu0
      %656 = vmatprep.mubr.bf16.mxu0 0
      %657 = vmatmul.mubr.bf16.gmra.mrb[0].mxu0 %v453
      %v658 = vpop.f32.mrb[0].mxu0
      %v659 = vadd.f32 0.0, %v658
      %v660 = vpop.f32.mrb[0].mxu0
      %v661 = vpop.f32.mrb[0].mxu0
      %v662 = vadd.f32 0.0, %v661
      %v663 = vpop.f32.mrb[0].mxu0
      %664 = vmatprep.mubr.bf16.mxu0 0
      %665 = vmatmul.mubr.bf16.gmra.mrb[0].mxu0 %v454
      %v666 = vpop.f32.mrb[0].mxu0
      %v667 = vadd.f32 0.0, %v666
      %v668 = vpop.f32.mrb[0].mxu0
      %v669 = vpop.f32.mrb[0].mxu0
      %v670 = vadd.f32 0.0, %v669
      %v671 = vpop.f32.mrb[0].mxu0
      %672 = vmatprep.mubr.bf16.mxu0 0
      %673 = vmatmul.mubr.bf16.gmra.mrb[0].mxu0 %v455
      %v674 = vpop.f32.mrb[0].mxu0
      %v675 = vadd.f32 0.0, %v674
      %v676 = vpop.f32.mrb[0].mxu0
      %v677 = vpop.f32.mrb[0].mxu0
      %v678 = vadd.f32 0.0, %v677
      %v679 = vpop.f32.mrb[0].mxu0
      %680 = vdwg.mxu0
      %v681 = vadd.f32 %v296, %v555
      %v682 = vadd.f32 %v297, %v558
      %v683 = vadd.f32 %v298, %v563
      %v684 = vadd.f32 %v299, %v566
      %v685 = vadd.f32 %v300, %v571
      %v686 = vadd.f32 %v301, %v574
      %v687 = vadd.f32 %v302, %v579
      %v688 = vadd.f32 %v303, %v582
      %v689 = vadd.f32 %v304, %v587
      %v690 = vadd.f32 %v305, %v590
      %v691 = vadd.f32 %v306, %v595
      %v692 = vadd.f32 %v307, %v598
      %v693 = vadd.f32 %v308, %v603
      %v694 = vadd.f32 %v309, %v606
      %v695 = vadd.f32 %v310, %v611
      %v696 = vadd.f32 %v311, %v614
      %v697 = vadd.f32 %v312, %v619
      %v698 = vadd.f32 %v313, %v622
      %v699 = vadd.f32 %v314, %v627
      %v700 = vadd.f32 %v315, %v630
      %v701 = vadd.f32 %v316, %v635
      %v702 = vadd.f32 %v317, %v638
      %v703 = vadd.f32 %v318, %v643
      %v704 = vadd.f32 %v319, %v646
      %v705 = vadd.f32 %v320, %v651
      %v706 = vadd.f32 %v321, %v654
      %v707 = vadd.f32 %v322, %v659
      %v708 = vadd.f32 %v323, %v662
      %v709 = vadd.f32 %v324, %v667
      %v710 = vadd.f32 %v325, %v670
      %v711 = vadd.f32 %v326, %v675
      %v712 = vadd.f32 %v327, %v678
      %713 = vst [vmem:[#allocation2] sm:$0xff] %v681
      %714 = vst [vmem:[#allocation2 + $0x8] sm:$0xff] %v682
      %715 = vst [vmem:[#allocation2 + $0x10] sm:$0xff] %v683
      %716 = vst [vmem:[#allocation2 + $0x18] sm:$0xff] %v684
      %717 = vst [vmem:[#allocation2 + $0x20] sm:$0xff] %v685
      %718 = vst [vmem:[#allocation2 + $0x28] sm:$0xff] %v686
      %719 = vst [vmem:[#allocation2 + $0x30] sm:$0xff] %v687
      %720 = vst [vmem:[#allocation2 + $0x38] sm:$0xff] %v688
      %721 = vst [vmem:[#allocation2 + $0x40] sm:$0xff] %v689
      %722 = vst [vmem:[#allocation2 + $0x48] sm:$0xff] %v690
      %723 = vst [vmem:[#allocation2 + $0x50] sm:$0xff] %v691
      %724 = vst [vmem:[#allocation2 + $0x58] sm:$0xff] %v692
      %725 = vst [vmem:[#allocation2 + $0x60] sm:$0xff] %v693
      %726 = vst [vmem:[#allocation2 + $0x68] sm:$0xff] %v694
      %727 = vst [vmem:[#allocation2 + $0x70] sm:$0xff] %v695
      %728 = vst [vmem:[#allocation2 + $0x78] sm:$0xff] %v696
      %729 = vst [vmem:[#allocation2 + $0x80] sm:$0xff] %v697
      %730 = vst [vmem:[#allocation2 + $0x88] sm:$0xff] %v698
      %731 = vst [vmem:[#allocation2 + $0x90] sm:$0xff] %v699
      %732 = vst [vmem:[#allocation2 + $0x98] sm:$0xff] %v700
      %733 = vst [vmem:[#allocation2 + $0xa0] sm:$0xff] %v701
      %734 = vst [vmem:[#allocation2 + $0xa8] sm:$0xff] %v702
      %735 = vst [vmem:[#allocation2 + $0xb0] sm:$0xff] %v703
      %736 = vst [vmem:[#allocation2 + $0xb8] sm:$0xff] %v704
      %737 = vst [vmem:[#allocation2 + $0xc0] sm:$0xff] %v705
      %738 = vst [vmem:[#allocation2 + $0xc8] sm:$0xff] %v706
      %739 = vst [vmem:[#allocation2 + $0xd0] sm:$0xff] %v707
      %740 = vst [vmem:[#allocation2 + $0xd8] sm:$0xff] %v708
      %741 = vst [vmem:[#allocation2 + $0xe0] sm:$0xff] %v709
      %742 = vst [vmem:[#allocation2 + $0xe8] sm:$0xff] %v710
      %743 = vst [vmem:[#allocation2 + $0xf0] sm:$0xff] %v711
      %744 = vst [vmem:[#allocation2 + $0xf8] sm:$0xff] %v712
      // Predicated region
      $region37: #{discriminator_forward.8} parent=31 // pred_check
        %p745 = pneg %p260
      $region38: #{discriminator_forward.8} parent=31 // pred_check_branch
        %747 = sbr.rel (%p745) target = $region40
      $region39: #{discriminator_forward.8} parent=31 // pred_region
        %v748 = vld [vmem:[#allocation2] sm:$0xff]
        %v749 = vld [vmem:[#allocation2 + $0x8] sm:$0xff]
        %v750 = vld [vmem:[#allocation2 + $0x10] sm:$0xff]
        %v751 = vld [vmem:[#allocation2 + $0x18] sm:$0xff]
        %v752 = vld [vmem:[#allocation2 + $0x20] sm:$0xff]
        %v753 = vld [vmem:[#allocation2 + $0x28] sm:$0xff]
        %v754 = vld [vmem:[#allocation2 + $0x30] sm:$0xff]
        %v755 = vld [vmem:[#allocation2 + $0x38] sm:$0xff]
        %v756 = vld [vmem:[#allocation2 + $0x40] sm:$0xff]
        %v757 = vld [vmem:[#allocation2 + $0x48] sm:$0xff]
        %v758 = vld [vmem:[#allocation2 + $0x50] sm:$0xff]
        %v759 = vld [vmem:[#allocation2 + $0x58] sm:$0xff]
        %v760 = vld [vmem:[#allocation2 + $0x60] sm:$0xff]
        %v761 = vld [vmem:[#allocation2 + $0x68] sm:$0xff]
        %v762 = vld [vmem:[#allocation2 + $0x70] sm:$0xff]
        %v763 = vld [vmem:[#allocation2 + $0x78] sm:$0xff]
        %v764 = vld [vmem:[#allocation2 + $0x80] sm:$0xff]
        %v765 = vld [vmem:[#allocation2 + $0x88] sm:$0xff]
        %v766 = vld [vmem:[#allocation2 + $0x90] sm:$0xff]
        %v767 = vld [vmem:[#allocation2 + $0x98] sm:$0xff]
        %v768 = vld [vmem:[#allocation2 + $0xa0] sm:$0xff]
        %v769 = vld [vmem:[#allocation2 + $0xa8] sm:$0xff]
        %v770 = vld [vmem:[#allocation2 + $0xb0] sm:$0xff]
        %v771 = vld [vmem:[#allocation2 + $0xb8] sm:$0xff]
        %v772 = vld [vmem:[#allocation2 + $0xc0] sm:$0xff]
        %v773 = vld [vmem:[#allocation2 + $0xc8] sm:$0xff]
        %v774 = vld [vmem:[#allocation2 + $0xd0] sm:$0xff]
        %v775 = vld [vmem:[#allocation2 + $0xd8] sm:$0xff]
        %v776 = vld [vmem:[#allocation2 + $0xe0] sm:$0xff]
        %v777 = vld [vmem:[#allocation2 + $0xe8] sm:$0xff]
        %v778 = vld [vmem:[#allocation2 + $0xf0] sm:$0xff]
        %v779 = vld [vmem:[#allocation2 + $0xf8] sm:$0xff]
        %v780 = vld [vmem:[%s249] sm:$0x1]
        %v782 = vlaneseq
        %v783 = vshrl.u32 %v782, 7
        %v784 = vsub.s32 0, %v783
        %v785 = vrot.slane %v780, %v784
        %v787 = vadd.f32 %v748, %v785
        %v788 = vadd.f32 %v749, %v785
        %v789 = vadd.f32 %v750, %v785
        %v790 = vadd.f32 %v751, %v785
        %v791 = vadd.f32 %v752, %v785
        %v792 = vadd.f32 %v753, %v785
        %v793 = vadd.f32 %v754, %v785
        %v794 = vadd.f32 %v755, %v785
        %v795 = vadd.f32 %v756, %v785
        %v796 = vadd.f32 %v757, %v785
        %v797 = vadd.f32 %v758, %v785
        %v798 = vadd.f32 %v759, %v785
        %v799 = vadd.f32 %v760, %v785
        %v800 = vadd.f32 %v761, %v785
        %v801 = vadd.f32 %v762, %v785
        %v802 = vadd.f32 %v763, %v785
        %v803 = vadd.f32 %v764, %v785
        %v804 = vadd.f32 %v765, %v785
        %v805 = vadd.f32 %v766, %v785
        %v806 = vadd.f32 %v767, %v785
        %v807 = vadd.f32 %v768, %v785
        %v808 = vadd.f32 %v769, %v785
        %v809 = vadd.f32 %v770, %v785
        %v810 = vadd.f32 %v771, %v785
        %v811 = vadd.f32 %v772, %v785
        %v812 = vadd.f32 %v773, %v785
        %v813 = vadd.f32 %v774, %v785
        %v814 = vadd.f32 %v775, %v785
        %v815 = vadd.f32 %v776, %v785
        %v816 = vadd.f32 %v777, %v785
        %v817 = vadd.f32 %v778, %v785
        %v818 = vadd.f32 %v779, %v785
        %vm819 = vcmp.ge.f32.partialorder %v787, 0.0
        %vm820 = vcmp.ge.f32.partialorder %v788, 0.0
        %vm821 = vcmp.ge.f32.partialorder %v789, 0.0
        %vm822 = vcmp.ge.f32.partialorder %v790, 0.0
        %vm823 = vcmp.ge.f32.partialorder %v791, 0.0
        %vm824 = vcmp.ge.f32.partialorder %v792, 0.0
        %vm825 = vcmp.ge.f32.partialorder %v793, 0.0
        %vm826 = vcmp.ge.f32.partialorder %v794, 0.0
        %vm827 = vcmp.ge.f32.partialorder %v795, 0.0
        %vm828 = vcmp.ge.f32.partialorder %v796, 0.0
        %vm829 = vcmp.ge.f32.partialorder %v797, 0.0
        %vm830 = vcmp.ge.f32.partialorder %v798, 0.0
        %vm831 = vcmp.ge.f32.partialorder %v799, 0.0
        %vm832 = vcmp.ge.f32.partialorder %v800, 0.0
        %vm833 = vcmp.ge.f32.partialorder %v801, 0.0
        %vm834 = vcmp.ge.f32.partialorder %v802, 0.0
        %vm835 = vcmp.ge.f32.partialorder %v803, 0.0
        %vm836 = vcmp.ge.f32.partialorder %v804, 0.0
        %vm837 = vcmp.ge.f32.partialorder %v805, 0.0
        %vm838 = vcmp.ge.f32.partialorder %v806, 0.0
        %vm839 = vcmp.ge.f32.partialorder %v807, 0.0
        %vm840 = vcmp.ge.f32.partialorder %v808, 0.0
        %vm841 = vcmp.ge.f32.partialorder %v809, 0.0
        %vm842 = vcmp.ge.f32.partialorder %v810, 0.0
        %vm843 = vcmp.ge.f32.partialorder %v811, 0.0
        %vm844 = vcmp.ge.f32.partialorder %v812, 0.0
        %vm845 = vcmp.ge.f32.partialorder %v813, 0.0
        %vm846 = vcmp.ge.f32.partialorder %v814, 0.0
        %vm847 = vcmp.ge.f32.partialorder %v815, 0.0
        %vm848 = vcmp.ge.f32.partialorder %v816, 0.0
        %vm849 = vcmp.ge.f32.partialorder %v817, 0.0
        %vm850 = vcmp.ge.f32.partialorder %v818, 0.0
        %v851 = vmul.f32 %v787, 0.2
        %v852 = vmul.f32 %v788, 0.2
        %v853 = vmul.f32 %v789, 0.2
        %v854 = vmul.f32 %v790, 0.2
        %v855 = vmul.f32 %v791, 0.2
        %v856 = vmul.f32 %v792, 0.2
        %v857 = vmul.f32 %v793, 0.2
        %v858 = vmul.f32 %v794, 0.2
        %v859 = vmul.f32 %v795, 0.2
        %v860 = vmul.f32 %v796, 0.2
        %v861 = vmul.f32 %v797, 0.2
        %v862 = vmul.f32 %v798, 0.2
        %v863 = vmul.f32 %v799, 0.2
        %v864 = vmul.f32 %v800, 0.2
        %v865 = vmul.f32 %v801, 0.2
        %v866 = vmul.f32 %v802, 0.2
        %v867 = vmul.f32 %v803, 0.2
        %v868 = vmul.f32 %v804, 0.2
        %v869 = vmul.f32 %v805, 0.2
        %v870 = vmul.f32 %v806, 0.2
        %v871 = vmul.f32 %v807, 0.2
        %v872 = vmul.f32 %v808, 0.2
        %v873 = vmul.f32 %v809, 0.2
        %v874 = vmul.f32 %v810, 0.2
        %v875 = vmul.f32 %v811, 0.2
        %v876 = vmul.f32 %v812, 0.2
        %v877 = vmul.f32 %v813, 0.2
        %v878 = vmul.f32 %v814, 0.2
        %v879 = vmul.f32 %v815, 0.2
        %v880 = vmul.f32 %v816, 0.2
        %v881 = vmul.f32 %v817, 0.2
        %v882 = vmul.f32 %v818, 0.2
        %v883 = vsel %vm819, %v787, %v851
        %v884 = vsel %vm820, %v788, %v852
        %v885 = vsel %vm821, %v789, %v853
        %v886 = vsel %vm822, %v790, %v854
        %v887 = vsel %vm823, %v791, %v855
        %v888 = vsel %vm824, %v792, %v856
        %v889 = vsel %vm825, %v793, %v857
        %v890 = vsel %vm826, %v794, %v858
        %v891 = vsel %vm827, %v795, %v859
        %v892 = vsel %vm828, %v796, %v860
        %v893 = vsel %vm829, %v797, %v861
        %v894 = vsel %vm830, %v798, %v862
        %v895 = vsel %vm831, %v799, %v863
        %v896 = vsel %vm832, %v800, %v864
        %v897 = vsel %vm833, %v801, %v865
        %v898 = vsel %vm834, %v802, %v866
        %v899 = vsel %vm835, %v803, %v867
        %v900 = vsel %vm836, %v804, %v868
        %v901 = vsel %vm837, %v805, %v869
        %v902 = vsel %vm838, %v806, %v870
        %v903 = vsel %vm839, %v807, %v871
        %v904 = vsel %vm840, %v808, %v872
        %v905 = vsel %vm841, %v809, %v873
        %v906 = vsel %vm842, %v810, %v874
        %v907 = vsel %vm843, %v811, %v875
        %v908 = vsel %vm844, %v812, %v876
        %v909 = vsel %vm845, %v813, %v877
        %v910 = vsel %vm846, %v814, %v878
        %v911 = vsel %vm847, %v815, %v879
        %v912 = vsel %vm848, %v816, %v880
        %v913 = vsel %vm849, %v817, %v881
        %v914 = vsel %vm850, %v818, %v882
        %915 = vst [vmem:[%s257] sm:$0xff] %v883
        %916 = vst [vmem:[%s257 + $0x8] sm:$0xff] %v884
        %917 = vst [vmem:[%s257 + $0x10] sm:$0xff] %v885
        %918 = vst [vmem:[%s257 + $0x18] sm:$0xff] %v886
        %919 = vst [vmem:[%s257 + $0x20] sm:$0xff] %v887
        %920 = vst [vmem:[%s257 + $0x28] sm:$0xff] %v888
        %921 = vst [vmem:[%s257 + $0x30] sm:$0xff] %v889
        %922 = vst [vmem:[%s257 + $0x38] sm:$0xff] %v890
        %923 = vst [vmem:[%s257 + $0x40] sm:$0xff] %v891
        %924 = vst [vmem:[%s257 + $0x48] sm:$0xff] %v892
        %925 = vst [vmem:[%s257 + $0x50] sm:$0xff] %v893
        %926 = vst [vmem:[%s257 + $0x58] sm:$0xff] %v894
        %927 = vst [vmem:[%s257 + $0x60] sm:$0xff] %v895
        %928 = vst [vmem:[%s257 + $0x68] sm:$0xff] %v896
        %929 = vst [vmem:[%s257 + $0x70] sm:$0xff] %v897
        %930 = vst [vmem:[%s257 + $0x78] sm:$0xff] %v898
        %931 = vst [vmem:[%s257 + $0x80] sm:$0xff] %v899
        %932 = vst [vmem:[%s257 + $0x88] sm:$0xff] %v900
        %933 = vst [vmem:[%s257 + $0x90] sm:$0xff] %v901
        %934 = vst [vmem:[%s257 + $0x98] sm:$0xff] %v902
        %935 = vst [vmem:[%s257 + $0xa0] sm:$0xff] %v903
        %936 = vst [vmem:[%s257 + $0xa8] sm:$0xff] %v904
        %937 = vst [vmem:[%s257 + $0xb0] sm:$0xff] %v905
        %938 = vst [vmem:[%s257 + $0xb8] sm:$0xff] %v906
        %939 = vst [vmem:[%s257 + $0xc0] sm:$0xff] %v907
        %940 = vst [vmem:[%s257 + $0xc8] sm:$0xff] %v908
        %941 = vst [vmem:[%s257 + $0xd0] sm:$0xff] %v909
        %942 = vst [vmem:[%s257 + $0xd8] sm:$0xff] %v910
        %943 = vst [vmem:[%s257 + $0xe0] sm:$0xff] %v911
        %944 = vst [vmem:[%s257 + $0xe8] sm:$0xff] %v912
        %945 = vst [vmem:[%s257 + $0xf0] sm:$0xff] %v913
        %946 = vst [vmem:[%s257 + $0xf8] sm:$0xff] %v914
      $region40: #{discriminator_forward.8} parent=31 // pred_fallthru
        _
      %s947 = smul.u32 32, %s19
      %p948 = scmp.lt.s32.totalorder %s947, 63
      %s949 = scalar_select %p948, %s947, 63
      %p950 = scmp.lt.s32.totalorder %s20, 0
      %s951 = scalar_select %p950, %s20, 0
      %s952 = sadd.s32 %s951, %s949
      %s953 = smul.addr %s952, 8
      %s954 = scalar_lea.vmem %s3, %s953
      // Predicated region
      $region41: #{discriminator_forward.8} parent=31 // pred_check
        %p955 = pneg %p135
      $region42: #{discriminator_forward.8} parent=31 // pred_check_branch
        %957 = sbr.rel (%p955) target = $region44
      $region43: #{discriminator_forward.8} parent=31 // pred_region
        %s958 = smul.u32 32, %s19
      $region44: #{discriminator_forward.8} parent=31 // pred_fallthru
        _
    $region32: #{discriminator_forward.8} parent=5 // pred_fallthru
      _
    %p959 = scmp.le.s32.totalorder 2, %s9
    // Predicated region
    $region45: #{discriminator_forward.8} parent=5 // pred_check
      %p960 = pneg %p959
    $region46: #{discriminator_forward.8} parent=5 // pred_check_branch
      %962 = sbr.rel (%p960) target = $region48
    $region47: #{discriminator_forward.8} parent=5 // pred_region
      %s963 = ssub.s32 %s9, 2
      // Predicated region
      $region49: #{discriminator_forward.8} parent=47 // pred_check
        %p964 = pneg %p141
      $region50: #{discriminator_forward.8} parent=47 // pred_check_branch
        %966 = sbr.rel (%p964) target = $region52
      $region51: #{discriminator_forward.8} parent=47 // pred_region
        %s967 = smul.u32 32, %s22
        %p968 = scmp.lt.s32.totalorder %s967, 63
        %s969 = scalar_select %p968, %s967, 63
        %p970 = scmp.lt.s32.totalorder %s23, 0
        %s971 = scalar_select %p970, %s23, 0
        %s972 = sadd.s32 %s971, %s969
        %s973 = smul.addr %s972, 8
        %s974 = scalar_lea.vmem %s3, %s973
      $region52: #{discriminator_forward.8} parent=47 // pred_fallthru
        _
    $region48: #{discriminator_forward.8} parent=5 // pred_fallthru
      _
  $region6: #{discriminator_forward.8} parent=0 // loop_footer
    %s13 = sadd.s32 1, %s9
  $region7: #{discriminator_forward.8} parent=0 // loop_footer_branch
    %8 = sbr.rel target = $region3
  $region8: #{discriminator_forward.8} parent=0 // loop_exit
    _

// kernel: discriminator_forward.10
$region0: #{discriminator_forward.10}
  #allocation0 [shape = 'u32[]', space=smem, size = 0x4, offset = 0x4, fixed_abs, tag = 'smem constant byte address 0x4 - core index']
  #allocation1 [shape = 'u32[144,128]{1,0:T(1,128)}', space=vmem, size = 0x12000, scoped, tag = 'internal scratch']
  %s0 = inlined_call_operand.vmem [shape: f32[2,64,128], index: 0, kind: input, shape index: {}]
  %s1 = inlined_call_operand.vmem [shape: f32[2,64,128], index: 1, kind: output, shape index: {}]
  %s2 = sld [smem:[#allocation0]]
  $region37: #{discriminator_forward.10} parent=0
    _
  %s4 = ssub.s32 1, %s2
  %s5 = scalar_select 0, %s4, %s2
  loop: start=0, step=1, limit=4
  $region2: #{discriminator_forward.10} parent=0 // loop_pre_header
    _
  $region3: #{discriminator_forward.10} parent=0 // loop_header
    %s7 = sphi 0, %s11
    %p8 = scmp.ge.s32.totalorder %s7, 4
    %s17 = sphi 0, %s19
    %s20 = sphi 0, %s17
    %s21 = sphi 0, %s20
    %s37 = sphi 0, %s21
    %s43 = sphi 0, %s45
    %s46 = sphi 0, %s43
    %s47 = sphi 0, %s46
    %s63 = sphi 0, %s47
  $region4: #{discriminator_forward.10} parent=0 // loop_header_branch
    %10 = sbr.rel (%p8) target = $region8
  $region5: #{discriminator_forward.10} parent=0 // loop_body
    %s12 = ssub.s32 %s7, 1
    %s13 = ssub.s32 %s7, 2
    %s14 = sadd.s32 %s7, 1
    %s15 = ssub.s32 %s7, %s14
    %p16 = scmp.eq.s32.totalorder %s15, 0
    %s18 = sadd.s32 %s17, 1
    %s19 = scalar_select %p16, %s17, %s18
    %p22 = pneg %p16
    %p23 = scmp.eq.s32.totalorder %s7, 1
    %p24 = por %p22, %p23
    %p25 = scmp.ne.s32.totalorder %s17, %s20
    %p26 = scmp.eq.s32.totalorder %s7, 0
    %p27 = por %p25, %p26
    %p28 = scmp.ne.s32.totalorder %s17, %s20
    %p29 = scmp.eq.s32.totalorder %s12, 1
    %p30 = por %p28, %p29
    %p31 = scmp.ne.s32.totalorder %s20, %s21
    %p32 = scmp.eq.s32.totalorder %s12, 0
    %p33 = por %p31, %p32
    %p34 = scmp.ne.s32.totalorder %s20, %s21
    %p35 = scmp.eq.s32.totalorder %s13, 1
    %p36 = por %p34, %p35
    %p38 = scmp.ne.s32.totalorder %s21, %s37
    %p39 = scmp.eq.s32.totalorder %s13, 0
    %p40 = por %p38, %p39
    %s41 = ssub.s32 %s7, %s14
    %p42 = scmp.eq.s32.totalorder %s41, 0
    %s44 = sadd.s32 %s43, 1
    %s45 = scalar_select %p42, %s43, %s44
    %p48 = pneg %p42
    %p49 = scmp.eq.s32.totalorder %s7, 1
    %p50 = por %p48, %p49
    %p51 = scmp.ne.s32.totalorder %s43, %s46
    %p52 = scmp.eq.s32.totalorder %s7, 0
    %p53 = por %p51, %p52
    %p54 = scmp.ne.s32.totalorder %s43, %s46
    %p55 = scmp.eq.s32.totalorder %s12, 1
    %p56 = por %p54, %p55
    %p57 = scmp.ne.s32.totalorder %s46, %s47
    %p58 = scmp.eq.s32.totalorder %s12, 0
    %p59 = por %p57, %p58
    %p60 = scmp.ne.s32.totalorder %s46, %s47
    %p61 = scmp.eq.s32.totalorder %s13, 1
    %p62 = por %p60, %p61
    %p64 = scmp.ne.s32.totalorder %s47, %s63
    %p65 = scmp.eq.s32.totalorder %s13, 0
    %p66 = por %p64, %p65
    %p67 = scmp.le.s32.totalorder 1, %s7
    %p68 = scmp.lt.s32.totalorder %s7, 3
    %p69 = pnand %p67, %p68
    %p70 = pneg %p69
    // Predicated region
    $region9: #{discriminator_forward.10} parent=5 // pred_check
      _
    $region10: #{discriminator_forward.10} parent=5 // pred_check_branch
      %72 = sbr.rel (%p69) target = $region12
    $region11: #{discriminator_forward.10} parent=5 // pred_region
      %s73 = ssub.s32 %s7, 1
    $region12: #{discriminator_forward.10} parent=5 // pred_fallthru
      _
    %p74 = scmp.lt.s32.totalorder %s7, 2
    // Predicated region
    $region13: #{discriminator_forward.10} parent=5 // pred_check
      %p75 = pneg %p74
    $region14: #{discriminator_forward.10} parent=5 // pred_check_branch
      %77 = sbr.rel (%p75) target = $region16
    $region15: #{discriminator_forward.10} parent=5 // pred_region
      // Predicated region
      $region17: #{discriminator_forward.10} parent=15 // pred_check
        %p78 = pneg %p27
      $region18: #{discriminator_forward.10} parent=15 // pred_check_branch
        %80 = sbr.rel (%p78) target = $region20
      $region19: #{discriminator_forward.10} parent=15 // pred_region
        %p81 = scmp.lt.s32.totalorder %s7, 1
        %s82 = scalar_select %p81, %s7, 1
        %s83 = smul.addr %s82, 8
        %s84 = smul.addr %s83, 8
        %s85 = scalar_lea.vmem %s0, %s84
      $region20: #{discriminator_forward.10} parent=15 // pred_fallthru
        _
    $region16: #{discriminator_forward.10} parent=5 // pred_fallthru
      _
    %p86 = scmp.le.s32.totalorder 1, %s7
    %p87 = scmp.lt.s32.totalorder %s7, 3
    %p88 = pnand %p86, %p87
    %p89 = pneg %p88
    // Predicated region
    $region21: #{discriminator_forward.10} parent=5 // pred_check
      _
    $region22: #{discriminator_forward.10} parent=5 // pred_check_branch
      %91 = sbr.rel (%p88) target = $region24
    $region23: #{discriminator_forward.10} parent=5 // pred_region
      %s92 = ssub.s32 %s7, 1
      %p93 = scmp.lt.s32.totalorder %s12, 1
      %s94 = scalar_select %p93, %s12, 1
      %s95 = smul.addr %s94, 8
      %s96 = smul.addr %s95, 8
      %s97 = scalar_lea.vmem %s0, %s96
      %p98 = pneg %p33
      %p99 = pneg %p30
      %p100 = pneg %p59
      %p101 = pneg %p56
      %p102 = scmp.lt.s32.totalorder %s12, 1
      %s103 = scalar_select %p102, %s12, 1
      %s104 = smul.addr %s103, 8
      %s105 = smul.addr %s104, 8
      %s106 = scalar_lea.vmem %s1, %s105
      %p107 = scmp.lt.s32.totalorder %s12, 1
      %s108 = scalar_select %p107, %s12, 1
      %s109 = smul.addr %s108, 8
      %s110 = smul.addr %s109, 8
      %s111 = scalar_lea.vmem %s0, %s110
      %p112 = scmp.lt.s32.totalorder %s12, 1
      %s113 = scalar_select %p112, %s12, 1
      %s114 = smul.addr %s113, 8
      %s115 = smul.addr %s114, 8
      %s116 = scalar_lea.vmem %s1, %s115
      %v117 = vld [vmem:[%s111] sm:$0xff]
      %v118 = vld [vmem:[%s111 + $0x8] sm:$0xff]
      %v119 = vld [vmem:[%s111 + $0x10] sm:$0xff]
      %v120 = vld [vmem:[%s111 + $0x18] sm:$0xff]
      %v121 = vld [vmem:[%s111 + $0x20] sm:$0xff]
      %v122 = vld [vmem:[%s111 + $0x28] sm:$0xff]
      %v123 = vld [vmem:[%s111 + $0x30] sm:$0xff]
      %v124 = vld [vmem:[%s111 + $0x38] sm:$0xff]
      %v125 = vadd.f32 %v117, %v118
      %v126 = vadd.f32 %v125, %v119
      %v127 = vadd.f32 %v126, %v120
      %v128 = vadd.f32 %v127, %v121
      %v129 = vadd.f32 %v128, %v122
      %v130 = vadd.f32 %v129, %v123
      %v131 = vadd.f32 %v130, %v124
      %v132 = vrot.slane %v131, 4
      %v133 = vadd.f32 %v131, %v132
      %v134 = vrot.slane %v133, 2
      %v135 = vadd.f32 %v133, %v134
      %v136 = vrot.slane %v135, 1
      %v137 = vadd.f32 %v135, %v136
      %v138 = vrcp.pop 64.0
      %v139 = vmul.f32 %v137, %v138
      %v140 = vsub.f32 %v117, %v139
      %v141 = vsub.f32 %v118, %v139
      %v142 = vsub.f32 %v119, %v139
      %v143 = vsub.f32 %v120, %v139
      %v144 = vsub.f32 %v121, %v139
      %v145 = vsub.f32 %v122, %v139
      %v146 = vsub.f32 %v123, %v139
      %v147 = vsub.f32 %v124, %v139
      %v148 = vmul.f32 %v140, %v140
      %v149 = vmul.f32 %v141, %v141
      %v150 = vmul.f32 %v142, %v142
      %v151 = vmul.f32 %v143, %v143
      %v152 = vmul.f32 %v144, %v144
      %v153 = vmul.f32 %v145, %v145
      %v154 = vmul.f32 %v146, %v146
      %v155 = vmul.f32 %v147, %v147
      %v156 = vadd.f32 %v148, %v149
      %v157 = vadd.f32 %v156, %v150
      %v158 = vadd.f32 %v157, %v151
      %v159 = vadd.f32 %v158, %v152
      %v160 = vadd.f32 %v159, %v153
      %v161 = vadd.f32 %v160, %v154
      %v162 = vadd.f32 %v161, %v155
      %v163 = vrot.slane %v162, 4
      %v164 = vadd.f32 %v162, %v163
      %v165 = vrot.slane %v164, 2
      %v166 = vadd.f32 %v164, %v165
      %v167 = vrot.slane %v166, 1
      %v168 = vadd.f32 %v166, %v167
      %v169 = vmul.f32 %v168, %v138
      %v170 = vadd.f32 %v169, 1e-05
      %v171 = vrsqrt.pop %v170
      %v172 = vmul.f32 %v140, %v171
      %v173 = vmul.f32 %v141, %v171
      %v174 = vmul.f32 %v142, %v171
      %v175 = vmul.f32 %v143, %v171
      %v176 = vmul.f32 %v144, %v171
      %v177 = vmul.f32 %v145, %v171
      %v178 = vmul.f32 %v146, %v171
      %v179 = vmul.f32 %v147, %v171
      %vm180 = vcmp.ge.f32.partialorder %v172, 0.0
      %vm181 = vcmp.ge.f32.partialorder %v173, 0.0
      %vm182 = vcmp.ge.f32.partialorder %v174, 0.0
      %vm183 = vcmp.ge.f32.partialorder %v175, 0.0
      %vm184 = vcmp.ge.f32.partialorder %v176, 0.0
      %vm185 = vcmp.ge.f32.partialorder %v177, 0.0
      %vm186 = vcmp.ge.f32.partialorder %v178, 0.0
      %vm187 = vcmp.ge.f32.partialorder %v179, 0.0
      %v188 = vmul.f32 %v172, 0.2
      %v189 = vmul.f32 %v173, 0.2
      %v190 = vmul.f32 %v174, 0.2
      %v191 = vmul.f32 %v175, 0.2
      %v192 = vmul.f32 %v176, 0.2
      %v193 = vmul.f32 %v177, 0.2
      %v194 = vmul.f32 %v178, 0.2
      %v195 = vmul.f32 %v179, 0.2
      %v196 = vsel %vm180, %v172, %v188
      %v197 = vsel %vm181, %v173, %v189
      %v198 = vsel %vm182, %v174, %v190
      %v199 = vsel %vm183, %v175, %v191
      %v200 = vsel %vm184, %v176, %v192
      %v201 = vsel %vm185, %v177, %v193
      %v202 = vsel %vm186, %v178, %v194
      %v203 = vsel %vm187, %v179, %v195
      %204 = vst [vmem:[%s116] sm:$0xff] %v196
      %205 = vst [vmem:[%s116 + $0x8] sm:$0xff] %v197
      %206 = vst [vmem:[%s116 + $0x10] sm:$0xff] %v198
      %207 = vst [vmem:[%s116 + $0x18] sm:$0xff] %v199
      %208 = vst [vmem:[%s116 + $0x20] sm:$0xff] %v200
      %209 = vst [vmem:[%s116 + $0x28] sm:$0xff] %v201
      %210 = vst [vmem:[%s116 + $0x30] sm:$0xff] %v202
      %211 = vst [vmem:[%s116 + $0x38] sm:$0xff] %v203
      %p212 = scmp.lt.s32.totalorder %s12, 1
      %s213 = scalar_select %p212, %s12, 1
      %s214 = smul.addr %s213, 8
      %s215 = smul.addr %s214, 8
      %s216 = scalar_lea.vmem %s1, %s215
      // Predicated region
      $region25: #{discriminator_forward.10} parent=23 // pred_check
        %p217 = pneg %p56
      $region26: #{discriminator_forward.10} parent=23 // pred_check_branch
        %219 = sbr.rel (%p217) target = $region28
      $region27: #{discriminator_forward.10} parent=23 // pred_region
        _
      $region28: #{discriminator_forward.10} parent=23 // pred_fallthru
        _
    $region24: #{discriminator_forward.10} parent=5 // pred_fallthru
      _
    %p220 = scmp.le.s32.totalorder 2, %s7
    // Predicated region
    $region29: #{discriminator_forward.10} parent=5 // pred_check
      %p221 = pneg %p220
    $region30: #{discriminator_forward.10} parent=5 // pred_check_branch
      %223 = sbr.rel (%p221) target = $region32
    $region31: #{discriminator_forward.10} parent=5 // pred_region
      %s224 = ssub.s32 %s7, 2
      // Predicated region
      $region33: #{discriminator_forward.10} parent=31 // pred_check
        %p225 = pneg %p62
      $region34: #{discriminator_forward.10} parent=31 // pred_check_branch
        %227 = sbr.rel (%p225) target = $region36
      $region35: #{discriminator_forward.10} parent=31 // pred_region
        %p228 = scmp.lt.s32.totalorder %s13, 1
        %s229 = scalar_select %p228, %s13, 1
        %s230 = smul.addr %s229, 8
        %s231 = smul.addr %s230, 8
        %s232 = scalar_lea.vmem %s1, %s231
      $region36: #{discriminator_forward.10} parent=31 // pred_fallthru
        _
    $region32: #{discriminator_forward.10} parent=5 // pred_fallthru
      _
  $region6: #{discriminator_forward.10} parent=0 // loop_footer
    %s11 = sadd.s32 1, %s7
  $region7: #{discriminator_forward.10} parent=0 // loop_footer_branch
    %6 = sbr.rel target = $region3
  $region8: #{discriminator_forward.10} parent=0 // loop_exit
    _

// kernel: discriminator_forward.9
$region0: #{discriminator_forward.9}
  #allocation0 [shape = 'u32[]', space=smem, size = 0x4, offset = 0x4, fixed_abs, tag = 'smem constant byte address 0x4 - core index']
  #allocation1 [shape = 'u32[144,128]{1,0:T(1,128)}', space=vmem, size = 0x12000, scoped, tag = 'internal scratch']
  #allocation2 [shape = 'f32[128,128]{1,0:T(8,128)}', space=vmem, size = 0x10000, scoped, tag = 'scratch operand']
  %s0 = inlined_call_operand.vmem [shape: bf16[128,640], index: 0, kind: input, shape index: {}]
  %s1 = inlined_call_operand.vmem [shape: bf16[640,128], index: 1, kind: input, shape index: {}]
  %s2 = inlined_call_operand.vmem [shape: f32[1,128], index: 2, kind: input, shape index: {}]
  %s3 = inlined_call_operand.vmem [shape: f32[128,128], index: 3, kind: output, shape index: {}]
  %s4 = sld [smem:[#allocation0]]
  $region30: #{discriminator_forward.9} parent=0
    _
  %s6 = ssub.s32 1, %s4
  %s7 = scalar_select 0, %s6, %s4
  // Predicated region
  $region2: #{discriminator_forward.9} parent=0 // pred_check
    _
  $region3: #{discriminator_forward.9} parent=0 // pred_check_branch
    %9 = sbr.rel (0) target = $region5
  $region4: #{discriminator_forward.9} parent=0 // pred_region
    _
  $region5: #{discriminator_forward.9} parent=0 // pred_fallthru
    _
  // Predicated region
  $region6: #{discriminator_forward.9} parent=0 // pred_check
    _
  $region7: #{discriminator_forward.9} parent=0 // pred_check_branch
    %11 = sbr.rel (0) target = $region9
  $region8: #{discriminator_forward.9} parent=0 // pred_region
    _
  $region9: #{discriminator_forward.9} parent=0 // pred_fallthru
    _
  // Predicated region
  $region10: #{discriminator_forward.9} parent=0 // pred_check
    _
  $region11: #{discriminator_forward.9} parent=0 // pred_check_branch
    %13 = sbr.rel (0) target = $region13
  $region12: #{discriminator_forward.9} parent=0 // pred_region
    _
  $region13: #{discriminator_forward.9} parent=0 // pred_fallthru
    _
  %p15 = scmp.eq.s32.totalorder 0, 0
  // Predicated region
  $region14: #{discriminator_forward.9} parent=0 // pred_check
    %p16 = pneg %p15
  $region15: #{discriminator_forward.9} parent=0 // pred_check_branch
    %18 = sbr.rel (%p16) target = $region17
  $region16: #{discriminator_forward.9} parent=0 // pred_region
    %19 = vst [vmem:[#allocation2] sm:$0xff] 0.0
    %20 = vst [vmem:[#allocation2 + $0x8] sm:$0xff] 0.0
    %21 = vst [vmem:[#allocation2 + $0x10] sm:$0xff] 0.0
    %22 = vst [vmem:[#allocation2 + $0x18] sm:$0xff] 0.0
    %23 = vst [vmem:[#allocation2 + $0x20] sm:$0xff] 0.0
    %24 = vst [vmem:[#allocation2 + $0x28] sm:$0xff] 0.0
    %25 = vst [vmem:[#allocation2 + $0x30] sm:$0xff] 0.0
    %26 = vst [vmem:[#allocation2 + $0x38] sm:$0xff] 0.0
    %27 = vst [vmem:[#allocation2 + $0x40] sm:$0xff] 0.0
    %28 = vst [vmem:[#allocation2 + $0x48] sm:$0xff] 0.0
    %29 = vst [vmem:[#allocation2 + $0x50] sm:$0xff] 0.0
    %30 = vst [vmem:[#allocation2 + $0x58] sm:$0xff] 0.0
    %31 = vst [vmem:[#allocation2 + $0x60] sm:$0xff] 0.0
    %32 = vst [vmem:[#allocation2 + $0x68] sm:$0xff] 0.0
    %33 = vst [vmem:[#allocation2 + $0x70] sm:$0xff] 0.0
    %34 = vst [vmem:[#allocation2 + $0x78] sm:$0xff] 0.0
  $region17: #{discriminator_forward.9} parent=0 // pred_fallthru
    _
  %v35 = vld [vmem:[#allocation2] sm:$0xff]
  %v36 = vld [vmem:[#allocation2 + $0x8] sm:$0xff]
  %v37 = vld [vmem:[#allocation2 + $0x10] sm:$0xff]
  %v38 = vld [vmem:[#allocation2 + $0x18] sm:$0xff]
  %v39 = vld [vmem:[#allocation2 + $0x20] sm:$0xff]
  %v40 = vld [vmem:[#allocation2 + $0x28] sm:$0xff]
  %v41 = vld [vmem:[#allocation2 + $0x30] sm:$0xff]
  %v42 = vld [vmem:[#allocation2 + $0x38] sm:$0xff]
  %v43 = vld [vmem:[#allocation2 + $0x40] sm:$0xff]
  %v44 = vld [vmem:[#allocation2 + $0x48] sm:$0xff]
  %v45 = vld [vmem:[#allocation2 + $0x50] sm:$0xff]
  %v46 = vld [vmem:[#allocation2 + $0x58] sm:$0xff]
  %v47 = vld [vmem:[#allocation2 + $0x60] sm:$0xff]
  %v48 = vld [vmem:[#allocation2 + $0x68] sm:$0xff]
  %v49 = vld [vmem:[#allocation2 + $0x70] sm:$0xff]
  %v50 = vld [vmem:[#allocation2 + $0x78] sm:$0xff]
  %v51 = vld [vmem:[%s0] sm:$0xff]
  %v52 = vld [vmem:[%s0 + $0x8] sm:$0xff]
  %v53 = vld [vmem:[%s0 + $0x10] sm:$0xf]
  %v54 = vld [vmem:[%s0 + $0x14] sm:$0xff]
  %v55 = vld [vmem:[%s0 + $0x1c] sm:$0xff]
  %v56 = vld [vmem:[%s0 + $0x24] sm:$0xf]
  %v57 = vld [vmem:[%s0 + $0x28] sm:$0xff]
  %v58 = vld [vmem:[%s0 + $0x30] sm:$0xff]
  %v59 = vld [vmem:[%s0 + $0x38] sm:$0xf]
  %v60 = vld [vmem:[%s0 + $0x3c] sm:$0xff]
  %v61 = vld [vmem:[%s0 + $0x44] sm:$0xff]
  %v62 = vld [vmem:[%s0 + $0x4c] sm:$0xf]
  %v63 = vld [vmem:[%s0 + $0x50] sm:$0xff]
  %v64 = vld [vmem:[%s0 + $0x58] sm:$0xff]
  %v65 = vld [vmem:[%s0 + $0x60] sm:$0xf]
  %v66 = vld [vmem:[%s0 + $0x64] sm:$0xff]
  %v67 = vld [vmem:[%s0 + $0x6c] sm:$0xff]
  %v68 = vld [vmem:[%s0 + $0x74] sm:$0xf]
  %v69 = vld [vmem:[%s0 + $0x78] sm:$0xff]
  %v70 = vld [vmem:[%s0 + $0x80] sm:$0xff]
  %v71 = vld [vmem:[%s0 + $0x88] sm:$0xf]
  %v72 = vld [vmem:[%s0 + $0x8c] sm:$0xff]
  %v73 = vld [vmem:[%s0 + $0x94] sm:$0xff]
  %v74 = vld [vmem:[%s0 + $0x9c] sm:$0xf]
  %v75 = vld [vmem:[%s0 + $0xa0] sm:$0xff]
  %v76 = vld [vmem:[%s0 + $0xa8] sm:$0xff]
  %v77 = vld [vmem:[%s0 + $0xb0] sm:$0xf]
  %v78 = vld [vmem:[%s0 + $0xb4] sm:$0xff]
  %v79 = vld [vmem:[%s0 + $0xbc] sm:$0xff]
  %v80 = vld [vmem:[%s0 + $0xc4] sm:$0xf]
  %v81 = vld [vmem:[%s0 + $0xc8] sm:$0xff]
  %v82 = vld [vmem:[%s0 + $0xd0] sm:$0xff]
  %v83 = vld [vmem:[%s0 + $0xd8] sm:$0xf]
  %v84 = vld [vmem:[%s0 + $0xdc] sm:$0xff]
  %v85 = vld [vmem:[%s0 + $0xe4] sm:$0xff]
  %v86 = vld [vmem:[%s0 + $0xec] sm:$0xf]
  %v87 = vld [vmem:[%s0 + $0xf0] sm:$0xff]
  %v88 = vld [vmem:[%s0 + $0xf8] sm:$0xff]
  %v89 = vld [vmem:[%s0 + $0x100] sm:$0xf]
  %v90 = vld [vmem:[%s0 + $0x104] sm:$0xff]
  %v91 = vld [vmem:[%s0 + $0x10c] sm:$0xff]
  %v92 = vld [vmem:[%s0 + $0x114] sm:$0xf]
  %v93 = vld [vmem:[%s0 + $0x118] sm:$0xff]
  %v94 = vld [vmem:[%s0 + $0x120] sm:$0xff]
  %v95 = vld [vmem:[%s0 + $0x128] sm:$0xf]
  %v96 = vld [vmem:[%s0 + $0x12c] sm:$0xff]
  %v97 = vld [vmem:[%s0 + $0x134] sm:$0xff]
  %v98 = vld [vmem:[%s0 + $0x13c] sm:$0xf]
  %v99 = vld [vmem:[%s1] sm:$0xf]
  %v100 = vld [vmem:[%s1 + $0x4] sm:$0xf]
  %v101 = vld [vmem:[%s1 + $0x8] sm:$0xf]
  %v102 = vld [vmem:[%s1 + $0xc] sm:$0xf]
  %v103 = vld [vmem:[%s1 + $0x10] sm:$0xf]
  %v104 = vld [vmem:[%s1 + $0x14] sm:$0xf]
  %v105 = vld [vmem:[%s1 + $0x18] sm:$0xf]
  %v106 = vld [vmem:[%s1 + $0x1c] sm:$0xf]
  %v107 = vld [vmem:[%s1 + $0x20] sm:$0xf]
  %v108 = vld [vmem:[%s1 + $0x24] sm:$0xf]
  %v109 = vld [vmem:[%s1 + $0x28] sm:$0xf]
  %v110 = vld [vmem:[%s1 + $0x2c] sm:$0xf]
  %v111 = vld [vmem:[%s1 + $0x30] sm:$0xf]
  %v112 = vld [vmem:[%s1 + $0x34] sm:$0xf]
  %v113 = vld [vmem:[%s1 + $0x38] sm:$0xf]
  %v114 = vld [vmem:[%s1 + $0x3c] sm:$0xf]
  %v115 = vld [vmem:[%s1 + $0x40] sm:$0xf]
  %v116 = vld [vmem:[%s1 + $0x44] sm:$0xf]
  %v117 = vld [vmem:[%s1 + $0x48] sm:$0xf]
  %v118 = vld [vmem:[%s1 + $0x4c] sm:$0xf]
  %v119 = vld [vmem:[%s1 + $0x50] sm:$0xf]
  %v120 = vld [vmem:[%s1 + $0x54] sm:$0xf]
  %v121 = vld [vmem:[%s1 + $0x58] sm:$0xf]
  %v122 = vld [vmem:[%s1 + $0x5c] sm:$0xf]
  %v123 = vld [vmem:[%s1 + $0x60] sm:$0xf]
  %v124 = vld [vmem:[%s1 + $0x64] sm:$0xf]
  %v125 = vld [vmem:[%s1 + $0x68] sm:$0xf]
  %v126 = vld [vmem:[%s1 + $0x6c] sm:$0xf]
  %v127 = vld [vmem:[%s1 + $0x70] sm:$0xf]
  %v128 = vld [vmem:[%s1 + $0x74] sm:$0xf]
  %v129 = vld [vmem:[%s1 + $0x78] sm:$0xf]
  %v130 = vld [vmem:[%s1 + $0x7c] sm:$0xf]
  %v131 = vld [vmem:[%s1 + $0x80] sm:$0xf]
  %v132 = vld [vmem:[%s1 + $0x84] sm:$0xf]
  %v133 = vld [vmem:[%s1 + $0x88] sm:$0xf]
  %v134 = vld [vmem:[%s1 + $0x8c] sm:$0xf]
  %v135 = vld [vmem:[%s1 + $0x90] sm:$0xf]
  %v136 = vld [vmem:[%s1 + $0x94] sm:$0xf]
  %v137 = vld [vmem:[%s1 + $0x98] sm:$0xf]
  %v138 = vld [vmem:[%s1 + $0x9c] sm:$0xf]
  %v139 = vld [vmem:[%s1 + $0xa0] sm:$0xf]
  %v140 = vld [vmem:[%s1 + $0xa4] sm:$0xf]
  %v141 = vld [vmem:[%s1 + $0xa8] sm:$0xf]
  %v142 = vld [vmem:[%s1 + $0xac] sm:$0xf]
  %v143 = vld [vmem:[%s1 + $0xb0] sm:$0xf]
  %v144 = vld [vmem:[%s1 + $0xb4] sm:$0xf]
  %v145 = vld [vmem:[%s1 + $0xb8] sm:$0xf]
  %v146 = vld [vmem:[%s1 + $0xbc] sm:$0xf]
  %v147 = vld [vmem:[%s1 + $0xc0] sm:$0xf]
  %v148 = vld [vmem:[%s1 + $0xc4] sm:$0xf]
  %v149 = vld [vmem:[%s1 + $0xc8] sm:$0xf]
  %v150 = vld [vmem:[%s1 + $0xcc] sm:$0xf]
  %v151 = vld [vmem:[%s1 + $0xd0] sm:$0xf]
  %v152 = vld [vmem:[%s1 + $0xd4] sm:$0xf]
  %v153 = vld [vmem:[%s1 + $0xd8] sm:$0xf]
  %v154 = vld [vmem:[%s1 + $0xdc] sm:$0xf]
  %v155 = vld [vmem:[%s1 + $0xe0] sm:$0xf]
  %v156 = vld [vmem:[%s1 + $0xe4] sm:$0xf]
  %v157 = vld [vmem:[%s1 + $0xe8] sm:$0xf]
  %v158 = vld [vmem:[%s1 + $0xec] sm:$0xf]
  %v159 = vld [vmem:[%s1 + $0xf0] sm:$0xf]
  %v160 = vld [vmem:[%s1 + $0xf4] sm:$0xf]
  %v161 = vld [vmem:[%s1 + $0xf8] sm:$0xf]
  %v162 = vld [vmem:[%s1 + $0xfc] sm:$0xf]
  %v163 = vld [vmem:[%s1 + $0x100] sm:$0xf]
  %v164 = vld [vmem:[%s1 + $0x104] sm:$0xf]
  %v165 = vld [vmem:[%s1 + $0x108] sm:$0xf]
  %v166 = vld [vmem:[%s1 + $0x10c] sm:$0xf]
  %v167 = vld [vmem:[%s1 + $0x110] sm:$0xf]
  %v168 = vld [vmem:[%s1 + $0x114] sm:$0xf]
  %v169 = vld [vmem:[%s1 + $0x118] sm:$0xf]
  %v170 = vld [vmem:[%s1 + $0x11c] sm:$0xf]
  %v171 = vld [vmem:[%s1 + $0x120] sm:$0xf]
  %v172 = vld [vmem:[%s1 + $0x124] sm:$0xf]
  %v173 = vld [vmem:[%s1 + $0x128] sm:$0xf]
  %v174 = vld [vmem:[%s1 + $0x12c] sm:$0xf]
  %v175 = vld [vmem:[%s1 + $0x130] sm:$0xf]
  %v176 = vld [vmem:[%s1 + $0x134] sm:$0xf]
  %v177 = vld [vmem:[%s1 + $0x138] sm:$0xf]
  %v178 = vld [vmem:[%s1 + $0x13c] sm:$0xf]
  %v227 = vunpack.c.l.b16 %v51
  %v228 = vunpack.c.h.b16 %v51
  %v229 = vunpack.c.l.b16 %v52
  %v230 = vunpack.c.h.b16 %v52
  %v231 = vunpack.c.l.b16 %v53
  %v232 = vunpack.c.l.b16 %v54
  %v233 = vunpack.c.h.b16 %v54
  %v234 = vunpack.c.l.b16 %v55
  %v235 = vunpack.c.h.b16 %v55
  %v236 = vunpack.c.l.b16 %v56
  %v237 = vunpack.c.l.b16 %v57
  %v238 = vunpack.c.h.b16 %v57
  %v239 = vunpack.c.l.b16 %v58
  %v240 = vunpack.c.h.b16 %v58
  %v241 = vunpack.c.l.b16 %v59
  %v242 = vunpack.c.l.b16 %v60
  %v243 = vunpack.c.h.b16 %v60
  %v244 = vunpack.c.l.b16 %v61
  %v245 = vunpack.c.h.b16 %v61
  %v246 = vunpack.c.l.b16 %v62
  %v247 = vunpack.c.l.b16 %v63
  %v248 = vunpack.c.h.b16 %v63
  %v249 = vunpack.c.l.b16 %v64
  %v250 = vunpack.c.h.b16 %v64
  %v251 = vunpack.c.l.b16 %v65
  %v252 = vunpack.c.l.b16 %v66
  %v253 = vunpack.c.h.b16 %v66
  %v254 = vunpack.c.l.b16 %v67
  %v255 = vunpack.c.h.b16 %v67
  %v256 = vunpack.c.l.b16 %v68
  %v257 = vunpack.c.l.b16 %v69
  %v258 = vunpack.c.h.b16 %v69
  %v259 = vunpack.c.l.b16 %v70
  %v260 = vunpack.c.h.b16 %v70
  %v261 = vunpack.c.l.b16 %v71
  %v262 = vunpack.c.l.b16 %v72
  %v263 = vunpack.c.h.b16 %v72
  %v264 = vunpack.c.l.b16 %v73
  %v265 = vunpack.c.h.b16 %v73
  %v266 = vunpack.c.l.b16 %v74
  %v267 = vunpack.c.l.b16 %v75
  %v268 = vunpack.c.h.b16 %v75
  %v269 = vunpack.c.l.b16 %v76
  %v270 = vunpack.c.h.b16 %v76
  %v271 = vunpack.c.l.b16 %v77
  %v272 = vunpack.c.l.b16 %v78
  %v273 = vunpack.c.h.b16 %v78
  %v274 = vunpack.c.l.b16 %v79
  %v275 = vunpack.c.h.b16 %v79
  %v276 = vunpack.c.l.b16 %v80
  %v277 = vunpack.c.l.b16 %v81
  %v278 = vunpack.c.h.b16 %v81
  %v279 = vunpack.c.l.b16 %v82
  %v280 = vunpack.c.h.b16 %v82
  %v281 = vunpack.c.l.b16 %v83
  %v282 = vunpack.c.l.b16 %v84
  %v283 = vunpack.c.h.b16 %v84
  %v284 = vunpack.c.l.b16 %v85
  %v285 = vunpack.c.h.b16 %v85
  %v286 = vunpack.c.l.b16 %v86
  %v287 = vunpack.c.l.b16 %v87
  %v288 = vunpack.c.h.b16 %v87
  %v289 = vunpack.c.l.b16 %v88
  %v290 = vunpack.c.h.b16 %v88
  %v291 = vunpack.c.l.b16 %v89
  %v292 = vunpack.c.l.b16 %v90
  %v293 = vunpack.c.h.b16 %v90
  %v294 = vunpack.c.l.b16 %v91
  %v295 = vunpack.c.h.b16 %v91
  %v296 = vunpack.c.l.b16 %v92
  %v297 = vunpack.c.l.b16 %v93
  %v298 = vunpack.c.h.b16 %v93
  %v299 = vunpack.c.l.b16 %v94
  %v300 = vunpack.c.h.b16 %v94
  %v301 = vunpack.c.l.b16 %v95
  %v302 = vunpack.c.l.b16 %v96
  %v303 = vunpack.c.h.b16 %v96
  %v304 = vunpack.c.l.b16 %v97
  %v305 = vunpack.c.h.b16 %v97
  %v306 = vunpack.c.l.b16 %v98
  %v307 = vpack.c.b16 %v232, %v227
  %v308 = vpack.c.b16 %v233, %v228
  %v309 = vpack.c.b16 %v234, %v229
  %v310 = vpack.c.b16 %v235, %v230
  %v311 = vpack.c.b16 %v236, %v231
  %v312 = vpack.c.b16 %v242, %v237
  %v313 = vpack.c.b16 %v243, %v238
  %v314 = vpack.c.b16 %v244, %v239
  %v315 = vpack.c.b16 %v245, %v240
  %v316 = vpack.c.b16 %v246, %v241
  %v317 = vpack.c.b16 %v252, %v247
  %v318 = vpack.c.b16 %v253, %v248
  %v319 = vpack.c.b16 %v254, %v249
  %v320 = vpack.c.b16 %v255, %v250
  %v321 = vpack.c.b16 %v256, %v251
  %v322 = vpack.c.b16 %v262, %v257
  %v323 = vpack.c.b16 %v263, %v258
  %v324 = vpack.c.b16 %v264, %v259
  %v325 = vpack.c.b16 %v265, %v260
  %v326 = vpack.c.b16 %v266, %v261
  %v327 = vpack.c.b16 %v272, %v267
  %v328 = vpack.c.b16 %v273, %v268
  %v329 = vpack.c.b16 %v274, %v269
  %v330 = vpack.c.b16 %v275, %v270
  %v331 = vpack.c.b16 %v276, %v271
  %v332 = vpack.c.b16 %v282, %v277
  %v333 = vpack.c.b16 %v283, %v278
  %v334 = vpack.c.b16 %v284, %v279
  %v335 = vpack.c.b16 %v285, %v280
  %v336 = vpack.c.b16 %v286, %v281
  %v337 = vpack.c.b16 %v292, %v287
  %v338 = vpack.c.b16 %v293, %v288
  %v339 = vpack.c.b16 %v294, %v289
  %v340 = vpack.c.b16 %v295, %v290
  %v341 = vpack.c.b16 %v296, %v291
  %v342 = vpack.c.b16 %v302, %v297
  %v343 = vpack.c.b16 %v303, %v298
  %v344 = vpack.c.b16 %v304, %v299
  %v345 = vpack.c.b16 %v305, %v300
  %v346 = vpack.c.b16 %v306, %v301
  %v467 = vunpack.c.l.b16 %v99
  %v468 = vunpack.c.l.b16 %v100
  %v469 = vunpack.c.l.b16 %v101
  %v470 = vunpack.c.l.b16 %v102
  %v471 = vunpack.c.l.b16 %v103
  %v472 = vunpack.c.l.b16 %v104
  %v473 = vunpack.c.l.b16 %v105
  %v474 = vunpack.c.l.b16 %v106
  %v475 = vunpack.c.l.b16 %v107
  %v476 = vunpack.c.l.b16 %v108
  %v477 = vunpack.c.l.b16 %v109
  %v478 = vunpack.c.l.b16 %v110
  %v479 = vunpack.c.l.b16 %v111
  %v480 = vunpack.c.l.b16 %v112
  %v481 = vunpack.c.l.b16 %v113
  %v482 = vunpack.c.l.b16 %v114
  %v483 = vunpack.c.l.b16 %v115
  %v484 = vunpack.c.l.b16 %v116
  %v485 = vunpack.c.l.b16 %v117
  %v486 = vunpack.c.l.b16 %v118
  %v487 = vunpack.c.l.b16 %v119
  %v488 = vunpack.c.l.b16 %v120
  %v489 = vunpack.c.l.b16 %v121
  %v490 = vunpack.c.l.b16 %v122
  %v491 = vunpack.c.l.b16 %v123
  %v492 = vunpack.c.l.b16 %v124
  %v493 = vunpack.c.l.b16 %v125
  %v494 = vunpack.c.l.b16 %v126
  %v495 = vunpack.c.l.b16 %v127
  %v496 = vunpack.c.l.b16 %v128
  %v497 = vunpack.c.l.b16 %v129
  %v498 = vunpack.c.l.b16 %v130
  %v499 = vunpack.c.l.b16 %v131
  %v500 = vunpack.c.l.b16 %v132
  %v501 = vunpack.c.l.b16 %v133
  %v502 = vunpack.c.l.b16 %v134
  %v503 = vunpack.c.l.b16 %v135
  %v504 = vunpack.c.l.b16 %v136
  %v505 = vunpack.c.l.b16 %v137
  %v506 = vunpack.c.l.b16 %v138
  %v507 = vunpack.c.l.b16 %v139
  %v508 = vunpack.c.l.b16 %v140
  %v509 = vunpack.c.l.b16 %v141
  %v510 = vunpack.c.l.b16 %v142
  %v511 = vunpack.c.l.b16 %v143
  %v512 = vunpack.c.l.b16 %v144
  %v513 = vunpack.c.l.b16 %v145
  %v514 = vunpack.c.l.b16 %v146
  %v515 = vunpack.c.l.b16 %v147
  %v516 = vunpack.c.l.b16 %v148
  %v517 = vunpack.c.l.b16 %v149
  %v518 = vunpack.c.l.b16 %v150
  %v519 = vunpack.c.l.b16 %v151
  %v520 = vunpack.c.l.b16 %v152
  %v521 = vunpack.c.l.b16 %v153
  %v522 = vunpack.c.l.b16 %v154
  %v523 = vunpack.c.l.b16 %v155
  %v524 = vunpack.c.l.b16 %v156
  %v525 = vunpack.c.l.b16 %v157
  %v526 = vunpack.c.l.b16 %v158
  %v527 = vunpack.c.l.b16 %v159
  %v528 = vunpack.c.l.b16 %v160
  %v529 = vunpack.c.l.b16 %v161
  %v530 = vunpack.c.l.b16 %v162
  %v531 = vunpack.c.l.b16 %v163
  %v532 = vunpack.c.l.b16 %v164
  %v533 = vunpack.c.l.b16 %v165
  %v534 = vunpack.c.l.b16 %v166
  %v535 = vunpack.c.l.b16 %v167
  %v536 = vunpack.c.l.b16 %v168
  %v537 = vunpack.c.l.b16 %v169
  %v538 = vunpack.c.l.b16 %v170
  %v539 = vunpack.c.l.b16 %v171
  %v540 = vunpack.c.l.b16 %v172
  %v541 = vunpack.c.l.b16 %v173
  %v542 = vunpack.c.l.b16 %v174
  %v543 = vunpack.c.l.b16 %v175
  %v544 = vunpack.c.l.b16 %v176
  %v545 = vunpack.c.l.b16 %v177
  %v546 = vunpack.c.l.b16 %v178
  %v547 = vpack.c.b16 %v468, %v467
  %v548 = vpack.c.b16 %v470, %v469
  %v549 = vpack.c.b16 %v472, %v471
  %v550 = vpack.c.b16 %v474, %v473
  %v551 = vpack.c.b16 %v476, %v475
  %v552 = vpack.c.b16 %v478, %v477
  %v553 = vpack.c.b16 %v480, %v479
  %v554 = vpack.c.b16 %v482, %v481
  %v555 = vpack.c.b16 %v484, %v483
  %v556 = vpack.c.b16 %v486, %v485
  %v557 = vpack.c.b16 %v488, %v487
  %v558 = vpack.c.b16 %v490, %v489
  %v559 = vpack.c.b16 %v492, %v491
  %v560 = vpack.c.b16 %v494, %v493
  %v561 = vpack.c.b16 %v496, %v495
  %v562 = vpack.c.b16 %v498, %v497
  %v563 = vpack.c.b16 %v500, %v499
  %v564 = vpack.c.b16 %v502, %v501
  %v565 = vpack.c.b16 %v504, %v503
  %v566 = vpack.c.b16 %v506, %v505
  %v567 = vpack.c.b16 %v508, %v507
  %v568 = vpack.c.b16 %v510, %v509
  %v569 = vpack.c.b16 %v512, %v511
  %v570 = vpack.c.b16 %v514, %v513
  %v571 = vpack.c.b16 %v516, %v515
  %v572 = vpack.c.b16 %v518, %v517
  %v573 = vpack.c.b16 %v520, %v519
  %v574 = vpack.c.b16 %v522, %v521
  %v575 = vpack.c.b16 %v524, %v523
  %v576 = vpack.c.b16 %v526, %v525
  %v577 = vpack.c.b16 %v528, %v527
  %v578 = vpack.c.b16 %v530, %v529
  %v579 = vpack.c.b16 %v532, %v531
  %v580 = vpack.c.b16 %v534, %v533
  %v581 = vpack.c.b16 %v536, %v535
  %v582 = vpack.c.b16 %v538, %v537
  %v583 = vpack.c.b16 %v540, %v539
  %v584 = vpack.c.b16 %v542, %v541
  %v585 = vpack.c.b16 %v544, %v543
  %v586 = vpack.c.b16 %v546, %v545
  %627 = vmatprep.subr.bf16.mxu0 0
  %628 = vmatpush1.bf16.msra.mxu0 %v547
  %629 = vmatprep.subr.bf16.mxu0 0
  %630 = vmatpush1.bf16.msra.mxu0 %v548
  %631 = vmatprep.subr.bf16.mxu0 0
  %632 = vmatpush1.bf16.msra.mxu0 %v549
  %633 = vmatprep.subr.bf16.mxu0 0
  %634 = vmatpush1.bf16.msra.mxu0 %v550
  %635 = vmatprep.subr.bf16.mxu0 0
  %636 = vmatpush1.bf16.msra.mxu0 %v551
  %637 = vmatprep.subr.bf16.mxu0 0
  %638 = vmatpush1.bf16.msra.mxu0 %v552
  %639 = vmatprep.subr.bf16.mxu0 0
  %640 = vmatpush1.bf16.msra.mxu0 %v553
  %641 = vmatprep.subr.bf16.mxu0 0
  %642 = vmatpush1.bf16.msra.mxu0 %v554
  %643 = vmatprep.subr.bf16.mxu0 0
  %644 = vmatpush1.bf16.msra.mxu0 %v555
  %645 = vmatprep.subr.bf16.mxu0 0
  %646 = vmatpush1.bf16.msra.mxu0 %v556
  %647 = vmatprep.subr.bf16.mxu0 0
  %648 = vmatpush1.bf16.msra.mxu0 %v557
  %649 = vmatprep.subr.bf16.mxu0 0
  %650 = vmatpush1.bf16.msra.mxu0 %v558
  %651 = vmatprep.subr.bf16.mxu0 0
  %652 = vmatpush1.bf16.msra.mxu0 %v559
  %653 = vmatprep.subr.bf16.mxu0 0
  %654 = vmatpush1.bf16.msra.mxu0 %v560
  %655 = vmatprep.subr.bf16.mxu0 0
  %656 = vmatpush1.bf16.msra.mxu0 %v561
  %657 = vmatprep.subr.bf16.mxu0 0
  %658 = vmatpush1.bf16.msra.mxu0 %v562
  %659 = vmatprep.mubr.bf16.mxu0 %v308
  %660 = vmatmul.mubr.bf16.gmra.mrb[0].mxu0 %v307
  %v661 = vpop.f32.mrb[0].mxu0
  %v662 = vadd.f32 0.0, %v661
  %v663 = vpop.f32.mrb[0].mxu0
  %v664 = vpop.f32.mrb[0].mxu0
  %v665 = vadd.f32 0.0, %v664
  %v666 = vpop.f32.mrb[0].mxu0
  %667 = vmatprep.mubr.bf16.mxu0 %v313
  %668 = vmatmul.mubr.bf16.gmra.mrb[0].mxu0 %v312
  %v669 = vpop.f32.mrb[0].mxu0
  %v670 = vadd.f32 0.0, %v669
  %v671 = vpop.f32.mrb[0].mxu0
  %v672 = vpop.f32.mrb[0].mxu0
  %v673 = vadd.f32 0.0, %v672
  %v674 = vpop.f32.mrb[0].mxu0
  %675 = vmatprep.mubr.bf16.mxu0 %v318
  %676 = vmatmul.mubr.bf16.gmra.mrb[0].mxu0 %v317
  %v677 = vpop.f32.mrb[0].mxu0
  %v678 = vadd.f32 0.0, %v677
  %v679 = vpop.f32.mrb[0].mxu0
  %v680 = vpop.f32.mrb[0].mxu0
  %v681 = vadd.f32 0.0, %v680
  %v682 = vpop.f32.mrb[0].mxu0
  %683 = vmatprep.mubr.bf16.mxu0 %v323
  %684 = vmatmul.mubr.bf16.gmra.mrb[0].mxu0 %v322
  %v685 = vpop.f32.mrb[0].mxu0
  %v686 = vadd.f32 0.0, %v685
  %v687 = vpop.f32.mrb[0].mxu0
  %v688 = vpop.f32.mrb[0].mxu0
  %v689 = vadd.f32 0.0, %v688
  %v690 = vpop.f32.mrb[0].mxu0
  %691 = vmatprep.mubr.bf16.mxu0 %v328
  %692 = vmatmul.mubr.bf16.gmra.mrb[0].mxu0 %v327
  %v693 = vpop.f32.mrb[0].mxu0
  %v694 = vadd.f32 0.0, %v693
  %v695 = vpop.f32.mrb[0].mxu0
  %v696 = vpop.f32.mrb[0].mxu0
  %v697 = vadd.f32 0.0, %v696
  %v698 = vpop.f32.mrb[0].mxu0
  %699 = vmatprep.mubr.bf16.mxu0 %v333
  %700 = vmatmul.mubr.bf16.gmra.mrb[0].mxu0 %v332
  %v701 = vpop.f32.mrb[0].mxu0
  %v702 = vadd.f32 0.0, %v701
  %v703 = vpop.f32.mrb[0].mxu0
  %v704 = vpop.f32.mrb[0].mxu0
  %v705 = vadd.f32 0.0, %v704
  %v706 = vpop.f32.mrb[0].mxu0
  %707 = vmatprep.mubr.bf16.mxu0 %v338
  %708 = vmatmul.mubr.bf16.gmra.mrb[0].mxu0 %v337
  %v709 = vpop.f32.mrb[0].mxu0
  %v710 = vadd.f32 0.0, %v709
  %v711 = vpop.f32.mrb[0].mxu0
  %v712 = vpop.f32.mrb[0].mxu0
  %v713 = vadd.f32 0.0, %v712
  %v714 = vpop.f32.mrb[0].mxu0
  %715 = vmatprep.mubr.bf16.mxu0 %v343
  %716 = vmatmul.mubr.bf16.gmra.mrb[0].mxu0 %v342
  %v717 = vpop.f32.mrb[0].mxu0
  %v718 = vadd.f32 0.0, %v717
  %v719 = vpop.f32.mrb[0].mxu0
  %v720 = vpop.f32.mrb[0].mxu0
  %v721 = vadd.f32 0.0, %v720
  %v722 = vpop.f32.mrb[0].mxu0
  %723 = vdwg.mxu0
  %724 = vmatprep.subr.bf16.mxu0 0
  %725 = vmatpush1.bf16.msra.mxu0 %v563
  %726 = vmatprep.subr.bf16.mxu0 0
  %727 = vmatpush1.bf16.msra.mxu0 %v564
  %728 = vmatprep.subr.bf16.mxu0 0
  %729 = vmatpush1.bf16.msra.mxu0 %v565
  %730 = vmatprep.subr.bf16.mxu0 0
  %731 = vmatpush1.bf16.msra.mxu0 %v566
  %732 = vmatprep.subr.bf16.mxu0 0
  %733 = vmatpush1.bf16.msra.mxu0 %v567
  %734 = vmatprep.subr.bf16.mxu0 0
  %735 = vmatpush1.bf16.msra.mxu0 %v568
  %736 = vmatprep.subr.bf16.mxu0 0
  %737 = vmatpush1.bf16.msra.mxu0 %v569
  %738 = vmatprep.subr.bf16.mxu0 0
  %739 = vmatpush1.bf16.msra.mxu0 %v570
  %740 = vmatprep.subr.bf16.mxu0 0
  %741 = vmatpush1.bf16.msra.mxu0 %v571
  %742 = vmatprep.subr.bf16.mxu0 0
  %743 = vmatpush1.bf16.msra.mxu0 %v572
  %744 = vmatprep.subr.bf16.mxu0 0
  %745 = vmatpush1.bf16.msra.mxu0 %v573
  %746 = vmatprep.subr.bf16.mxu0 0
  %747 = vmatpush1.bf16.msra.mxu0 %v574
  %748 = vmatprep.subr.bf16.mxu0 0
  %749 = vmatpush1.bf16.msra.mxu0 %v575
  %750 = vmatprep.subr.bf16.mxu0 0
  %751 = vmatpush1.bf16.msra.mxu0 %v576
  %752 = vmatprep.subr.bf16.mxu0 0
  %753 = vmatpush1.bf16.msra.mxu0 %v577
  %754 = vmatprep.subr.bf16.mxu0 0
  %755 = vmatpush1.bf16.msra.mxu0 %v578
  %756 = vmatprep.mubr.bf16.mxu0 %v310
  %757 = vmatmul.mubr.bf16.gmra.mrb[0].mxu0 %v309
  %v758 = vpop.f32.mrb[0].mxu0
  %v759 = vadd.f32 %v662, %v758
  %v760 = vpop.f32.mrb[0].mxu0
  %v761 = vpop.f32.mrb[0].mxu0
  %v762 = vadd.f32 %v665, %v761
  %v763 = vpop.f32.mrb[0].mxu0
  %764 = vmatprep.mubr.bf16.mxu0 %v315
  %765 = vmatmul.mubr.bf16.gmra.mrb[0].mxu0 %v314
  %v766 = vpop.f32.mrb[0].mxu0
  %v767 = vadd.f32 %v670, %v766
  %v768 = vpop.f32.mrb[0].mxu0
  %v769 = vpop.f32.mrb[0].mxu0
  %v770 = vadd.f32 %v673, %v769
  %v771 = vpop.f32.mrb[0].mxu0
  %772 = vmatprep.mubr.bf16.mxu0 %v320
  %773 = vmatmul.mubr.bf16.gmra.mrb[0].mxu0 %v319
  %v774 = vpop.f32.mrb[0].mxu0
  %v775 = vadd.f32 %v678, %v774
  %v776 = vpop.f32.mrb[0].mxu0
  %v777 = vpop.f32.mrb[0].mxu0
  %v778 = vadd.f32 %v681, %v777
  %v779 = vpop.f32.mrb[0].mxu0
  %780 = vmatprep.mubr.bf16.mxu0 %v325
  %781 = vmatmul.mubr.bf16.gmra.mrb[0].mxu0 %v324
  %v782 = vpop.f32.mrb[0].mxu0
  %v783 = vadd.f32 %v686, %v782
  %v784 = vpop.f32.mrb[0].mxu0
  %v785 = vpop.f32.mrb[0].mxu0
  %v786 = vadd.f32 %v689, %v785
  %v787 = vpop.f32.mrb[0].mxu0
  %788 = vmatprep.mubr.bf16.mxu0 %v330
  %789 = vmatmul.mubr.bf16.gmra.mrb[0].mxu0 %v329
  %v790 = vpop.f32.mrb[0].mxu0
  %v791 = vadd.f32 %v694, %v790
  %v792 = vpop.f32.mrb[0].mxu0
  %v793 = vpop.f32.mrb[0].mxu0
  %v794 = vadd.f32 %v697, %v793
  %v795 = vpop.f32.mrb[0].mxu0
  %796 = vmatprep.mubr.bf16.mxu0 %v335
  %797 = vmatmul.mubr.bf16.gmra.mrb[0].mxu0 %v334
  %v798 = vpop.f32.mrb[0].mxu0
  %v799 = vadd.f32 %v702, %v798
  %v800 = vpop.f32.mrb[0].mxu0
  %v801 = vpop.f32.mrb[0].mxu0
  %v802 = vadd.f32 %v705, %v801
  %v803 = vpop.f32.mrb[0].mxu0
  %804 = vmatprep.mubr.bf16.mxu0 %v340
  %805 = vmatmul.mubr.bf16.gmra.mrb[0].mxu0 %v339
  %v806 = vpop.f32.mrb[0].mxu0
  %v807 = vadd.f32 %v710, %v806
  %v808 = vpop.f32.mrb[0].mxu0
  %v809 = vpop.f32.mrb[0].mxu0
  %v810 = vadd.f32 %v713, %v809
  %v811 = vpop.f32.mrb[0].mxu0
  %812 = vmatprep.mubr.bf16.mxu0 %v345
  %813 = vmatmul.mubr.bf16.gmra.mrb[0].mxu0 %v344
  %v814 = vpop.f32.mrb[0].mxu0
  %v815 = vadd.f32 %v718, %v814
  %v816 = vpop.f32.mrb[0].mxu0
  %v817 = vpop.f32.mrb[0].mxu0
  %v818 = vadd.f32 %v721, %v817
  %v819 = vpop.f32.mrb[0].mxu0
  %820 = vdwg.mxu0
  %821 = vmatprep.subr.bf16.mxu0 0
  %822 = vmatpush1.bf16.msra.mxu0 %v579
  %823 = vmatprep.subr.bf16.mxu0 0
  %824 = vmatpush1.bf16.msra.mxu0 %v580
  %825 = vmatprep.subr.bf16.mxu0 0
  %826 = vmatpush1.bf16.msra.mxu0 %v581
  %827 = vmatprep.subr.bf16.mxu0 0
  %828 = vmatpush1.bf16.msra.mxu0 %v582
  %829 = vmatprep.subr.bf16.mxu0 0
  %830 = vmatpush1.bf16.msra.mxu0 %v583
  %831 = vmatprep.subr.bf16.mxu0 0
  %832 = vmatpush1.bf16.msra.mxu0 %v584
  %833 = vmatprep.subr.bf16.mxu0 0
  %834 = vmatpush1.bf16.msra.mxu0 %v585
  %835 = vmatprep.subr.bf16.mxu0 0
  %836 = vmatpush1.bf16.msra.mxu0 %v586
  %837 = vmatprep.subr.bf16.mxu0 0
  %838 = vmatpush1.bf16.msra.mxu0 0
  %839 = vmatprep.subr.bf16.mxu0 0
  %840 = vmatpush1.bf16.msra.mxu0 0
  %841 = vmatprep.subr.bf16.mxu0 0
  %842 = vmatpush1.bf16.msra.mxu0 0
  %843 = vmatprep.subr.bf16.mxu0 0
  %844 = vmatpush1.bf16.msra.mxu0 0
  %845 = vmatprep.subr.bf16.mxu0 0
  %846 = vmatpush1.bf16.msra.mxu0 0
  %847 = vmatprep.subr.bf16.mxu0 0
  %848 = vmatpush1.bf16.msra.mxu0 0
  %849 = vmatprep.subr.bf16.mxu0 0
  %850 = vmatpush1.bf16.msra.mxu0 0
  %851 = vmatprep.subr.bf16.mxu0 0
  %852 = vmatpush1.bf16.msra.mxu0 0
  %853 = vmatprep.mubr.bf16.mxu0 0
  %854 = vmatmul.mubr.bf16.gmra.mrb[0].mxu0 %v311
  %v855 = vpop.f32.mrb[0].mxu0
  %v856 = vadd.f32 %v759, %v855
  %v857 = vpop.f32.mrb[0].mxu0
  %v858 = vpop.f32.mrb[0].mxu0
  %v859 = vadd.f32 %v762, %v858
  %v860 = vpop.f32.mrb[0].mxu0
  %861 = vmatprep.mubr.bf16.mxu0 0
  %862 = vmatmul.mubr.bf16.gmra.mrb[0].mxu0 %v316
  %v863 = vpop.f32.mrb[0].mxu0
  %v864 = vadd.f32 %v767, %v863
  %v865 = vpop.f32.mrb[0].mxu0
  %v866 = vpop.f32.mrb[0].mxu0
  %v867 = vadd.f32 %v770, %v866
  %v868 = vpop.f32.mrb[0].mxu0
  %869 = vmatprep.mubr.bf16.mxu0 0
  %870 = vmatmul.mubr.bf16.gmra.mrb[0].mxu0 %v321
  %v871 = vpop.f32.mrb[0].mxu0
  %v872 = vadd.f32 %v775, %v871
  %v873 = vpop.f32.mrb[0].mxu0
  %v874 = vpop.f32.mrb[0].mxu0
  %v875 = vadd.f32 %v778, %v874
  %v876 = vpop.f32.mrb[0].mxu0
  %877 = vmatprep.mubr.bf16.mxu0 0
  %878 = vmatmul.mubr.bf16.gmra.mrb[0].mxu0 %v326
  %v879 = vpop.f32.mrb[0].mxu0
  %v880 = vadd.f32 %v783, %v879
  %v881 = vpop.f32.mrb[0].mxu0
  %v882 = vpop.f32.mrb[0].mxu0
  %v883 = vadd.f32 %v786, %v882
  %v884 = vpop.f32.mrb[0].mxu0
  %885 = vmatprep.mubr.bf16.mxu0 0
  %886 = vmatmul.mubr.bf16.gmra.mrb[0].mxu0 %v331
  %v887 = vpop.f32.mrb[0].mxu0
  %v888 = vadd.f32 %v791, %v887
  %v889 = vpop.f32.mrb[0].mxu0
  %v890 = vpop.f32.mrb[0].mxu0
  %v891 = vadd.f32 %v794, %v890
  %v892 = vpop.f32.mrb[0].mxu0
  %893 = vmatprep.mubr.bf16.mxu0 0
  %894 = vmatmul.mubr.bf16.gmra.mrb[0].mxu0 %v336
  %v895 = vpop.f32.mrb[0].mxu0
  %v896 = vadd.f32 %v799, %v895
  %v897 = vpop.f32.mrb[0].mxu0
  %v898 = vpop.f32.mrb[0].mxu0
  %v899 = vadd.f32 %v802, %v898
  %v900 = vpop.f32.mrb[0].mxu0
  %901 = vmatprep.mubr.bf16.mxu0 0
  %902 = vmatmul.mubr.bf16.gmra.mrb[0].mxu0 %v341
  %v903 = vpop.f32.mrb[0].mxu0
  %v904 = vadd.f32 %v807, %v903
  %v905 = vpop.f32.mrb[0].mxu0
  %v906 = vpop.f32.mrb[0].mxu0
  %v907 = vadd.f32 %v810, %v906
  %v908 = vpop.f32.mrb[0].mxu0
  %909 = vmatprep.mubr.bf16.mxu0 0
  %910 = vmatmul.mubr.bf16.gmra.mrb[0].mxu0 %v346
  %v911 = vpop.f32.mrb[0].mxu0
  %v912 = vadd.f32 %v815, %v911
  %v913 = vpop.f32.mrb[0].mxu0
  %v914 = vpop.f32.mrb[0].mxu0
  %v915 = vadd.f32 %v818, %v914
  %v916 = vpop.f32.mrb[0].mxu0
  %917 = vdwg.mxu0
  %v918 = vadd.f32 %v35, %v856
  %v919 = vadd.f32 %v36, %v859
  %v920 = vadd.f32 %v37, %v864
  %v921 = vadd.f32 %v38, %v867
  %v922 = vadd.f32 %v39, %v872
  %v923 = vadd.f32 %v40, %v875
  %v924 = vadd.f32 %v41, %v880
  %v925 = vadd.f32 %v42, %v883
  %v926 = vadd.f32 %v43, %v888
  %v927 = vadd.f32 %v44, %v891
  %v928 = vadd.f32 %v45, %v896
  %v929 = vadd.f32 %v46, %v899
  %v930 = vadd.f32 %v47, %v904
  %v931 = vadd.f32 %v48, %v907
  %v932 = vadd.f32 %v49, %v912
  %v933 = vadd.f32 %v50, %v915
  %934 = vst [vmem:[#allocation2] sm:$0xff] %v918
  %935 = vst [vmem:[#allocation2 + $0x8] sm:$0xff] %v919
  %936 = vst [vmem:[#allocation2 + $0x10] sm:$0xff] %v920
  %937 = vst [vmem:[#allocation2 + $0x18] sm:$0xff] %v921
  %938 = vst [vmem:[#allocation2 + $0x20] sm:$0xff] %v922
  %939 = vst [vmem:[#allocation2 + $0x28] sm:$0xff] %v923
  %940 = vst [vmem:[#allocation2 + $0x30] sm:$0xff] %v924
  %941 = vst [vmem:[#allocation2 + $0x38] sm:$0xff] %v925
  %942 = vst [vmem:[#allocation2 + $0x40] sm:$0xff] %v926
  %943 = vst [vmem:[#allocation2 + $0x48] sm:$0xff] %v927
  %944 = vst [vmem:[#allocation2 + $0x50] sm:$0xff] %v928
  %945 = vst [vmem:[#allocation2 + $0x58] sm:$0xff] %v929
  %946 = vst [vmem:[#allocation2 + $0x60] sm:$0xff] %v930
  %947 = vst [vmem:[#allocation2 + $0x68] sm:$0xff] %v931
  %948 = vst [vmem:[#allocation2 + $0x70] sm:$0xff] %v932
  %949 = vst [vmem:[#allocation2 + $0x78] sm:$0xff] %v933
  // Predicated region
  $region18: #{discriminator_forward.9} parent=0 // pred_check
    %p950 = pneg %p15
  $region19: #{discriminator_forward.9} parent=0 // pred_check_branch
    %952 = sbr.rel (%p950) target = $region21
  $region20: #{discriminator_forward.9} parent=0 // pred_region
    %v953 = vld [vmem:[#allocation2] sm:$0xff]
    %v954 = vld [vmem:[#allocation2 + $0x8] sm:$0xff]
    %v955 = vld [vmem:[#allocation2 + $0x10] sm:$0xff]
    %v956 = vld [vmem:[#allocation2 + $0x18] sm:$0xff]
    %v957 = vld [vmem:[#allocation2 + $0x20] sm:$0xff]
    %v958 = vld [vmem:[#allocation2 + $0x28] sm:$0xff]
    %v959 = vld [vmem:[#allocation2 + $0x30] sm:$0xff]
    %v960 = vld [vmem:[#allocation2 + $0x38] sm:$0xff]
    %v961 = vld [vmem:[#allocation2 + $0x40] sm:$0xff]
    %v962 = vld [vmem:[#allocation2 + $0x48] sm:$0xff]
    %v963 = vld [vmem:[#allocation2 + $0x50] sm:$0xff]
    %v964 = vld [vmem:[#allocation2 + $0x58] sm:$0xff]
    %v965 = vld [vmem:[#allocation2 + $0x60] sm:$0xff]
    %v966 = vld [vmem:[#allocation2 + $0x68] sm:$0xff]
    %v967 = vld [vmem:[#allocation2 + $0x70] sm:$0xff]
    %v968 = vld [vmem:[#allocation2 + $0x78] sm:$0xff]
    %v969 = vld [vmem:[%s2] sm:$0x1]
    %v971 = vlaneseq
    %v972 = vshrl.u32 %v971, 7
    %v973 = vsub.s32 0, %v972
    %v974 = vrot.slane %v969, %v973
    %v976 = vadd.f32 %v953, %v974
    %v977 = vadd.f32 %v954, %v974
    %v978 = vadd.f32 %v955, %v974
    %v979 = vadd.f32 %v956, %v974
    %v980 = vadd.f32 %v957, %v974
    %v981 = vadd.f32 %v958, %v974
    %v982 = vadd.f32 %v959, %v974
    %v983 = vadd.f32 %v960, %v974
    %v984 = vadd.f32 %v961, %v974
    %v985 = vadd.f32 %v962, %v974
    %v986 = vadd.f32 %v963, %v974
    %v987 = vadd.f32 %v964, %v974
    %v988 = vadd.f32 %v965, %v974
    %v989 = vadd.f32 %v966, %v974
    %v990 = vadd.f32 %v967, %v974
    %v991 = vadd.f32 %v968, %v974
    %992 = vst [vmem:[%s3] sm:$0xff] %v976
    %993 = vst [vmem:[%s3 + $0x8] sm:$0xff] %v977
    %994 = vst [vmem:[%s3 + $0x10] sm:$0xff] %v978
    %995 = vst [vmem:[%s3 + $0x18] sm:$0xff] %v979
    %996 = vst [vmem:[%s3 + $0x20] sm:$0xff] %v980
    %997 = vst [vmem:[%s3 + $0x28] sm:$0xff] %v981
    %998 = vst [vmem:[%s3 + $0x30] sm:$0xff] %v982
    %999 = vst [vmem:[%s3 + $0x38] sm:$0xff] %v983
    %1000 = vst [vmem:[%s3 + $0x40] sm:$0xff] %v984
    %1001 = vst [vmem:[%s3 + $0x48] sm:$0xff] %v985
    %1002 = vst [vmem:[%s3 + $0x50] sm:$0xff] %v986
    %1003 = vst [vmem:[%s3 + $0x58] sm:$0xff] %v987
    %1004 = vst [vmem:[%s3 + $0x60] sm:$0xff] %v988
    %1005 = vst [vmem:[%s3 + $0x68] sm:$0xff] %v989
    %1006 = vst [vmem:[%s3 + $0x70] sm:$0xff] %v990
    %1007 = vst [vmem:[%s3 + $0x78] sm:$0xff] %v991
  $region21: #{discriminator_forward.9} parent=0 // pred_fallthru
    _
  // Predicated region
  $region22: #{discriminator_forward.9} parent=0 // pred_check
    _
  $region23: #{discriminator_forward.9} parent=0 // pred_check_branch
    %1009 = sbr.rel (0) target = $region25
  $region24: #{discriminator_forward.9} parent=0 // pred_region
    _
  $region25: #{discriminator_forward.9} parent=0 // pred_fallthru
    _
  // Predicated region
  $region26: #{discriminator_forward.9} parent=0 // pred_check
    _
  $region27: #{discriminator_forward.9} parent=0 // pred_check_branch
    %1011 = sbr.rel (0) target = $region29
  $region28: #{discriminator_forward.9} parent=0 // pred_region
    _
  $region29: #{discriminator_forward.9} parent=0 // pred_fallthru
    _

// kernel: discriminator_forward.12
$region0: #{discriminator_forward.12}
  #allocation0 [shape = 'u32[]', space=smem, size = 0x4, offset = 0x4, fixed_abs, tag = 'smem constant byte address 0x4 - core index']
  #allocation1 [shape = 'u32[144,128]{1,0:T(1,128)}', space=vmem, size = 0x12000, scoped, tag = 'internal scratch']
  %s0 = inlined_call_operand.vmem [shape: f32[2,16,256], index: 0, kind: input, shape index: {}]
  %s1 = inlined_call_operand.vmem [shape: f32[2,16,256], index: 1, kind: output, shape index: {}]
  %s2 = sld [smem:[#allocation0]]
  $region37: #{discriminator_forward.12} parent=0
    _
  %s4 = ssub.s32 1, %s2
  %s5 = scalar_select 0, %s4, %s2
  loop: start=0, step=1, limit=4
  $region2: #{discriminator_forward.12} parent=0 // loop_pre_header
    _
  $region3: #{discriminator_forward.12} parent=0 // loop_header
    %s7 = sphi 0, %s11
    %p8 = scmp.ge.s32.totalorder %s7, 4
    %s17 = sphi 0, %s19
    %s20 = sphi 0, %s17
    %s21 = sphi 0, %s20
    %s37 = sphi 0, %s21
    %s43 = sphi 0, %s45
    %s46 = sphi 0, %s43
    %s47 = sphi 0, %s46
    %s63 = sphi 0, %s47
  $region4: #{discriminator_forward.12} parent=0 // loop_header_branch
    %10 = sbr.rel (%p8) target = $region8
  $region5: #{discriminator_forward.12} parent=0 // loop_body
    %s12 = ssub.s32 %s7, 1
    %s13 = ssub.s32 %s7, 2
    %s14 = sadd.s32 %s7, 1
    %s15 = ssub.s32 %s7, %s14
    %p16 = scmp.eq.s32.totalorder %s15, 0
    %s18 = sadd.s32 %s17, 1
    %s19 = scalar_select %p16, %s17, %s18
    %p22 = pneg %p16
    %p23 = scmp.eq.s32.totalorder %s7, 1
    %p24 = por %p22, %p23
    %p25 = scmp.ne.s32.totalorder %s17, %s20
    %p26 = scmp.eq.s32.totalorder %s7, 0
    %p27 = por %p25, %p26
    %p28 = scmp.ne.s32.totalorder %s17, %s20
    %p29 = scmp.eq.s32.totalorder %s12, 1
    %p30 = por %p28, %p29
    %p31 = scmp.ne.s32.totalorder %s20, %s21
    %p32 = scmp.eq.s32.totalorder %s12, 0
    %p33 = por %p31, %p32
    %p34 = scmp.ne.s32.totalorder %s20, %s21
    %p35 = scmp.eq.s32.totalorder %s13, 1
    %p36 = por %p34, %p35
    %p38 = scmp.ne.s32.totalorder %s21, %s37
    %p39 = scmp.eq.s32.totalorder %s13, 0
    %p40 = por %p38, %p39
    %s41 = ssub.s32 %s7, %s14
    %p42 = scmp.eq.s32.totalorder %s41, 0
    %s44 = sadd.s32 %s43, 1
    %s45 = scalar_select %p42, %s43, %s44
    %p48 = pneg %p42
    %p49 = scmp.eq.s32.totalorder %s7, 1
    %p50 = por %p48, %p49
    %p51 = scmp.ne.s32.totalorder %s43, %s46
    %p52 = scmp.eq.s32.totalorder %s7, 0
    %p53 = por %p51, %p52
    %p54 = scmp.ne.s32.totalorder %s43, %s46
    %p55 = scmp.eq.s32.totalorder %s12, 1
    %p56 = por %p54, %p55
    %p57 = scmp.ne.s32.totalorder %s46, %s47
    %p58 = scmp.eq.s32.totalorder %s12, 0
    %p59 = por %p57, %p58
    %p60 = scmp.ne.s32.totalorder %s46, %s47
    %p61 = scmp.eq.s32.totalorder %s13, 1
    %p62 = por %p60, %p61
    %p64 = scmp.ne.s32.totalorder %s47, %s63
    %p65 = scmp.eq.s32.totalorder %s13, 0
    %p66 = por %p64, %p65
    %p67 = scmp.le.s32.totalorder 1, %s7
    %p68 = scmp.lt.s32.totalorder %s7, 3
    %p69 = pnand %p67, %p68
    %p70 = pneg %p69
    // Predicated region
    $region9: #{discriminator_forward.12} parent=5 // pred_check
      _
    $region10: #{discriminator_forward.12} parent=5 // pred_check_branch
      %72 = sbr.rel (%p69) target = $region12
    $region11: #{discriminator_forward.12} parent=5 // pred_region
      %s73 = ssub.s32 %s7, 1
    $region12: #{discriminator_forward.12} parent=5 // pred_fallthru
      _
    %p74 = scmp.lt.s32.totalorder %s7, 2
    // Predicated region
    $region13: #{discriminator_forward.12} parent=5 // pred_check
      %p75 = pneg %p74
    $region14: #{discriminator_forward.12} parent=5 // pred_check_branch
      %77 = sbr.rel (%p75) target = $region16
    $region15: #{discriminator_forward.12} parent=5 // pred_region
      // Predicated region
      $region17: #{discriminator_forward.12} parent=15 // pred_check
        %p78 = pneg %p27
      $region18: #{discriminator_forward.12} parent=15 // pred_check_branch
        %80 = sbr.rel (%p78) target = $region20
      $region19: #{discriminator_forward.12} parent=15 // pred_region
        %p81 = scmp.lt.s32.totalorder %s7, 1
        %s82 = scalar_select %p81, %s7, 1
        %s83 = smul.addr %s82, 4
        %s84 = smul.addr %s83, 8
        %s85 = scalar_lea.vmem %s0, %s84
      $region20: #{discriminator_forward.12} parent=15 // pred_fallthru
        _
    $region16: #{discriminator_forward.12} parent=5 // pred_fallthru
      _
    %p86 = scmp.le.s32.totalorder 1, %s7
    %p87 = scmp.lt.s32.totalorder %s7, 3
    %p88 = pnand %p86, %p87
    %p89 = pneg %p88
    // Predicated region
    $region21: #{discriminator_forward.12} parent=5 // pred_check
      _
    $region22: #{discriminator_forward.12} parent=5 // pred_check_branch
      %91 = sbr.rel (%p88) target = $region24
    $region23: #{discriminator_forward.12} parent=5 // pred_region
      %s92 = ssub.s32 %s7, 1
      %p93 = scmp.lt.s32.totalorder %s12, 1
      %s94 = scalar_select %p93, %s12, 1
      %s95 = smul.addr %s94, 4
      %s96 = smul.addr %s95, 8
      %s97 = scalar_lea.vmem %s0, %s96
      %p98 = pneg %p33
      %p99 = pneg %p30
      %p100 = pneg %p59
      %p101 = pneg %p56
      %p102 = scmp.lt.s32.totalorder %s12, 1
      %s103 = scalar_select %p102, %s12, 1
      %s104 = smul.addr %s103, 4
      %s105 = smul.addr %s104, 8
      %s106 = scalar_lea.vmem %s1, %s105
      %p107 = scmp.lt.s32.totalorder %s12, 1
      %s108 = scalar_select %p107, %s12, 1
      %s109 = smul.addr %s108, 4
      %s110 = smul.addr %s109, 8
      %s111 = scalar_lea.vmem %s0, %s110
      %p112 = scmp.lt.s32.totalorder %s12, 1
      %s113 = scalar_select %p112, %s12, 1
      %s114 = smul.addr %s113, 4
      %s115 = smul.addr %s114, 8
      %s116 = scalar_lea.vmem %s1, %s115
      %v117 = vld [vmem:[%s111] sm:$0xff]
      %v118 = vld [vmem:[%s111 + $0x8] sm:$0xff]
      %v119 = vld [vmem:[%s111 + $0x10] sm:$0xff]
      %v120 = vld [vmem:[%s111 + $0x18] sm:$0xff]
      %v121 = vadd.f32 %v117, %v119
      %v122 = vrot.slane %v121, 4
      %v123 = vadd.f32 %v121, %v122
      %v124 = vrot.slane %v123, 2
      %v125 = vadd.f32 %v123, %v124
      %v126 = vrot.slane %v125, 1
      %v127 = vadd.f32 %v125, %v126
      %v128 = vadd.f32 %v118, %v120
      %v129 = vrot.slane %v128, 4
      %v130 = vadd.f32 %v128, %v129
      %v131 = vrot.slane %v130, 2
      %v132 = vadd.f32 %v130, %v131
      %v133 = vrot.slane %v132, 1
      %v134 = vadd.f32 %v132, %v133
      %v135 = vrcp.pop 16.0
      %v136 = vmul.f32 %v127, %v135
      %v137 = vmul.f32 %v134, %v135
      %v138 = vsub.f32 %v117, %v136
      %v139 = vsub.f32 %v118, %v137
      %v140 = vsub.f32 %v119, %v136
      %v141 = vsub.f32 %v120, %v137
      %v142 = vmul.f32 %v138, %v138
      %v143 = vmul.f32 %v139, %v139
      %v144 = vmul.f32 %v140, %v140
      %v145 = vmul.f32 %v141, %v141
      %v146 = vadd.f32 %v142, %v144
      %v147 = vrot.slane %v146, 4
      %v148 = vadd.f32 %v146, %v147
      %v149 = vrot.slane %v148, 2
      %v150 = vadd.f32 %v148, %v149
      %v151 = vrot.slane %v150, 1
      %v152 = vadd.f32 %v150, %v151
      %v153 = vadd.f32 %v143, %v145
      %v154 = vrot.slane %v153, 4
      %v155 = vadd.f32 %v153, %v154
      %v156 = vrot.slane %v155, 2
      %v157 = vadd.f32 %v155, %v156
      %v158 = vrot.slane %v157, 1
      %v159 = vadd.f32 %v157, %v158
      %v160 = vmul.f32 %v152, %v135
      %v161 = vmul.f32 %v159, %v135
      %v162 = vadd.f32 %v160, 1e-05
      %v163 = vadd.f32 %v161, 1e-05
      %v164 = vrsqrt.pop %v162
      %v165 = vrsqrt.pop %v163
      %v166 = vmul.f32 %v138, %v164
      %v167 = vmul.f32 %v139, %v165
      %v168 = vmul.f32 %v140, %v164
      %v169 = vmul.f32 %v141, %v165
      %vm170 = vcmp.ge.f32.partialorder %v166, 0.0
      %vm171 = vcmp.ge.f32.partialorder %v167, 0.0
      %vm172 = vcmp.ge.f32.partialorder %v168, 0.0
      %vm173 = vcmp.ge.f32.partialorder %v169, 0.0
      %v174 = vmul.f32 %v166, 0.2
      %v175 = vmul.f32 %v167, 0.2
      %v176 = vmul.f32 %v168, 0.2
      %v177 = vmul.f32 %v169, 0.2
      %v178 = vsel %vm170, %v166, %v174
      %v179 = vsel %vm171, %v167, %v175
      %v180 = vsel %vm172, %v168, %v176
      %v181 = vsel %vm173, %v169, %v177
      %182 = vst [vmem:[%s116] sm:$0xff] %v178
      %183 = vst [vmem:[%s116 + $0x8] sm:$0xff] %v179
      %184 = vst [vmem:[%s116 + $0x10] sm:$0xff] %v180
      %185 = vst [vmem:[%s116 + $0x18] sm:$0xff] %v181
      %p186 = scmp.lt.s32.totalorder %s12, 1
      %s187 = scalar_select %p186, %s12, 1
      %s188 = smul.addr %s187, 4
      %s189 = smul.addr %s188, 8
      %s190 = scalar_lea.vmem %s1, %s189
      // Predicated region
      $region25: #{discriminator_forward.12} parent=23 // pred_check
        %p191 = pneg %p56
      $region26: #{discriminator_forward.12} parent=23 // pred_check_branch
        %193 = sbr.rel (%p191) target = $region28
      $region27: #{discriminator_forward.12} parent=23 // pred_region
        _
      $region28: #{discriminator_forward.12} parent=23 // pred_fallthru
        _
    $region24: #{discriminator_forward.12} parent=5 // pred_fallthru
      _
    %p194 = scmp.le.s32.totalorder 2, %s7
    // Predicated region
    $region29: #{discriminator_forward.12} parent=5 // pred_check
      %p195 = pneg %p194
    $region30: #{discriminator_forward.12} parent=5 // pred_check_branch
      %197 = sbr.rel (%p195) target = $region32
    $region31: #{discriminator_forward.12} parent=5 // pred_region
      %s198 = ssub.s32 %s7, 2
      // Predicated region
      $region33: #{discriminator_forward.12} parent=31 // pred_check
        %p199 = pneg %p62
      $region34: #{discriminator_forward.12} parent=31 // pred_check_branch
        %201 = sbr.rel (%p199) target = $region36
      $region35: #{discriminator_forward.12} parent=31 // pred_region
        %p202 = scmp.lt.s32.totalorder %s13, 1
        %s203 = scalar_select %p202, %s13, 1
        %s204 = smul.addr %s203, 4
        %s205 = smul.addr %s204, 8
        %s206 = scalar_lea.vmem %s1, %s205
      $region36: #{discriminator_forward.12} parent=31 // pred_fallthru
        _
    $region32: #{discriminator_forward.12} parent=5 // pred_fallthru
      _
  $region6: #{discriminator_forward.12} parent=0 // loop_footer
    %s11 = sadd.s32 1, %s7
  $region7: #{discriminator_forward.12} parent=0 // loop_footer_branch
    %6 = sbr.rel target = $region3
  $region8: #{discriminator_forward.12} parent=0 // loop_exit
    _

// kernel: discriminator_forward.11
$region0: #{discriminator_forward.11}
  #allocation0 [shape = 'u32[]', space=smem, size = 0x4, offset = 0x4, fixed_abs, tag = 'smem constant byte address 0x4 - core index']
  #allocation1 [shape = 'u32[144,128]{1,0:T(1,128)}', space=vmem, size = 0x12000, scoped, tag = 'internal scratch']
  #allocation2 [shape = 'f32[32,256]{1,0:T(8,128)}', space=vmem, size = 0x8000, scoped, tag = 'scratch operand']
  %s0 = inlined_call_operand.vmem [shape: bf16[32,1152], index: 0, kind: input, shape index: {}]
  %s1 = inlined_call_operand.vmem [shape: bf16[1152,256], index: 1, kind: input, shape index: {}]
  %s2 = inlined_call_operand.vmem [shape: f32[1,256], index: 2, kind: input, shape index: {}]
  %s3 = inlined_call_operand.vmem [shape: f32[32,256], index: 3, kind: output, shape index: {}]
  %s4 = sld [smem:[#allocation0]]
  $region30: #{discriminator_forward.11} parent=0
    _
  %s6 = ssub.s32 1, %s4
  %s7 = scalar_select 0, %s6, %s4
  // Predicated region
  $region2: #{discriminator_forward.11} parent=0 // pred_check
    _
  $region3: #{discriminator_forward.11} parent=0 // pred_check_branch
    %9 = sbr.rel (0) target = $region5
  $region4: #{discriminator_forward.11} parent=0 // pred_region
    _
  $region5: #{discriminator_forward.11} parent=0 // pred_fallthru
    _
  // Predicated region
  $region6: #{discriminator_forward.11} parent=0 // pred_check
    _
  $region7: #{discriminator_forward.11} parent=0 // pred_check_branch
    %11 = sbr.rel (0) target = $region9
  $region8: #{discriminator_forward.11} parent=0 // pred_region
    _
  $region9: #{discriminator_forward.11} parent=0 // pred_fallthru
    _
  // Predicated region
  $region10: #{discriminator_forward.11} parent=0 // pred_check
    _
  $region11: #{discriminator_forward.11} parent=0 // pred_check_branch
    %13 = sbr.rel (0) target = $region13
  $region12: #{discriminator_forward.11} parent=0 // pred_region
    _
  $region13: #{discriminator_forward.11} parent=0 // pred_fallthru
    _
  %p15 = scmp.eq.s32.totalorder 0, 0
  // Predicated region
  $region14: #{discriminator_forward.11} parent=0 // pred_check
    %p16 = pneg %p15
  $region15: #{discriminator_forward.11} parent=0 // pred_check_branch
    %18 = sbr.rel (%p16) target = $region17
  $region16: #{discriminator_forward.11} parent=0 // pred_region
    %19 = vst [vmem:[#allocation2] sm:$0xff] 0.0
    %20 = vst [vmem:[#allocation2 + $0x8] sm:$0xff] 0.0
    %21 = vst [vmem:[#allocation2 + $0x10] sm:$0xff] 0.0
    %22 = vst [vmem:[#allocation2 + $0x18] sm:$0xff] 0.0
    %23 = vst [vmem:[#allocation2 + $0x20] sm:$0xff] 0.0
    %24 = vst [vmem:[#allocation2 + $0x28] sm:$0xff] 0.0
    %25 = vst [vmem:[#allocation2 + $0x30] sm:$0xff] 0.0
    %26 = vst [vmem:[#allocation2 + $0x38] sm:$0xff] 0.0
  $region17: #{discriminator_forward.11} parent=0 // pred_fallthru
    _
  %v27 = vld [vmem:[#allocation2] sm:$0xff]
  %v28 = vld [vmem:[#allocation2 + $0x8] sm:$0xff]
  %v29 = vld [vmem:[#allocation2 + $0x10] sm:$0xff]
  %v30 = vld [vmem:[#allocation2 + $0x18] sm:$0xff]
  %v31 = vld [vmem:[#allocation2 + $0x20] sm:$0xff]
  %v32 = vld [vmem:[#allocation2 + $0x28] sm:$0xff]
  %v33 = vld [vmem:[#allocation2 + $0x30] sm:$0xff]
  %v34 = vld [vmem:[#allocation2 + $0x38] sm:$0xff]
  %v35 = vld [vmem:[%s0] sm:$0xff]
  %v36 = vld [vmem:[%s0 + $0x8] sm:$0xff]
  %v37 = vld [vmem:[%s0 + $0x10] sm:$0xff]
  %v38 = vld [vmem:[%s0 + $0x18] sm:$0xff]
  %v39 = vld [vmem:[%s0 + $0x20] sm:$0xf]
  %v40 = vld [vmem:[%s0 + $0x24] sm:$0xff]
  %v41 = vld [vmem:[%s0 + $0x2c] sm:$0xff]
  %v42 = vld [vmem:[%s0 + $0x34] sm:$0xff]
  %v43 = vld [vmem:[%s0 + $0x3c] sm:$0xff]
  %v44 = vld [vmem:[%s0 + $0x44] sm:$0xf]
  %v45 = vld [vmem:[%s0 + $0x48] sm:$0xff]
  %v46 = vld [vmem:[%s0 + $0x50] sm:$0xff]
  %v47 = vld [vmem:[%s0 + $0x58] sm:$0xff]
  %v48 = vld [vmem:[%s0 + $0x60] sm:$0xff]
  %v49 = vld [vmem:[%s0 + $0x68] sm:$0xf]
  %v50 = vld [vmem:[%s0 + $0x6c] sm:$0xff]
  %v51 = vld [vmem:[%s0 + $0x74] sm:$0xff]
  %v52 = vld [vmem:[%s0 + $0x7c] sm:$0xff]
  %v53 = vld [vmem:[%s0 + $0x84] sm:$0xff]
  %v54 = vld [vmem:[%s0 + $0x8c] sm:$0xf]
  %v55 = vld [vmem:[%s1] sm:$0xff]
  %v56 = vld [vmem:[%s1 + $0x8] sm:$0xff]
  %v57 = vld [vmem:[%s1 + $0x10] sm:$0xff]
  %v58 = vld [vmem:[%s1 + $0x18] sm:$0xff]
  %v59 = vld [vmem:[%s1 + $0x20] sm:$0xff]
  %v60 = vld [vmem:[%s1 + $0x28] sm:$0xff]
  %v61 = vld [vmem:[%s1 + $0x30] sm:$0xff]
  %v62 = vld [vmem:[%s1 + $0x38] sm:$0xff]
  %v63 = vld [vmem:[%s1 + $0x40] sm:$0xff]
  %v64 = vld [vmem:[%s1 + $0x48] sm:$0xff]
  %v65 = vld [vmem:[%s1 + $0x50] sm:$0xff]
  %v66 = vld [vmem:[%s1 + $0x58] sm:$0xff]
  %v67 = vld [vmem:[%s1 + $0x60] sm:$0xff]
  %v68 = vld [vmem:[%s1 + $0x68] sm:$0xff]
  %v69 = vld [vmem:[%s1 + $0x70] sm:$0xff]
  %v70 = vld [vmem:[%s1 + $0x78] sm:$0xff]
  %v71 = vld [vmem:[%s1 + $0x80] sm:$0xff]
  %v72 = vld [vmem:[%s1 + $0x88] sm:$0xff]
  %v73 = vld [vmem:[%s1 + $0x90] sm:$0xff]
  %v74 = vld [vmem:[%s1 + $0x98] sm:$0xff]
  %v75 = vld [vmem:[%s1 + $0xa0] sm:$0xff]
  %v76 = vld [vmem:[%s1 + $0xa8] sm:$0xff]
  %v77 = vld [vmem:[%s1 + $0xb0] sm:$0xff]
  %v78 = vld [vmem:[%s1 + $0xb8] sm:$0xff]
  %v79 = vld [vmem:[%s1 + $0xc0] sm:$0xff]
  %v80 = vld [vmem:[%s1 + $0xc8] sm:$0xff]
  %v81 = vld [vmem:[%s1 + $0xd0] sm:$0xff]
  %v82 = vld [vmem:[%s1 + $0xd8] sm:$0xff]
  %v83 = vld [vmem:[%s1 + $0xe0] sm:$0xff]
  %v84 = vld [vmem:[%s1 + $0xe8] sm:$0xff]
  %v85 = vld [vmem:[%s1 + $0xf0] sm:$0xff]
  %v86 = vld [vmem:[%s1 + $0xf8] sm:$0xff]
  %v87 = vld [vmem:[%s1 + $0x100] sm:$0xff]
  %v88 = vld [vmem:[%s1 + $0x108] sm:$0xff]
  %v89 = vld [vmem:[%s1 + $0x110] sm:$0xff]
  %v90 = vld [vmem:[%s1 + $0x118] sm:$0xff]
  %v91 = vld [vmem:[%s1 + $0x120] sm:$0xff]
  %v92 = vld [vmem:[%s1 + $0x128] sm:$0xff]
  %v93 = vld [vmem:[%s1 + $0x130] sm:$0xff]
  %v94 = vld [vmem:[%s1 + $0x138] sm:$0xff]
  %v95 = vld [vmem:[%s1 + $0x140] sm:$0xff]
  %v96 = vld [vmem:[%s1 + $0x148] sm:$0xff]
  %v97 = vld [vmem:[%s1 + $0x150] sm:$0xff]
  %v98 = vld [vmem:[%s1 + $0x158] sm:$0xff]
  %v99 = vld [vmem:[%s1 + $0x160] sm:$0xff]
  %v100 = vld [vmem:[%s1 + $0x168] sm:$0xff]
  %v101 = vld [vmem:[%s1 + $0x170] sm:$0xff]
  %v102 = vld [vmem:[%s1 + $0x178] sm:$0xff]
  %v103 = vld [vmem:[%s1 + $0x180] sm:$0xff]
  %v104 = vld [vmem:[%s1 + $0x188] sm:$0xff]
  %v105 = vld [vmem:[%s1 + $0x190] sm:$0xff]
  %v106 = vld [vmem:[%s1 + $0x198] sm:$0xff]
  %v107 = vld [vmem:[%s1 + $0x1a0] sm:$0xff]
  %v108 = vld [vmem:[%s1 + $0x1a8] sm:$0xff]
  %v109 = vld [vmem:[%s1 + $0x1b0] sm:$0xff]
  %v110 = vld [vmem:[%s1 + $0x1b8] sm:$0xff]
  %v111 = vld [vmem:[%s1 + $0x1c0] sm:$0xff]
  %v112 = vld [vmem:[%s1 + $0x1c8] sm:$0xff]
  %v113 = vld [vmem:[%s1 + $0x1d0] sm:$0xff]
  %v114 = vld [vmem:[%s1 + $0x1d8] sm:$0xff]
  %v115 = vld [vmem:[%s1 + $0x1e0] sm:$0xff]
  %v116 = vld [vmem:[%s1 + $0x1e8] sm:$0xff]
  %v117 = vld [vmem:[%s1 + $0x1f0] sm:$0xff]
  %v118 = vld [vmem:[%s1 + $0x1f8] sm:$0xff]
  %v119 = vld [vmem:[%s1 + $0x200] sm:$0xff]
  %v120 = vld [vmem:[%s1 + $0x208] sm:$0xff]
  %v121 = vld [vmem:[%s1 + $0x210] sm:$0xff]
  %v122 = vld [vmem:[%s1 + $0x218] sm:$0xff]
  %v123 = vld [vmem:[%s1 + $0x220] sm:$0xff]
  %v124 = vld [vmem:[%s1 + $0x228] sm:$0xff]
  %v125 = vld [vmem:[%s1 + $0x230] sm:$0xff]
  %v126 = vld [vmem:[%s1 + $0x238] sm:$0xff]
  %v127 = vld [vmem:[%s1 + $0x240] sm:$0xff]
  %v128 = vld [vmem:[%s1 + $0x248] sm:$0xff]
  %v129 = vld [vmem:[%s1 + $0x250] sm:$0xff]
  %v130 = vld [vmem:[%s1 + $0x258] sm:$0xff]
  %v131 = vld [vmem:[%s1 + $0x260] sm:$0xff]
  %v132 = vld [vmem:[%s1 + $0x268] sm:$0xff]
  %v133 = vld [vmem:[%s1 + $0x270] sm:$0xff]
  %v134 = vld [vmem:[%s1 + $0x278] sm:$0xff]
  %v135 = vld [vmem:[%s1 + $0x280] sm:$0xff]
  %v136 = vld [vmem:[%s1 + $0x288] sm:$0xff]
  %v137 = vld [vmem:[%s1 + $0x290] sm:$0xff]
  %v138 = vld [vmem:[%s1 + $0x298] sm:$0xff]
  %v139 = vld [vmem:[%s1 + $0x2a0] sm:$0xff]
  %v140 = vld [vmem:[%s1 + $0x2a8] sm:$0xff]
  %v141 = vld [vmem:[%s1 + $0x2b0] sm:$0xff]
  %v142 = vld [vmem:[%s1 + $0x2b8] sm:$0xff]
  %v143 = vld [vmem:[%s1 + $0x2c0] sm:$0xff]
  %v144 = vld [vmem:[%s1 + $0x2c8] sm:$0xff]
  %v145 = vld [vmem:[%s1 + $0x2d0] sm:$0xff]
  %v146 = vld [vmem:[%s1 + $0x2d8] sm:$0xff]
  %v147 = vld [vmem:[%s1 + $0x2e0] sm:$0xff]
  %v148 = vld [vmem:[%s1 + $0x2e8] sm:$0xff]
  %v149 = vld [vmem:[%s1 + $0x2f0] sm:$0xff]
  %v150 = vld [vmem:[%s1 + $0x2f8] sm:$0xff]
  %v151 = vld [vmem:[%s1 + $0x300] sm:$0xff]
  %v152 = vld [vmem:[%s1 + $0x308] sm:$0xff]
  %v153 = vld [vmem:[%s1 + $0x310] sm:$0xff]
  %v154 = vld [vmem:[%s1 + $0x318] sm:$0xff]
  %v155 = vld [vmem:[%s1 + $0x320] sm:$0xff]
  %v156 = vld [vmem:[%s1 + $0x328] sm:$0xff]
  %v157 = vld [vmem:[%s1 + $0x330] sm:$0xff]
  %v158 = vld [vmem:[%s1 + $0x338] sm:$0xff]
  %v159 = vld [vmem:[%s1 + $0x340] sm:$0xff]
  %v160 = vld [vmem:[%s1 + $0x348] sm:$0xff]
  %v161 = vld [vmem:[%s1 + $0x350] sm:$0xff]
  %v162 = vld [vmem:[%s1 + $0x358] sm:$0xff]
  %v163 = vld [vmem:[%s1 + $0x360] sm:$0xff]
  %v164 = vld [vmem:[%s1 + $0x368] sm:$0xff]
  %v165 = vld [vmem:[%s1 + $0x370] sm:$0xff]
  %v166 = vld [vmem:[%s1 + $0x378] sm:$0xff]
  %v167 = vld [vmem:[%s1 + $0x380] sm:$0xff]
  %v168 = vld [vmem:[%s1 + $0x388] sm:$0xff]
  %v169 = vld [vmem:[%s1 + $0x390] sm:$0xff]
  %v170 = vld [vmem:[%s1 + $0x398] sm:$0xff]
  %v171 = vld [vmem:[%s1 + $0x3a0] sm:$0xff]
  %v172 = vld [vmem:[%s1 + $0x3a8] sm:$0xff]
  %v173 = vld [vmem:[%s1 + $0x3b0] sm:$0xff]
  %v174 = vld [vmem:[%s1 + $0x3b8] sm:$0xff]
  %v175 = vld [vmem:[%s1 + $0x3c0] sm:$0xff]
  %v176 = vld [vmem:[%s1 + $0x3c8] sm:$0xff]
  %v177 = vld [vmem:[%s1 + $0x3d0] sm:$0xff]
  %v178 = vld [vmem:[%s1 + $0x3d8] sm:$0xff]
  %v179 = vld [vmem:[%s1 + $0x3e0] sm:$0xff]
  %v180 = vld [vmem:[%s1 + $0x3e8] sm:$0xff]
  %v181 = vld [vmem:[%s1 + $0x3f0] sm:$0xff]
  %v182 = vld [vmem:[%s1 + $0x3f8] sm:$0xff]
  %v183 = vld [vmem:[%s1 + $0x400] sm:$0xff]
  %v184 = vld [vmem:[%s1 + $0x408] sm:$0xff]
  %v185 = vld [vmem:[%s1 + $0x410] sm:$0xff]
  %v186 = vld [vmem:[%s1 + $0x418] sm:$0xff]
  %v187 = vld [vmem:[%s1 + $0x420] sm:$0xff]
  %v188 = vld [vmem:[%s1 + $0x428] sm:$0xff]
  %v189 = vld [vmem:[%s1 + $0x430] sm:$0xff]
  %v190 = vld [vmem:[%s1 + $0x438] sm:$0xff]
  %v191 = vld [vmem:[%s1 + $0x440] sm:$0xff]
  %v192 = vld [vmem:[%s1 + $0x448] sm:$0xff]
  %v193 = vld [vmem:[%s1 + $0x450] sm:$0xff]
  %v194 = vld [vmem:[%s1 + $0x458] sm:$0xff]
  %v195 = vld [vmem:[%s1 + $0x460] sm:$0xff]
  %v196 = vld [vmem:[%s1 + $0x468] sm:$0xff]
  %v197 = vld [vmem:[%s1 + $0x470] sm:$0xff]
  %v198 = vld [vmem:[%s1 + $0x478] sm:$0xff]
  %v219 = vunpack.c.l.b16 %v35
  %v220 = vunpack.c.h.b16 %v35
  %v221 = vunpack.c.l.b16 %v36
  %v222 = vunpack.c.h.b16 %v36
  %v223 = vunpack.c.l.b16 %v37
  %v224 = vunpack.c.h.b16 %v37
  %v225 = vunpack.c.l.b16 %v38
  %v226 = vunpack.c.h.b16 %v38
  %v227 = vunpack.c.l.b16 %v39
  %v228 = vunpack.c.l.b16 %v40
  %v229 = vunpack.c.h.b16 %v40
  %v230 = vunpack.c.l.b16 %v41
  %v231 = vunpack.c.h.b16 %v41
  %v232 = vunpack.c.l.b16 %v42
  %v233 = vunpack.c.h.b16 %v42
  %v234 = vunpack.c.l.b16 %v43
  %v235 = vunpack.c.h.b16 %v43
  %v236 = vunpack.c.l.b16 %v44
  %v237 = vunpack.c.l.b16 %v45
  %v238 = vunpack.c.h.b16 %v45
  %v239 = vunpack.c.l.b16 %v46
  %v240 = vunpack.c.h.b16 %v46
  %v241 = vunpack.c.l.b16 %v47
  %v242 = vunpack.c.h.b16 %v47
  %v243 = vunpack.c.l.b16 %v48
  %v244 = vunpack.c.h.b16 %v48
  %v245 = vunpack.c.l.b16 %v49
  %v246 = vunpack.c.l.b16 %v50
  %v247 = vunpack.c.h.b16 %v50
  %v248 = vunpack.c.l.b16 %v51
  %v249 = vunpack.c.h.b16 %v51
  %v250 = vunpack.c.l.b16 %v52
  %v251 = vunpack.c.h.b16 %v52
  %v252 = vunpack.c.l.b16 %v53
  %v253 = vunpack.c.h.b16 %v53
  %v254 = vunpack.c.l.b16 %v54
  %v255 = vpack.c.b16 %v228, %v219
  %v256 = vpack.c.b16 %v229, %v220
  %v257 = vpack.c.b16 %v230, %v221
  %v258 = vpack.c.b16 %v231, %v222
  %v259 = vpack.c.b16 %v232, %v223
  %v260 = vpack.c.b16 %v233, %v224
  %v261 = vpack.c.b16 %v234, %v225
  %v262 = vpack.c.b16 %v235, %v226
  %v263 = vpack.c.b16 %v236, %v227
  %v264 = vpack.c.b16 %v246, %v237
  %v265 = vpack.c.b16 %v247, %v238
  %v266 = vpack.c.b16 %v248, %v239
  %v267 = vpack.c.b16 %v249, %v240
  %v268 = vpack.c.b16 %v250, %v241
  %v269 = vpack.c.b16 %v251, %v242
  %v270 = vpack.c.b16 %v252, %v243
  %v271 = vpack.c.b16 %v253, %v244
  %v272 = vpack.c.b16 %v254, %v245
  %v435 = vunpack.c.l.b16 %v55
  %v436 = vunpack.c.h.b16 %v55
  %v437 = vunpack.c.l.b16 %v56
  %v438 = vunpack.c.h.b16 %v56
  %v439 = vunpack.c.l.b16 %v57
  %v440 = vunpack.c.h.b16 %v57
  %v441 = vunpack.c.l.b16 %v58
  %v442 = vunpack.c.h.b16 %v58
  %v443 = vunpack.c.l.b16 %v59
  %v444 = vunpack.c.h.b16 %v59
  %v445 = vunpack.c.l.b16 %v60
  %v446 = vunpack.c.h.b16 %v60
  %v447 = vunpack.c.l.b16 %v61
  %v448 = vunpack.c.h.b16 %v61
  %v449 = vunpack.c.l.b16 %v62
  %v450 = vunpack.c.h.b16 %v62
  %v451 = vunpack.c.l.b16 %v63
  %v452 = vunpack.c.h.b16 %v63
  %v453 = vunpack.c.l.b16 %v64
  %v454 = vunpack.c.h.b16 %v64
  %v455 = vunpack.c.l.b16 %v65
  %v456 = vunpack.c.h.b16 %v65
  %v457 = vunpack.c.l.b16 %v66
  %v458 = vunpack.c.h.b16 %v66
  %v459 = vunpack.c.l.b16 %v67
  %v460 = vunpack.c.h.b16 %v67
  %v461 = vunpack.c.l.b16 %v68
  %v462 = vunpack.c.h.b16 %v68
  %v463 = vunpack.c.l.b16 %v69
  %v464 = vunpack.c.h.b16 %v69
  %v465 = vunpack.c.l.b16 %v70
  %v466 = vunpack.c.h.b16 %v70
  %v467 = vunpack.c.l.b16 %v71
  %v468 = vunpack.c.h.b16 %v71
  %v469 = vunpack.c.l.b16 %v72
  %v470 = vunpack.c.h.b16 %v72
  %v471 = vunpack.c.l.b16 %v73
  %v472 = vunpack.c.h.b16 %v73
  %v473 = vunpack.c.l.b16 %v74
  %v474 = vunpack.c.h.b16 %v74
  %v475 = vunpack.c.l.b16 %v75
  %v476 = vunpack.c.h.b16 %v75
  %v477 = vunpack.c.l.b16 %v76
  %v478 = vunpack.c.h.b16 %v76
  %v479 = vunpack.c.l.b16 %v77
  %v480 = vunpack.c.h.b16 %v77
  %v481 = vunpack.c.l.b16 %v78
  %v482 = vunpack.c.h.b16 %v78
  %v483 = vunpack.c.l.b16 %v79
  %v484 = vunpack.c.h.b16 %v79
  %v485 = vunpack.c.l.b16 %v80
  %v486 = vunpack.c.h.b16 %v80
  %v487 = vunpack.c.l.b16 %v81
  %v488 = vunpack.c.h.b16 %v81
  %v489 = vunpack.c.l.b16 %v82
  %v490 = vunpack.c.h.b16 %v82
  %v491 = vunpack.c.l.b16 %v83
  %v492 = vunpack.c.h.b16 %v83
  %v493 = vunpack.c.l.b16 %v84
  %v494 = vunpack.c.h.b16 %v84
  %v495 = vunpack.c.l.b16 %v85
  %v496 = vunpack.c.h.b16 %v85
  %v497 = vunpack.c.l.b16 %v86
  %v498 = vunpack.c.h.b16 %v86
  %v499 = vunpack.c.l.b16 %v87
  %v500 = vunpack.c.h.b16 %v87
  %v501 = vunpack.c.l.b16 %v88
  %v502 = vunpack.c.h.b16 %v88
  %v503 = vunpack.c.l.b16 %v89
  %v504 = vunpack.c.h.b16 %v89
  %v505 = vunpack.c.l.b16 %v90
  %v506 = vunpack.c.h.b16 %v90
  %v507 = vunpack.c.l.b16 %v91
  %v508 = vunpack.c.h.b16 %v91
  %v509 = vunpack.c.l.b16 %v92
  %v510 = vunpack.c.h.b16 %v92
  %v511 = vunpack.c.l.b16 %v93
  %v512 = vunpack.c.h.b16 %v93
  %v513 = vunpack.c.l.b16 %v94
  %v514 = vunpack.c.h.b16 %v94
  %v515 = vunpack.c.l.b16 %v95
  %v516 = vunpack.c.h.b16 %v95
  %v517 = vunpack.c.l.b16 %v96
  %v518 = vunpack.c.h.b16 %v96
  %v519 = vunpack.c.l.b16 %v97
  %v520 = vunpack.c.h.b16 %v97
  %v521 = vunpack.c.l.b16 %v98
  %v522 = vunpack.c.h.b16 %v98
  %v523 = vunpack.c.l.b16 %v99
  %v524 = vunpack.c.h.b16 %v99
  %v525 = vunpack.c.l.b16 %v100
  %v526 = vunpack.c.h.b16 %v100
  %v527 = vunpack.c.l.b16 %v101
  %v528 = vunpack.c.h.b16 %v101
  %v529 = vunpack.c.l.b16 %v102
  %v530 = vunpack.c.h.b16 %v102
  %v531 = vunpack.c.l.b16 %v103
  %v532 = vunpack.c.h.b16 %v103
  %v533 = vunpack.c.l.b16 %v104
  %v534 = vunpack.c.h.b16 %v104
  %v535 = vunpack.c.l.b16 %v105
  %v536 = vunpack.c.h.b16 %v105
  %v537 = vunpack.c.l.b16 %v106
  %v538 = vunpack.c.h.b16 %v106
  %v539 = vunpack.c.l.b16 %v107
  %v540 = vunpack.c.h.b16 %v107
  %v541 = vunpack.c.l.b16 %v108
  %v542 = vunpack.c.h.b16 %v108
  %v543 = vunpack.c.l.b16 %v109
  %v544 = vunpack.c.h.b16 %v109
  %v545 = vunpack.c.l.b16 %v110
  %v546 = vunpack.c.h.b16 %v110
  %v547 = vunpack.c.l.b16 %v111
  %v548 = vunpack.c.h.b16 %v111
  %v549 = vunpack.c.l.b16 %v112
  %v550 = vunpack.c.h.b16 %v112
  %v551 = vunpack.c.l.b16 %v113
  %v552 = vunpack.c.h.b16 %v113
  %v553 = vunpack.c.l.b16 %v114
  %v554 = vunpack.c.h.b16 %v114
  %v555 = vunpack.c.l.b16 %v115
  %v556 = vunpack.c.h.b16 %v115
  %v557 = vunpack.c.l.b16 %v116
  %v558 = vunpack.c.h.b16 %v116
  %v559 = vunpack.c.l.b16 %v117
  %v560 = vunpack.c.h.b16 %v117
  %v561 = vunpack.c.l.b16 %v118
  %v562 = vunpack.c.h.b16 %v118
  %v563 = vunpack.c.l.b16 %v119
  %v564 = vunpack.c.h.b16 %v119
  %v565 = vunpack.c.l.b16 %v120
  %v566 = vunpack.c.h.b16 %v120
  %v567 = vunpack.c.l.b16 %v121
  %v568 = vunpack.c.h.b16 %v121
  %v569 = vunpack.c.l.b16 %v122
  %v570 = vunpack.c.h.b16 %v122
  %v571 = vunpack.c.l.b16 %v123
  %v572 = vunpack.c.h.b16 %v123
  %v573 = vunpack.c.l.b16 %v124
  %v574 = vunpack.c.h.b16 %v124
  %v575 = vunpack.c.l.b16 %v125
  %v576 = vunpack.c.h.b16 %v125
  %v577 = vunpack.c.l.b16 %v126
  %v578 = vunpack.c.h.b16 %v126
  %v579 = vunpack.c.l.b16 %v127
  %v580 = vunpack.c.h.b16 %v127
  %v581 = vunpack.c.l.b16 %v128
  %v582 = vunpack.c.h.b16 %v128
  %v583 = vunpack.c.l.b16 %v129
  %v584 = vunpack.c.h.b16 %v129
  %v585 = vunpack.c.l.b16 %v130
  %v586 = vunpack.c.h.b16 %v130
  %v587 = vunpack.c.l.b16 %v131
  %v588 = vunpack.c.h.b16 %v131
  %v589 = vunpack.c.l.b16 %v132
  %v590 = vunpack.c.h.b16 %v132
  %v591 = vunpack.c.l.b16 %v133
  %v592 = vunpack.c.h.b16 %v133
  %v593 = vunpack.c.l.b16 %v134
  %v594 = vunpack.c.h.b16 %v134
  %v595 = vunpack.c.l.b16 %v135
  %v596 = vunpack.c.h.b16 %v135
  %v597 = vunpack.c.l.b16 %v136
  %v598 = vunpack.c.h.b16 %v136
  %v599 = vunpack.c.l.b16 %v137
  %v600 = vunpack.c.h.b16 %v137
  %v601 = vunpack.c.l.b16 %v138
  %v602 = vunpack.c.h.b16 %v138
  %v603 = vunpack.c.l.b16 %v139
  %v604 = vunpack.c.h.b16 %v139
  %v605 = vunpack.c.l.b16 %v140
  %v606 = vunpack.c.h.b16 %v140
  %v607 = vunpack.c.l.b16 %v141
  %v608 = vunpack.c.h.b16 %v141
  %v609 = vunpack.c.l.b16 %v142
  %v610 = vunpack.c.h.b16 %v142
  %v611 = vunpack.c.l.b16 %v143
  %v612 = vunpack.c.h.b16 %v143
  %v613 = vunpack.c.l.b16 %v144
  %v614 = vunpack.c.h.b16 %v144
  %v615 = vunpack.c.l.b16 %v145
  %v616 = vunpack.c.h.b16 %v145
  %v617 = vunpack.c.l.b16 %v146
  %v618 = vunpack.c.h.b16 %v146
  %v619 = vunpack.c.l.b16 %v147
  %v620 = vunpack.c.h.b16 %v147
  %v621 = vunpack.c.l.b16 %v148
  %v622 = vunpack.c.h.b16 %v148
  %v623 = vunpack.c.l.b16 %v149
  %v624 = vunpack.c.h.b16 %v149
  %v625 = vunpack.c.l.b16 %v150
  %v626 = vunpack.c.h.b16 %v150
  %v627 = vunpack.c.l.b16 %v151
  %v628 = vunpack.c.h.b16 %v151
  %v629 = vunpack.c.l.b16 %v152
  %v630 = vunpack.c.h.b16 %v152
  %v631 = vunpack.c.l.b16 %v153
  %v632 = vunpack.c.h.b16 %v153
  %v633 = vunpack.c.l.b16 %v154
  %v634 = vunpack.c.h.b16 %v154
  %v635 = vunpack.c.l.b16 %v155
  %v636 = vunpack.c.h.b16 %v155
  %v637 = vunpack.c.l.b16 %v156
  %v638 = vunpack.c.h.b16 %v156
  %v639 = vunpack.c.l.b16 %v157
  %v640 = vunpack.c.h.b16 %v157
  %v641 = vunpack.c.l.b16 %v158
  %v642 = vunpack.c.h.b16 %v158
  %v643 = vunpack.c.l.b16 %v159
  %v644 = vunpack.c.h.b16 %v159
  %v645 = vunpack.c.l.b16 %v160
  %v646 = vunpack.c.h.b16 %v160
  %v647 = vunpack.c.l.b16 %v161
  %v648 = vunpack.c.h.b16 %v161
  %v649 = vunpack.c.l.b16 %v162
  %v650 = vunpack.c.h.b16 %v162
  %v651 = vunpack.c.l.b16 %v163
  %v652 = vunpack.c.h.b16 %v163
  %v653 = vunpack.c.l.b16 %v164
  %v654 = vunpack.c.h.b16 %v164
  %v655 = vunpack.c.l.b16 %v165
  %v656 = vunpack.c.h.b16 %v165
  %v657 = vunpack.c.l.b16 %v166
  %v658 = vunpack.c.h.b16 %v166
  %v659 = vunpack.c.l.b16 %v167
  %v660 = vunpack.c.h.b16 %v167
  %v661 = vunpack.c.l.b16 %v168
  %v662 = vunpack.c.h.b16 %v168
  %v663 = vunpack.c.l.b16 %v169
  %v664 = vunpack.c.h.b16 %v169
  %v665 = vunpack.c.l.b16 %v170
  %v666 = vunpack.c.h.b16 %v170
  %v667 = vunpack.c.l.b16 %v171
  %v668 = vunpack.c.h.b16 %v171
  %v669 = vunpack.c.l.b16 %v172
  %v670 = vunpack.c.h.b16 %v172
  %v671 = vunpack.c.l.b16 %v173
  %v672 = vunpack.c.h.b16 %v173
  %v673 = vunpack.c.l.b16 %v174
  %v674 = vunpack.c.h.b16 %v174
  %v675 = vunpack.c.l.b16 %v175
  %v676 = vunpack.c.h.b16 %v175
  %v677 = vunpack.c.l.b16 %v176
  %v678 = vunpack.c.h.b16 %v176
  %v679 = vunpack.c.l.b16 %v177
  %v680 = vunpack.c.h.b16 %v177
  %v681 = vunpack.c.l.b16 %v178
  %v682 = vunpack.c.h.b16 %v178
  %v683 = vunpack.c.l.b16 %v179
  %v684 = vunpack.c.h.b16 %v179
  %v685 = vunpack.c.l.b16 %v180
  %v686 = vunpack.c.h.b16 %v180
  %v687 = vunpack.c.l.b16 %v181
  %v688 = vunpack.c.h.b16 %v181
  %v689 = vunpack.c.l.b16 %v182
  %v690 = vunpack.c.h.b16 %v182
  %v691 = vunpack.c.l.b16 %v183
  %v692 = vunpack.c.h.b16 %v183
  %v693 = vunpack.c.l.b16 %v184
  %v694 = vunpack.c.h.b16 %v184
  %v695 = vunpack.c.l.b16 %v185
  %v696 = vunpack.c.h.b16 %v185
  %v697 = vunpack.c.l.b16 %v186
  %v698 = vunpack.c.h.b16 %v186
  %v699 = vunpack.c.l.b16 %v187
  %v700 = vunpack.c.h.b16 %v187
  %v701 = vunpack.c.l.b16 %v188
  %v702 = vunpack.c.h.b16 %v188
  %v703 = vunpack.c.l.b16 %v189
  %v704 = vunpack.c.h.b16 %v189
  %v705 = vunpack.c.l.b16 %v190
  %v706 = vunpack.c.h.b16 %v190
  %v707 = vunpack.c.l.b16 %v191
  %v708 = vunpack.c.h.b16 %v191
  %v709 = vunpack.c.l.b16 %v192
  %v710 = vunpack.c.h.b16 %v192
  %v711 = vunpack.c.l.b16 %v193
  %v712 = vunpack.c.h.b16 %v193
  %v713 = vunpack.c.l.b16 %v194
  %v714 = vunpack.c.h.b16 %v194
  %v715 = vunpack.c.l.b16 %v195
  %v716 = vunpack.c.h.b16 %v195
  %v717 = vunpack.c.l.b16 %v196
  %v718 = vunpack.c.h.b16 %v196
  %v719 = vunpack.c.l.b16 %v197
  %v720 = vunpack.c.h.b16 %v197
  %v721 = vunpack.c.l.b16 %v198
  %v722 = vunpack.c.h.b16 %v198
  %v723 = vpack.c.b16 %v437, %v435
  %v724 = vpack.c.b16 %v438, %v436
  %v725 = vpack.c.b16 %v441, %v439
  %v726 = vpack.c.b16 %v442, %v440
  %v727 = vpack.c.b16 %v445, %v443
  %v728 = vpack.c.b16 %v446, %v444
  %v729 = vpack.c.b16 %v449, %v447
  %v730 = vpack.c.b16 %v450, %v448
  %v731 = vpack.c.b16 %v453, %v451
  %v732 = vpack.c.b16 %v454, %v452
  %v733 = vpack.c.b16 %v457, %v455
  %v734 = vpack.c.b16 %v458, %v456
  %v735 = vpack.c.b16 %v461, %v459
  %v736 = vpack.c.b16 %v462, %v460
  %v737 = vpack.c.b16 %v465, %v463
  %v738 = vpack.c.b16 %v466, %v464
  %v739 = vpack.c.b16 %v469, %v467
  %v740 = vpack.c.b16 %v470, %v468
  %v741 = vpack.c.b16 %v473, %v471
  %v742 = vpack.c.b16 %v474, %v472
  %v743 = vpack.c.b16 %v477, %v475
  %v744 = vpack.c.b16 %v478, %v476
  %v745 = vpack.c.b16 %v481, %v479
  %v746 = vpack.c.b16 %v482, %v480
  %v747 = vpack.c.b16 %v485, %v483
  %v748 = vpack.c.b16 %v486, %v484
  %v749 = vpack.c.b16 %v489, %v487
  %v750 = vpack.c.b16 %v490, %v488
  %v751 = vpack.c.b16 %v493, %v491
  %v752 = vpack.c.b16 %v494, %v492
  %v753 = vpack.c.b16 %v497, %v495
  %v754 = vpack.c.b16 %v498, %v496
  %v755 = vpack.c.b16 %v501, %v499
  %v756 = vpack.c.b16 %v502, %v500
  %v757 = vpack.c.b16 %v505, %v503
  %v758 = vpack.c.b16 %v506, %v504
  %v759 = vpack.c.b16 %v509, %v507
  %v760 = vpack.c.b16 %v510, %v508
  %v761 = vpack.c.b16 %v513, %v511
  %v762 = vpack.c.b16 %v514, %v512
  %v763 = vpack.c.b16 %v517, %v515
  %v764 = vpack.c.b16 %v518, %v516
  %v765 = vpack.c.b16 %v521, %v519
  %v766 = vpack.c.b16 %v522, %v520
  %v767 = vpack.c.b16 %v525, %v523
  %v768 = vpack.c.b16 %v526, %v524
  %v769 = vpack.c.b16 %v529, %v527
  %v770 = vpack.c.b16 %v530, %v528
  %v771 = vpack.c.b16 %v533, %v531
  %v772 = vpack.c.b16 %v534, %v532
  %v773 = vpack.c.b16 %v537, %v535
  %v774 = vpack.c.b16 %v538, %v536
  %v775 = vpack.c.b16 %v541, %v539
  %v776 = vpack.c.b16 %v542, %v540
  %v777 = vpack.c.b16 %v545, %v543
  %v778 = vpack.c.b16 %v546, %v544
  %v779 = vpack.c.b16 %v549, %v547
  %v780 = vpack.c.b16 %v550, %v548
  %v781 = vpack.c.b16 %v553, %v551
  %v782 = vpack.c.b16 %v554, %v552
  %v783 = vpack.c.b16 %v557, %v555
  %v784 = vpack.c.b16 %v558, %v556
  %v785 = vpack.c.b16 %v561, %v559
  %v786 = vpack.c.b16 %v562, %v560
  %v787 = vpack.c.b16 %v565, %v563
  %v788 = vpack.c.b16 %v566, %v564
  %v789 = vpack.c.b16 %v569, %v567
  %v790 = vpack.c.b16 %v570, %v568
  %v791 = vpack.c.b16 %v573, %v571
  %v792 = vpack.c.b16 %v574, %v572
  %v793 = vpack.c.b16 %v577, %v575
  %v794 = vpack.c.b16 %v578, %v576
  %v795 = vpack.c.b16 %v581, %v579
  %v796 = vpack.c.b16 %v582, %v580
  %v797 = vpack.c.b16 %v585, %v583
  %v798 = vpack.c.b16 %v586, %v584
  %v799 = vpack.c.b16 %v589, %v587
  %v800 = vpack.c.b16 %v590, %v588
  %v801 = vpack.c.b16 %v593, %v591
  %v802 = vpack.c.b16 %v594, %v592
  %v803 = vpack.c.b16 %v597, %v595
  %v804 = vpack.c.b16 %v598, %v596
  %v805 = vpack.c.b16 %v601, %v599
  %v806 = vpack.c.b16 %v602, %v600
  %v807 = vpack.c.b16 %v605, %v603
  %v808 = vpack.c.b16 %v606, %v604
  %v809 = vpack.c.b16 %v609, %v607
  %v810 = vpack.c.b16 %v610, %v608
  %v811 = vpack.c.b16 %v613, %v611
  %v812 = vpack.c.b16 %v614, %v612
  %v813 = vpack.c.b16 %v617, %v615
  %v814 = vpack.c.b16 %v618, %v616
  %v815 = vpack.c.b16 %v621, %v619
  %v816 = vpack.c.b16 %v622, %v620
  %v817 = vpack.c.b16 %v625, %v623
  %v818 = vpack.c.b16 %v626, %v624
  %v819 = vpack.c.b16 %v629, %v627
  %v820 = vpack.c.b16 %v630, %v628
  %v821 = vpack.c.b16 %v633, %v631
  %v822 = vpack.c.b16 %v634, %v632
  %v823 = vpack.c.b16 %v637, %v635
  %v824 = vpack.c.b16 %v638, %v636
  %v825 = vpack.c.b16 %v641, %v639
  %v826 = vpack.c.b16 %v642, %v640
  %v827 = vpack.c.b16 %v645, %v643
  %v828 = vpack.c.b16 %v646, %v644
  %v829 = vpack.c.b16 %v649, %v647
  %v830 = vpack.c.b16 %v650, %v648
  %v831 = vpack.c.b16 %v653, %v651
  %v832 = vpack.c.b16 %v654, %v652
  %v833 = vpack.c.b16 %v657, %v655
  %v834 = vpack.c.b16 %v658, %v656
  %v835 = vpack.c.b16 %v661, %v659
  %v836 = vpack.c.b16 %v662, %v660
  %v837 = vpack.c.b16 %v665, %v663
  %v838 = vpack.c.b16 %v666, %v664
  %v839 = vpack.c.b16 %v669, %v667
  %v840 = vpack.c.b16 %v670, %v668
  %v841 = vpack.c.b16 %v673, %v671
  %v842 = vpack.c.b16 %v674, %v672
  %v843 = vpack.c.b16 %v677, %v675
  %v844 = vpack.c.b16 %v678, %v676
  %v845 = vpack.c.b16 %v681, %v679
  %v846 = vpack.c.b16 %v682, %v680
  %v847 = vpack.c.b16 %v685, %v683
  %v848 = vpack.c.b16 %v686, %v684
  %v849 = vpack.c.b16 %v689, %v687
  %v850 = vpack.c.b16 %v690, %v688
  %v851 = vpack.c.b16 %v693, %v691
  %v852 = vpack.c.b16 %v694, %v692
  %v853 = vpack.c.b16 %v697, %v695
  %v854 = vpack.c.b16 %v698, %v696
  %v855 = vpack.c.b16 %v701, %v699
  %v856 = vpack.c.b16 %v702, %v700
  %v857 = vpack.c.b16 %v705, %v703
  %v858 = vpack.c.b16 %v706, %v704
  %v859 = vpack.c.b16 %v709, %v707
  %v860 = vpack.c.b16 %v710, %v708
  %v861 = vpack.c.b16 %v713, %v711
  %v862 = vpack.c.b16 %v714, %v712
  %v863 = vpack.c.b16 %v717, %v715
  %v864 = vpack.c.b16 %v718, %v716
  %v865 = vpack.c.b16 %v721, %v719
  %v866 = vpack.c.b16 %v722, %v720
  %1011 = vmatprep.subr.bf16.mxu0 %v724
  %1012 = vmatpush1.bf16.msra.mxu0 %v723
  %1013 = vmatprep.subr.bf16.mxu0 %v726
  %1014 = vmatpush1.bf16.msra.mxu0 %v725
  %1015 = vmatprep.subr.bf16.mxu0 %v728
  %1016 = vmatpush1.bf16.msra.mxu0 %v727
  %1017 = vmatprep.subr.bf16.mxu0 %v730
  %1018 = vmatpush1.bf16.msra.mxu0 %v729
  %1019 = vmatprep.subr.bf16.mxu0 %v732
  %1020 = vmatpush1.bf16.msra.mxu0 %v731
  %1021 = vmatprep.subr.bf16.mxu0 %v734
  %1022 = vmatpush1.bf16.msra.mxu0 %v733
  %1023 = vmatprep.subr.bf16.mxu0 %v736
  %1024 = vmatpush1.bf16.msra.mxu0 %v735
  %1025 = vmatprep.subr.bf16.mxu0 %v738
  %1026 = vmatpush1.bf16.msra.mxu0 %v737
  %1027 = vmatprep.subr.bf16.mxu0 %v740
  %1028 = vmatpush1.bf16.msra.mxu0 %v739
  %1029 = vmatprep.subr.bf16.mxu0 %v742
  %1030 = vmatpush1.bf16.msra.mxu0 %v741
  %1031 = vmatprep.subr.bf16.mxu0 %v744
  %1032 = vmatpush1.bf16.msra.mxu0 %v743
  %1033 = vmatprep.subr.bf16.mxu0 %v746
  %1034 = vmatpush1.bf16.msra.mxu0 %v745
  %1035 = vmatprep.subr.bf16.mxu0 %v748
  %1036 = vmatpush1.bf16.msra.mxu0 %v747
  %1037 = vmatprep.subr.bf16.mxu0 %v750
  %1038 = vmatpush1.bf16.msra.mxu0 %v749
  %1039 = vmatprep.subr.bf16.mxu0 %v752
  %1040 = vmatpush1.bf16.msra.mxu0 %v751
  %1041 = vmatprep.subr.bf16.mxu0 %v754
  %1042 = vmatpush1.bf16.msra.mxu0 %v753
  %1043 = vmatprep.mubr.bf16.mxu0 %v256
  %1044 = vmatmul.mubr.bf16.gmra.mrb[0].mxu0 %v255
  %v1045 = vpop.f32.mrb[0].mxu0
  %v1046 = vadd.f32 0.0, %v1045
  %v1047 = vpop.f32.mrb[0].mxu0
  %v1048 = vadd.f32 0.0, %v1047
  %v1049 = vpop.f32.mrb[0].mxu0
  %v1050 = vadd.f32 0.0, %v1049
  %v1051 = vpop.f32.mrb[0].mxu0
  %v1052 = vadd.f32 0.0, %v1051
  %1053 = vmatprep.mubr.bf16.mxu0 %v265
  %1054 = vmatmul.mubr.bf16.gmra.mrb[0].mxu0 %v264
  %v1055 = vpop.f32.mrb[0].mxu0
  %v1056 = vadd.f32 0.0, %v1055
  %v1057 = vpop.f32.mrb[0].mxu0
  %v1058 = vadd.f32 0.0, %v1057
  %v1059 = vpop.f32.mrb[0].mxu0
  %v1060 = vadd.f32 0.0, %v1059
  %v1061 = vpop.f32.mrb[0].mxu0
  %v1062 = vadd.f32 0.0, %v1061
  %1063 = vdwg.mxu0
  %1064 = vmatprep.subr.bf16.mxu0 %v756
  %1065 = vmatpush1.bf16.msra.mxu0 %v755
  %1066 = vmatprep.subr.bf16.mxu0 %v758
  %1067 = vmatpush1.bf16.msra.mxu0 %v757
  %1068 = vmatprep.subr.bf16.mxu0 %v760
  %1069 = vmatpush1.bf16.msra.mxu0 %v759
  %1070 = vmatprep.subr.bf16.mxu0 %v762
  %1071 = vmatpush1.bf16.msra.mxu0 %v761
  %1072 = vmatprep.subr.bf16.mxu0 %v764
  %1073 = vmatpush1.bf16.msra.mxu0 %v763
  %1074 = vmatprep.subr.bf16.mxu0 %v766
  %1075 = vmatpush1.bf16.msra.mxu0 %v765
  %1076 = vmatprep.subr.bf16.mxu0 %v768
  %1077 = vmatpush1.bf16.msra.mxu0 %v767
  %1078 = vmatprep.subr.bf16.mxu0 %v770
  %1079 = vmatpush1.bf16.msra.mxu0 %v769
  %1080 = vmatprep.subr.bf16.mxu0 %v772
  %1081 = vmatpush1.bf16.msra.mxu0 %v771
  %1082 = vmatprep.subr.bf16.mxu0 %v774
  %1083 = vmatpush1.bf16.msra.mxu0 %v773
  %1084 = vmatprep.subr.bf16.mxu0 %v776
  %1085 = vmatpush1.bf16.msra.mxu0 %v775
  %1086 = vmatprep.subr.bf16.mxu0 %v778
  %1087 = vmatpush1.bf16.msra.mxu0 %v777
  %1088 = vmatprep.subr.bf16.mxu0 %v780
  %1089 = vmatpush1.bf16.msra.mxu0 %v779
  %1090 = vmatprep.subr.bf16.mxu0 %v782
  %1091 = vmatpush1.bf16.msra.mxu0 %v781
  %1092 = vmatprep.subr.bf16.mxu0 %v784
  %1093 = vmatpush1.bf16.msra.mxu0 %v783
  %1094 = vmatprep.subr.bf16.mxu0 %v786
  %1095 = vmatpush1.bf16.msra.mxu0 %v785
  %1096 = vmatprep.mubr.bf16.mxu0 %v258
  %1097 = vmatmul.mubr.bf16.gmra.mrb[0].mxu0 %v257
  %v1098 = vpop.f32.mrb[0].mxu0
  %v1099 = vadd.f32 %v1046, %v1098
  %v1100 = vpop.f32.mrb[0].mxu0
  %v1101 = vadd.f32 %v1048, %v1100
  %v1102 = vpop.f32.mrb[0].mxu0
  %v1103 = vadd.f32 %v1050, %v1102
  %v1104 = vpop.f32.mrb[0].mxu0
  %v1105 = vadd.f32 %v1052, %v1104
  %1106 = vmatprep.mubr.bf16.mxu0 %v267
  %1107 = vmatmul.mubr.bf16.gmra.mrb[0].mxu0 %v266
  %v1108 = vpop.f32.mrb[0].mxu0
  %v1109 = vadd.f32 %v1056, %v1108
  %v1110 = vpop.f32.mrb[0].mxu0
  %v1111 = vadd.f32 %v1058, %v1110
  %v1112 = vpop.f32.mrb[0].mxu0
  %v1113 = vadd.f32 %v1060, %v1112
  %v1114 = vpop.f32.mrb[0].mxu0
  %v1115 = vadd.f32 %v1062, %v1114
  %1116 = vdwg.mxu0
  %1117 = vmatprep.subr.bf16.mxu0 %v788
  %1118 = vmatpush1.bf16.msra.mxu0 %v787
  %1119 = vmatprep.subr.bf16.mxu0 %v790
  %1120 = vmatpush1.bf16.msra.mxu0 %v789
  %1121 = vmatprep.subr.bf16.mxu0 %v792
  %1122 = vmatpush1.bf16.msra.mxu0 %v791
  %1123 = vmatprep.subr.bf16.mxu0 %v794
  %1124 = vmatpush1.bf16.msra.mxu0 %v793
  %1125 = vmatprep.subr.bf16.mxu0 %v796
  %1126 = vmatpush1.bf16.msra.mxu0 %v795
  %1127 = vmatprep.subr.bf16.mxu0 %v798
  %1128 = vmatpush1.bf16.msra.mxu0 %v797
  %1129 = vmatprep.subr.bf16.mxu0 %v800
  %1130 = vmatpush1.bf16.msra.mxu0 %v799
  %1131 = vmatprep.subr.bf16.mxu0 %v802
  %1132 = vmatpush1.bf16.msra.mxu0 %v801
  %1133 = vmatprep.subr.bf16.mxu0 %v804
  %1134 = vmatpush1.bf16.msra.mxu0 %v803
  %1135 = vmatprep.subr.bf16.mxu0 %v806
  %1136 = vmatpush1.bf16.msra.mxu0 %v805
  %1137 = vmatprep.subr.bf16.mxu0 %v808
  %1138 = vmatpush1.bf16.msra.mxu0 %v807
  %1139 = vmatprep.subr.bf16.mxu0 %v810
  %1140 = vmatpush1.bf16.msra.mxu0 %v809
  %1141 = vmatprep.subr.bf16.mxu0 %v812
  %1142 = vmatpush1.bf16.msra.mxu0 %v811
  %1143 = vmatprep.subr.bf16.mxu0 %v814
  %1144 = vmatpush1.bf16.msra.mxu0 %v813
  %1145 = vmatprep.subr.bf16.mxu0 %v816
  %1146 = vmatpush1.bf16.msra.mxu0 %v815
  %1147 = vmatprep.subr.bf16.mxu0 %v818
  %1148 = vmatpush1.bf16.msra.mxu0 %v817
  %1149 = vmatprep.mubr.bf16.mxu0 %v260
  %1150 = vmatmul.mubr.bf16.gmra.mrb[0].mxu0 %v259
  %v1151 = vpop.f32.mrb[0].mxu0
  %v1152 = vadd.f32 %v1099, %v1151
  %v1153 = vpop.f32.mrb[0].mxu0
  %v1154 = vadd.f32 %v1101, %v1153
  %v1155 = vpop.f32.mrb[0].mxu0
  %v1156 = vadd.f32 %v1103, %v1155
  %v1157 = vpop.f32.mrb[0].mxu0
  %v1158 = vadd.f32 %v1105, %v1157
  %1159 = vmatprep.mubr.bf16.mxu0 %v269
  %1160 = vmatmul.mubr.bf16.gmra.mrb[0].mxu0 %v268
  %v1161 = vpop.f32.mrb[0].mxu0
  %v1162 = vadd.f32 %v1109, %v1161
  %v1163 = vpop.f32.mrb[0].mxu0
  %v1164 = vadd.f32 %v1111, %v1163
  %v1165 = vpop.f32.mrb[0].mxu0
  %v1166 = vadd.f32 %v1113, %v1165
  %v1167 = vpop.f32.mrb[0].mxu0
  %v1168 = vadd.f32 %v1115, %v1167
  %1169 = vdwg.mxu0
  %1170 = vmatprep.subr.bf16.mxu0 %v820
  %1171 = vmatpush1.bf16.msra.mxu0 %v819
  %1172 = vmatprep.subr.bf16.mxu0 %v822
  %1173 = vmatpush1.bf16.msra.mxu0 %v821
  %1174 = vmatprep.subr.bf16.mxu0 %v824
  %1175 = vmatpush1.bf16.msra.mxu0 %v823
  %1176 = vmatprep.subr.bf16.mxu0 %v826
  %1177 = vmatpush1.bf16.msra.mxu0 %v825
  %1178 = vmatprep.subr.bf16.mxu0 %v828
  %1179 = vmatpush1.bf16.msra.mxu0 %v827
  %1180 = vmatprep.subr.bf16.mxu0 %v830
  %1181 = vmatpush1.bf16.msra.mxu0 %v829
  %1182 = vmatprep.subr.bf16.mxu0 %v832
  %1183 = vmatpush1.bf16.msra.mxu0 %v831
  %1184 = vmatprep.subr.bf16.mxu0 %v834
  %1185 = vmatpush1.bf16.msra.mxu0 %v833
  %1186 = vmatprep.subr.bf16.mxu0 %v836
  %1187 = vmatpush1.bf16.msra.mxu0 %v835
  %1188 = vmatprep.subr.bf16.mxu0 %v838
  %1189 = vmatpush1.bf16.msra.mxu0 %v837
  %1190 = vmatprep.subr.bf16.mxu0 %v840
  %1191 = vmatpush1.bf16.msra.mxu0 %v839
  %1192 = vmatprep.subr.bf16.mxu0 %v842
  %1193 = vmatpush1.bf16.msra.mxu0 %v841
  %1194 = vmatprep.subr.bf16.mxu0 %v844
  %1195 = vmatpush1.bf16.msra.mxu0 %v843
  %1196 = vmatprep.subr.bf16.mxu0 %v846
  %1197 = vmatpush1.bf16.msra.mxu0 %v845
  %1198 = vmatprep.subr.bf16.mxu0 %v848
  %1199 = vmatpush1.bf16.msra.mxu0 %v847
  %1200 = vmatprep.subr.bf16.mxu0 %v850
  %1201 = vmatpush1.bf16.msra.mxu0 %v849
  %1202 = vmatprep.mubr.bf16.mxu0 %v262
  %1203 = vmatmul.mubr.bf16.gmra.mrb[0].mxu0 %v261
  %v1204 = vpop.f32.mrb[0].mxu0
  %v1205 = vadd.f32 %v1152, %v1204
  %v1206 = vpop.f32.mrb[0].mxu0
  %v1207 = vadd.f32 %v1154, %v1206
  %v1208 = vpop.f32.mrb[0].mxu0
  %v1209 = vadd.f32 %v1156, %v1208
  %v1210 = vpop.f32.mrb[0].mxu0
  %v1211 = vadd.f32 %v1158, %v1210
  %1212 = vmatprep.mubr.bf16.mxu0 %v271
  %1213 = vmatmul.mubr.bf16.gmra.mrb[0].mxu0 %v270
  %v1214 = vpop.f32.mrb[0].mxu0
  %v1215 = vadd.f32 %v1162, %v1214
  %v1216 = vpop.f32.mrb[0].mxu0
  %v1217 = vadd.f32 %v1164, %v1216
  %v1218 = vpop.f32.mrb[0].mxu0
  %v1219 = vadd.f32 %v1166, %v1218
  %v1220 = vpop.f32.mrb[0].mxu0
  %v1221 = vadd.f32 %v1168, %v1220
  %1222 = vdwg.mxu0
  %1223 = vmatprep.subr.bf16.mxu0 %v852
  %1224 = vmatpush1.bf16.msra.mxu0 %v851
  %1225 = vmatprep.subr.bf16.mxu0 %v854
  %1226 = vmatpush1.bf16.msra.mxu0 %v853
  %1227 = vmatprep.subr.bf16.mxu0 %v856
  %1228 = vmatpush1.bf16.msra.mxu0 %v855
  %1229 = vmatprep.subr.bf16.mxu0 %v858
  %1230 = vmatpush1.bf16.msra.mxu0 %v857
  %1231 = vmatprep.subr.bf16.mxu0 %v860
  %1232 = vmatpush1.bf16.msra.mxu0 %v859
  %1233 = vmatprep.subr.bf16.mxu0 %v862
  %1234 = vmatpush1.bf16.msra.mxu0 %v861
  %1235 = vmatprep.subr.bf16.mxu0 %v864
  %1236 = vmatpush1.bf16.msra.mxu0 %v863
  %1237 = vmatprep.subr.bf16.mxu0 %v866
  %1238 = vmatpush1.bf16.msra.mxu0 %v865
  %1239 = vmatprep.subr.bf16.mxu0 0
  %1240 = vmatpush1.bf16.msra.mxu0 0
  %1241 = vmatprep.subr.bf16.mxu0 0
  %1242 = vmatpush1.bf16.msra.mxu0 0
  %1243 = vmatprep.subr.bf16.mxu0 0
  %1244 = vmatpush1.bf16.msra.mxu0 0
  %1245 = vmatprep.subr.bf16.mxu0 0
  %1246 = vmatpush1.bf16.msra.mxu0 0
  %1247 = vmatprep.subr.bf16.mxu0 0
  %1248 = vmatpush1.bf16.msra.mxu0 0
  %1249 = vmatprep.subr.bf16.mxu0 0
  %1250 = vmatpush1.bf16.msra.mxu0 0
  %1251 = vmatprep.subr.bf16.mxu0 0
  %1252 = vmatpush1.bf16.msra.mxu0 0
  %1253 = vmatprep.subr.bf16.mxu0 0
  %1254 = vmatpush1.bf16.msra.mxu0 0
  %1255 = vmatprep.mubr.bf16.mxu0 0
  %1256 = vmatmul.mubr.bf16.gmra.mrb[0].mxu0 %v263
  %v1257 = vpop.f32.mrb[0].mxu0
  %v1258 = vadd.f32 %v1205, %v1257
  %v1259 = vpop.f32.mrb[0].mxu0
  %v1260 = vadd.f32 %v1207, %v1259
  %v1261 = vpop.f32.mrb[0].mxu0
  %v1262 = vadd.f32 %v1209, %v1261
  %v1263 = vpop.f32.mrb[0].mxu0
  %v1264 = vadd.f32 %v1211, %v1263
  %1265 = vmatprep.mubr.bf16.mxu0 0
  %1266 = vmatmul.mubr.bf16.gmra.mrb[0].mxu0 %v272
  %v1267 = vpop.f32.mrb[0].mxu0
  %v1268 = vadd.f32 %v1215, %v1267
  %v1269 = vpop.f32.mrb[0].mxu0
  %v1270 = vadd.f32 %v1217, %v1269
  %v1271 = vpop.f32.mrb[0].mxu0
  %v1272 = vadd.f32 %v1219, %v1271
  %v1273 = vpop.f32.mrb[0].mxu0
  %v1274 = vadd.f32 %v1221, %v1273
  %1275 = vdwg.mxu0
  %v1276 = vadd.f32 %v27, %v1258
  %v1277 = vadd.f32 %v28, %v1260
  %v1278 = vadd.f32 %v29, %v1262
  %v1279 = vadd.f32 %v30, %v1264
  %v1280 = vadd.f32 %v31, %v1268
  %v1281 = vadd.f32 %v32, %v1270
  %v1282 = vadd.f32 %v33, %v1272
  %v1283 = vadd.f32 %v34, %v1274
  %1284 = vst [vmem:[#allocation2] sm:$0xff] %v1276
  %1285 = vst [vmem:[#allocation2 + $0x8] sm:$0xff] %v1277
  %1286 = vst [vmem:[#allocation2 + $0x10] sm:$0xff] %v1278
  %1287 = vst [vmem:[#allocation2 + $0x18] sm:$0xff] %v1279
  %1288 = vst [vmem:[#allocation2 + $0x20] sm:$0xff] %v1280
  %1289 = vst [vmem:[#allocation2 + $0x28] sm:$0xff] %v1281
  %1290 = vst [vmem:[#allocation2 + $0x30] sm:$0xff] %v1282
  %1291 = vst [vmem:[#allocation2 + $0x38] sm:$0xff] %v1283
  // Predicated region
  $region18: #{discriminator_forward.11} parent=0 // pred_check
    %p1292 = pneg %p15
  $region19: #{discriminator_forward.11} parent=0 // pred_check_branch
    %1294 = sbr.rel (%p1292) target = $region21
  $region20: #{discriminator_forward.11} parent=0 // pred_region
    %v1295 = vld [vmem:[#allocation2] sm:$0xff]
    %v1296 = vld [vmem:[#allocation2 + $0x8] sm:$0xff]
    %v1297 = vld [vmem:[#allocation2 + $0x10] sm:$0xff]
    %v1298 = vld [vmem:[#allocation2 + $0x18] sm:$0xff]
    %v1299 = vld [vmem:[#allocation2 + $0x20] sm:$0xff]
    %v1300 = vld [vmem:[#allocation2 + $0x28] sm:$0xff]
    %v1301 = vld [vmem:[#allocation2 + $0x30] sm:$0xff]
    %v1302 = vld [vmem:[#allocation2 + $0x38] sm:$0xff]
    %v1303 = vld [vmem:[%s2] sm:$0x3]
    %v1305 = vlaneseq
    %v1306 = vshrl.u32 %v1305, 7
    %v1307 = vsub.s32 0, %v1306
    %v1308 = vrot.slane %v1303, %v1307
    %v1309 = vlaneseq
    %v1310 = vshrl.u32 %v1309, 7
    %v1311 = vsub.s32 1, %v1310
    %v1312 = vrot.slane %v1303, %v1311
    %v1315 = vadd.f32 %v1295, %v1308
    %v1316 = vadd.f32 %v1296, %v1312
    %v1317 = vadd.f32 %v1297, %v1308
    %v1318 = vadd.f32 %v1298, %v1312
    %v1319 = vadd.f32 %v1299, %v1308
    %v1320 = vadd.f32 %v1300, %v1312
    %v1321 = vadd.f32 %v1301, %v1308
    %v1322 = vadd.f32 %v1302, %v1312
    %1323 = vst [vmem:[%s3] sm:$0xff] %v1315
    %1324 = vst [vmem:[%s3 + $0x8] sm:$0xff] %v1316
    %1325 = vst [vmem:[%s3 + $0x10] sm:$0xff] %v1317
    %1326 = vst [vmem:[%s3 + $0x18] sm:$0xff] %v1318
    %1327 = vst [vmem:[%s3 + $0x20] sm:$0xff] %v1319
    %1328 = vst [vmem:[%s3 + $0x28] sm:$0xff] %v1320
    %1329 = vst [vmem:[%s3 + $0x30] sm:$0xff] %v1321
    %1330 = vst [vmem:[%s3 + $0x38] sm:$0xff] %v1322
  $region21: #{discriminator_forward.11} parent=0 // pred_fallthru
    _
  // Predicated region
  $region22: #{discriminator_forward.11} parent=0 // pred_check
    _
  $region23: #{discriminator_forward.11} parent=0 // pred_check_branch
    %1332 = sbr.rel (0) target = $region25
  $region24: #{discriminator_forward.11} parent=0 // pred_region
    _
  $region25: #{discriminator_forward.11} parent=0 // pred_fallthru
    _
  // Predicated region
  $region26: #{discriminator_forward.11} parent=0 // pred_check
    _
  $region27: #{discriminator_forward.11} parent=0 // pred_check_branch
    %1334 = sbr.rel (0) target = $region29
  $region28: #{discriminator_forward.11} parent=0 // pred_region
    _
  $region29: #{discriminator_forward.11} parent=0 // pred_fallthru
    _

// kernel: discriminator_forward.14
$region0: #{discriminator_forward.14}
  #allocation0 [shape = 'u32[]', space=smem, size = 0x4, offset = 0x4, fixed_abs, tag = 'smem constant byte address 0x4 - core index']
  #allocation1 [shape = 'u32[144,128]{1,0:T(1,128)}', space=vmem, size = 0x12000, scoped, tag = 'internal scratch']
  %s0 = inlined_call_operand.vmem [shape: f32[2,4,512], index: 0, kind: input, shape index: {}]
  %s1 = inlined_call_operand.vmem [shape: f32[2,4,512], index: 1, kind: output, shape index: {}]
  %s2 = sld [smem:[#allocation0]]
  $region37: #{discriminator_forward.14} parent=0
    _
  %s4 = ssub.s32 1, %s2
  %s5 = scalar_select 0, %s4, %s2
  loop: start=0, step=1, limit=4
  $region2: #{discriminator_forward.14} parent=0 // loop_pre_header
    _
  $region3: #{discriminator_forward.14} parent=0 // loop_header
    %s7 = sphi 0, %s11
    %p8 = scmp.ge.s32.totalorder %s7, 4
    %s17 = sphi 0, %s19
    %s20 = sphi 0, %s17
    %s21 = sphi 0, %s20
    %s37 = sphi 0, %s21
    %s43 = sphi 0, %s45
    %s46 = sphi 0, %s43
    %s47 = sphi 0, %s46
    %s63 = sphi 0, %s47
  $region4: #{discriminator_forward.14} parent=0 // loop_header_branch
    %10 = sbr.rel (%p8) target = $region8
  $region5: #{discriminator_forward.14} parent=0 // loop_body
    %s12 = ssub.s32 %s7, 1
    %s13 = ssub.s32 %s7, 2
    %s14 = sadd.s32 %s7, 1
    %s15 = ssub.s32 %s7, %s14
    %p16 = scmp.eq.s32.totalorder %s15, 0
    %s18 = sadd.s32 %s17, 1
    %s19 = scalar_select %p16, %s17, %s18
    %p22 = pneg %p16
    %p23 = scmp.eq.s32.totalorder %s7, 1
    %p24 = por %p22, %p23
    %p25 = scmp.ne.s32.totalorder %s17, %s20
    %p26 = scmp.eq.s32.totalorder %s7, 0
    %p27 = por %p25, %p26
    %p28 = scmp.ne.s32.totalorder %s17, %s20
    %p29 = scmp.eq.s32.totalorder %s12, 1
    %p30 = por %p28, %p29
    %p31 = scmp.ne.s32.totalorder %s20, %s21
    %p32 = scmp.eq.s32.totalorder %s12, 0
    %p33 = por %p31, %p32
    %p34 = scmp.ne.s32.totalorder %s20, %s21
    %p35 = scmp.eq.s32.totalorder %s13, 1
    %p36 = por %p34, %p35
    %p38 = scmp.ne.s32.totalorder %s21, %s37
    %p39 = scmp.eq.s32.totalorder %s13, 0
    %p40 = por %p38, %p39
    %s41 = ssub.s32 %s7, %s14
    %p42 = scmp.eq.s32.totalorder %s41, 0
    %s44 = sadd.s32 %s43, 1
    %s45 = scalar_select %p42, %s43, %s44
    %p48 = pneg %p42
    %p49 = scmp.eq.s32.totalorder %s7, 1
    %p50 = por %p48, %p49
    %p51 = scmp.ne.s32.totalorder %s43, %s46
    %p52 = scmp.eq.s32.totalorder %s7, 0
    %p53 = por %p51, %p52
    %p54 = scmp.ne.s32.totalorder %s43, %s46
    %p55 = scmp.eq.s32.totalorder %s12, 1
    %p56 = por %p54, %p55
    %p57 = scmp.ne.s32.totalorder %s46, %s47
    %p58 = scmp.eq.s32.totalorder %s12, 0
    %p59 = por %p57, %p58
    %p60 = scmp.ne.s32.totalorder %s46, %s47
    %p61 = scmp.eq.s32.totalorder %s13, 1
    %p62 = por %p60, %p61
    %p64 = scmp.ne.s32.totalorder %s47, %s63
    %p65 = scmp.eq.s32.totalorder %s13, 0
    %p66 = por %p64, %p65
    %p67 = scmp.le.s32.totalorder 1, %s7
    %p68 = scmp.lt.s32.totalorder %s7, 3
    %p69 = pnand %p67, %p68
    %p70 = pneg %p69
    // Predicated region
    $region9: #{discriminator_forward.14} parent=5 // pred_check
      _
    $region10: #{discriminator_forward.14} parent=5 // pred_check_branch
      %72 = sbr.rel (%p69) target = $region12
    $region11: #{discriminator_forward.14} parent=5 // pred_region
      %s73 = ssub.s32 %s7, 1
    $region12: #{discriminator_forward.14} parent=5 // pred_fallthru
      _
    %p74 = scmp.lt.s32.totalorder %s7, 2
    // Predicated region
    $region13: #{discriminator_forward.14} parent=5 // pred_check
      %p75 = pneg %p74
    $region14: #{discriminator_forward.14} parent=5 // pred_check_branch
      %77 = sbr.rel (%p75) target = $region16
    $region15: #{discriminator_forward.14} parent=5 // pred_region
      // Predicated region
      $region17: #{discriminator_forward.14} parent=15 // pred_check
        %p78 = pneg %p27
      $region18: #{discriminator_forward.14} parent=15 // pred_check_branch
        %80 = sbr.rel (%p78) target = $region20
      $region19: #{discriminator_forward.14} parent=15 // pred_region
        %p81 = scmp.lt.s32.totalorder %s7, 1
        %s82 = scalar_select %p81, %s7, 1
        %s83 = smul.addr %s82, 4
        %s84 = smul.addr %s83, 4
        %s85 = scalar_lea.vmem %s0, %s84
      $region20: #{discriminator_forward.14} parent=15 // pred_fallthru
        _
    $region16: #{discriminator_forward.14} parent=5 // pred_fallthru
      _
    %p86 = scmp.le.s32.totalorder 1, %s7
    %p87 = scmp.lt.s32.totalorder %s7, 3
    %p88 = pnand %p86, %p87
    %p89 = pneg %p88
    // Predicated region
    $region21: #{discriminator_forward.14} parent=5 // pred_check
      _
    $region22: #{discriminator_forward.14} parent=5 // pred_check_branch
      %91 = sbr.rel (%p88) target = $region24
    $region23: #{discriminator_forward.14} parent=5 // pred_region
      %s92 = ssub.s32 %s7, 1
      %p93 = scmp.lt.s32.totalorder %s12, 1
      %s94 = scalar_select %p93, %s12, 1
      %s95 = smul.addr %s94, 4
      %s96 = smul.addr %s95, 4
      %s97 = scalar_lea.vmem %s0, %s96
      %p98 = pneg %p33
      %p99 = pneg %p30
      %p100 = pneg %p59
      %p101 = pneg %p56
      %p102 = scmp.lt.s32.totalorder %s12, 1
      %s103 = scalar_select %p102, %s12, 1
      %s104 = smul.addr %s103, 4
      %s105 = smul.addr %s104, 4
      %s106 = scalar_lea.vmem %s1, %s105
      %p107 = scmp.lt.s32.totalorder %s12, 1
      %s108 = scalar_select %p107, %s12, 1
      %s109 = smul.addr %s108, 4
      %s110 = smul.addr %s109, 4
      %s111 = scalar_lea.vmem %s0, %s110
      %p112 = scmp.lt.s32.totalorder %s12, 1
      %s113 = scalar_select %p112, %s12, 1
      %s114 = smul.addr %s113, 4
      %s115 = smul.addr %s114, 4
      %s116 = scalar_lea.vmem %s1, %s115
      %v117 = vld [vmem:[%s111] sm:$0xff]
      %v118 = vld [vmem:[%s111 + $0x8] sm:$0xff]
      %v121 = vcombine.high %v117, %v117
      %v122 = vcombine.high %v118, %v118
      %vm125 = vcmask 1043456
      %v126 = vsel %vm125, %v117, 0.0
      %v127 = vrot.slane %v126, 4
      %v128 = vadd.f32 %v126, %v127
      %v129 = vrot.slane %v128, 2
      %v130 = vadd.f32 %v128, %v129
      %v131 = vrot.slane %v130, 1
      %v132 = vadd.f32 %v130, %v131
      %v133 = vsel %vm125, %v121, 0.0
      %v134 = vrot.slane %v133, 4
      %v135 = vadd.f32 %v133, %v134
      %v136 = vrot.slane %v135, 2
      %v137 = vadd.f32 %v135, %v136
      %v138 = vrot.slane %v137, 1
      %v139 = vadd.f32 %v137, %v138
      %v140 = vsel %vm125, %v118, 0.0
      %v141 = vrot.slane %v140, 4
      %v142 = vadd.f32 %v140, %v141
      %v143 = vrot.slane %v142, 2
      %v144 = vadd.f32 %v142, %v143
      %v145 = vrot.slane %v144, 1
      %v146 = vadd.f32 %v144, %v145
      %v147 = vsel %vm125, %v122, 0.0
      %v148 = vrot.slane %v147, 4
      %v149 = vadd.f32 %v147, %v148
      %v150 = vrot.slane %v149, 2
      %v151 = vadd.f32 %v149, %v150
      %v152 = vrot.slane %v151, 1
      %v153 = vadd.f32 %v151, %v152
      %v154 = vrcp.pop 4.0
      %v155 = vmul.f32 %v132, %v154
      %v156 = vmul.f32 %v139, %v154
      %v157 = vmul.f32 %v146, %v154
      %v158 = vmul.f32 %v153, %v154
      %v163 = vcombine.low %v155, %v156
      %v164 = vcombine.low %v157, %v158
      %v167 = vsub.f32 %v117, %v163
      %v168 = vsub.f32 %v118, %v164
      %v169 = vmul.f32 %v167, %v167
      %v170 = vmul.f32 %v168, %v168
      %v173 = vcombine.high %v169, %v169
      %v174 = vcombine.high %v170, %v170
      %v177 = vsel %vm125, %v169, 0.0
      %v178 = vrot.slane %v177, 4
      %v179 = vadd.f32 %v177, %v178
      %v180 = vrot.slane %v179, 2
      %v181 = vadd.f32 %v179, %v180
      %v182 = vrot.slane %v181, 1
      %v183 = vadd.f32 %v181, %v182
      %v184 = vsel %vm125, %v173, 0.0
      %v185 = vrot.slane %v184, 4
      %v186 = vadd.f32 %v184, %v185
      %v187 = vrot.slane %v186, 2
      %v188 = vadd.f32 %v186, %v187
      %v189 = vrot.slane %v188, 1
      %v190 = vadd.f32 %v188, %v189
      %v191 = vsel %vm125, %v170, 0.0
      %v192 = vrot.slane %v191, 4
      %v193 = vadd.f32 %v191, %v192
      %v194 = vrot.slane %v193, 2
      %v195 = vadd.f32 %v193, %v194
      %v196 = vrot.slane %v195, 1
      %v197 = vadd.f32 %v195, %v196
      %v198 = vsel %vm125, %v174, 0.0
      %v199 = vrot.slane %v198, 4
      %v200 = vadd.f32 %v198, %v199
      %v201 = vrot.slane %v200, 2
      %v202 = vadd.f32 %v200, %v201
      %v203 = vrot.slane %v202, 1
      %v204 = vadd.f32 %v202, %v203
      %v205 = vmul.f32 %v183, %v154
      %v206 = vmul.f32 %v190, %v154
      %v207 = vmul.f32 %v197, %v154
      %v208 = vmul.f32 %v204, %v154
      %v209 = vadd.f32 %v205, 1e-05
      %v210 = vadd.f32 %v206, 1e-05
      %v211 = vadd.f32 %v207, 1e-05
      %v212 = vadd.f32 %v208, 1e-05
      %v213 = vrsqrt.pop %v209
      %v214 = vrsqrt.pop %v210
      %v215 = vrsqrt.pop %v211
      %v216 = vrsqrt.pop %v212
      %v221 = vcombine.low %v213, %v214
      %v222 = vcombine.low %v215, %v216
      %v225 = vmul.f32 %v167, %v221
      %v226 = vmul.f32 %v168, %v222
      %vm227 = vcmp.ge.f32.partialorder %v225, 0.0
      %vm228 = vcmp.ge.f32.partialorder %v226, 0.0
      %v229 = vmul.f32 %v225, 0.2
      %v230 = vmul.f32 %v226, 0.2
      %v231 = vsel %vm227, %v225, %v229
      %v232 = vsel %vm228, %v226, %v230
      %233 = vst [vmem:[%s116] sm:$0xff] %v231
      %234 = vst [vmem:[%s116 + $0x8] sm:$0xff] %v232
      %p235 = scmp.lt.s32.totalorder %s12, 1
      %s236 = scalar_select %p235, %s12, 1
      %s237 = smul.addr %s236, 4
      %s238 = smul.addr %s237, 4
      %s239 = scalar_lea.vmem %s1, %s238
      // Predicated region
      $region25: #{discriminator_forward.14} parent=23 // pred_check
        %p240 = pneg %p56
      $region26: #{discriminator_forward.14} parent=23 // pred_check_branch
        %242 = sbr.rel (%p240) target = $region28
      $region27: #{discriminator_forward.14} parent=23 // pred_region
        _
      $region28: #{discriminator_forward.14} parent=23 // pred_fallthru
        _
    $region24: #{discriminator_forward.14} parent=5 // pred_fallthru
      _
    %p243 = scmp.le.s32.totalorder 2, %s7
    // Predicated region
    $region29: #{discriminator_forward.14} parent=5 // pred_check
      %p244 = pneg %p243
    $region30: #{discriminator_forward.14} parent=5 // pred_check_branch
      %246 = sbr.rel (%p244) target = $region32
    $region31: #{discriminator_forward.14} parent=5 // pred_region
      %s247 = ssub.s32 %s7, 2
      // Predicated region
      $region33: #{discriminator_forward.14} parent=31 // pred_check
        %p248 = pneg %p62
      $region34: #{discriminator_forward.14} parent=31 // pred_check_branch
        %250 = sbr.rel (%p248) target = $region36
      $region35: #{discriminator_forward.14} parent=31 // pred_region
        %p251 = scmp.lt.s32.totalorder %s13, 1
        %s252 = scalar_select %p251, %s13, 1
        %s253 = smul.addr %s252, 4
        %s254 = smul.addr %s253, 4
        %s255 = scalar_lea.vmem %s1, %s254
      $region36: #{discriminator_forward.14} parent=31 // pred_fallthru
        _
    $region32: #{discriminator_forward.14} parent=5 // pred_fallthru
      _
  $region6: #{discriminator_forward.14} parent=0 // loop_footer
    %s11 = sadd.s32 1, %s7
  $region7: #{discriminator_forward.14} parent=0 // loop_footer_branch
    %6 = sbr.rel target = $region3
  $region8: #{discriminator_forward.14} parent=0 // loop_exit
    _

// kernel: discriminator_forward.13
$region0: #{discriminator_forward.13}
  #allocation0 [shape = 'u32[]', space=smem, size = 0x4, offset = 0x4, fixed_abs, tag = 'smem constant byte address 0x4 - core index']
  #allocation1 [shape = 'u32[144,128]{1,0:T(1,128)}', space=vmem, size = 0x12000, scoped, tag = 'internal scratch']
  #allocation2 [shape = 'f32[8,512]{1,0:T(8,128)}', space=vmem, size = 0x4000, scoped, tag = 'scratch operand']
  %s0 = inlined_call_operand.vmem [shape: bf16[8,2304], index: 0, kind: input, shape index: {}]
  %s1 = inlined_call_operand.vmem [shape: bf16[2304,512], index: 1, kind: input, shape index: {}]
  %s2 = inlined_call_operand.vmem [shape: f32[1,512], index: 2, kind: input, shape index: {}]
  %s3 = inlined_call_operand.vmem [shape: f32[8,512], index: 3, kind: output, shape index: {}]
  %s4 = sld [smem:[#allocation0]]
  $region30: #{discriminator_forward.13} parent=0
    _
  %s6 = ssub.s32 1, %s4
  %s7 = scalar_select 0, %s6, %s4
  // Predicated region
  $region2: #{discriminator_forward.13} parent=0 // pred_check
    _
  $region3: #{discriminator_forward.13} parent=0 // pred_check_branch
    %9 = sbr.rel (0) target = $region5
  $region4: #{discriminator_forward.13} parent=0 // pred_region
    _
  $region5: #{discriminator_forward.13} parent=0 // pred_fallthru
    _
  // Predicated region
  $region6: #{discriminator_forward.13} parent=0 // pred_check
    _
  $region7: #{discriminator_forward.13} parent=0 // pred_check_branch
    %11 = sbr.rel (0) target = $region9
  $region8: #{discriminator_forward.13} parent=0 // pred_region
    _
  $region9: #{discriminator_forward.13} parent=0 // pred_fallthru
    _
  // Predicated region
  $region10: #{discriminator_forward.13} parent=0 // pred_check
    _
  $region11: #{discriminator_forward.13} parent=0 // pred_check_branch
    %13 = sbr.rel (0) target = $region13
  $region12: #{discriminator_forward.13} parent=0 // pred_region
    _
  $region13: #{discriminator_forward.13} parent=0 // pred_fallthru
    _
  %p14 = scmp.eq.s32.totalorder 0, 0
  // Predicated region
  $region14: #{discriminator_forward.13} parent=0 // pred_check
    %p15 = pneg %p14
  $region15: #{discriminator_forward.13} parent=0 // pred_check_branch
    %17 = sbr.rel (%p15) target = $region17
  $region16: #{discriminator_forward.13} parent=0 // pred_region
    %18 = vst [vmem:[#allocation2] sm:$0xff] 0.0
    %19 = vst [vmem:[#allocation2 + $0x8] sm:$0xff] 0.0
    %20 = vst [vmem:[#allocation2 + $0x10] sm:$0xff] 0.0
    %21 = vst [vmem:[#allocation2 + $0x18] sm:$0xff] 0.0
  $region17: #{discriminator_forward.13} parent=0 // pred_fallthru
    _
  %v22 = vld [vmem:[#allocation2] sm:$0xff]
  %v23 = vld [vmem:[#allocation2 + $0x8] sm:$0xff]
  %v24 = vld [vmem:[#allocation2 + $0x10] sm:$0xff]
  %v25 = vld [vmem:[#allocation2 + $0x18] sm:$0xff]
  %v26 = vld [vmem:[%s0] sm:$0xff]
  %v27 = vld [vmem:[%s0 + $0x8] sm:$0xff]
  %v28 = vld [vmem:[%s0 + $0x10] sm:$0xff]
  %v29 = vld [vmem:[%s0 + $0x18] sm:$0xff]
  %v30 = vld [vmem:[%s0 + $0x20] sm:$0xff]
  %v31 = vld [vmem:[%s0 + $0x28] sm:$0xff]
  %v32 = vld [vmem:[%s0 + $0x30] sm:$0xff]
  %v33 = vld [vmem:[%s0 + $0x38] sm:$0xff]
  %v34 = vld [vmem:[%s0 + $0x40] sm:$0xff]
  %v35 = vld [vmem:[%s1] sm:$0xff]
  %v36 = vld [vmem:[%s1 + $0x8] sm:$0xff]
  %v37 = vld [vmem:[%s1 + $0x10] sm:$0xff]
  %v38 = vld [vmem:[%s1 + $0x18] sm:$0xff]
  %v39 = vld [vmem:[%s1 + $0x20] sm:$0xff]
  %v40 = vld [vmem:[%s1 + $0x28] sm:$0xff]
  %v41 = vld [vmem:[%s1 + $0x30] sm:$0xff]
  %v42 = vld [vmem:[%s1 + $0x38] sm:$0xff]
  %v43 = vld [vmem:[%s1 + $0x40] sm:$0xff]
  %v44 = vld [vmem:[%s1 + $0x48] sm:$0xff]
  %v45 = vld [vmem:[%s1 + $0x50] sm:$0xff]
  %v46 = vld [vmem:[%s1 + $0x58] sm:$0xff]
  %v47 = vld [vmem:[%s1 + $0x60] sm:$0xff]
  %v48 = vld [vmem:[%s1 + $0x68] sm:$0xff]
  %v49 = vld [vmem:[%s1 + $0x70] sm:$0xff]
  %v50 = vld [vmem:[%s1 + $0x78] sm:$0xff]
  %v51 = vld [vmem:[%s1 + $0x80] sm:$0xff]
  %v52 = vld [vmem:[%s1 + $0x88] sm:$0xff]
  %v53 = vld [vmem:[%s1 + $0x90] sm:$0xff]
  %v54 = vld [vmem:[%s1 + $0x98] sm:$0xff]
  %v55 = vld [vmem:[%s1 + $0xa0] sm:$0xff]
  %v56 = vld [vmem:[%s1 + $0xa8] sm:$0xff]
  %v57 = vld [vmem:[%s1 + $0xb0] sm:$0xff]
  %v58 = vld [vmem:[%s1 + $0xb8] sm:$0xff]
  %v59 = vld [vmem:[%s1 + $0xc0] sm:$0xff]
  %v60 = vld [vmem:[%s1 + $0xc8] sm:$0xff]
  %v61 = vld [vmem:[%s1 + $0xd0] sm:$0xff]
  %v62 = vld [vmem:[%s1 + $0xd8] sm:$0xff]
  %v63 = vld [vmem:[%s1 + $0xe0] sm:$0xff]
  %v64 = vld [vmem:[%s1 + $0xe8] sm:$0xff]
  %v65 = vld [vmem:[%s1 + $0xf0] sm:$0xff]
  %v66 = vld [vmem:[%s1 + $0xf8] sm:$0xff]
  %v67 = vld [vmem:[%s1 + $0x100] sm:$0xff]
  %v68 = vld [vmem:[%s1 + $0x108] sm:$0xff]
  %v69 = vld [vmem:[%s1 + $0x110] sm:$0xff]
  %v70 = vld [vmem:[%s1 + $0x118] sm:$0xff]
  %v71 = vld [vmem:[%s1 + $0x120] sm:$0xff]
  %v72 = vld [vmem:[%s1 + $0x128] sm:$0xff]
  %v73 = vld [vmem:[%s1 + $0x130] sm:$0xff]
  %v74 = vld [vmem:[%s1 + $0x138] sm:$0xff]
  %v75 = vld [vmem:[%s1 + $0x140] sm:$0xff]
  %v76 = vld [vmem:[%s1 + $0x148] sm:$0xff]
  %v77 = vld [vmem:[%s1 + $0x150] sm:$0xff]
  %v78 = vld [vmem:[%s1 + $0x158] sm:$0xff]
  %v79 = vld [vmem:[%s1 + $0x160] sm:$0xff]
  %v80 = vld [vmem:[%s1 + $0x168] sm:$0xff]
  %v81 = vld [vmem:[%s1 + $0x170] sm:$0xff]
  %v82 = vld [vmem:[%s1 + $0x178] sm:$0xff]
  %v83 = vld [vmem:[%s1 + $0x180] sm:$0xff]
  %v84 = vld [vmem:[%s1 + $0x188] sm:$0xff]
  %v85 = vld [vmem:[%s1 + $0x190] sm:$0xff]
  %v86 = vld [vmem:[%s1 + $0x198] sm:$0xff]
  %v87 = vld [vmem:[%s1 + $0x1a0] sm:$0xff]
  %v88 = vld [vmem:[%s1 + $0x1a8] sm:$0xff]
  %v89 = vld [vmem:[%s1 + $0x1b0] sm:$0xff]
  %v90 = vld [vmem:[%s1 + $0x1b8] sm:$0xff]
  %v91 = vld [vmem:[%s1 + $0x1c0] sm:$0xff]
  %v92 = vld [vmem:[%s1 + $0x1c8] sm:$0xff]
  %v93 = vld [vmem:[%s1 + $0x1d0] sm:$0xff]
  %v94 = vld [vmem:[%s1 + $0x1d8] sm:$0xff]
  %v95 = vld [vmem:[%s1 + $0x1e0] sm:$0xff]
  %v96 = vld [vmem:[%s1 + $0x1e8] sm:$0xff]
  %v97 = vld [vmem:[%s1 + $0x1f0] sm:$0xff]
  %v98 = vld [vmem:[%s1 + $0x1f8] sm:$0xff]
  %v99 = vld [vmem:[%s1 + $0x200] sm:$0xff]
  %v100 = vld [vmem:[%s1 + $0x208] sm:$0xff]
  %v101 = vld [vmem:[%s1 + $0x210] sm:$0xff]
  %v102 = vld [vmem:[%s1 + $0x218] sm:$0xff]
  %v103 = vld [vmem:[%s1 + $0x220] sm:$0xff]
  %v104 = vld [vmem:[%s1 + $0x228] sm:$0xff]
  %v105 = vld [vmem:[%s1 + $0x230] sm:$0xff]
  %v106 = vld [vmem:[%s1 + $0x238] sm:$0xff]
  %v107 = vld [vmem:[%s1 + $0x240] sm:$0xff]
  %v108 = vld [vmem:[%s1 + $0x248] sm:$0xff]
  %v109 = vld [vmem:[%s1 + $0x250] sm:$0xff]
  %v110 = vld [vmem:[%s1 + $0x258] sm:$0xff]
  %v111 = vld [vmem:[%s1 + $0x260] sm:$0xff]
  %v112 = vld [vmem:[%s1 + $0x268] sm:$0xff]
  %v113 = vld [vmem:[%s1 + $0x270] sm:$0xff]
  %v114 = vld [vmem:[%s1 + $0x278] sm:$0xff]
  %v115 = vld [vmem:[%s1 + $0x280] sm:$0xff]
  %v116 = vld [vmem:[%s1 + $0x288] sm:$0xff]
  %v117 = vld [vmem:[%s1 + $0x290] sm:$0xff]
  %v118 = vld [vmem:[%s1 + $0x298] sm:$0xff]
  %v119 = vld [vmem:[%s1 + $0x2a0] sm:$0xff]
  %v120 = vld [vmem:[%s1 + $0x2a8] sm:$0xff]
  %v121 = vld [vmem:[%s1 + $0x2b0] sm:$0xff]
  %v122 = vld [vmem:[%s1 + $0x2b8] sm:$0xff]
  %v123 = vld [vmem:[%s1 + $0x2c0] sm:$0xff]
  %v124 = vld [vmem:[%s1 + $0x2c8] sm:$0xff]
  %v125 = vld [vmem:[%s1 + $0x2d0] sm:$0xff]
  %v126 = vld [vmem:[%s1 + $0x2d8] sm:$0xff]
  %v127 = vld [vmem:[%s1 + $0x2e0] sm:$0xff]
  %v128 = vld [vmem:[%s1 + $0x2e8] sm:$0xff]
  %v129 = vld [vmem:[%s1 + $0x2f0] sm:$0xff]
  %v130 = vld [vmem:[%s1 + $0x2f8] sm:$0xff]
  %v131 = vld [vmem:[%s1 + $0x300] sm:$0xff]
  %v132 = vld [vmem:[%s1 + $0x308] sm:$0xff]
  %v133 = vld [vmem:[%s1 + $0x310] sm:$0xff]
  %v134 = vld [vmem:[%s1 + $0x318] sm:$0xff]
  %v135 = vld [vmem:[%s1 + $0x320] sm:$0xff]
  %v136 = vld [vmem:[%s1 + $0x328] sm:$0xff]
  %v137 = vld [vmem:[%s1 + $0x330] sm:$0xff]
  %v138 = vld [vmem:[%s1 + $0x338] sm:$0xff]
  %v139 = vld [vmem:[%s1 + $0x340] sm:$0xff]
  %v140 = vld [vmem:[%s1 + $0x348] sm:$0xff]
  %v141 = vld [vmem:[%s1 + $0x350] sm:$0xff]
  %v142 = vld [vmem:[%s1 + $0x358] sm:$0xff]
  %v143 = vld [vmem:[%s1 + $0x360] sm:$0xff]
  %v144 = vld [vmem:[%s1 + $0x368] sm:$0xff]
  %v145 = vld [vmem:[%s1 + $0x370] sm:$0xff]
  %v146 = vld [vmem:[%s1 + $0x378] sm:$0xff]
  %v147 = vld [vmem:[%s1 + $0x380] sm:$0xff]
  %v148 = vld [vmem:[%s1 + $0x388] sm:$0xff]
  %v149 = vld [vmem:[%s1 + $0x390] sm:$0xff]
  %v150 = vld [vmem:[%s1 + $0x398] sm:$0xff]
  %v151 = vld [vmem:[%s1 + $0x3a0] sm:$0xff]
  %v152 = vld [vmem:[%s1 + $0x3a8] sm:$0xff]
  %v153 = vld [vmem:[%s1 + $0x3b0] sm:$0xff]
  %v154 = vld [vmem:[%s1 + $0x3b8] sm:$0xff]
  %v155 = vld [vmem:[%s1 + $0x3c0] sm:$0xff]
  %v156 = vld [vmem:[%s1 + $0x3c8] sm:$0xff]
  %v157 = vld [vmem:[%s1 + $0x3d0] sm:$0xff]
  %v158 = vld [vmem:[%s1 + $0x3d8] sm:$0xff]
  %v159 = vld [vmem:[%s1 + $0x3e0] sm:$0xff]
  %v160 = vld [vmem:[%s1 + $0x3e8] sm:$0xff]
  %v161 = vld [vmem:[%s1 + $0x3f0] sm:$0xff]
  %v162 = vld [vmem:[%s1 + $0x3f8] sm:$0xff]
  %v163 = vld [vmem:[%s1 + $0x400] sm:$0xff]
  %v164 = vld [vmem:[%s1 + $0x408] sm:$0xff]
  %v165 = vld [vmem:[%s1 + $0x410] sm:$0xff]
  %v166 = vld [vmem:[%s1 + $0x418] sm:$0xff]
  %v167 = vld [vmem:[%s1 + $0x420] sm:$0xff]
  %v168 = vld [vmem:[%s1 + $0x428] sm:$0xff]
  %v169 = vld [vmem:[%s1 + $0x430] sm:$0xff]
  %v170 = vld [vmem:[%s1 + $0x438] sm:$0xff]
  %v171 = vld [vmem:[%s1 + $0x440] sm:$0xff]
  %v172 = vld [vmem:[%s1 + $0x448] sm:$0xff]
  %v173 = vld [vmem:[%s1 + $0x450] sm:$0xff]
  %v174 = vld [vmem:[%s1 + $0x458] sm:$0xff]
  %v175 = vld [vmem:[%s1 + $0x460] sm:$0xff]
  %v176 = vld [vmem:[%s1 + $0x468] sm:$0xff]
  %v177 = vld [vmem:[%s1 + $0x470] sm:$0xff]
  %v178 = vld [vmem:[%s1 + $0x478] sm:$0xff]
  %v179 = vld [vmem:[%s1 + $0x480] sm:$0xff]
  %v180 = vld [vmem:[%s1 + $0x488] sm:$0xff]
  %v181 = vld [vmem:[%s1 + $0x490] sm:$0xff]
  %v182 = vld [vmem:[%s1 + $0x498] sm:$0xff]
  %v183 = vld [vmem:[%s1 + $0x4a0] sm:$0xff]
  %v184 = vld [vmem:[%s1 + $0x4a8] sm:$0xff]
  %v185 = vld [vmem:[%s1 + $0x4b0] sm:$0xff]
  %v186 = vld [vmem:[%s1 + $0x4b8] sm:$0xff]
  %v187 = vld [vmem:[%s1 + $0x4c0] sm:$0xff]
  %v188 = vld [vmem:[%s1 + $0x4c8] sm:$0xff]
  %v189 = vld [vmem:[%s1 + $0x4d0] sm:$0xff]
  %v190 = vld [vmem:[%s1 + $0x4d8] sm:$0xff]
  %v191 = vld [vmem:[%s1 + $0x4e0] sm:$0xff]
  %v192 = vld [vmem:[%s1 + $0x4e8] sm:$0xff]
  %v193 = vld [vmem:[%s1 + $0x4f0] sm:$0xff]
  %v194 = vld [vmem:[%s1 + $0x4f8] sm:$0xff]
  %v195 = vld [vmem:[%s1 + $0x500] sm:$0xff]
  %v196 = vld [vmem:[%s1 + $0x508] sm:$0xff]
  %v197 = vld [vmem:[%s1 + $0x510] sm:$0xff]
  %v198 = vld [vmem:[%s1 + $0x518] sm:$0xff]
  %v199 = vld [vmem:[%s1 + $0x520] sm:$0xff]
  %v200 = vld [vmem:[%s1 + $0x528] sm:$0xff]
  %v201 = vld [vmem:[%s1 + $0x530] sm:$0xff]
  %v202 = vld [vmem:[%s1 + $0x538] sm:$0xff]
  %v203 = vld [vmem:[%s1 + $0x540] sm:$0xff]
  %v204 = vld [vmem:[%s1 + $0x548] sm:$0xff]
  %v205 = vld [vmem:[%s1 + $0x550] sm:$0xff]
  %v206 = vld [vmem:[%s1 + $0x558] sm:$0xff]
  %v207 = vld [vmem:[%s1 + $0x560] sm:$0xff]
  %v208 = vld [vmem:[%s1 + $0x568] sm:$0xff]
  %v209 = vld [vmem:[%s1 + $0x570] sm:$0xff]
  %v210 = vld [vmem:[%s1 + $0x578] sm:$0xff]
  %v211 = vld [vmem:[%s1 + $0x580] sm:$0xff]
  %v212 = vld [vmem:[%s1 + $0x588] sm:$0xff]
  %v213 = vld [vmem:[%s1 + $0x590] sm:$0xff]
  %v214 = vld [vmem:[%s1 + $0x598] sm:$0xff]
  %v215 = vld [vmem:[%s1 + $0x5a0] sm:$0xff]
  %v216 = vld [vmem:[%s1 + $0x5a8] sm:$0xff]
  %v217 = vld [vmem:[%s1 + $0x5b0] sm:$0xff]
  %v218 = vld [vmem:[%s1 + $0x5b8] sm:$0xff]
  %v219 = vld [vmem:[%s1 + $0x5c0] sm:$0xff]
  %v220 = vld [vmem:[%s1 + $0x5c8] sm:$0xff]
  %v221 = vld [vmem:[%s1 + $0x5d0] sm:$0xff]
  %v222 = vld [vmem:[%s1 + $0x5d8] sm:$0xff]
  %v223 = vld [vmem:[%s1 + $0x5e0] sm:$0xff]
  %v224 = vld [vmem:[%s1 + $0x5e8] sm:$0xff]
  %v225 = vld [vmem:[%s1 + $0x5f0] sm:$0xff]
  %v226 = vld [vmem:[%s1 + $0x5f8] sm:$0xff]
  %v227 = vld [vmem:[%s1 + $0x600] sm:$0xff]
  %v228 = vld [vmem:[%s1 + $0x608] sm:$0xff]
  %v229 = vld [vmem:[%s1 + $0x610] sm:$0xff]
  %v230 = vld [vmem:[%s1 + $0x618] sm:$0xff]
  %v231 = vld [vmem:[%s1 + $0x620] sm:$0xff]
  %v232 = vld [vmem:[%s1 + $0x628] sm:$0xff]
  %v233 = vld [vmem:[%s1 + $0x630] sm:$0xff]
  %v234 = vld [vmem:[%s1 + $0x638] sm:$0xff]
  %v235 = vld [vmem:[%s1 + $0x640] sm:$0xff]
  %v236 = vld [vmem:[%s1 + $0x648] sm:$0xff]
  %v237 = vld [vmem:[%s1 + $0x650] sm:$0xff]
  %v238 = vld [vmem:[%s1 + $0x658] sm:$0xff]
  %v239 = vld [vmem:[%s1 + $0x660] sm:$0xff]
  %v240 = vld [vmem:[%s1 + $0x668] sm:$0xff]
  %v241 = vld [vmem:[%s1 + $0x670] sm:$0xff]
  %v242 = vld [vmem:[%s1 + $0x678] sm:$0xff]
  %v243 = vld [vmem:[%s1 + $0x680] sm:$0xff]
  %v244 = vld [vmem:[%s1 + $0x688] sm:$0xff]
  %v245 = vld [vmem:[%s1 + $0x690] sm:$0xff]
  %v246 = vld [vmem:[%s1 + $0x698] sm:$0xff]
  %v247 = vld [vmem:[%s1 + $0x6a0] sm:$0xff]
  %v248 = vld [vmem:[%s1 + $0x6a8] sm:$0xff]
  %v249 = vld [vmem:[%s1 + $0x6b0] sm:$0xff]
  %v250 = vld [vmem:[%s1 + $0x6b8] sm:$0xff]
  %v251 = vld [vmem:[%s1 + $0x6c0] sm:$0xff]
  %v252 = vld [vmem:[%s1 + $0x6c8] sm:$0xff]
  %v253 = vld [vmem:[%s1 + $0x6d0] sm:$0xff]
  %v254 = vld [vmem:[%s1 + $0x6d8] sm:$0xff]
  %v255 = vld [vmem:[%s1 + $0x6e0] sm:$0xff]
  %v256 = vld [vmem:[%s1 + $0x6e8] sm:$0xff]
  %v257 = vld [vmem:[%s1 + $0x6f0] sm:$0xff]
  %v258 = vld [vmem:[%s1 + $0x6f8] sm:$0xff]
  %v259 = vld [vmem:[%s1 + $0x700] sm:$0xff]
  %v260 = vld [vmem:[%s1 + $0x708] sm:$0xff]
  %v261 = vld [vmem:[%s1 + $0x710] sm:$0xff]
  %v262 = vld [vmem:[%s1 + $0x718] sm:$0xff]
  %v263 = vld [vmem:[%s1 + $0x720] sm:$0xff]
  %v264 = vld [vmem:[%s1 + $0x728] sm:$0xff]
  %v265 = vld [vmem:[%s1 + $0x730] sm:$0xff]
  %v266 = vld [vmem:[%s1 + $0x738] sm:$0xff]
  %v267 = vld [vmem:[%s1 + $0x740] sm:$0xff]
  %v268 = vld [vmem:[%s1 + $0x748] sm:$0xff]
  %v269 = vld [vmem:[%s1 + $0x750] sm:$0xff]
  %v270 = vld [vmem:[%s1 + $0x758] sm:$0xff]
  %v271 = vld [vmem:[%s1 + $0x760] sm:$0xff]
  %v272 = vld [vmem:[%s1 + $0x768] sm:$0xff]
  %v273 = vld [vmem:[%s1 + $0x770] sm:$0xff]
  %v274 = vld [vmem:[%s1 + $0x778] sm:$0xff]
  %v275 = vld [vmem:[%s1 + $0x780] sm:$0xff]
  %v276 = vld [vmem:[%s1 + $0x788] sm:$0xff]
  %v277 = vld [vmem:[%s1 + $0x790] sm:$0xff]
  %v278 = vld [vmem:[%s1 + $0x798] sm:$0xff]
  %v279 = vld [vmem:[%s1 + $0x7a0] sm:$0xff]
  %v280 = vld [vmem:[%s1 + $0x7a8] sm:$0xff]
  %v281 = vld [vmem:[%s1 + $0x7b0] sm:$0xff]
  %v282 = vld [vmem:[%s1 + $0x7b8] sm:$0xff]
  %v283 = vld [vmem:[%s1 + $0x7c0] sm:$0xff]
  %v284 = vld [vmem:[%s1 + $0x7c8] sm:$0xff]
  %v285 = vld [vmem:[%s1 + $0x7d0] sm:$0xff]
  %v286 = vld [vmem:[%s1 + $0x7d8] sm:$0xff]
  %v287 = vld [vmem:[%s1 + $0x7e0] sm:$0xff]
  %v288 = vld [vmem:[%s1 + $0x7e8] sm:$0xff]
  %v289 = vld [vmem:[%s1 + $0x7f0] sm:$0xff]
  %v290 = vld [vmem:[%s1 + $0x7f8] sm:$0xff]
  %v291 = vld [vmem:[%s1 + $0x800] sm:$0xff]
  %v292 = vld [vmem:[%s1 + $0x808] sm:$0xff]
  %v293 = vld [vmem:[%s1 + $0x810] sm:$0xff]
  %v294 = vld [vmem:[%s1 + $0x818] sm:$0xff]
  %v295 = vld [vmem:[%s1 + $0x820] sm:$0xff]
  %v296 = vld [vmem:[%s1 + $0x828] sm:$0xff]
  %v297 = vld [vmem:[%s1 + $0x830] sm:$0xff]
  %v298 = vld [vmem:[%s1 + $0x838] sm:$0xff]
  %v299 = vld [vmem:[%s1 + $0x840] sm:$0xff]
  %v300 = vld [vmem:[%s1 + $0x848] sm:$0xff]
  %v301 = vld [vmem:[%s1 + $0x850] sm:$0xff]
  %v302 = vld [vmem:[%s1 + $0x858] sm:$0xff]
  %v303 = vld [vmem:[%s1 + $0x860] sm:$0xff]
  %v304 = vld [vmem:[%s1 + $0x868] sm:$0xff]
  %v305 = vld [vmem:[%s1 + $0x870] sm:$0xff]
  %v306 = vld [vmem:[%s1 + $0x878] sm:$0xff]
  %v307 = vld [vmem:[%s1 + $0x880] sm:$0xff]
  %v308 = vld [vmem:[%s1 + $0x888] sm:$0xff]
  %v309 = vld [vmem:[%s1 + $0x890] sm:$0xff]
  %v310 = vld [vmem:[%s1 + $0x898] sm:$0xff]
  %v311 = vld [vmem:[%s1 + $0x8a0] sm:$0xff]
  %v312 = vld [vmem:[%s1 + $0x8a8] sm:$0xff]
  %v313 = vld [vmem:[%s1 + $0x8b0] sm:$0xff]
  %v314 = vld [vmem:[%s1 + $0x8b8] sm:$0xff]
  %v315 = vld [vmem:[%s1 + $0x8c0] sm:$0xff]
  %v316 = vld [vmem:[%s1 + $0x8c8] sm:$0xff]
  %v317 = vld [vmem:[%s1 + $0x8d0] sm:$0xff]
  %v318 = vld [vmem:[%s1 + $0x8d8] sm:$0xff]
  %v319 = vld [vmem:[%s1 + $0x8e0] sm:$0xff]
  %v320 = vld [vmem:[%s1 + $0x8e8] sm:$0xff]
  %v321 = vld [vmem:[%s1 + $0x8f0] sm:$0xff]
  %v322 = vld [vmem:[%s1 + $0x8f8] sm:$0xff]
  %v323 = vld [vmem:[%s1 + $0x900] sm:$0xff]
  %v324 = vld [vmem:[%s1 + $0x908] sm:$0xff]
  %v325 = vld [vmem:[%s1 + $0x910] sm:$0xff]
  %v326 = vld [vmem:[%s1 + $0x918] sm:$0xff]
  %v327 = vld [vmem:[%s1 + $0x920] sm:$0xff]
  %v328 = vld [vmem:[%s1 + $0x928] sm:$0xff]
  %v329 = vld [vmem:[%s1 + $0x930] sm:$0xff]
  %v330 = vld [vmem:[%s1 + $0x938] sm:$0xff]
  %v331 = vld [vmem:[%s1 + $0x940] sm:$0xff]
  %v332 = vld [vmem:[%s1 + $0x948] sm:$0xff]
  %v333 = vld [vmem:[%s1 + $0x950] sm:$0xff]
  %v334 = vld [vmem:[%s1 + $0x958] sm:$0xff]
  %v335 = vld [vmem:[%s1 + $0x960] sm:$0xff]
  %v336 = vld [vmem:[%s1 + $0x968] sm:$0xff]
  %v337 = vld [vmem:[%s1 + $0x970] sm:$0xff]
  %v338 = vld [vmem:[%s1 + $0x978] sm:$0xff]
  %v339 = vld [vmem:[%s1 + $0x980] sm:$0xff]
  %v340 = vld [vmem:[%s1 + $0x988] sm:$0xff]
  %v341 = vld [vmem:[%s1 + $0x990] sm:$0xff]
  %v342 = vld [vmem:[%s1 + $0x998] sm:$0xff]
  %v343 = vld [vmem:[%s1 + $0x9a0] sm:$0xff]
  %v344 = vld [vmem:[%s1 + $0x9a8] sm:$0xff]
  %v345 = vld [vmem:[%s1 + $0x9b0] sm:$0xff]
  %v346 = vld [vmem:[%s1 + $0x9b8] sm:$0xff]
  %v347 = vld [vmem:[%s1 + $0x9c0] sm:$0xff]
  %v348 = vld [vmem:[%s1 + $0x9c8] sm:$0xff]
  %v349 = vld [vmem:[%s1 + $0x9d0] sm:$0xff]
  %v350 = vld [vmem:[%s1 + $0x9d8] sm:$0xff]
  %v351 = vld [vmem:[%s1 + $0x9e0] sm:$0xff]
  %v352 = vld [vmem:[%s1 + $0x9e8] sm:$0xff]
  %v353 = vld [vmem:[%s1 + $0x9f0] sm:$0xff]
  %v354 = vld [vmem:[%s1 + $0x9f8] sm:$0xff]
  %v355 = vld [vmem:[%s1 + $0xa00] sm:$0xff]
  %v356 = vld [vmem:[%s1 + $0xa08] sm:$0xff]
  %v357 = vld [vmem:[%s1 + $0xa10] sm:$0xff]
  %v358 = vld [vmem:[%s1 + $0xa18] sm:$0xff]
  %v359 = vld [vmem:[%s1 + $0xa20] sm:$0xff]
  %v360 = vld [vmem:[%s1 + $0xa28] sm:$0xff]
  %v361 = vld [vmem:[%s1 + $0xa30] sm:$0xff]
  %v362 = vld [vmem:[%s1 + $0xa38] sm:$0xff]
  %v363 = vld [vmem:[%s1 + $0xa40] sm:$0xff]
  %v364 = vld [vmem:[%s1 + $0xa48] sm:$0xff]
  %v365 = vld [vmem:[%s1 + $0xa50] sm:$0xff]
  %v366 = vld [vmem:[%s1 + $0xa58] sm:$0xff]
  %v367 = vld [vmem:[%s1 + $0xa60] sm:$0xff]
  %v368 = vld [vmem:[%s1 + $0xa68] sm:$0xff]
  %v369 = vld [vmem:[%s1 + $0xa70] sm:$0xff]
  %v370 = vld [vmem:[%s1 + $0xa78] sm:$0xff]
  %v371 = vld [vmem:[%s1 + $0xa80] sm:$0xff]
  %v372 = vld [vmem:[%s1 + $0xa88] sm:$0xff]
  %v373 = vld [vmem:[%s1 + $0xa90] sm:$0xff]
  %v374 = vld [vmem:[%s1 + $0xa98] sm:$0xff]
  %v375 = vld [vmem:[%s1 + $0xaa0] sm:$0xff]
  %v376 = vld [vmem:[%s1 + $0xaa8] sm:$0xff]
  %v377 = vld [vmem:[%s1 + $0xab0] sm:$0xff]
  %v378 = vld [vmem:[%s1 + $0xab8] sm:$0xff]
  %v379 = vld [vmem:[%s1 + $0xac0] sm:$0xff]
  %v380 = vld [vmem:[%s1 + $0xac8] sm:$0xff]
  %v381 = vld [vmem:[%s1 + $0xad0] sm:$0xff]
  %v382 = vld [vmem:[%s1 + $0xad8] sm:$0xff]
  %v383 = vld [vmem:[%s1 + $0xae0] sm:$0xff]
  %v384 = vld [vmem:[%s1 + $0xae8] sm:$0xff]
  %v385 = vld [vmem:[%s1 + $0xaf0] sm:$0xff]
  %v386 = vld [vmem:[%s1 + $0xaf8] sm:$0xff]
  %v387 = vld [vmem:[%s1 + $0xb00] sm:$0xff]
  %v388 = vld [vmem:[%s1 + $0xb08] sm:$0xff]
  %v389 = vld [vmem:[%s1 + $0xb10] sm:$0xff]
  %v390 = vld [vmem:[%s1 + $0xb18] sm:$0xff]
  %v391 = vld [vmem:[%s1 + $0xb20] sm:$0xff]
  %v392 = vld [vmem:[%s1 + $0xb28] sm:$0xff]
  %v393 = vld [vmem:[%s1 + $0xb30] sm:$0xff]
  %v394 = vld [vmem:[%s1 + $0xb38] sm:$0xff]
  %v395 = vld [vmem:[%s1 + $0xb40] sm:$0xff]
  %v396 = vld [vmem:[%s1 + $0xb48] sm:$0xff]
  %v397 = vld [vmem:[%s1 + $0xb50] sm:$0xff]
  %v398 = vld [vmem:[%s1 + $0xb58] sm:$0xff]
  %v399 = vld [vmem:[%s1 + $0xb60] sm:$0xff]
  %v400 = vld [vmem:[%s1 + $0xb68] sm:$0xff]
  %v401 = vld [vmem:[%s1 + $0xb70] sm:$0xff]
  %v402 = vld [vmem:[%s1 + $0xb78] sm:$0xff]
  %v403 = vld [vmem:[%s1 + $0xb80] sm:$0xff]
  %v404 = vld [vmem:[%s1 + $0xb88] sm:$0xff]
  %v405 = vld [vmem:[%s1 + $0xb90] sm:$0xff]
  %v406 = vld [vmem:[%s1 + $0xb98] sm:$0xff]
  %v407 = vld [vmem:[%s1 + $0xba0] sm:$0xff]
  %v408 = vld [vmem:[%s1 + $0xba8] sm:$0xff]
  %v409 = vld [vmem:[%s1 + $0xbb0] sm:$0xff]
  %v410 = vld [vmem:[%s1 + $0xbb8] sm:$0xff]
  %v411 = vld [vmem:[%s1 + $0xbc0] sm:$0xff]
  %v412 = vld [vmem:[%s1 + $0xbc8] sm:$0xff]
  %v413 = vld [vmem:[%s1 + $0xbd0] sm:$0xff]
  %v414 = vld [vmem:[%s1 + $0xbd8] sm:$0xff]
  %v415 = vld [vmem:[%s1 + $0xbe0] sm:$0xff]
  %v416 = vld [vmem:[%s1 + $0xbe8] sm:$0xff]
  %v417 = vld [vmem:[%s1 + $0xbf0] sm:$0xff]
  %v418 = vld [vmem:[%s1 + $0xbf8] sm:$0xff]
  %v419 = vld [vmem:[%s1 + $0xc00] sm:$0xff]
  %v420 = vld [vmem:[%s1 + $0xc08] sm:$0xff]
  %v421 = vld [vmem:[%s1 + $0xc10] sm:$0xff]
  %v422 = vld [vmem:[%s1 + $0xc18] sm:$0xff]
  %v423 = vld [vmem:[%s1 + $0xc20] sm:$0xff]
  %v424 = vld [vmem:[%s1 + $0xc28] sm:$0xff]
  %v425 = vld [vmem:[%s1 + $0xc30] sm:$0xff]
  %v426 = vld [vmem:[%s1 + $0xc38] sm:$0xff]
  %v427 = vld [vmem:[%s1 + $0xc40] sm:$0xff]
  %v428 = vld [vmem:[%s1 + $0xc48] sm:$0xff]
  %v429 = vld [vmem:[%s1 + $0xc50] sm:$0xff]
  %v430 = vld [vmem:[%s1 + $0xc58] sm:$0xff]
  %v431 = vld [vmem:[%s1 + $0xc60] sm:$0xff]
  %v432 = vld [vmem:[%s1 + $0xc68] sm:$0xff]
  %v433 = vld [vmem:[%s1 + $0xc70] sm:$0xff]
  %v434 = vld [vmem:[%s1 + $0xc78] sm:$0xff]
  %v435 = vld [vmem:[%s1 + $0xc80] sm:$0xff]
  %v436 = vld [vmem:[%s1 + $0xc88] sm:$0xff]
  %v437 = vld [vmem:[%s1 + $0xc90] sm:$0xff]
  %v438 = vld [vmem:[%s1 + $0xc98] sm:$0xff]
  %v439 = vld [vmem:[%s1 + $0xca0] sm:$0xff]
  %v440 = vld [vmem:[%s1 + $0xca8] sm:$0xff]
  %v441 = vld [vmem:[%s1 + $0xcb0] sm:$0xff]
  %v442 = vld [vmem:[%s1 + $0xcb8] sm:$0xff]
  %v443 = vld [vmem:[%s1 + $0xcc0] sm:$0xff]
  %v444 = vld [vmem:[%s1 + $0xcc8] sm:$0xff]
  %v445 = vld [vmem:[%s1 + $0xcd0] sm:$0xff]
  %v446 = vld [vmem:[%s1 + $0xcd8] sm:$0xff]
  %v447 = vld [vmem:[%s1 + $0xce0] sm:$0xff]
  %v448 = vld [vmem:[%s1 + $0xce8] sm:$0xff]
  %v449 = vld [vmem:[%s1 + $0xcf0] sm:$0xff]
  %v450 = vld [vmem:[%s1 + $0xcf8] sm:$0xff]
  %v451 = vld [vmem:[%s1 + $0xd00] sm:$0xff]
  %v452 = vld [vmem:[%s1 + $0xd08] sm:$0xff]
  %v453 = vld [vmem:[%s1 + $0xd10] sm:$0xff]
  %v454 = vld [vmem:[%s1 + $0xd18] sm:$0xff]
  %v455 = vld [vmem:[%s1 + $0xd20] sm:$0xff]
  %v456 = vld [vmem:[%s1 + $0xd28] sm:$0xff]
  %v457 = vld [vmem:[%s1 + $0xd30] sm:$0xff]
  %v458 = vld [vmem:[%s1 + $0xd38] sm:$0xff]
  %v459 = vld [vmem:[%s1 + $0xd40] sm:$0xff]
  %v460 = vld [vmem:[%s1 + $0xd48] sm:$0xff]
  %v461 = vld [vmem:[%s1 + $0xd50] sm:$0xff]
  %v462 = vld [vmem:[%s1 + $0xd58] sm:$0xff]
  %v463 = vld [vmem:[%s1 + $0xd60] sm:$0xff]
  %v464 = vld [vmem:[%s1 + $0xd68] sm:$0xff]
  %v465 = vld [vmem:[%s1 + $0xd70] sm:$0xff]
  %v466 = vld [vmem:[%s1 + $0xd78] sm:$0xff]
  %v467 = vld [vmem:[%s1 + $0xd80] sm:$0xff]
  %v468 = vld [vmem:[%s1 + $0xd88] sm:$0xff]
  %v469 = vld [vmem:[%s1 + $0xd90] sm:$0xff]
  %v470 = vld [vmem:[%s1 + $0xd98] sm:$0xff]
  %v471 = vld [vmem:[%s1 + $0xda0] sm:$0xff]
  %v472 = vld [vmem:[%s1 + $0xda8] sm:$0xff]
  %v473 = vld [vmem:[%s1 + $0xdb0] sm:$0xff]
  %v474 = vld [vmem:[%s1 + $0xdb8] sm:$0xff]
  %v475 = vld [vmem:[%s1 + $0xdc0] sm:$0xff]
  %v476 = vld [vmem:[%s1 + $0xdc8] sm:$0xff]
  %v477 = vld [vmem:[%s1 + $0xdd0] sm:$0xff]
  %v478 = vld [vmem:[%s1 + $0xdd8] sm:$0xff]
  %v479 = vld [vmem:[%s1 + $0xde0] sm:$0xff]
  %v480 = vld [vmem:[%s1 + $0xde8] sm:$0xff]
  %v481 = vld [vmem:[%s1 + $0xdf0] sm:$0xff]
  %v482 = vld [vmem:[%s1 + $0xdf8] sm:$0xff]
  %v483 = vld [vmem:[%s1 + $0xe00] sm:$0xff]
  %v484 = vld [vmem:[%s1 + $0xe08] sm:$0xff]
  %v485 = vld [vmem:[%s1 + $0xe10] sm:$0xff]
  %v486 = vld [vmem:[%s1 + $0xe18] sm:$0xff]
  %v487 = vld [vmem:[%s1 + $0xe20] sm:$0xff]
  %v488 = vld [vmem:[%s1 + $0xe28] sm:$0xff]
  %v489 = vld [vmem:[%s1 + $0xe30] sm:$0xff]
  %v490 = vld [vmem:[%s1 + $0xe38] sm:$0xff]
  %v491 = vld [vmem:[%s1 + $0xe40] sm:$0xff]
  %v492 = vld [vmem:[%s1 + $0xe48] sm:$0xff]
  %v493 = vld [vmem:[%s1 + $0xe50] sm:$0xff]
  %v494 = vld [vmem:[%s1 + $0xe58] sm:$0xff]
  %v495 = vld [vmem:[%s1 + $0xe60] sm:$0xff]
  %v496 = vld [vmem:[%s1 + $0xe68] sm:$0xff]
  %v497 = vld [vmem:[%s1 + $0xe70] sm:$0xff]
  %v498 = vld [vmem:[%s1 + $0xe78] sm:$0xff]
  %v499 = vld [vmem:[%s1 + $0xe80] sm:$0xff]
  %v500 = vld [vmem:[%s1 + $0xe88] sm:$0xff]
  %v501 = vld [vmem:[%s1 + $0xe90] sm:$0xff]
  %v502 = vld [vmem:[%s1 + $0xe98] sm:$0xff]
  %v503 = vld [vmem:[%s1 + $0xea0] sm:$0xff]
  %v504 = vld [vmem:[%s1 + $0xea8] sm:$0xff]
  %v505 = vld [vmem:[%s1 + $0xeb0] sm:$0xff]
  %v506 = vld [vmem:[%s1 + $0xeb8] sm:$0xff]
  %v507 = vld [vmem:[%s1 + $0xec0] sm:$0xff]
  %v508 = vld [vmem:[%s1 + $0xec8] sm:$0xff]
  %v509 = vld [vmem:[%s1 + $0xed0] sm:$0xff]
  %v510 = vld [vmem:[%s1 + $0xed8] sm:$0xff]
  %v511 = vld [vmem:[%s1 + $0xee0] sm:$0xff]
  %v512 = vld [vmem:[%s1 + $0xee8] sm:$0xff]
  %v513 = vld [vmem:[%s1 + $0xef0] sm:$0xff]
  %v514 = vld [vmem:[%s1 + $0xef8] sm:$0xff]
  %v515 = vld [vmem:[%s1 + $0xf00] sm:$0xff]
  %v516 = vld [vmem:[%s1 + $0xf08] sm:$0xff]
  %v517 = vld [vmem:[%s1 + $0xf10] sm:$0xff]
  %v518 = vld [vmem:[%s1 + $0xf18] sm:$0xff]
  %v519 = vld [vmem:[%s1 + $0xf20] sm:$0xff]
  %v520 = vld [vmem:[%s1 + $0xf28] sm:$0xff]
  %v521 = vld [vmem:[%s1 + $0xf30] sm:$0xff]
  %v522 = vld [vmem:[%s1 + $0xf38] sm:$0xff]
  %v523 = vld [vmem:[%s1 + $0xf40] sm:$0xff]
  %v524 = vld [vmem:[%s1 + $0xf48] sm:$0xff]
  %v525 = vld [vmem:[%s1 + $0xf50] sm:$0xff]
  %v526 = vld [vmem:[%s1 + $0xf58] sm:$0xff]
  %v527 = vld [vmem:[%s1 + $0xf60] sm:$0xff]
  %v528 = vld [vmem:[%s1 + $0xf68] sm:$0xff]
  %v529 = vld [vmem:[%s1 + $0xf70] sm:$0xff]
  %v530 = vld [vmem:[%s1 + $0xf78] sm:$0xff]
  %v531 = vld [vmem:[%s1 + $0xf80] sm:$0xff]
  %v532 = vld [vmem:[%s1 + $0xf88] sm:$0xff]
  %v533 = vld [vmem:[%s1 + $0xf90] sm:$0xff]
  %v534 = vld [vmem:[%s1 + $0xf98] sm:$0xff]
  %v535 = vld [vmem:[%s1 + $0xfa0] sm:$0xff]
  %v536 = vld [vmem:[%s1 + $0xfa8] sm:$0xff]
  %v537 = vld [vmem:[%s1 + $0xfb0] sm:$0xff]
  %v538 = vld [vmem:[%s1 + $0xfb8] sm:$0xff]
  %v539 = vld [vmem:[%s1 + $0xfc0] sm:$0xff]
  %v540 = vld [vmem:[%s1 + $0xfc8] sm:$0xff]
  %v541 = vld [vmem:[%s1 + $0xfd0] sm:$0xff]
  %v542 = vld [vmem:[%s1 + $0xfd8] sm:$0xff]
  %v543 = vld [vmem:[%s1 + $0xfe0] sm:$0xff]
  %v544 = vld [vmem:[%s1 + $0xfe8] sm:$0xff]
  %v545 = vld [vmem:[%s1 + $0xff0] sm:$0xff]
  %v546 = vld [vmem:[%s1 + $0xff8] sm:$0xff]
  %v547 = vld [vmem:[%s1 + $0x1000] sm:$0xff]
  %v548 = vld [vmem:[%s1 + $0x1008] sm:$0xff]
  %v549 = vld [vmem:[%s1 + $0x1010] sm:$0xff]
  %v550 = vld [vmem:[%s1 + $0x1018] sm:$0xff]
  %v551 = vld [vmem:[%s1 + $0x1020] sm:$0xff]
  %v552 = vld [vmem:[%s1 + $0x1028] sm:$0xff]
  %v553 = vld [vmem:[%s1 + $0x1030] sm:$0xff]
  %v554 = vld [vmem:[%s1 + $0x1038] sm:$0xff]
  %v555 = vld [vmem:[%s1 + $0x1040] sm:$0xff]
  %v556 = vld [vmem:[%s1 + $0x1048] sm:$0xff]
  %v557 = vld [vmem:[%s1 + $0x1050] sm:$0xff]
  %v558 = vld [vmem:[%s1 + $0x1058] sm:$0xff]
  %v559 = vld [vmem:[%s1 + $0x1060] sm:$0xff]
  %v560 = vld [vmem:[%s1 + $0x1068] sm:$0xff]
  %v561 = vld [vmem:[%s1 + $0x1070] sm:$0xff]
  %v562 = vld [vmem:[%s1 + $0x1078] sm:$0xff]
  %v563 = vld [vmem:[%s1 + $0x1080] sm:$0xff]
  %v564 = vld [vmem:[%s1 + $0x1088] sm:$0xff]
  %v565 = vld [vmem:[%s1 + $0x1090] sm:$0xff]
  %v566 = vld [vmem:[%s1 + $0x1098] sm:$0xff]
  %v567 = vld [vmem:[%s1 + $0x10a0] sm:$0xff]
  %v568 = vld [vmem:[%s1 + $0x10a8] sm:$0xff]
  %v569 = vld [vmem:[%s1 + $0x10b0] sm:$0xff]
  %v570 = vld [vmem:[%s1 + $0x10b8] sm:$0xff]
  %v571 = vld [vmem:[%s1 + $0x10c0] sm:$0xff]
  %v572 = vld [vmem:[%s1 + $0x10c8] sm:$0xff]
  %v573 = vld [vmem:[%s1 + $0x10d0] sm:$0xff]
  %v574 = vld [vmem:[%s1 + $0x10d8] sm:$0xff]
  %v575 = vld [vmem:[%s1 + $0x10e0] sm:$0xff]
  %v576 = vld [vmem:[%s1 + $0x10e8] sm:$0xff]
  %v577 = vld [vmem:[%s1 + $0x10f0] sm:$0xff]
  %v578 = vld [vmem:[%s1 + $0x10f8] sm:$0xff]
  %v579 = vld [vmem:[%s1 + $0x1100] sm:$0xff]
  %v580 = vld [vmem:[%s1 + $0x1108] sm:$0xff]
  %v581 = vld [vmem:[%s1 + $0x1110] sm:$0xff]
  %v582 = vld [vmem:[%s1 + $0x1118] sm:$0xff]
  %v583 = vld [vmem:[%s1 + $0x1120] sm:$0xff]
  %v584 = vld [vmem:[%s1 + $0x1128] sm:$0xff]
  %v585 = vld [vmem:[%s1 + $0x1130] sm:$0xff]
  %v586 = vld [vmem:[%s1 + $0x1138] sm:$0xff]
  %v587 = vld [vmem:[%s1 + $0x1140] sm:$0xff]
  %v588 = vld [vmem:[%s1 + $0x1148] sm:$0xff]
  %v589 = vld [vmem:[%s1 + $0x1150] sm:$0xff]
  %v590 = vld [vmem:[%s1 + $0x1158] sm:$0xff]
  %v591 = vld [vmem:[%s1 + $0x1160] sm:$0xff]
  %v592 = vld [vmem:[%s1 + $0x1168] sm:$0xff]
  %v593 = vld [vmem:[%s1 + $0x1170] sm:$0xff]
  %v594 = vld [vmem:[%s1 + $0x1178] sm:$0xff]
  %v595 = vld [vmem:[%s1 + $0x1180] sm:$0xff]
  %v596 = vld [vmem:[%s1 + $0x1188] sm:$0xff]
  %v597 = vld [vmem:[%s1 + $0x1190] sm:$0xff]
  %v598 = vld [vmem:[%s1 + $0x1198] sm:$0xff]
  %v599 = vld [vmem:[%s1 + $0x11a0] sm:$0xff]
  %v600 = vld [vmem:[%s1 + $0x11a8] sm:$0xff]
  %v601 = vld [vmem:[%s1 + $0x11b0] sm:$0xff]
  %v602 = vld [vmem:[%s1 + $0x11b8] sm:$0xff]
  %v603 = vld [vmem:[%s1 + $0x11c0] sm:$0xff]
  %v604 = vld [vmem:[%s1 + $0x11c8] sm:$0xff]
  %v605 = vld [vmem:[%s1 + $0x11d0] sm:$0xff]
  %v606 = vld [vmem:[%s1 + $0x11d8] sm:$0xff]
  %v607 = vld [vmem:[%s1 + $0x11e0] sm:$0xff]
  %v608 = vld [vmem:[%s1 + $0x11e8] sm:$0xff]
  %v609 = vld [vmem:[%s1 + $0x11f0] sm:$0xff]
  %v610 = vld [vmem:[%s1 + $0x11f8] sm:$0xff]
  %v620 = vunpack.c.l.b16 %v26
  %v621 = vunpack.c.h.b16 %v26
  %v622 = vunpack.c.l.b16 %v27
  %v623 = vunpack.c.h.b16 %v27
  %v624 = vunpack.c.l.b16 %v28
  %v625 = vunpack.c.h.b16 %v28
  %v626 = vunpack.c.l.b16 %v29
  %v627 = vunpack.c.h.b16 %v29
  %v628 = vunpack.c.l.b16 %v30
  %v629 = vunpack.c.h.b16 %v30
  %v630 = vunpack.c.l.b16 %v31
  %v631 = vunpack.c.h.b16 %v31
  %v632 = vunpack.c.l.b16 %v32
  %v633 = vunpack.c.h.b16 %v32
  %v634 = vunpack.c.l.b16 %v33
  %v635 = vunpack.c.h.b16 %v33
  %v636 = vunpack.c.l.b16 %v34
  %v637 = vunpack.c.h.b16 %v34
  %v638 = vpack.c.b16 %v620, %v620
  %v639 = vpack.c.b16 %v621, %v621
  %v640 = vpack.c.b16 %v622, %v622
  %v641 = vpack.c.b16 %v623, %v623
  %v642 = vpack.c.b16 %v624, %v624
  %v643 = vpack.c.b16 %v625, %v625
  %v644 = vpack.c.b16 %v626, %v626
  %v645 = vpack.c.b16 %v627, %v627
  %v646 = vpack.c.b16 %v628, %v628
  %v647 = vpack.c.b16 %v629, %v629
  %v648 = vpack.c.b16 %v630, %v630
  %v649 = vpack.c.b16 %v631, %v631
  %v650 = vpack.c.b16 %v632, %v632
  %v651 = vpack.c.b16 %v633, %v633
  %v652 = vpack.c.b16 %v634, %v634
  %v653 = vpack.c.b16 %v635, %v635
  %v654 = vpack.c.b16 %v636, %v636
  %v655 = vpack.c.b16 %v637, %v637
  %v1250 = vunpack.c.l.b16 %v35
  %v1251 = vunpack.c.h.b16 %v35
  %v1252 = vunpack.c.l.b16 %v36
  %v1253 = vunpack.c.h.b16 %v36
  %v1254 = vunpack.c.l.b16 %v37
  %v1255 = vunpack.c.h.b16 %v37
  %v1256 = vunpack.c.l.b16 %v38
  %v1257 = vunpack.c.h.b16 %v38
  %v1258 = vunpack.c.l.b16 %v39
  %v1259 = vunpack.c.h.b16 %v39
  %v1260 = vunpack.c.l.b16 %v40
  %v1261 = vunpack.c.h.b16 %v40
  %v1262 = vunpack.c.l.b16 %v41
  %v1263 = vunpack.c.h.b16 %v41
  %v1264 = vunpack.c.l.b16 %v42
  %v1265 = vunpack.c.h.b16 %v42
  %v1266 = vunpack.c.l.b16 %v43
  %v1267 = vunpack.c.h.b16 %v43
  %v1268 = vunpack.c.l.b16 %v44
  %v1269 = vunpack.c.h.b16 %v44
  %v1270 = vunpack.c.l.b16 %v45
  %v1271 = vunpack.c.h.b16 %v45
  %v1272 = vunpack.c.l.b16 %v46
  %v1273 = vunpack.c.h.b16 %v46
  %v1274 = vunpack.c.l.b16 %v47
  %v1275 = vunpack.c.h.b16 %v47
  %v1276 = vunpack.c.l.b16 %v48
  %v1277 = vunpack.c.h.b16 %v48
  %v1278 = vunpack.c.l.b16 %v49
  %v1279 = vunpack.c.h.b16 %v49
  %v1280 = vunpack.c.l.b16 %v50
  %v1281 = vunpack.c.h.b16 %v50
  %v1282 = vunpack.c.l.b16 %v51
  %v1283 = vunpack.c.h.b16 %v51
  %v1284 = vunpack.c.l.b16 %v52
  %v1285 = vunpack.c.h.b16 %v52
  %v1286 = vunpack.c.l.b16 %v53
  %v1287 = vunpack.c.h.b16 %v53
  %v1288 = vunpack.c.l.b16 %v54
  %v1289 = vunpack.c.h.b16 %v54
  %v1290 = vunpack.c.l.b16 %v55
  %v1291 = vunpack.c.h.b16 %v55
  %v1292 = vunpack.c.l.b16 %v56
  %v1293 = vunpack.c.h.b16 %v56
  %v1294 = vunpack.c.l.b16 %v57
  %v1295 = vunpack.c.h.b16 %v57
  %v1296 = vunpack.c.l.b16 %v58
  %v1297 = vunpack.c.h.b16 %v58
  %v1298 = vunpack.c.l.b16 %v59
  %v1299 = vunpack.c.h.b16 %v59
  %v1300 = vunpack.c.l.b16 %v60
  %v1301 = vunpack.c.h.b16 %v60
  %v1302 = vunpack.c.l.b16 %v61
  %v1303 = vunpack.c.h.b16 %v61
  %v1304 = vunpack.c.l.b16 %v62
  %v1305 = vunpack.c.h.b16 %v62
  %v1306 = vunpack.c.l.b16 %v63
  %v1307 = vunpack.c.h.b16 %v63
  %v1308 = vunpack.c.l.b16 %v64
  %v1309 = vunpack.c.h.b16 %v64
  %v1310 = vunpack.c.l.b16 %v65
  %v1311 = vunpack.c.h.b16 %v65
  %v1312 = vunpack.c.l.b16 %v66
  %v1313 = vunpack.c.h.b16 %v66
  %v1314 = vunpack.c.l.b16 %v67
  %v1315 = vunpack.c.h.b16 %v67
  %v1316 = vunpack.c.l.b16 %v68
  %v1317 = vunpack.c.h.b16 %v68
  %v1318 = vunpack.c.l.b16 %v69
  %v1319 = vunpack.c.h.b16 %v69
  %v1320 = vunpack.c.l.b16 %v70
  %v1321 = vunpack.c.h.b16 %v70
  %v1322 = vunpack.c.l.b16 %v71
  %v1323 = vunpack.c.h.b16 %v71
  %v1324 = vunpack.c.l.b16 %v72
  %v1325 = vunpack.c.h.b16 %v72
  %v1326 = vunpack.c.l.b16 %v73
  %v1327 = vunpack.c.h.b16 %v73
  %v1328 = vunpack.c.l.b16 %v74
  %v1329 = vunpack.c.h.b16 %v74
  %v1330 = vunpack.c.l.b16 %v75
  %v1331 = vunpack.c.h.b16 %v75
  %v1332 = vunpack.c.l.b16 %v76
  %v1333 = vunpack.c.h.b16 %v76
  %v1334 = vunpack.c.l.b16 %v77
  %v1335 = vunpack.c.h.b16 %v77
  %v1336 = vunpack.c.l.b16 %v78
  %v1337 = vunpack.c.h.b16 %v78
  %v1338 = vunpack.c.l.b16 %v79
  %v1339 = vunpack.c.h.b16 %v79
  %v1340 = vunpack.c.l.b16 %v80
  %v1341 = vunpack.c.h.b16 %v80
  %v1342 = vunpack.c.l.b16 %v81
  %v1343 = vunpack.c.h.b16 %v81
  %v1344 = vunpack.c.l.b16 %v82
  %v1345 = vunpack.c.h.b16 %v82
  %v1346 = vunpack.c.l.b16 %v83
  %v1347 = vunpack.c.h.b16 %v83
  %v1348 = vunpack.c.l.b16 %v84
  %v1349 = vunpack.c.h.b16 %v84
  %v1350 = vunpack.c.l.b16 %v85
  %v1351 = vunpack.c.h.b16 %v85
  %v1352 = vunpack.c.l.b16 %v86
  %v1353 = vunpack.c.h.b16 %v86
  %v1354 = vunpack.c.l.b16 %v87
  %v1355 = vunpack.c.h.b16 %v87
  %v1356 = vunpack.c.l.b16 %v88
  %v1357 = vunpack.c.h.b16 %v88
  %v1358 = vunpack.c.l.b16 %v89
  %v1359 = vunpack.c.h.b16 %v89
  %v1360 = vunpack.c.l.b16 %v90
  %v1361 = vunpack.c.h.b16 %v90
  %v1362 = vunpack.c.l.b16 %v91
  %v1363 = vunpack.c.h.b16 %v91
  %v1364 = vunpack.c.l.b16 %v92
  %v1365 = vunpack.c.h.b16 %v92
  %v1366 = vunpack.c.l.b16 %v93
  %v1367 = vunpack.c.h.b16 %v93
  %v1368 = vunpack.c.l.b16 %v94
  %v1369 = vunpack.c.h.b16 %v94
  %v1370 = vunpack.c.l.b16 %v95
  %v1371 = vunpack.c.h.b16 %v95
  %v1372 = vunpack.c.l.b16 %v96
  %v1373 = vunpack.c.h.b16 %v96
  %v1374 = vunpack.c.l.b16 %v97
  %v1375 = vunpack.c.h.b16 %v97
  %v1376 = vunpack.c.l.b16 %v98
  %v1377 = vunpack.c.h.b16 %v98
  %v1378 = vunpack.c.l.b16 %v99
  %v1379 = vunpack.c.h.b16 %v99
  %v1380 = vunpack.c.l.b16 %v100
  %v1381 = vunpack.c.h.b16 %v100
  %v1382 = vunpack.c.l.b16 %v101
  %v1383 = vunpack.c.h.b16 %v101
  %v1384 = vunpack.c.l.b16 %v102
  %v1385 = vunpack.c.h.b16 %v102
  %v1386 = vunpack.c.l.b16 %v103
  %v1387 = vunpack.c.h.b16 %v103
  %v1388 = vunpack.c.l.b16 %v104
  %v1389 = vunpack.c.h.b16 %v104
  %v1390 = vunpack.c.l.b16 %v105
  %v1391 = vunpack.c.h.b16 %v105
  %v1392 = vunpack.c.l.b16 %v106
  %v1393 = vunpack.c.h.b16 %v106
  %v1394 = vunpack.c.l.b16 %v107
  %v1395 = vunpack.c.h.b16 %v107
  %v1396 = vunpack.c.l.b16 %v108
  %v1397 = vunpack.c.h.b16 %v108
  %v1398 = vunpack.c.l.b16 %v109
  %v1399 = vunpack.c.h.b16 %v109
  %v1400 = vunpack.c.l.b16 %v110
  %v1401 = vunpack.c.h.b16 %v110
  %v1402 = vunpack.c.l.b16 %v111
  %v1403 = vunpack.c.h.b16 %v111
  %v1404 = vunpack.c.l.b16 %v112
  %v1405 = vunpack.c.h.b16 %v112
  %v1406 = vunpack.c.l.b16 %v113
  %v1407 = vunpack.c.h.b16 %v113
  %v1408 = vunpack.c.l.b16 %v114
  %v1409 = vunpack.c.h.b16 %v114
  %v1410 = vunpack.c.l.b16 %v115
  %v1411 = vunpack.c.h.b16 %v115
  %v1412 = vunpack.c.l.b16 %v116
  %v1413 = vunpack.c.h.b16 %v116
  %v1414 = vunpack.c.l.b16 %v117
  %v1415 = vunpack.c.h.b16 %v117
  %v1416 = vunpack.c.l.b16 %v118
  %v1417 = vunpack.c.h.b16 %v118
  %v1418 = vunpack.c.l.b16 %v119
  %v1419 = vunpack.c.h.b16 %v119
  %v1420 = vunpack.c.l.b16 %v120
  %v1421 = vunpack.c.h.b16 %v120
  %v1422 = vunpack.c.l.b16 %v121
  %v1423 = vunpack.c.h.b16 %v121
  %v1424 = vunpack.c.l.b16 %v122
  %v1425 = vunpack.c.h.b16 %v122
  %v1426 = vunpack.c.l.b16 %v123
  %v1427 = vunpack.c.h.b16 %v123
  %v1428 = vunpack.c.l.b16 %v124
  %v1429 = vunpack.c.h.b16 %v124
  %v1430 = vunpack.c.l.b16 %v125
  %v1431 = vunpack.c.h.b16 %v125
  %v1432 = vunpack.c.l.b16 %v126
  %v1433 = vunpack.c.h.b16 %v126
  %v1434 = vunpack.c.l.b16 %v127
  %v1435 = vunpack.c.h.b16 %v127
  %v1436 = vunpack.c.l.b16 %v128
  %v1437 = vunpack.c.h.b16 %v128
  %v1438 = vunpack.c.l.b16 %v129
  %v1439 = vunpack.c.h.b16 %v129
  %v1440 = vunpack.c.l.b16 %v130
  %v1441 = vunpack.c.h.b16 %v130
  %v1442 = vunpack.c.l.b16 %v131
  %v1443 = vunpack.c.h.b16 %v131
  %v1444 = vunpack.c.l.b16 %v132
  %v1445 = vunpack.c.h.b16 %v132
  %v1446 = vunpack.c.l.b16 %v133
  %v1447 = vunpack.c.h.b16 %v133
  %v1448 = vunpack.c.l.b16 %v134
  %v1449 = vunpack.c.h.b16 %v134
  %v1450 = vunpack.c.l.b16 %v135
  %v1451 = vunpack.c.h.b16 %v135
  %v1452 = vunpack.c.l.b16 %v136
  %v1453 = vunpack.c.h.b16 %v136
  %v1454 = vunpack.c.l.b16 %v137
  %v1455 = vunpack.c.h.b16 %v137
  %v1456 = vunpack.c.l.b16 %v138
  %v1457 = vunpack.c.h.b16 %v138
  %v1458 = vunpack.c.l.b16 %v139
  %v1459 = vunpack.c.h.b16 %v139
  %v1460 = vunpack.c.l.b16 %v140
  %v1461 = vunpack.c.h.b16 %v140
  %v1462 = vunpack.c.l.b16 %v141
  %v1463 = vunpack.c.h.b16 %v141
  %v1464 = vunpack.c.l.b16 %v142
  %v1465 = vunpack.c.h.b16 %v142
  %v1466 = vunpack.c.l.b16 %v143
  %v1467 = vunpack.c.h.b16 %v143
  %v1468 = vunpack.c.l.b16 %v144
  %v1469 = vunpack.c.h.b16 %v144
  %v1470 = vunpack.c.l.b16 %v145
  %v1471 = vunpack.c.h.b16 %v145
  %v1472 = vunpack.c.l.b16 %v146
  %v1473 = vunpack.c.h.b16 %v146
  %v1474 = vunpack.c.l.b16 %v147
  %v1475 = vunpack.c.h.b16 %v147
  %v1476 = vunpack.c.l.b16 %v148
  %v1477 = vunpack.c.h.b16 %v148
  %v1478 = vunpack.c.l.b16 %v149
  %v1479 = vunpack.c.h.b16 %v149
  %v1480 = vunpack.c.l.b16 %v150
  %v1481 = vunpack.c.h.b16 %v150
  %v1482 = vunpack.c.l.b16 %v151
  %v1483 = vunpack.c.h.b16 %v151
  %v1484 = vunpack.c.l.b16 %v152
  %v1485 = vunpack.c.h.b16 %v152
  %v1486 = vunpack.c.l.b16 %v153
  %v1487 = vunpack.c.h.b16 %v153
  %v1488 = vunpack.c.l.b16 %v154
  %v1489 = vunpack.c.h.b16 %v154
  %v1490 = vunpack.c.l.b16 %v155
  %v1491 = vunpack.c.h.b16 %v155
  %v1492 = vunpack.c.l.b16 %v156
  %v1493 = vunpack.c.h.b16 %v156
  %v1494 = vunpack.c.l.b16 %v157
  %v1495 = vunpack.c.h.b16 %v157
  %v1496 = vunpack.c.l.b16 %v158
  %v1497 = vunpack.c.h.b16 %v158
  %v1498 = vunpack.c.l.b16 %v159
  %v1499 = vunpack.c.h.b16 %v159
  %v1500 = vunpack.c.l.b16 %v160
  %v1501 = vunpack.c.h.b16 %v160
  %v1502 = vunpack.c.l.b16 %v161
  %v1503 = vunpack.c.h.b16 %v161
  %v1504 = vunpack.c.l.b16 %v162
  %v1505 = vunpack.c.h.b16 %v162
  %v1506 = vunpack.c.l.b16 %v163
  %v1507 = vunpack.c.h.b16 %v163
  %v1508 = vunpack.c.l.b16 %v164
  %v1509 = vunpack.c.h.b16 %v164
  %v1510 = vunpack.c.l.b16 %v165
  %v1511 = vunpack.c.h.b16 %v165
  %v1512 = vunpack.c.l.b16 %v166
  %v1513 = vunpack.c.h.b16 %v166
  %v1514 = vunpack.c.l.b16 %v167
  %v1515 = vunpack.c.h.b16 %v167
  %v1516 = vunpack.c.l.b16 %v168
  %v1517 = vunpack.c.h.b16 %v168
  %v1518 = vunpack.c.l.b16 %v169
  %v1519 = vunpack.c.h.b16 %v169
  %v1520 = vunpack.c.l.b16 %v170
  %v1521 = vunpack.c.h.b16 %v170
  %v1522 = vunpack.c.l.b16 %v171
  %v1523 = vunpack.c.h.b16 %v171
  %v1524 = vunpack.c.l.b16 %v172
  %v1525 = vunpack.c.h.b16 %v172
  %v1526 = vunpack.c.l.b16 %v173
  %v1527 = vunpack.c.h.b16 %v173
  %v1528 = vunpack.c.l.b16 %v174
  %v1529 = vunpack.c.h.b16 %v174
  %v1530 = vunpack.c.l.b16 %v175
  %v1531 = vunpack.c.h.b16 %v175
  %v1532 = vunpack.c.l.b16 %v176
  %v1533 = vunpack.c.h.b16 %v176
  %v1534 = vunpack.c.l.b16 %v177
  %v1535 = vunpack.c.h.b16 %v177
  %v1536 = vunpack.c.l.b16 %v178
  %v1537 = vunpack.c.h.b16 %v178
  %v1538 = vunpack.c.l.b16 %v179
  %v1539 = vunpack.c.h.b16 %v179
  %v1540 = vunpack.c.l.b16 %v180
  %v1541 = vunpack.c.h.b16 %v180
  %v1542 = vunpack.c.l.b16 %v181
  %v1543 = vunpack.c.h.b16 %v181
  %v1544 = vunpack.c.l.b16 %v182
  %v1545 = vunpack.c.h.b16 %v182
  %v1546 = vunpack.c.l.b16 %v183
  %v1547 = vunpack.c.h.b16 %v183
  %v1548 = vunpack.c.l.b16 %v184
  %v1549 = vunpack.c.h.b16 %v184
  %v1550 = vunpack.c.l.b16 %v185
  %v1551 = vunpack.c.h.b16 %v185
  %v1552 = vunpack.c.l.b16 %v186
  %v1553 = vunpack.c.h.b16 %v186
  %v1554 = vunpack.c.l.b16 %v187
  %v1555 = vunpack.c.h.b16 %v187
  %v1556 = vunpack.c.l.b16 %v188
  %v1557 = vunpack.c.h.b16 %v188
  %v1558 = vunpack.c.l.b16 %v189
  %v1559 = vunpack.c.h.b16 %v189
  %v1560 = vunpack.c.l.b16 %v190
  %v1561 = vunpack.c.h.b16 %v190
  %v1562 = vunpack.c.l.b16 %v191
  %v1563 = vunpack.c.h.b16 %v191
  %v1564 = vunpack.c.l.b16 %v192
  %v1565 = vunpack.c.h.b16 %v192
  %v1566 = vunpack.c.l.b16 %v193
  %v1567 = vunpack.c.h.b16 %v193
  %v1568 = vunpack.c.l.b16 %v194
  %v1569 = vunpack.c.h.b16 %v194
  %v1570 = vunpack.c.l.b16 %v195
  %v1571 = vunpack.c.h.b16 %v195
  %v1572 = vunpack.c.l.b16 %v196
  %v1573 = vunpack.c.h.b16 %v196
  %v1574 = vunpack.c.l.b16 %v197
  %v1575 = vunpack.c.h.b16 %v197
  %v1576 = vunpack.c.l.b16 %v198
  %v1577 = vunpack.c.h.b16 %v198
  %v1578 = vunpack.c.l.b16 %v199
  %v1579 = vunpack.c.h.b16 %v199
  %v1580 = vunpack.c.l.b16 %v200
  %v1581 = vunpack.c.h.b16 %v200
  %v1582 = vunpack.c.l.b16 %v201
  %v1583 = vunpack.c.h.b16 %v201
  %v1584 = vunpack.c.l.b16 %v202
  %v1585 = vunpack.c.h.b16 %v202
  %v1586 = vunpack.c.l.b16 %v203
  %v1587 = vunpack.c.h.b16 %v203
  %v1588 = vunpack.c.l.b16 %v204
  %v1589 = vunpack.c.h.b16 %v204
  %v1590 = vunpack.c.l.b16 %v205
  %v1591 = vunpack.c.h.b16 %v205
  %v1592 = vunpack.c.l.b16 %v206
  %v1593 = vunpack.c.h.b16 %v206
  %v1594 = vunpack.c.l.b16 %v207
  %v1595 = vunpack.c.h.b16 %v207
  %v1596 = vunpack.c.l.b16 %v208
  %v1597 = vunpack.c.h.b16 %v208
  %v1598 = vunpack.c.l.b16 %v209
  %v1599 = vunpack.c.h.b16 %v209
  %v1600 = vunpack.c.l.b16 %v210
  %v1601 = vunpack.c.h.b16 %v210
  %v1602 = vunpack.c.l.b16 %v211
  %v1603 = vunpack.c.h.b16 %v211
  %v1604 = vunpack.c.l.b16 %v212
  %v1605 = vunpack.c.h.b16 %v212
  %v1606 = vunpack.c.l.b16 %v213
  %v1607 = vunpack.c.h.b16 %v213
  %v1608 = vunpack.c.l.b16 %v214
  %v1609 = vunpack.c.h.b16 %v214
  %v1610 = vunpack.c.l.b16 %v215
  %v1611 = vunpack.c.h.b16 %v215
  %v1612 = vunpack.c.l.b16 %v216
  %v1613 = vunpack.c.h.b16 %v216
  %v1614 = vunpack.c.l.b16 %v217
  %v1615 = vunpack.c.h.b16 %v217
  %v1616 = vunpack.c.l.b16 %v218
  %v1617 = vunpack.c.h.b16 %v218
  %v1618 = vunpack.c.l.b16 %v219
  %v1619 = vunpack.c.h.b16 %v219
  %v1620 = vunpack.c.l.b16 %v220
  %v1621 = vunpack.c.h.b16 %v220
  %v1622 = vunpack.c.l.b16 %v221
  %v1623 = vunpack.c.h.b16 %v221
  %v1624 = vunpack.c.l.b16 %v222
  %v1625 = vunpack.c.h.b16 %v222
  %v1626 = vunpack.c.l.b16 %v223
  %v1627 = vunpack.c.h.b16 %v223
  %v1628 = vunpack.c.l.b16 %v224
  %v1629 = vunpack.c.h.b16 %v224
  %v1630 = vunpack.c.l.b16 %v225
  %v1631 = vunpack.c.h.b16 %v225
  %v1632 = vunpack.c.l.b16 %v226
  %v1633 = vunpack.c.h.b16 %v226
  %v1634 = vunpack.c.l.b16 %v227
  %v1635 = vunpack.c.h.b16 %v227
  %v1636 = vunpack.c.l.b16 %v228
  %v1637 = vunpack.c.h.b16 %v228
  %v1638 = vunpack.c.l.b16 %v229
  %v1639 = vunpack.c.h.b16 %v229
  %v1640 = vunpack.c.l.b16 %v230
  %v1641 = vunpack.c.h.b16 %v230
  %v1642 = vunpack.c.l.b16 %v231
  %v1643 = vunpack.c.h.b16 %v231
  %v1644 = vunpack.c.l.b16 %v232
  %v1645 = vunpack.c.h.b16 %v232
  %v1646 = vunpack.c.l.b16 %v233
  %v1647 = vunpack.c.h.b16 %v233
  %v1648 = vunpack.c.l.b16 %v234
  %v1649 = vunpack.c.h.b16 %v234
  %v1650 = vunpack.c.l.b16 %v235
  %v1651 = vunpack.c.h.b16 %v235
  %v1652 = vunpack.c.l.b16 %v236
  %v1653 = vunpack.c.h.b16 %v236
  %v1654 = vunpack.c.l.b16 %v237
  %v1655 = vunpack.c.h.b16 %v237
  %v1656 = vunpack.c.l.b16 %v238
  %v1657 = vunpack.c.h.b16 %v238
  %v1658 = vunpack.c.l.b16 %v239
  %v1659 = vunpack.c.h.b16 %v239
  %v1660 = vunpack.c.l.b16 %v240
  %v1661 = vunpack.c.h.b16 %v240
  %v1662 = vunpack.c.l.b16 %v241
  %v1663 = vunpack.c.h.b16 %v241
  %v1664 = vunpack.c.l.b16 %v242
  %v1665 = vunpack.c.h.b16 %v242
  %v1666 = vunpack.c.l.b16 %v243
  %v1667 = vunpack.c.h.b16 %v243
  %v1668 = vunpack.c.l.b16 %v244
  %v1669 = vunpack.c.h.b16 %v244
  %v1670 = vunpack.c.l.b16 %v245
  %v1671 = vunpack.c.h.b16 %v245
  %v1672 = vunpack.c.l.b16 %v246
  %v1673 = vunpack.c.h.b16 %v246
  %v1674 = vunpack.c.l.b16 %v247
  %v1675 = vunpack.c.h.b16 %v247
  %v1676 = vunpack.c.l.b16 %v248
  %v1677 = vunpack.c.h.b16 %v248
  %v1678 = vunpack.c.l.b16 %v249
  %v1679 = vunpack.c.h.b16 %v249
  %v1680 = vunpack.c.l.b16 %v250
  %v1681 = vunpack.c.h.b16 %v250
  %v1682 = vunpack.c.l.b16 %v251
  %v1683 = vunpack.c.h.b16 %v251
  %v1684 = vunpack.c.l.b16 %v252
  %v1685 = vunpack.c.h.b16 %v252
  %v1686 = vunpack.c.l.b16 %v253
  %v1687 = vunpack.c.h.b16 %v253
  %v1688 = vunpack.c.l.b16 %v254
  %v1689 = vunpack.c.h.b16 %v254
  %v1690 = vunpack.c.l.b16 %v255
  %v1691 = vunpack.c.h.b16 %v255
  %v1692 = vunpack.c.l.b16 %v256
  %v1693 = vunpack.c.h.b16 %v256
  %v1694 = vunpack.c.l.b16 %v257
  %v1695 = vunpack.c.h.b16 %v257
  %v1696 = vunpack.c.l.b16 %v258
  %v1697 = vunpack.c.h.b16 %v258
  %v1698 = vunpack.c.l.b16 %v259
  %v1699 = vunpack.c.h.b16 %v259
  %v1700 = vunpack.c.l.b16 %v260
  %v1701 = vunpack.c.h.b16 %v260
  %v1702 = vunpack.c.l.b16 %v261
  %v1703 = vunpack.c.h.b16 %v261
  %v1704 = vunpack.c.l.b16 %v262
  %v1705 = vunpack.c.h.b16 %v262
  %v1706 = vunpack.c.l.b16 %v263
  %v1707 = vunpack.c.h.b16 %v263
  %v1708 = vunpack.c.l.b16 %v264
  %v1709 = vunpack.c.h.b16 %v264
  %v1710 = vunpack.c.l.b16 %v265
  %v1711 = vunpack.c.h.b16 %v265
  %v1712 = vunpack.c.l.b16 %v266
  %v1713 = vunpack.c.h.b16 %v266
  %v1714 = vunpack.c.l.b16 %v267
  %v1715 = vunpack.c.h.b16 %v267
  %v1716 = vunpack.c.l.b16 %v268
  %v1717 = vunpack.c.h.b16 %v268
  %v1718 = vunpack.c.l.b16 %v269
  %v1719 = vunpack.c.h.b16 %v269
  %v1720 = vunpack.c.l.b16 %v270
  %v1721 = vunpack.c.h.b16 %v270
  %v1722 = vunpack.c.l.b16 %v271
  %v1723 = vunpack.c.h.b16 %v271
  %v1724 = vunpack.c.l.b16 %v272
  %v1725 = vunpack.c.h.b16 %v272
  %v1726 = vunpack.c.l.b16 %v273
  %v1727 = vunpack.c.h.b16 %v273
  %v1728 = vunpack.c.l.b16 %v274
  %v1729 = vunpack.c.h.b16 %v274
  %v1730 = vunpack.c.l.b16 %v275
  %v1731 = vunpack.c.h.b16 %v275
  %v1732 = vunpack.c.l.b16 %v276
  %v1733 = vunpack.c.h.b16 %v276
  %v1734 = vunpack.c.l.b16 %v277
  %v1735 = vunpack.c.h.b16 %v277
  %v1736 = vunpack.c.l.b16 %v278
  %v1737 = vunpack.c.h.b16 %v278
  %v1738 = vunpack.c.l.b16 %v279
  %v1739 = vunpack.c.h.b16 %v279
  %v1740 = vunpack.c.l.b16 %v280
  %v1741 = vunpack.c.h.b16 %v280
  %v1742 = vunpack.c.l.b16 %v281
  %v1743 = vunpack.c.h.b16 %v281
  %v1744 = vunpack.c.l.b16 %v282
  %v1745 = vunpack.c.h.b16 %v282
  %v1746 = vunpack.c.l.b16 %v283
  %v1747 = vunpack.c.h.b16 %v283
  %v1748 = vunpack.c.l.b16 %v284
  %v1749 = vunpack.c.h.b16 %v284
  %v1750 = vunpack.c.l.b16 %v285
  %v1751 = vunpack.c.h.b16 %v285
  %v1752 = vunpack.c.l.b16 %v286
  %v1753 = vunpack.c.h.b16 %v286
  %v1754 = vunpack.c.l.b16 %v287
  %v1755 = vunpack.c.h.b16 %v287
  %v1756 = vunpack.c.l.b16 %v288
  %v1757 = vunpack.c.h.b16 %v288
  %v1758 = vunpack.c.l.b16 %v289
  %v1759 = vunpack.c.h.b16 %v289
  %v1760 = vunpack.c.l.b16 %v290
  %v1761 = vunpack.c.h.b16 %v290
  %v1762 = vunpack.c.l.b16 %v291
  %v1763 = vunpack.c.h.b16 %v291
  %v1764 = vunpack.c.l.b16 %v292
  %v1765 = vunpack.c.h.b16 %v292
  %v1766 = vunpack.c.l.b16 %v293
  %v1767 = vunpack.c.h.b16 %v293
  %v1768 = vunpack.c.l.b16 %v294
  %v1769 = vunpack.c.h.b16 %v294
  %v1770 = vunpack.c.l.b16 %v295
  %v1771 = vunpack.c.h.b16 %v295
  %v1772 = vunpack.c.l.b16 %v296
  %v1773 = vunpack.c.h.b16 %v296
  %v1774 = vunpack.c.l.b16 %v297
  %v1775 = vunpack.c.h.b16 %v297
  %v1776 = vunpack.c.l.b16 %v298
  %v1777 = vunpack.c.h.b16 %v298
  %v1778 = vunpack.c.l.b16 %v299
  %v1779 = vunpack.c.h.b16 %v299
  %v1780 = vunpack.c.l.b16 %v300
  %v1781 = vunpack.c.h.b16 %v300
  %v1782 = vunpack.c.l.b16 %v301
  %v1783 = vunpack.c.h.b16 %v301
  %v1784 = vunpack.c.l.b16 %v302
  %v1785 = vunpack.c.h.b16 %v302
  %v1786 = vunpack.c.l.b16 %v303
  %v1787 = vunpack.c.h.b16 %v303
  %v1788 = vunpack.c.l.b16 %v304
  %v1789 = vunpack.c.h.b16 %v304
  %v1790 = vunpack.c.l.b16 %v305
  %v1791 = vunpack.c.h.b16 %v305
  %v1792 = vunpack.c.l.b16 %v306
  %v1793 = vunpack.c.h.b16 %v306
  %v1794 = vunpack.c.l.b16 %v307
  %v1795 = vunpack.c.h.b16 %v307
  %v1796 = vunpack.c.l.b16 %v308
  %v1797 = vunpack.c.h.b16 %v308
  %v1798 = vunpack.c.l.b16 %v309
  %v1799 = vunpack.c.h.b16 %v309
  %v1800 = vunpack.c.l.b16 %v310
  %v1801 = vunpack.c.h.b16 %v310
  %v1802 = vunpack.c.l.b16 %v311
  %v1803 = vunpack.c.h.b16 %v311
  %v1804 = vunpack.c.l.b16 %v312
  %v1805 = vunpack.c.h.b16 %v312
  %v1806 = vunpack.c.l.b16 %v313
  %v1807 = vunpack.c.h.b16 %v313
  %v1808 = vunpack.c.l.b16 %v314
  %v1809 = vunpack.c.h.b16 %v314
  %v1810 = vunpack.c.l.b16 %v315
  %v1811 = vunpack.c.h.b16 %v315
  %v1812 = vunpack.c.l.b16 %v316
  %v1813 = vunpack.c.h.b16 %v316
  %v1814 = vunpack.c.l.b16 %v317
  %v1815 = vunpack.c.h.b16 %v317
  %v1816 = vunpack.c.l.b16 %v318
  %v1817 = vunpack.c.h.b16 %v318
  %v1818 = vunpack.c.l.b16 %v319
  %v1819 = vunpack.c.h.b16 %v319
  %v1820 = vunpack.c.l.b16 %v320
  %v1821 = vunpack.c.h.b16 %v320
  %v1822 = vunpack.c.l.b16 %v321
  %v1823 = vunpack.c.h.b16 %v321
  %v1824 = vunpack.c.l.b16 %v322
  %v1825 = vunpack.c.h.b16 %v322
  %v1826 = vunpack.c.l.b16 %v323
  %v1827 = vunpack.c.h.b16 %v323
  %v1828 = vunpack.c.l.b16 %v324
  %v1829 = vunpack.c.h.b16 %v324
  %v1830 = vunpack.c.l.b16 %v325
  %v1831 = vunpack.c.h.b16 %v325
  %v1832 = vunpack.c.l.b16 %v326
  %v1833 = vunpack.c.h.b16 %v326
  %v1834 = vunpack.c.l.b16 %v327
  %v1835 = vunpack.c.h.b16 %v327
  %v1836 = vunpack.c.l.b16 %v328
  %v1837 = vunpack.c.h.b16 %v328
  %v1838 = vunpack.c.l.b16 %v329
  %v1839 = vunpack.c.h.b16 %v329
  %v1840 = vunpack.c.l.b16 %v330
  %v1841 = vunpack.c.h.b16 %v330
  %v1842 = vunpack.c.l.b16 %v331
  %v1843 = vunpack.c.h.b16 %v331
  %v1844 = vunpack.c.l.b16 %v332
  %v1845 = vunpack.c.h.b16 %v332
  %v1846 = vunpack.c.l.b16 %v333
  %v1847 = vunpack.c.h.b16 %v333
  %v1848 = vunpack.c.l.b16 %v334
  %v1849 = vunpack.c.h.b16 %v334
  %v1850 = vunpack.c.l.b16 %v335
  %v1851 = vunpack.c.h.b16 %v335
  %v1852 = vunpack.c.l.b16 %v336
  %v1853 = vunpack.c.h.b16 %v336
  %v1854 = vunpack.c.l.b16 %v337
  %v1855 = vunpack.c.h.b16 %v337
  %v1856 = vunpack.c.l.b16 %v338
  %v1857 = vunpack.c.h.b16 %v338
  %v1858 = vunpack.c.l.b16 %v339
  %v1859 = vunpack.c.h.b16 %v339
  %v1860 = vunpack.c.l.b16 %v340
  %v1861 = vunpack.c.h.b16 %v340
  %v1862 = vunpack.c.l.b16 %v341
  %v1863 = vunpack.c.h.b16 %v341
  %v1864 = vunpack.c.l.b16 %v342
  %v1865 = vunpack.c.h.b16 %v342
  %v1866 = vunpack.c.l.b16 %v343
  %v1867 = vunpack.c.h.b16 %v343
  %v1868 = vunpack.c.l.b16 %v344
  %v1869 = vunpack.c.h.b16 %v344
  %v1870 = vunpack.c.l.b16 %v345
  %v1871 = vunpack.c.h.b16 %v345
  %v1872 = vunpack.c.l.b16 %v346
  %v1873 = vunpack.c.h.b16 %v346
  %v1874 = vunpack.c.l.b16 %v347
  %v1875 = vunpack.c.h.b16 %v347
  %v1876 = vunpack.c.l.b16 %v348
  %v1877 = vunpack.c.h.b16 %v348
  %v1878 = vunpack.c.l.b16 %v349
  %v1879 = vunpack.c.h.b16 %v349
  %v1880 = vunpack.c.l.b16 %v350
  %v1881 = vunpack.c.h.b16 %v350
  %v1882 = vunpack.c.l.b16 %v351
  %v1883 = vunpack.c.h.b16 %v351
  %v1884 = vunpack.c.l.b16 %v352
  %v1885 = vunpack.c.h.b16 %v352
  %v1886 = vunpack.c.l.b16 %v353
  %v1887 = vunpack.c.h.b16 %v353
  %v1888 = vunpack.c.l.b16 %v354
  %v1889 = vunpack.c.h.b16 %v354
  %v1890 = vunpack.c.l.b16 %v355
  %v1891 = vunpack.c.h.b16 %v355
  %v1892 = vunpack.c.l.b16 %v356
  %v1893 = vunpack.c.h.b16 %v356
  %v1894 = vunpack.c.l.b16 %v357
  %v1895 = vunpack.c.h.b16 %v357
  %v1896 = vunpack.c.l.b16 %v358
  %v1897 = vunpack.c.h.b16 %v358
  %v1898 = vunpack.c.l.b16 %v359
  %v1899 = vunpack.c.h.b16 %v359
  %v1900 = vunpack.c.l.b16 %v360
  %v1901 = vunpack.c.h.b16 %v360
  %v1902 = vunpack.c.l.b16 %v361
  %v1903 = vunpack.c.h.b16 %v361
  %v1904 = vunpack.c.l.b16 %v362
  %v1905 = vunpack.c.h.b16 %v362
  %v1906 = vunpack.c.l.b16 %v363
  %v1907 = vunpack.c.h.b16 %v363
  %v1908 = vunpack.c.l.b16 %v364
  %v1909 = vunpack.c.h.b16 %v364
  %v1910 = vunpack.c.l.b16 %v365
  %v1911 = vunpack.c.h.b16 %v365
  %v1912 = vunpack.c.l.b16 %v366
  %v1913 = vunpack.c.h.b16 %v366
  %v1914 = vunpack.c.l.b16 %v367
  %v1915 = vunpack.c.h.b16 %v367
  %v1916 = vunpack.c.l.b16 %v368
  %v1917 = vunpack.c.h.b16 %v368
  %v1918 = vunpack.c.l.b16 %v369
  %v1919 = vunpack.c.h.b16 %v369
  %v1920 = vunpack.c.l.b16 %v370
  %v1921 = vunpack.c.h.b16 %v370
  %v1922 = vunpack.c.l.b16 %v371
  %v1923 = vunpack.c.h.b16 %v371
  %v1924 = vunpack.c.l.b16 %v372
  %v1925 = vunpack.c.h.b16 %v372
  %v1926 = vunpack.c.l.b16 %v373
  %v1927 = vunpack.c.h.b16 %v373
  %v1928 = vunpack.c.l.b16 %v374
  %v1929 = vunpack.c.h.b16 %v374
  %v1930 = vunpack.c.l.b16 %v375
  %v1931 = vunpack.c.h.b16 %v375
  %v1932 = vunpack.c.l.b16 %v376
  %v1933 = vunpack.c.h.b16 %v376
  %v1934 = vunpack.c.l.b16 %v377
  %v1935 = vunpack.c.h.b16 %v377
  %v1936 = vunpack.c.l.b16 %v378
  %v1937 = vunpack.c.h.b16 %v378
  %v1938 = vunpack.c.l.b16 %v379
  %v1939 = vunpack.c.h.b16 %v379
  %v1940 = vunpack.c.l.b16 %v380
  %v1941 = vunpack.c.h.b16 %v380
  %v1942 = vunpack.c.l.b16 %v381
  %v1943 = vunpack.c.h.b16 %v381
  %v1944 = vunpack.c.l.b16 %v382
  %v1945 = vunpack.c.h.b16 %v382
  %v1946 = vunpack.c.l.b16 %v383
  %v1947 = vunpack.c.h.b16 %v383
  %v1948 = vunpack.c.l.b16 %v384
  %v1949 = vunpack.c.h.b16 %v384
  %v1950 = vunpack.c.l.b16 %v385
  %v1951 = vunpack.c.h.b16 %v385
  %v1952 = vunpack.c.l.b16 %v386
  %v1953 = vunpack.c.h.b16 %v386
  %v1954 = vunpack.c.l.b16 %v387
  %v1955 = vunpack.c.h.b16 %v387
  %v1956 = vunpack.c.l.b16 %v388
  %v1957 = vunpack.c.h.b16 %v388
  %v1958 = vunpack.c.l.b16 %v389
  %v1959 = vunpack.c.h.b16 %v389
  %v1960 = vunpack.c.l.b16 %v390
  %v1961 = vunpack.c.h.b16 %v390
  %v1962 = vunpack.c.l.b16 %v391
  %v1963 = vunpack.c.h.b16 %v391
  %v1964 = vunpack.c.l.b16 %v392
  %v1965 = vunpack.c.h.b16 %v392
  %v1966 = vunpack.c.l.b16 %v393
  %v1967 = vunpack.c.h.b16 %v393
  %v1968 = vunpack.c.l.b16 %v394
  %v1969 = vunpack.c.h.b16 %v394
  %v1970 = vunpack.c.l.b16 %v395
  %v1971 = vunpack.c.h.b16 %v395
  %v1972 = vunpack.c.l.b16 %v396
  %v1973 = vunpack.c.h.b16 %v396
  %v1974 = vunpack.c.l.b16 %v397
  %v1975 = vunpack.c.h.b16 %v397
  %v1976 = vunpack.c.l.b16 %v398
  %v1977 = vunpack.c.h.b16 %v398
  %v1978 = vunpack.c.l.b16 %v399
  %v1979 = vunpack.c.h.b16 %v399
  %v1980 = vunpack.c.l.b16 %v400
  %v1981 = vunpack.c.h.b16 %v400
  %v1982 = vunpack.c.l.b16 %v401
  %v1983 = vunpack.c.h.b16 %v401
  %v1984 = vunpack.c.l.b16 %v402
  %v1985 = vunpack.c.h.b16 %v402
  %v1986 = vunpack.c.l.b16 %v403
  %v1987 = vunpack.c.h.b16 %v403
  %v1988 = vunpack.c.l.b16 %v404
  %v1989 = vunpack.c.h.b16 %v404
  %v1990 = vunpack.c.l.b16 %v405
  %v1991 = vunpack.c.h.b16 %v405
  %v1992 = vunpack.c.l.b16 %v406
  %v1993 = vunpack.c.h.b16 %v406
  %v1994 = vunpack.c.l.b16 %v407
  %v1995 = vunpack.c.h.b16 %v407
  %v1996 = vunpack.c.l.b16 %v408
  %v1997 = vunpack.c.h.b16 %v408
  %v1998 = vunpack.c.l.b16 %v409
  %v1999 = vunpack.c.h.b16 %v409
  %v2000 = vunpack.c.l.b16 %v410
  %v2001 = vunpack.c.h.b16 %v410
  %v2002 = vunpack.c.l.b16 %v411
  %v2003 = vunpack.c.h.b16 %v411
  %v2004 = vunpack.c.l.b16 %v412
  %v2005 = vunpack.c.h.b16 %v412
  %v2006 = vunpack.c.l.b16 %v413
  %v2007 = vunpack.c.h.b16 %v413
  %v2008 = vunpack.c.l.b16 %v414
  %v2009 = vunpack.c.h.b16 %v414
  %v2010 = vunpack.c.l.b16 %v415
  %v2011 = vunpack.c.h.b16 %v415
  %v2012 = vunpack.c.l.b16 %v416
  %v2013 = vunpack.c.h.b16 %v416
  %v2014 = vunpack.c.l.b16 %v417
  %v2015 = vunpack.c.h.b16 %v417
  %v2016 = vunpack.c.l.b16 %v418
  %v2017 = vunpack.c.h.b16 %v418
  %v2018 = vunpack.c.l.b16 %v419
  %v2019 = vunpack.c.h.b16 %v419
  %v2020 = vunpack.c.l.b16 %v420
  %v2021 = vunpack.c.h.b16 %v420
  %v2022 = vunpack.c.l.b16 %v421
  %v2023 = vunpack.c.h.b16 %v421
  %v2024 = vunpack.c.l.b16 %v422
  %v2025 = vunpack.c.h.b16 %v422
  %v2026 = vunpack.c.l.b16 %v423
  %v2027 = vunpack.c.h.b16 %v423
  %v2028 = vunpack.c.l.b16 %v424
  %v2029 = vunpack.c.h.b16 %v424
  %v2030 = vunpack.c.l.b16 %v425
  %v2031 = vunpack.c.h.b16 %v425
  %v2032 = vunpack.c.l.b16 %v426
  %v2033 = vunpack.c.h.b16 %v426
  %v2034 = vunpack.c.l.b16 %v427
  %v2035 = vunpack.c.h.b16 %v427
  %v2036 = vunpack.c.l.b16 %v428
  %v2037 = vunpack.c.h.b16 %v428
  %v2038 = vunpack.c.l.b16 %v429
  %v2039 = vunpack.c.h.b16 %v429
  %v2040 = vunpack.c.l.b16 %v430
  %v2041 = vunpack.c.h.b16 %v430
  %v2042 = vunpack.c.l.b16 %v431
  %v2043 = vunpack.c.h.b16 %v431
  %v2044 = vunpack.c.l.b16 %v432
  %v2045 = vunpack.c.h.b16 %v432
  %v2046 = vunpack.c.l.b16 %v433
  %v2047 = vunpack.c.h.b16 %v433
  %v2048 = vunpack.c.l.b16 %v434
  %v2049 = vunpack.c.h.b16 %v434
  %v2050 = vunpack.c.l.b16 %v435
  %v2051 = vunpack.c.h.b16 %v435
  %v2052 = vunpack.c.l.b16 %v436
  %v2053 = vunpack.c.h.b16 %v436
  %v2054 = vunpack.c.l.b16 %v437
  %v2055 = vunpack.c.h.b16 %v437
  %v2056 = vunpack.c.l.b16 %v438
  %v2057 = vunpack.c.h.b16 %v438
  %v2058 = vunpack.c.l.b16 %v439
  %v2059 = vunpack.c.h.b16 %v439
  %v2060 = vunpack.c.l.b16 %v440
  %v2061 = vunpack.c.h.b16 %v440
  %v2062 = vunpack.c.l.b16 %v441
  %v2063 = vunpack.c.h.b16 %v441
  %v2064 = vunpack.c.l.b16 %v442
  %v2065 = vunpack.c.h.b16 %v442
  %v2066 = vunpack.c.l.b16 %v443
  %v2067 = vunpack.c.h.b16 %v443
  %v2068 = vunpack.c.l.b16 %v444
  %v2069 = vunpack.c.h.b16 %v444
  %v2070 = vunpack.c.l.b16 %v445
  %v2071 = vunpack.c.h.b16 %v445
  %v2072 = vunpack.c.l.b16 %v446
  %v2073 = vunpack.c.h.b16 %v446
  %v2074 = vunpack.c.l.b16 %v447
  %v2075 = vunpack.c.h.b16 %v447
  %v2076 = vunpack.c.l.b16 %v448
  %v2077 = vunpack.c.h.b16 %v448
  %v2078 = vunpack.c.l.b16 %v449
  %v2079 = vunpack.c.h.b16 %v449
  %v2080 = vunpack.c.l.b16 %v450
  %v2081 = vunpack.c.h.b16 %v450
  %v2082 = vunpack.c.l.b16 %v451
  %v2083 = vunpack.c.h.b16 %v451
  %v2084 = vunpack.c.l.b16 %v452
  %v2085 = vunpack.c.h.b16 %v452
  %v2086 = vunpack.c.l.b16 %v453
  %v2087 = vunpack.c.h.b16 %v453
  %v2088 = vunpack.c.l.b16 %v454
  %v2089 = vunpack.c.h.b16 %v454
  %v2090 = vunpack.c.l.b16 %v455
  %v2091 = vunpack.c.h.b16 %v455
  %v2092 = vunpack.c.l.b16 %v456
  %v2093 = vunpack.c.h.b16 %v456
  %v2094 = vunpack.c.l.b16 %v457
  %v2095 = vunpack.c.h.b16 %v457
  %v2096 = vunpack.c.l.b16 %v458
  %v2097 = vunpack.c.h.b16 %v458
  %v2098 = vunpack.c.l.b16 %v459
  %v2099 = vunpack.c.h.b16 %v459
  %v2100 = vunpack.c.l.b16 %v460
  %v2101 = vunpack.c.h.b16 %v460
  %v2102 = vunpack.c.l.b16 %v461
  %v2103 = vunpack.c.h.b16 %v461
  %v2104 = vunpack.c.l.b16 %v462
  %v2105 = vunpack.c.h.b16 %v462
  %v2106 = vunpack.c.l.b16 %v463
  %v2107 = vunpack.c.h.b16 %v463
  %v2108 = vunpack.c.l.b16 %v464
  %v2109 = vunpack.c.h.b16 %v464
  %v2110 = vunpack.c.l.b16 %v465
  %v2111 = vunpack.c.h.b16 %v465
  %v2112 = vunpack.c.l.b16 %v466
  %v2113 = vunpack.c.h.b16 %v466
  %v2114 = vunpack.c.l.b16 %v467
  %v2115 = vunpack.c.h.b16 %v467
  %v2116 = vunpack.c.l.b16 %v468
  %v2117 = vunpack.c.h.b16 %v468
  %v2118 = vunpack.c.l.b16 %v469
  %v2119 = vunpack.c.h.b16 %v469
  %v2120 = vunpack.c.l.b16 %v470
  %v2121 = vunpack.c.h.b16 %v470
  %v2122 = vunpack.c.l.b16 %v471
  %v2123 = vunpack.c.h.b16 %v471
  %v2124 = vunpack.c.l.b16 %v472
  %v2125 = vunpack.c.h.b16 %v472
  %v2126 = vunpack.c.l.b16 %v473
  %v2127 = vunpack.c.h.b16 %v473
  %v2128 = vunpack.c.l.b16 %v474
  %v2129 = vunpack.c.h.b16 %v474
  %v2130 = vunpack.c.l.b16 %v475
  %v2131 = vunpack.c.h.b16 %v475
  %v2132 = vunpack.c.l.b16 %v476
  %v2133 = vunpack.c.h.b16 %v476
  %v2134 = vunpack.c.l.b16 %v477
  %v2135 = vunpack.c.h.b16 %v477
  %v2136 = vunpack.c.l.b16 %v478
  %v2137 = vunpack.c.h.b16 %v478
  %v2138 = vunpack.c.l.b16 %v479
  %v2139 = vunpack.c.h.b16 %v479
  %v2140 = vunpack.c.l.b16 %v480
  %v2141 = vunpack.c.h.b16 %v480
  %v2142 = vunpack.c.l.b16 %v481
  %v2143 = vunpack.c.h.b16 %v481
  %v2144 = vunpack.c.l.b16 %v482
  %v2145 = vunpack.c.h.b16 %v482
  %v2146 = vunpack.c.l.b16 %v483
  %v2147 = vunpack.c.h.b16 %v483
  %v2148 = vunpack.c.l.b16 %v484
  %v2149 = vunpack.c.h.b16 %v484
  %v2150 = vunpack.c.l.b16 %v485
  %v2151 = vunpack.c.h.b16 %v485
  %v2152 = vunpack.c.l.b16 %v486
  %v2153 = vunpack.c.h.b16 %v486
  %v2154 = vunpack.c.l.b16 %v487
  %v2155 = vunpack.c.h.b16 %v487
  %v2156 = vunpack.c.l.b16 %v488
  %v2157 = vunpack.c.h.b16 %v488
  %v2158 = vunpack.c.l.b16 %v489
  %v2159 = vunpack.c.h.b16 %v489
  %v2160 = vunpack.c.l.b16 %v490
  %v2161 = vunpack.c.h.b16 %v490
  %v2162 = vunpack.c.l.b16 %v491
  %v2163 = vunpack.c.h.b16 %v491
  %v2164 = vunpack.c.l.b16 %v492
  %v2165 = vunpack.c.h.b16 %v492
  %v2166 = vunpack.c.l.b16 %v493
  %v2167 = vunpack.c.h.b16 %v493
  %v2168 = vunpack.c.l.b16 %v494
  %v2169 = vunpack.c.h.b16 %v494
  %v2170 = vunpack.c.l.b16 %v495
  %v2171 = vunpack.c.h.b16 %v495
  %v2172 = vunpack.c.l.b16 %v496
  %v2173 = vunpack.c.h.b16 %v496
  %v2174 = vunpack.c.l.b16 %v497
  %v2175 = vunpack.c.h.b16 %v497
  %v2176 = vunpack.c.l.b16 %v498
  %v2177 = vunpack.c.h.b16 %v498
  %v2178 = vunpack.c.l.b16 %v499
  %v2179 = vunpack.c.h.b16 %v499
  %v2180 = vunpack.c.l.b16 %v500
  %v2181 = vunpack.c.h.b16 %v500
  %v2182 = vunpack.c.l.b16 %v501
  %v2183 = vunpack.c.h.b16 %v501
  %v2184 = vunpack.c.l.b16 %v502
  %v2185 = vunpack.c.h.b16 %v502
  %v2186 = vunpack.c.l.b16 %v503
  %v2187 = vunpack.c.h.b16 %v503
  %v2188 = vunpack.c.l.b16 %v504
  %v2189 = vunpack.c.h.b16 %v504
  %v2190 = vunpack.c.l.b16 %v505
  %v2191 = vunpack.c.h.b16 %v505
  %v2192 = vunpack.c.l.b16 %v506
  %v2193 = vunpack.c.h.b16 %v506
  %v2194 = vunpack.c.l.b16 %v507
  %v2195 = vunpack.c.h.b16 %v507
  %v2196 = vunpack.c.l.b16 %v508
  %v2197 = vunpack.c.h.b16 %v508
  %v2198 = vunpack.c.l.b16 %v509
  %v2199 = vunpack.c.h.b16 %v509
  %v2200 = vunpack.c.l.b16 %v510
  %v2201 = vunpack.c.h.b16 %v510
  %v2202 = vunpack.c.l.b16 %v511
  %v2203 = vunpack.c.h.b16 %v511
  %v2204 = vunpack.c.l.b16 %v512
  %v2205 = vunpack.c.h.b16 %v512
  %v2206 = vunpack.c.l.b16 %v513
  %v2207 = vunpack.c.h.b16 %v513
  %v2208 = vunpack.c.l.b16 %v514
  %v2209 = vunpack.c.h.b16 %v514
  %v2210 = vunpack.c.l.b16 %v515
  %v2211 = vunpack.c.h.b16 %v515
  %v2212 = vunpack.c.l.b16 %v516
  %v2213 = vunpack.c.h.b16 %v516
  %v2214 = vunpack.c.l.b16 %v517
  %v2215 = vunpack.c.h.b16 %v517
  %v2216 = vunpack.c.l.b16 %v518
  %v2217 = vunpack.c.h.b16 %v518
  %v2218 = vunpack.c.l.b16 %v519
  %v2219 = vunpack.c.h.b16 %v519
  %v2220 = vunpack.c.l.b16 %v520
  %v2221 = vunpack.c.h.b16 %v520
  %v2222 = vunpack.c.l.b16 %v521
  %v2223 = vunpack.c.h.b16 %v521
  %v2224 = vunpack.c.l.b16 %v522
  %v2225 = vunpack.c.h.b16 %v522
  %v2226 = vunpack.c.l.b16 %v523
  %v2227 = vunpack.c.h.b16 %v523
  %v2228 = vunpack.c.l.b16 %v524
  %v2229 = vunpack.c.h.b16 %v524
  %v2230 = vunpack.c.l.b16 %v525
  %v2231 = vunpack.c.h.b16 %v525
  %v2232 = vunpack.c.l.b16 %v526
  %v2233 = vunpack.c.h.b16 %v526
  %v2234 = vunpack.c.l.b16 %v527
  %v2235 = vunpack.c.h.b16 %v527
  %v2236 = vunpack.c.l.b16 %v528
  %v2237 = vunpack.c.h.b16 %v528
  %v2238 = vunpack.c.l.b16 %v529
  %v2239 = vunpack.c.h.b16 %v529
  %v2240 = vunpack.c.l.b16 %v530
  %v2241 = vunpack.c.h.b16 %v530
  %v2242 = vunpack.c.l.b16 %v531
  %v2243 = vunpack.c.h.b16 %v531
  %v2244 = vunpack.c.l.b16 %v532
  %v2245 = vunpack.c.h.b16 %v532
  %v2246 = vunpack.c.l.b16 %v533
  %v2247 = vunpack.c.h.b16 %v533
  %v2248 = vunpack.c.l.b16 %v534
  %v2249 = vunpack.c.h.b16 %v534
  %v2250 = vunpack.c.l.b16 %v535
  %v2251 = vunpack.c.h.b16 %v535
  %v2252 = vunpack.c.l.b16 %v536
  %v2253 = vunpack.c.h.b16 %v536
  %v2254 = vunpack.c.l.b16 %v537
  %v2255 = vunpack.c.h.b16 %v537
  %v2256 = vunpack.c.l.b16 %v538
  %v2257 = vunpack.c.h.b16 %v538
  %v2258 = vunpack.c.l.b16 %v539
  %v2259 = vunpack.c.h.b16 %v539
  %v2260 = vunpack.c.l.b16 %v540
  %v2261 = vunpack.c.h.b16 %v540
  %v2262 = vunpack.c.l.b16 %v541
  %v2263 = vunpack.c.h.b16 %v541
  %v2264 = vunpack.c.l.b16 %v542
  %v2265 = vunpack.c.h.b16 %v542
  %v2266 = vunpack.c.l.b16 %v543
  %v2267 = vunpack.c.h.b16 %v543
  %v2268 = vunpack.c.l.b16 %v544
  %v2269 = vunpack.c.h.b16 %v544
  %v2270 = vunpack.c.l.b16 %v545
  %v2271 = vunpack.c.h.b16 %v545
  %v2272 = vunpack.c.l.b16 %v546
  %v2273 = vunpack.c.h.b16 %v546
  %v2274 = vunpack.c.l.b16 %v547
  %v2275 = vunpack.c.h.b16 %v547
  %v2276 = vunpack.c.l.b16 %v548
  %v2277 = vunpack.c.h.b16 %v548
  %v2278 = vunpack.c.l.b16 %v549
  %v2279 = vunpack.c.h.b16 %v549
  %v2280 = vunpack.c.l.b16 %v550
  %v2281 = vunpack.c.h.b16 %v550
  %v2282 = vunpack.c.l.b16 %v551
  %v2283 = vunpack.c.h.b16 %v551
  %v2284 = vunpack.c.l.b16 %v552
  %v2285 = vunpack.c.h.b16 %v552
  %v2286 = vunpack.c.l.b16 %v553
  %v2287 = vunpack.c.h.b16 %v553
  %v2288 = vunpack.c.l.b16 %v554
  %v2289 = vunpack.c.h.b16 %v554
  %v2290 = vunpack.c.l.b16 %v555
  %v2291 = vunpack.c.h.b16 %v555
  %v2292 = vunpack.c.l.b16 %v556
  %v2293 = vunpack.c.h.b16 %v556
  %v2294 = vunpack.c.l.b16 %v557
  %v2295 = vunpack.c.h.b16 %v557
  %v2296 = vunpack.c.l.b16 %v558
  %v2297 = vunpack.c.h.b16 %v558
  %v2298 = vunpack.c.l.b16 %v559
  %v2299 = vunpack.c.h.b16 %v559
  %v2300 = vunpack.c.l.b16 %v560
  %v2301 = vunpack.c.h.b16 %v560
  %v2302 = vunpack.c.l.b16 %v561
  %v2303 = vunpack.c.h.b16 %v561
  %v2304 = vunpack.c.l.b16 %v562
  %v2305 = vunpack.c.h.b16 %v562
  %v2306 = vunpack.c.l.b16 %v563
  %v2307 = vunpack.c.h.b16 %v563
  %v2308 = vunpack.c.l.b16 %v564
  %v2309 = vunpack.c.h.b16 %v564
  %v2310 = vunpack.c.l.b16 %v565
  %v2311 = vunpack.c.h.b16 %v565
  %v2312 = vunpack.c.l.b16 %v566
  %v2313 = vunpack.c.h.b16 %v566
  %v2314 = vunpack.c.l.b16 %v567
  %v2315 = vunpack.c.h.b16 %v567
  %v2316 = vunpack.c.l.b16 %v568
  %v2317 = vunpack.c.h.b16 %v568
  %v2318 = vunpack.c.l.b16 %v569
  %v2319 = vunpack.c.h.b16 %v569
  %v2320 = vunpack.c.l.b16 %v570
  %v2321 = vunpack.c.h.b16 %v570
  %v2322 = vunpack.c.l.b16 %v571
  %v2323 = vunpack.c.h.b16 %v571
  %v2324 = vunpack.c.l.b16 %v572
  %v2325 = vunpack.c.h.b16 %v572
  %v2326 = vunpack.c.l.b16 %v573
  %v2327 = vunpack.c.h.b16 %v573
  %v2328 = vunpack.c.l.b16 %v574
  %v2329 = vunpack.c.h.b16 %v574
  %v2330 = vunpack.c.l.b16 %v575
  %v2331 = vunpack.c.h.b16 %v575
  %v2332 = vunpack.c.l.b16 %v576
  %v2333 = vunpack.c.h.b16 %v576
  %v2334 = vunpack.c.l.b16 %v577
  %v2335 = vunpack.c.h.b16 %v577
  %v2336 = vunpack.c.l.b16 %v578
  %v2337 = vunpack.c.h.b16 %v578
  %v2338 = vunpack.c.l.b16 %v579
  %v2339 = vunpack.c.h.b16 %v579
  %v2340 = vunpack.c.l.b16 %v580
  %v2341 = vunpack.c.h.b16 %v580
  %v2342 = vunpack.c.l.b16 %v581
  %v2343 = vunpack.c.h.b16 %v581
  %v2344 = vunpack.c.l.b16 %v582
  %v2345 = vunpack.c.h.b16 %v582
  %v2346 = vunpack.c.l.b16 %v583
  %v2347 = vunpack.c.h.b16 %v583
  %v2348 = vunpack.c.l.b16 %v584
  %v2349 = vunpack.c.h.b16 %v584
  %v2350 = vunpack.c.l.b16 %v585
  %v2351 = vunpack.c.h.b16 %v585
  %v2352 = vunpack.c.l.b16 %v586
  %v2353 = vunpack.c.h.b16 %v586
  %v2354 = vunpack.c.l.b16 %v587
  %v2355 = vunpack.c.h.b16 %v587
  %v2356 = vunpack.c.l.b16 %v588
  %v2357 = vunpack.c.h.b16 %v588
  %v2358 = vunpack.c.l.b16 %v589
  %v2359 = vunpack.c.h.b16 %v589
  %v2360 = vunpack.c.l.b16 %v590
  %v2361 = vunpack.c.h.b16 %v590
  %v2362 = vunpack.c.l.b16 %v591
  %v2363 = vunpack.c.h.b16 %v591
  %v2364 = vunpack.c.l.b16 %v592
  %v2365 = vunpack.c.h.b16 %v592
  %v2366 = vunpack.c.l.b16 %v593
  %v2367 = vunpack.c.h.b16 %v593
  %v2368 = vunpack.c.l.b16 %v594
  %v2369 = vunpack.c.h.b16 %v594
  %v2370 = vunpack.c.l.b16 %v595
  %v2371 = vunpack.c.h.b16 %v595
  %v2372 = vunpack.c.l.b16 %v596
  %v2373 = vunpack.c.h.b16 %v596
  %v2374 = vunpack.c.l.b16 %v597
  %v2375 = vunpack.c.h.b16 %v597
  %v2376 = vunpack.c.l.b16 %v598
  %v2377 = vunpack.c.h.b16 %v598
  %v2378 = vunpack.c.l.b16 %v599
  %v2379 = vunpack.c.h.b16 %v599
  %v2380 = vunpack.c.l.b16 %v600
  %v2381 = vunpack.c.h.b16 %v600
  %v2382 = vunpack.c.l.b16 %v601
  %v2383 = vunpack.c.h.b16 %v601
  %v2384 = vunpack.c.l.b16 %v602
  %v2385 = vunpack.c.h.b16 %v602
  %v2386 = vunpack.c.l.b16 %v603
  %v2387 = vunpack.c.h.b16 %v603
  %v2388 = vunpack.c.l.b16 %v604
  %v2389 = vunpack.c.h.b16 %v604
  %v2390 = vunpack.c.l.b16 %v605
  %v2391 = vunpack.c.h.b16 %v605
  %v2392 = vunpack.c.l.b16 %v606
  %v2393 = vunpack.c.h.b16 %v606
  %v2394 = vunpack.c.l.b16 %v607
  %v2395 = vunpack.c.h.b16 %v607
  %v2396 = vunpack.c.l.b16 %v608
  %v2397 = vunpack.c.h.b16 %v608
  %v2398 = vunpack.c.l.b16 %v609
  %v2399 = vunpack.c.h.b16 %v609
  %v2400 = vunpack.c.l.b16 %v610
  %v2401 = vunpack.c.h.b16 %v610
  %v2402 = vpack.c.b16 %v1254, %v1250
  %v2403 = vpack.c.b16 %v1255, %v1251
  %v2404 = vpack.c.b16 %v1256, %v1252
  %v2405 = vpack.c.b16 %v1257, %v1253
  %v2406 = vpack.c.b16 %v1262, %v1258
  %v2407 = vpack.c.b16 %v1263, %v1259
  %v2408 = vpack.c.b16 %v1264, %v1260
  %v2409 = vpack.c.b16 %v1265, %v1261
  %v2410 = vpack.c.b16 %v1270, %v1266
  %v2411 = vpack.c.b16 %v1271, %v1267
  %v2412 = vpack.c.b16 %v1272, %v1268
  %v2413 = vpack.c.b16 %v1273, %v1269
  %v2414 = vpack.c.b16 %v1278, %v1274
  %v2415 = vpack.c.b16 %v1279, %v1275
  %v2416 = vpack.c.b16 %v1280, %v1276
  %v2417 = vpack.c.b16 %v1281, %v1277
  %v2418 = vpack.c.b16 %v1286, %v1282
  %v2419 = vpack.c.b16 %v1287, %v1283
  %v2420 = vpack.c.b16 %v1288, %v1284
  %v2421 = vpack.c.b16 %v1289, %v1285
  %v2422 = vpack.c.b16 %v1294, %v1290
  %v2423 = vpack.c.b16 %v1295, %v1291
  %v2424 = vpack.c.b16 %v1296, %v1292
  %v2425 = vpack.c.b16 %v1297, %v1293
  %v2426 = vpack.c.b16 %v1302, %v1298
  %v2427 = vpack.c.b16 %v1303, %v1299
  %v2428 = vpack.c.b16 %v1304, %v1300
  %v2429 = vpack.c.b16 %v1305, %v1301
  %v2430 = vpack.c.b16 %v1310, %v1306
  %v2431 = vpack.c.b16 %v1311, %v1307
  %v2432 = vpack.c.b16 %v1312, %v1308
  %v2433 = vpack.c.b16 %v1313, %v1309
  %v2434 = vpack.c.b16 %v1318, %v1314
  %v2435 = vpack.c.b16 %v1319, %v1315
  %v2436 = vpack.c.b16 %v1320, %v1316
  %v2437 = vpack.c.b16 %v1321, %v1317
  %v2438 = vpack.c.b16 %v1326, %v1322
  %v2439 = vpack.c.b16 %v1327, %v1323
  %v2440 = vpack.c.b16 %v1328, %v1324
  %v2441 = vpack.c.b16 %v1329, %v1325
  %v2442 = vpack.c.b16 %v1334, %v1330
  %v2443 = vpack.c.b16 %v1335, %v1331
  %v2444 = vpack.c.b16 %v1336, %v1332
  %v2445 = vpack.c.b16 %v1337, %v1333
  %v2446 = vpack.c.b16 %v1342, %v1338
  %v2447 = vpack.c.b16 %v1343, %v1339
  %v2448 = vpack.c.b16 %v1344, %v1340
  %v2449 = vpack.c.b16 %v1345, %v1341
  %v2450 = vpack.c.b16 %v1350, %v1346
  %v2451 = vpack.c.b16 %v1351, %v1347
  %v2452 = vpack.c.b16 %v1352, %v1348
  %v2453 = vpack.c.b16 %v1353, %v1349
  %v2454 = vpack.c.b16 %v1358, %v1354
  %v2455 = vpack.c.b16 %v1359, %v1355
  %v2456 = vpack.c.b16 %v1360, %v1356
  %v2457 = vpack.c.b16 %v1361, %v1357
  %v2458 = vpack.c.b16 %v1366, %v1362
  %v2459 = vpack.c.b16 %v1367, %v1363
  %v2460 = vpack.c.b16 %v1368, %v1364
  %v2461 = vpack.c.b16 %v1369, %v1365
  %v2462 = vpack.c.b16 %v1374, %v1370
  %v2463 = vpack.c.b16 %v1375, %v1371
  %v2464 = vpack.c.b16 %v1376, %v1372
  %v2465 = vpack.c.b16 %v1377, %v1373
  %v2466 = vpack.c.b16 %v1382, %v1378
  %v2467 = vpack.c.b16 %v1383, %v1379
  %v2468 = vpack.c.b16 %v1384, %v1380
  %v2469 = vpack.c.b16 %v1385, %v1381
  %v2470 = vpack.c.b16 %v1390, %v1386
  %v2471 = vpack.c.b16 %v1391, %v1387
  %v2472 = vpack.c.b16 %v1392, %v1388
  %v2473 = vpack.c.b16 %v1393, %v1389
  %v2474 = vpack.c.b16 %v1398, %v1394
  %v2475 = vpack.c.b16 %v1399, %v1395
  %v2476 = vpack.c.b16 %v1400, %v1396
  %v2477 = vpack.c.b16 %v1401, %v1397
  %v2478 = vpack.c.b16 %v1406, %v1402
  %v2479 = vpack.c.b16 %v1407, %v1403
  %v2480 = vpack.c.b16 %v1408, %v1404
  %v2481 = vpack.c.b16 %v1409, %v1405
  %v2482 = vpack.c.b16 %v1414, %v1410
  %v2483 = vpack.c.b16 %v1415, %v1411
  %v2484 = vpack.c.b16 %v1416, %v1412
  %v2485 = vpack.c.b16 %v1417, %v1413
  %v2486 = vpack.c.b16 %v1422, %v1418
  %v2487 = vpack.c.b16 %v1423, %v1419
  %v2488 = vpack.c.b16 %v1424, %v1420
  %v2489 = vpack.c.b16 %v1425, %v1421
  %v2490 = vpack.c.b16 %v1430, %v1426
  %v2491 = vpack.c.b16 %v1431, %v1427
  %v2492 = vpack.c.b16 %v1432, %v1428
  %v2493 = vpack.c.b16 %v1433, %v1429
  %v2494 = vpack.c.b16 %v1438, %v1434
  %v2495 = vpack.c.b16 %v1439, %v1435
  %v2496 = vpack.c.b16 %v1440, %v1436
  %v2497 = vpack.c.b16 %v1441, %v1437
  %v2498 = vpack.c.b16 %v1446, %v1442
  %v2499 = vpack.c.b16 %v1447, %v1443
  %v2500 = vpack.c.b16 %v1448, %v1444
  %v2501 = vpack.c.b16 %v1449, %v1445
  %v2502 = vpack.c.b16 %v1454, %v1450
  %v2503 = vpack.c.b16 %v1455, %v1451
  %v2504 = vpack.c.b16 %v1456, %v1452
  %v2505 = vpack.c.b16 %v1457, %v1453
  %v2506 = vpack.c.b16 %v1462, %v1458
  %v2507 = vpack.c.b16 %v1463, %v1459
  %v2508 = vpack.c.b16 %v1464, %v1460
  %v2509 = vpack.c.b16 %v1465, %v1461
  %v2510 = vpack.c.b16 %v1470, %v1466
  %v2511 = vpack.c.b16 %v1471, %v1467
  %v2512 = vpack.c.b16 %v1472, %v1468
  %v2513 = vpack.c.b16 %v1473, %v1469
  %v2514 = vpack.c.b16 %v1478, %v1474
  %v2515 = vpack.c.b16 %v1479, %v1475
  %v2516 = vpack.c.b16 %v1480, %v1476
  %v2517 = vpack.c.b16 %v1481, %v1477
  %v2518 = vpack.c.b16 %v1486, %v1482
  %v2519 = vpack.c.b16 %v1487, %v1483
  %v2520 = vpack.c.b16 %v1488, %v1484
  %v2521 = vpack.c.b16 %v1489, %v1485
  %v2522 = vpack.c.b16 %v1494, %v1490
  %v2523 = vpack.c.b16 %v1495, %v1491
  %v2524 = vpack.c.b16 %v1496, %v1492
  %v2525 = vpack.c.b16 %v1497, %v1493
  %v2526 = vpack.c.b16 %v1502, %v1498
  %v2527 = vpack.c.b16 %v1503, %v1499
  %v2528 = vpack.c.b16 %v1504, %v1500
  %v2529 = vpack.c.b16 %v1505, %v1501
  %v2530 = vpack.c.b16 %v1510, %v1506
  %v2531 = vpack.c.b16 %v1511, %v1507
  %v2532 = vpack.c.b16 %v1512, %v1508
  %v2533 = vpack.c.b16 %v1513, %v1509
  %v2534 = vpack.c.b16 %v1518, %v1514
  %v2535 = vpack.c.b16 %v1519, %v1515
  %v2536 = vpack.c.b16 %v1520, %v1516
  %v2537 = vpack.c.b16 %v1521, %v1517
  %v2538 = vpack.c.b16 %v1526, %v1522
  %v2539 = vpack.c.b16 %v1527, %v1523
  %v2540 = vpack.c.b16 %v1528, %v1524
  %v2541 = vpack.c.b16 %v1529, %v1525
  %v2542 = vpack.c.b16 %v1534, %v1530
  %v2543 = vpack.c.b16 %v1535, %v1531
  %v2544 = vpack.c.b16 %v1536, %v1532
  %v2545 = vpack.c.b16 %v1537, %v1533
  %v2546 = vpack.c.b16 %v1542, %v1538
  %v2547 = vpack.c.b16 %v1543, %v1539
  %v2548 = vpack.c.b16 %v1544, %v1540
  %v2549 = vpack.c.b16 %v1545, %v1541
  %v2550 = vpack.c.b16 %v1550, %v1546
  %v2551 = vpack.c.b16 %v1551, %v1547
  %v2552 = vpack.c.b16 %v1552, %v1548
  %v2553 = vpack.c.b16 %v1553, %v1549
  %v2554 = vpack.c.b16 %v1558, %v1554
  %v2555 = vpack.c.b16 %v1559, %v1555
  %v2556 = vpack.c.b16 %v1560, %v1556
  %v2557 = vpack.c.b16 %v1561, %v1557
  %v2558 = vpack.c.b16 %v1566, %v1562
  %v2559 = vpack.c.b16 %v1567, %v1563
  %v2560 = vpack.c.b16 %v1568, %v1564
  %v2561 = vpack.c.b16 %v1569, %v1565
  %v2562 = vpack.c.b16 %v1574, %v1570
  %v2563 = vpack.c.b16 %v1575, %v1571
  %v2564 = vpack.c.b16 %v1576, %v1572
  %v2565 = vpack.c.b16 %v1577, %v1573
  %v2566 = vpack.c.b16 %v1582, %v1578
  %v2567 = vpack.c.b16 %v1583, %v1579
  %v2568 = vpack.c.b16 %v1584, %v1580
  %v2569 = vpack.c.b16 %v1585, %v1581
  %v2570 = vpack.c.b16 %v1590, %v1586
  %v2571 = vpack.c.b16 %v1591, %v1587
  %v2572 = vpack.c.b16 %v1592, %v1588
  %v2573 = vpack.c.b16 %v1593, %v1589
  %v2574 = vpack.c.b16 %v1598, %v1594
  %v2575 = vpack.c.b16 %v1599, %v1595
  %v2576 = vpack.c.b16 %v1600, %v1596
  %v2577 = vpack.c.b16 %v1601, %v1597
  %v2578 = vpack.c.b16 %v1606, %v1602
  %v2579 = vpack.c.b16 %v1607, %v1603
  %v2580 = vpack.c.b16 %v1608, %v1604
  %v2581 = vpack.c.b16 %v1609, %v1605
  %v2582 = vpack.c.b16 %v1614, %v1610
  %v2583 = vpack.c.b16 %v1615, %v1611
  %v2584 = vpack.c.b16 %v1616, %v1612
  %v2585 = vpack.c.b16 %v1617, %v1613
  %v2586 = vpack.c.b16 %v1622, %v1618
  %v2587 = vpack.c.b16 %v1623, %v1619
  %v2588 = vpack.c.b16 %v1624, %v1620
  %v2589 = vpack.c.b16 %v1625, %v1621
  %v2590 = vpack.c.b16 %v1630, %v1626
  %v2591 = vpack.c.b16 %v1631, %v1627
  %v2592 = vpack.c.b16 %v1632, %v1628
  %v2593 = vpack.c.b16 %v1633, %v1629
  %v2594 = vpack.c.b16 %v1638, %v1634
  %v2595 = vpack.c.b16 %v1639, %v1635
  %v2596 = vpack.c.b16 %v1640, %v1636
  %v2597 = vpack.c.b16 %v1641, %v1637
  %v2598 = vpack.c.b16 %v1646, %v1642
  %v2599 = vpack.c.b16 %v1647, %v1643
  %v2600 = vpack.c.b16 %v1648, %v1644
  %v2601 = vpack.c.b16 %v1649, %v1645
  %v2602 = vpack.c.b16 %v1654, %v1650
  %v2603 = vpack.c.b16 %v1655, %v1651
  %v2604 = vpack.c.b16 %v1656, %v1652
  %v2605 = vpack.c.b16 %v1657, %v1653
  %v2606 = vpack.c.b16 %v1662, %v1658
  %v2607 = vpack.c.b16 %v1663, %v1659
  %v2608 = vpack.c.b16 %v1664, %v1660
  %v2609 = vpack.c.b16 %v1665, %v1661
  %v2610 = vpack.c.b16 %v1670, %v1666
  %v2611 = vpack.c.b16 %v1671, %v1667
  %v2612 = vpack.c.b16 %v1672, %v1668
  %v2613 = vpack.c.b16 %v1673, %v1669
  %v2614 = vpack.c.b16 %v1678, %v1674
  %v2615 = vpack.c.b16 %v1679, %v1675
  %v2616 = vpack.c.b16 %v1680, %v1676
  %v2617 = vpack.c.b16 %v1681, %v1677
  %v2618 = vpack.c.b16 %v1686, %v1682
  %v2619 = vpack.c.b16 %v1687, %v1683
  %v2620 = vpack.c.b16 %v1688, %v1684
  %v2621 = vpack.c.b16 %v1689, %v1685
  %v2622 = vpack.c.b16 %v1694, %v1690
  %v2623 = vpack.c.b16 %v1695, %v1691
  %v2624 = vpack.c.b16 %v1696, %v1692
  %v2625 = vpack.c.b16 %v1697, %v1693
  %v2626 = vpack.c.b16 %v1702, %v1698
  %v2627 = vpack.c.b16 %v1703, %v1699
  %v2628 = vpack.c.b16 %v1704, %v1700
  %v2629 = vpack.c.b16 %v1705, %v1701
  %v2630 = vpack.c.b16 %v1710, %v1706
  %v2631 = vpack.c.b16 %v1711, %v1707
  %v2632 = vpack.c.b16 %v1712, %v1708
  %v2633 = vpack.c.b16 %v1713, %v1709
  %v2634 = vpack.c.b16 %v1718, %v1714
  %v2635 = vpack.c.b16 %v1719, %v1715
  %v2636 = vpack.c.b16 %v1720, %v1716
  %v2637 = vpack.c.b16 %v1721, %v1717
  %v2638 = vpack.c.b16 %v1726, %v1722
  %v2639 = vpack.c.b16 %v1727, %v1723
  %v2640 = vpack.c.b16 %v1728, %v1724
  %v2641 = vpack.c.b16 %v1729, %v1725
  %v2642 = vpack.c.b16 %v1734, %v1730
  %v2643 = vpack.c.b16 %v1735, %v1731
  %v2644 = vpack.c.b16 %v1736, %v1732
  %v2645 = vpack.c.b16 %v1737, %v1733
  %v2646 = vpack.c.b16 %v1742, %v1738
  %v2647 = vpack.c.b16 %v1743, %v1739
  %v2648 = vpack.c.b16 %v1744, %v1740
  %v2649 = vpack.c.b16 %v1745, %v1741
  %v2650 = vpack.c.b16 %v1750, %v1746
  %v2651 = vpack.c.b16 %v1751, %v1747
  %v2652 = vpack.c.b16 %v1752, %v1748
  %v2653 = vpack.c.b16 %v1753, %v1749
  %v2654 = vpack.c.b16 %v1758, %v1754
  %v2655 = vpack.c.b16 %v1759, %v1755
  %v2656 = vpack.c.b16 %v1760, %v1756
  %v2657 = vpack.c.b16 %v1761, %v1757
  %v2658 = vpack.c.b16 %v1766, %v1762
  %v2659 = vpack.c.b16 %v1767, %v1763
  %v2660 = vpack.c.b16 %v1768, %v1764
  %v2661 = vpack.c.b16 %v1769, %v1765
  %v2662 = vpack.c.b16 %v1774, %v1770
  %v2663 = vpack.c.b16 %v1775, %v1771
  %v2664 = vpack.c.b16 %v1776, %v1772
  %v2665 = vpack.c.b16 %v1777, %v1773
  %v2666 = vpack.c.b16 %v1782, %v1778
  %v2667 = vpack.c.b16 %v1783, %v1779
  %v2668 = vpack.c.b16 %v1784, %v1780
  %v2669 = vpack.c.b16 %v1785, %v1781
  %v2670 = vpack.c.b16 %v1790, %v1786
  %v2671 = vpack.c.b16 %v1791, %v1787
  %v2672 = vpack.c.b16 %v1792, %v1788
  %v2673 = vpack.c.b16 %v1793, %v1789
  %v2674 = vpack.c.b16 %v1798, %v1794
  %v2675 = vpack.c.b16 %v1799, %v1795
  %v2676 = vpack.c.b16 %v1800, %v1796
  %v2677 = vpack.c.b16 %v1801, %v1797
  %v2678 = vpack.c.b16 %v1806, %v1802
  %v2679 = vpack.c.b16 %v1807, %v1803
  %v2680 = vpack.c.b16 %v1808, %v1804
  %v2681 = vpack.c.b16 %v1809, %v1805
  %v2682 = vpack.c.b16 %v1814, %v1810
  %v2683 = vpack.c.b16 %v1815, %v1811
  %v2684 = vpack.c.b16 %v1816, %v1812
  %v2685 = vpack.c.b16 %v1817, %v1813
  %v2686 = vpack.c.b16 %v1822, %v1818
  %v2687 = vpack.c.b16 %v1823, %v1819
  %v2688 = vpack.c.b16 %v1824, %v1820
  %v2689 = vpack.c.b16 %v1825, %v1821
  %v2690 = vpack.c.b16 %v1830, %v1826
  %v2691 = vpack.c.b16 %v1831, %v1827
  %v2692 = vpack.c.b16 %v1832, %v1828
  %v2693 = vpack.c.b16 %v1833, %v1829
  %v2694 = vpack.c.b16 %v1838, %v1834
  %v2695 = vpack.c.b16 %v1839, %v1835
  %v2696 = vpack.c.b16 %v1840, %v1836
  %v2697 = vpack.c.b16 %v1841, %v1837
  %v2698 = vpack.c.b16 %v1846, %v1842
  %v2699 = vpack.c.b16 %v1847, %v1843
  %v2700 = vpack.c.b16 %v1848, %v1844
  %v2701 = vpack.c.b16 %v1849, %v1845
  %v2702 = vpack.c.b16 %v1854, %v1850
  %v2703 = vpack.c.b16 %v1855, %v1851
  %v2704 = vpack.c.b16 %v1856, %v1852
  %v2705 = vpack.c.b16 %v1857, %v1853
  %v2706 = vpack.c.b16 %v1862, %v1858
  %v2707 = vpack.c.b16 %v1863, %v1859
  %v2708 = vpack.c.b16 %v1864, %v1860
  %v2709 = vpack.c.b16 %v1865, %v1861
  %v2710 = vpack.c.b16 %v1870, %v1866
  %v2711 = vpack.c.b16 %v1871, %v1867
  %v2712 = vpack.c.b16 %v1872, %v1868
  %v2713 = vpack.c.b16 %v1873, %v1869
  %v2714 = vpack.c.b16 %v1878, %v1874
  %v2715 = vpack.c.b16 %v1879, %v1875
  %v2716 = vpack.c.b16 %v1880, %v1876
  %v2717 = vpack.c.b16 %v1881, %v1877
  %v2718 = vpack.c.b16 %v1886, %v1882
  %v2719 = vpack.c.b16 %v1887, %v1883
  %v2720 = vpack.c.b16 %v1888, %v1884
  %v2721 = vpack.c.b16 %v1889, %v1885
  %v2722 = vpack.c.b16 %v1894, %v1890
  %v2723 = vpack.c.b16 %v1895, %v1891
  %v2724 = vpack.c.b16 %v1896, %v1892
  %v2725 = vpack.c.b16 %v1897, %v1893
  %v2726 = vpack.c.b16 %v1902, %v1898
  %v2727 = vpack.c.b16 %v1903, %v1899
  %v2728 = vpack.c.b16 %v1904, %v1900
  %v2729 = vpack.c.b16 %v1905, %v1901
  %v2730 = vpack.c.b16 %v1910, %v1906
  %v2731 = vpack.c.b16 %v1911, %v1907
  %v2732 = vpack.c.b16 %v1912, %v1908
  %v2733 = vpack.c.b16 %v1913, %v1909
  %v2734 = vpack.c.b16 %v1918, %v1914
  %v2735 = vpack.c.b16 %v1919, %v1915
  %v2736 = vpack.c.b16 %v1920, %v1916
  %v2737 = vpack.c.b16 %v1921, %v1917
  %v2738 = vpack.c.b16 %v1926, %v1922
  %v2739 = vpack.c.b16 %v1927, %v1923
  %v2740 = vpack.c.b16 %v1928, %v1924
  %v2741 = vpack.c.b16 %v1929, %v1925
  %v2742 = vpack.c.b16 %v1934, %v1930
  %v2743 = vpack.c.b16 %v1935, %v1931
  %v2744 = vpack.c.b16 %v1936, %v1932
  %v2745 = vpack.c.b16 %v1937, %v1933
  %v2746 = vpack.c.b16 %v1942, %v1938
  %v2747 = vpack.c.b16 %v1943, %v1939
  %v2748 = vpack.c.b16 %v1944, %v1940
  %v2749 = vpack.c.b16 %v1945, %v1941
  %v2750 = vpack.c.b16 %v1950, %v1946
  %v2751 = vpack.c.b16 %v1951, %v1947
  %v2752 = vpack.c.b16 %v1952, %v1948
  %v2753 = vpack.c.b16 %v1953, %v1949
  %v2754 = vpack.c.b16 %v1958, %v1954
  %v2755 = vpack.c.b16 %v1959, %v1955
  %v2756 = vpack.c.b16 %v1960, %v1956
  %v2757 = vpack.c.b16 %v1961, %v1957
  %v2758 = vpack.c.b16 %v1966, %v1962
  %v2759 = vpack.c.b16 %v1967, %v1963
  %v2760 = vpack.c.b16 %v1968, %v1964
  %v2761 = vpack.c.b16 %v1969, %v1965
  %v2762 = vpack.c.b16 %v1974, %v1970
  %v2763 = vpack.c.b16 %v1975, %v1971
  %v2764 = vpack.c.b16 %v1976, %v1972
  %v2765 = vpack.c.b16 %v1977, %v1973
  %v2766 = vpack.c.b16 %v1982, %v1978
  %v2767 = vpack.c.b16 %v1983, %v1979
  %v2768 = vpack.c.b16 %v1984, %v1980
  %v2769 = vpack.c.b16 %v1985, %v1981
  %v2770 = vpack.c.b16 %v1990, %v1986
  %v2771 = vpack.c.b16 %v1991, %v1987
  %v2772 = vpack.c.b16 %v1992, %v1988
  %v2773 = vpack.c.b16 %v1993, %v1989
  %v2774 = vpack.c.b16 %v1998, %v1994
  %v2775 = vpack.c.b16 %v1999, %v1995
  %v2776 = vpack.c.b16 %v2000, %v1996
  %v2777 = vpack.c.b16 %v2001, %v1997
  %v2778 = vpack.c.b16 %v2006, %v2002
  %v2779 = vpack.c.b16 %v2007, %v2003
  %v2780 = vpack.c.b16 %v2008, %v2004
  %v2781 = vpack.c.b16 %v2009, %v2005
  %v2782 = vpack.c.b16 %v2014, %v2010
  %v2783 = vpack.c.b16 %v2015, %v2011
  %v2784 = vpack.c.b16 %v2016, %v2012
  %v2785 = vpack.c.b16 %v2017, %v2013
  %v2786 = vpack.c.b16 %v2022, %v2018
  %v2787 = vpack.c.b16 %v2023, %v2019
  %v2788 = vpack.c.b16 %v2024, %v2020
  %v2789 = vpack.c.b16 %v2025, %v2021
  %v2790 = vpack.c.b16 %v2030, %v2026
  %v2791 = vpack.c.b16 %v2031, %v2027
  %v2792 = vpack.c.b16 %v2032, %v2028
  %v2793 = vpack.c.b16 %v2033, %v2029
  %v2794 = vpack.c.b16 %v2038, %v2034
  %v2795 = vpack.c.b16 %v2039, %v2035
  %v2796 = vpack.c.b16 %v2040, %v2036
  %v2797 = vpack.c.b16 %v2041, %v2037
  %v2798 = vpack.c.b16 %v2046, %v2042
  %v2799 = vpack.c.b16 %v2047, %v2043
  %v2800 = vpack.c.b16 %v2048, %v2044
  %v2801 = vpack.c.b16 %v2049, %v2045
  %v2802 = vpack.c.b16 %v2054, %v2050
  %v2803 = vpack.c.b16 %v2055, %v2051
  %v2804 = vpack.c.b16 %v2056, %v2052
  %v2805 = vpack.c.b16 %v2057, %v2053
  %v2806 = vpack.c.b16 %v2062, %v2058
  %v2807 = vpack.c.b16 %v2063, %v2059
  %v2808 = vpack.c.b16 %v2064, %v2060
  %v2809 = vpack.c.b16 %v2065, %v2061
  %v2810 = vpack.c.b16 %v2070, %v2066
  %v2811 = vpack.c.b16 %v2071, %v2067
  %v2812 = vpack.c.b16 %v2072, %v2068
  %v2813 = vpack.c.b16 %v2073, %v2069
  %v2814 = vpack.c.b16 %v2078, %v2074
  %v2815 = vpack.c.b16 %v2079, %v2075
  %v2816 = vpack.c.b16 %v2080, %v2076
  %v2817 = vpack.c.b16 %v2081, %v2077
  %v2818 = vpack.c.b16 %v2086, %v2082
  %v2819 = vpack.c.b16 %v2087, %v2083
  %v2820 = vpack.c.b16 %v2088, %v2084
  %v2821 = vpack.c.b16 %v2089, %v2085
  %v2822 = vpack.c.b16 %v2094, %v2090
  %v2823 = vpack.c.b16 %v2095, %v2091
  %v2824 = vpack.c.b16 %v2096, %v2092
  %v2825 = vpack.c.b16 %v2097, %v2093
  %v2826 = vpack.c.b16 %v2102, %v2098
  %v2827 = vpack.c.b16 %v2103, %v2099
  %v2828 = vpack.c.b16 %v2104, %v2100
  %v2829 = vpack.c.b16 %v2105, %v2101
  %v2830 = vpack.c.b16 %v2110, %v2106
  %v2831 = vpack.c.b16 %v2111, %v2107
  %v2832 = vpack.c.b16 %v2112, %v2108
  %v2833 = vpack.c.b16 %v2113, %v2109
  %v2834 = vpack.c.b16 %v2118, %v2114
  %v2835 = vpack.c.b16 %v2119, %v2115
  %v2836 = vpack.c.b16 %v2120, %v2116
  %v2837 = vpack.c.b16 %v2121, %v2117
  %v2838 = vpack.c.b16 %v2126, %v2122
  %v2839 = vpack.c.b16 %v2127, %v2123
  %v2840 = vpack.c.b16 %v2128, %v2124
  %v2841 = vpack.c.b16 %v2129, %v2125
  %v2842 = vpack.c.b16 %v2134, %v2130
  %v2843 = vpack.c.b16 %v2135, %v2131
  %v2844 = vpack.c.b16 %v2136, %v2132
  %v2845 = vpack.c.b16 %v2137, %v2133
  %v2846 = vpack.c.b16 %v2142, %v2138
  %v2847 = vpack.c.b16 %v2143, %v2139
  %v2848 = vpack.c.b16 %v2144, %v2140
  %v2849 = vpack.c.b16 %v2145, %v2141
  %v2850 = vpack.c.b16 %v2150, %v2146
  %v2851 = vpack.c.b16 %v2151, %v2147
  %v2852 = vpack.c.b16 %v2152, %v2148
  %v2853 = vpack.c.b16 %v2153, %v2149
  %v2854 = vpack.c.b16 %v2158, %v2154
  %v2855 = vpack.c.b16 %v2159, %v2155
  %v2856 = vpack.c.b16 %v2160, %v2156
  %v2857 = vpack.c.b16 %v2161, %v2157
  %v2858 = vpack.c.b16 %v2166, %v2162
  %v2859 = vpack.c.b16 %v2167, %v2163
  %v2860 = vpack.c.b16 %v2168, %v2164
  %v2861 = vpack.c.b16 %v2169, %v2165
  %v2862 = vpack.c.b16 %v2174, %v2170
  %v2863 = vpack.c.b16 %v2175, %v2171
  %v2864 = vpack.c.b16 %v2176, %v2172
  %v2865 = vpack.c.b16 %v2177, %v2173
  %v2866 = vpack.c.b16 %v2182, %v2178
  %v2867 = vpack.c.b16 %v2183, %v2179
  %v2868 = vpack.c.b16 %v2184, %v2180
  %v2869 = vpack.c.b16 %v2185, %v2181
  %v2870 = vpack.c.b16 %v2190, %v2186
  %v2871 = vpack.c.b16 %v2191, %v2187
  %v2872 = vpack.c.b16 %v2192, %v2188
  %v2873 = vpack.c.b16 %v2193, %v2189
  %v2874 = vpack.c.b16 %v2198, %v2194
  %v2875 = vpack.c.b16 %v2199, %v2195
  %v2876 = vpack.c.b16 %v2200, %v2196
  %v2877 = vpack.c.b16 %v2201, %v2197
  %v2878 = vpack.c.b16 %v2206, %v2202
  %v2879 = vpack.c.b16 %v2207, %v2203
  %v2880 = vpack.c.b16 %v2208, %v2204
  %v2881 = vpack.c.b16 %v2209, %v2205
  %v2882 = vpack.c.b16 %v2214, %v2210
  %v2883 = vpack.c.b16 %v2215, %v2211
  %v2884 = vpack.c.b16 %v2216, %v2212
  %v2885 = vpack.c.b16 %v2217, %v2213
  %v2886 = vpack.c.b16 %v2222, %v2218
  %v2887 = vpack.c.b16 %v2223, %v2219
  %v2888 = vpack.c.b16 %v2224, %v2220
  %v2889 = vpack.c.b16 %v2225, %v2221
  %v2890 = vpack.c.b16 %v2230, %v2226
  %v2891 = vpack.c.b16 %v2231, %v2227
  %v2892 = vpack.c.b16 %v2232, %v2228
  %v2893 = vpack.c.b16 %v2233, %v2229
  %v2894 = vpack.c.b16 %v2238, %v2234
  %v2895 = vpack.c.b16 %v2239, %v2235
  %v2896 = vpack.c.b16 %v2240, %v2236
  %v2897 = vpack.c.b16 %v2241, %v2237
  %v2898 = vpack.c.b16 %v2246, %v2242
  %v2899 = vpack.c.b16 %v2247, %v2243
  %v2900 = vpack.c.b16 %v2248, %v2244
  %v2901 = vpack.c.b16 %v2249, %v2245
  %v2902 = vpack.c.b16 %v2254, %v2250
  %v2903 = vpack.c.b16 %v2255, %v2251
  %v2904 = vpack.c.b16 %v2256, %v2252
  %v2905 = vpack.c.b16 %v2257, %v2253
  %v2906 = vpack.c.b16 %v2262, %v2258
  %v2907 = vpack.c.b16 %v2263, %v2259
  %v2908 = vpack.c.b16 %v2264, %v2260
  %v2909 = vpack.c.b16 %v2265, %v2261
  %v2910 = vpack.c.b16 %v2270, %v2266
  %v2911 = vpack.c.b16 %v2271, %v2267
  %v2912 = vpack.c.b16 %v2272, %v2268
  %v2913 = vpack.c.b16 %v2273, %v2269
  %v2914 = vpack.c.b16 %v2278, %v2274
  %v2915 = vpack.c.b16 %v2279, %v2275
  %v2916 = vpack.c.b16 %v2280, %v2276
  %v2917 = vpack.c.b16 %v2281, %v2277
  %v2918 = vpack.c.b16 %v2286, %v2282
  %v2919 = vpack.c.b16 %v2287, %v2283
  %v2920 = vpack.c.b16 %v2288, %v2284
  %v2921 = vpack.c.b16 %v2289, %v2285
  %v2922 = vpack.c.b16 %v2294, %v2290
  %v2923 = vpack.c.b16 %v2295, %v2291
  %v2924 = vpack.c.b16 %v2296, %v2292
  %v2925 = vpack.c.b16 %v2297, %v2293
  %v2926 = vpack.c.b16 %v2302, %v2298
  %v2927 = vpack.c.b16 %v2303, %v2299
  %v2928 = vpack.c.b16 %v2304, %v2300
  %v2929 = vpack.c.b16 %v2305, %v2301
  %v2930 = vpack.c.b16 %v2310, %v2306
  %v2931 = vpack.c.b16 %v2311, %v2307
  %v2932 = vpack.c.b16 %v2312, %v2308
  %v2933 = vpack.c.b16 %v2313, %v2309
  %v2934 = vpack.c.b16 %v2318, %v2314
  %v2935 = vpack.c.b16 %v2319, %v2315
  %v2936 = vpack.c.b16 %v2320, %v2316
  %v2937 = vpack.c.b16 %v2321, %v2317
  %v2938 = vpack.c.b16 %v2326, %v2322
  %v2939 = vpack.c.b16 %v2327, %v2323
  %v2940 = vpack.c.b16 %v2328, %v2324
  %v2941 = vpack.c.b16 %v2329, %v2325
  %v2942 = vpack.c.b16 %v2334, %v2330
  %v2943 = vpack.c.b16 %v2335, %v2331
  %v2944 = vpack.c.b16 %v2336, %v2332
  %v2945 = vpack.c.b16 %v2337, %v2333
  %v2946 = vpack.c.b16 %v2342, %v2338
  %v2947 = vpack.c.b16 %v2343, %v2339
  %v2948 = vpack.c.b16 %v2344, %v2340
  %v2949 = vpack.c.b16 %v2345, %v2341
  %v2950 = vpack.c.b16 %v2350, %v2346
  %v2951 = vpack.c.b16 %v2351, %v2347
  %v2952 = vpack.c.b16 %v2352, %v2348
  %v2953 = vpack.c.b16 %v2353, %v2349
  %v2954 = vpack.c.b16 %v2358, %v2354
  %v2955 = vpack.c.b16 %v2359, %v2355
  %v2956 = vpack.c.b16 %v2360, %v2356
  %v2957 = vpack.c.b16 %v2361, %v2357
  %v2958 = vpack.c.b16 %v2366, %v2362
  %v2959 = vpack.c.b16 %v2367, %v2363
  %v2960 = vpack.c.b16 %v2368, %v2364
  %v2961 = vpack.c.b16 %v2369, %v2365
  %v2962 = vpack.c.b16 %v2374, %v2370
  %v2963 = vpack.c.b16 %v2375, %v2371
  %v2964 = vpack.c.b16 %v2376, %v2372
  %v2965 = vpack.c.b16 %v2377, %v2373
  %v2966 = vpack.c.b16 %v2382, %v2378
  %v2967 = vpack.c.b16 %v2383, %v2379
  %v2968 = vpack.c.b16 %v2384, %v2380
  %v2969 = vpack.c.b16 %v2385, %v2381
  %v2970 = vpack.c.b16 %v2390, %v2386
  %v2971 = vpack.c.b16 %v2391, %v2387
  %v2972 = vpack.c.b16 %v2392, %v2388
  %v2973 = vpack.c.b16 %v2393, %v2389
  %v2974 = vpack.c.b16 %v2398, %v2394
  %v2975 = vpack.c.b16 %v2399, %v2395
  %v2976 = vpack.c.b16 %v2400, %v2396
  %v2977 = vpack.c.b16 %v2401, %v2397
  %3554 = vmatprep.subr.bf16.mxu0 %v2403
  %3555 = vmatpush1.bf16.msra.mxu0 %v2402
  %3556 = vmatprep.subr.bf16.mxu0 %v2407
  %3557 = vmatpush1.bf16.msra.mxu0 %v2406
  %3558 = vmatprep.subr.bf16.mxu0 %v2411
  %3559 = vmatpush1.bf16.msra.mxu0 %v2410
  %3560 = vmatprep.subr.bf16.mxu0 %v2415
  %3561 = vmatpush1.bf16.msra.mxu0 %v2414
  %3562 = vmatprep.subr.bf16.mxu0 %v2419
  %3563 = vmatpush1.bf16.msra.mxu0 %v2418
  %3564 = vmatprep.subr.bf16.mxu0 %v2423
  %3565 = vmatpush1.bf16.msra.mxu0 %v2422
  %3566 = vmatprep.subr.bf16.mxu0 %v2427
  %3567 = vmatpush1.bf16.msra.mxu0 %v2426
  %3568 = vmatprep.subr.bf16.mxu0 %v2431
  %3569 = vmatpush1.bf16.msra.mxu0 %v2430
  %3570 = vmatprep.subr.bf16.mxu0 %v2435
  %3571 = vmatpush1.bf16.msra.mxu0 %v2434
  %3572 = vmatprep.subr.bf16.mxu0 %v2439
  %3573 = vmatpush1.bf16.msra.mxu0 %v2438
  %3574 = vmatprep.subr.bf16.mxu0 %v2443
  %3575 = vmatpush1.bf16.msra.mxu0 %v2442
  %3576 = vmatprep.subr.bf16.mxu0 %v2447
  %3577 = vmatpush1.bf16.msra.mxu0 %v2446
  %3578 = vmatprep.subr.bf16.mxu0 %v2451
  %3579 = vmatpush1.bf16.msra.mxu0 %v2450
  %3580 = vmatprep.subr.bf16.mxu0 %v2455
  %3581 = vmatpush1.bf16.msra.mxu0 %v2454
  %3582 = vmatprep.subr.bf16.mxu0 %v2459
  %3583 = vmatpush1.bf16.msra.mxu0 %v2458
  %3584 = vmatprep.subr.bf16.mxu0 %v2463
  %3585 = vmatpush1.bf16.msra.mxu0 %v2462
  %3586 = vmatprep.mubr.bf16.mxu0 %v639
  %3587 = vmatmul.mubr.bf16.gmra.mrb[0].mxu0 %v638
  %v3588 = vpop.f32.mrb[0].mxu0
  %v3589 = vadd.f32 0.0, %v3588
  %v3590 = vpop.f32.mrb[0].mxu0
  %v3591 = vadd.f32 0.0, %v3590
  %v3592 = vpop.f32.mrb[0].mxu0
  %v3593 = vpop.f32.mrb[0].mxu0
  %3594 = vdwg.mxu0
  %3595 = vmatprep.subr.bf16.mxu0 %v2467
  %3596 = vmatpush1.bf16.msra.mxu0 %v2466
  %3597 = vmatprep.subr.bf16.mxu0 %v2471
  %3598 = vmatpush1.bf16.msra.mxu0 %v2470
  %3599 = vmatprep.subr.bf16.mxu0 %v2475
  %3600 = vmatpush1.bf16.msra.mxu0 %v2474
  %3601 = vmatprep.subr.bf16.mxu0 %v2479
  %3602 = vmatpush1.bf16.msra.mxu0 %v2478
  %3603 = vmatprep.subr.bf16.mxu0 %v2483
  %3604 = vmatpush1.bf16.msra.mxu0 %v2482
  %3605 = vmatprep.subr.bf16.mxu0 %v2487
  %3606 = vmatpush1.bf16.msra.mxu0 %v2486
  %3607 = vmatprep.subr.bf16.mxu0 %v2491
  %3608 = vmatpush1.bf16.msra.mxu0 %v2490
  %3609 = vmatprep.subr.bf16.mxu0 %v2495
  %3610 = vmatpush1.bf16.msra.mxu0 %v2494
  %3611 = vmatprep.subr.bf16.mxu0 %v2499
  %3612 = vmatpush1.bf16.msra.mxu0 %v2498
  %3613 = vmatprep.subr.bf16.mxu0 %v2503
  %3614 = vmatpush1.bf16.msra.mxu0 %v2502
  %3615 = vmatprep.subr.bf16.mxu0 %v2507
  %3616 = vmatpush1.bf16.msra.mxu0 %v2506
  %3617 = vmatprep.subr.bf16.mxu0 %v2511
  %3618 = vmatpush1.bf16.msra.mxu0 %v2510
  %3619 = vmatprep.subr.bf16.mxu0 %v2515
  %3620 = vmatpush1.bf16.msra.mxu0 %v2514
  %3621 = vmatprep.subr.bf16.mxu0 %v2519
  %3622 = vmatpush1.bf16.msra.mxu0 %v2518
  %3623 = vmatprep.subr.bf16.mxu0 %v2523
  %3624 = vmatpush1.bf16.msra.mxu0 %v2522
  %3625 = vmatprep.subr.bf16.mxu0 %v2527
  %3626 = vmatpush1.bf16.msra.mxu0 %v2526
  %3627 = vmatprep.mubr.bf16.mxu0 %v641
  %3628 = vmatmul.mubr.bf16.gmra.mrb[0].mxu0 %v640
  %v3629 = vpop.f32.mrb[0].mxu0
  %v3630 = vadd.f32 %v3589, %v3629
  %v3631 = vpop.f32.mrb[0].mxu0
  %v3632 = vadd.f32 %v3591, %v3631
  %v3633 = vpop.f32.mrb[0].mxu0
  %v3634 = vpop.f32.mrb[0].mxu0
  %3635 = vdwg.mxu0
  %3636 = vmatprep.subr.bf16.mxu0 %v2531
  %3637 = vmatpush1.bf16.msra.mxu0 %v2530
  %3638 = vmatprep.subr.bf16.mxu0 %v2535
  %3639 = vmatpush1.bf16.msra.mxu0 %v2534
  %3640 = vmatprep.subr.bf16.mxu0 %v2539
  %3641 = vmatpush1.bf16.msra.mxu0 %v2538
  %3642 = vmatprep.subr.bf16.mxu0 %v2543
  %3643 = vmatpush1.bf16.msra.mxu0 %v2542
  %3644 = vmatprep.subr.bf16.mxu0 %v2547
  %3645 = vmatpush1.bf16.msra.mxu0 %v2546
  %3646 = vmatprep.subr.bf16.mxu0 %v2551
  %3647 = vmatpush1.bf16.msra.mxu0 %v2550
  %3648 = vmatprep.subr.bf16.mxu0 %v2555
  %3649 = vmatpush1.bf16.msra.mxu0 %v2554
  %3650 = vmatprep.subr.bf16.mxu0 %v2559
  %3651 = vmatpush1.bf16.msra.mxu0 %v2558
  %3652 = vmatprep.subr.bf16.mxu0 %v2563
  %3653 = vmatpush1.bf16.msra.mxu0 %v2562
  %3654 = vmatprep.subr.bf16.mxu0 %v2567
  %3655 = vmatpush1.bf16.msra.mxu0 %v2566
  %3656 = vmatprep.subr.bf16.mxu0 %v2571
  %3657 = vmatpush1.bf16.msra.mxu0 %v2570
  %3658 = vmatprep.subr.bf16.mxu0 %v2575
  %3659 = vmatpush1.bf16.msra.mxu0 %v2574
  %3660 = vmatprep.subr.bf16.mxu0 %v2579
  %3661 = vmatpush1.bf16.msra.mxu0 %v2578
  %3662 = vmatprep.subr.bf16.mxu0 %v2583
  %3663 = vmatpush1.bf16.msra.mxu0 %v2582
  %3664 = vmatprep.subr.bf16.mxu0 %v2587
  %3665 = vmatpush1.bf16.msra.mxu0 %v2586
  %3666 = vmatprep.subr.bf16.mxu0 %v2591
  %3667 = vmatpush1.bf16.msra.mxu0 %v2590
  %3668 = vmatprep.mubr.bf16.mxu0 %v643
  %3669 = vmatmul.mubr.bf16.gmra.mrb[0].mxu0 %v642
  %v3670 = vpop.f32.mrb[0].mxu0
  %v3671 = vadd.f32 %v3630, %v3670
  %v3672 = vpop.f32.mrb[0].mxu0
  %v3673 = vadd.f32 %v3632, %v3672
  %v3674 = vpop.f32.mrb[0].mxu0
  %v3675 = vpop.f32.mrb[0].mxu0
  %3676 = vdwg.mxu0
  %3677 = vmatprep.subr.bf16.mxu0 %v2595
  %3678 = vmatpush1.bf16.msra.mxu0 %v2594
  %3679 = vmatprep.subr.bf16.mxu0 %v2599
  %3680 = vmatpush1.bf16.msra.mxu0 %v2598
  %3681 = vmatprep.subr.bf16.mxu0 %v2603
  %3682 = vmatpush1.bf16.msra.mxu0 %v2602
  %3683 = vmatprep.subr.bf16.mxu0 %v2607
  %3684 = vmatpush1.bf16.msra.mxu0 %v2606
  %3685 = vmatprep.subr.bf16.mxu0 %v2611
  %3686 = vmatpush1.bf16.msra.mxu0 %v2610
  %3687 = vmatprep.subr.bf16.mxu0 %v2615
  %3688 = vmatpush1.bf16.msra.mxu0 %v2614
  %3689 = vmatprep.subr.bf16.mxu0 %v2619
  %3690 = vmatpush1.bf16.msra.mxu0 %v2618
  %3691 = vmatprep.subr.bf16.mxu0 %v2623
  %3692 = vmatpush1.bf16.msra.mxu0 %v2622
  %3693 = vmatprep.subr.bf16.mxu0 %v2627
  %3694 = vmatpush1.bf16.msra.mxu0 %v2626
  %3695 = vmatprep.subr.bf16.mxu0 %v2631
  %3696 = vmatpush1.bf16.msra.mxu0 %v2630
  %3697 = vmatprep.subr.bf16.mxu0 %v2635
  %3698 = vmatpush1.bf16.msra.mxu0 %v2634
  %3699 = vmatprep.subr.bf16.mxu0 %v2639
  %3700 = vmatpush1.bf16.msra.mxu0 %v2638
  %3701 = vmatprep.subr.bf16.mxu0 %v2643
  %3702 = vmatpush1.bf16.msra.mxu0 %v2642
  %3703 = vmatprep.subr.bf16.mxu0 %v2647
  %3704 = vmatpush1.bf16.msra.mxu0 %v2646
  %3705 = vmatprep.subr.bf16.mxu0 %v2651
  %3706 = vmatpush1.bf16.msra.mxu0 %v2650
  %3707 = vmatprep.subr.bf16.mxu0 %v2655
  %3708 = vmatpush1.bf16.msra.mxu0 %v2654
  %3709 = vmatprep.mubr.bf16.mxu0 %v645
  %3710 = vmatmul.mubr.bf16.gmra.mrb[0].mxu0 %v644
  %v3711 = vpop.f32.mrb[0].mxu0
  %v3712 = vadd.f32 %v3671, %v3711
  %v3713 = vpop.f32.mrb[0].mxu0
  %v3714 = vadd.f32 %v3673, %v3713
  %v3715 = vpop.f32.mrb[0].mxu0
  %v3716 = vpop.f32.mrb[0].mxu0
  %3717 = vdwg.mxu0
  %3718 = vmatprep.subr.bf16.mxu0 %v2659
  %3719 = vmatpush1.bf16.msra.mxu0 %v2658
  %3720 = vmatprep.subr.bf16.mxu0 %v2663
  %3721 = vmatpush1.bf16.msra.mxu0 %v2662
  %3722 = vmatprep.subr.bf16.mxu0 %v2667
  %3723 = vmatpush1.bf16.msra.mxu0 %v2666
  %3724 = vmatprep.subr.bf16.mxu0 %v2671
  %3725 = vmatpush1.bf16.msra.mxu0 %v2670
  %3726 = vmatprep.subr.bf16.mxu0 %v2675
  %3727 = vmatpush1.bf16.msra.mxu0 %v2674
  %3728 = vmatprep.subr.bf16.mxu0 %v2679
  %3729 = vmatpush1.bf16.msra.mxu0 %v2678
  %3730 = vmatprep.subr.bf16.mxu0 %v2683
  %3731 = vmatpush1.bf16.msra.mxu0 %v2682
  %3732 = vmatprep.subr.bf16.mxu0 %v2687
  %3733 = vmatpush1.bf16.msra.mxu0 %v2686
  %3734 = vmatprep.subr.bf16.mxu0 %v2691
  %3735 = vmatpush1.bf16.msra.mxu0 %v2690
  %3736 = vmatprep.subr.bf16.mxu0 %v2695
  %3737 = vmatpush1.bf16.msra.mxu0 %v2694
  %3738 = vmatprep.subr.bf16.mxu0 %v2699
  %3739 = vmatpush1.bf16.msra.mxu0 %v2698
  %3740 = vmatprep.subr.bf16.mxu0 %v2703
  %3741 = vmatpush1.bf16.msra.mxu0 %v2702
  %3742 = vmatprep.subr.bf16.mxu0 %v2707
  %3743 = vmatpush1.bf16.msra.mxu0 %v2706
  %3744 = vmatprep.subr.bf16.mxu0 %v2711
  %3745 = vmatpush1.bf16.msra.mxu0 %v2710
  %3746 = vmatprep.subr.bf16.mxu0 %v2715
  %3747 = vmatpush1.bf16.msra.mxu0 %v2714
  %3748 = vmatprep.subr.bf16.mxu0 %v2719
  %3749 = vmatpush1.bf16.msra.mxu0 %v2718
  %3750 = vmatprep.mubr.bf16.mxu0 %v647
  %3751 = vmatmul.mubr.bf16.gmra.mrb[0].mxu0 %v646
  %v3752 = vpop.f32.mrb[0].mxu0
  %v3753 = vadd.f32 %v3712, %v3752
  %v3754 = vpop.f32.mrb[0].mxu0
  %v3755 = vadd.f32 %v3714, %v3754
  %v3756 = vpop.f32.mrb[0].mxu0
  %v3757 = vpop.f32.mrb[0].mxu0
  %3758 = vdwg.mxu0
  %3759 = vmatprep.subr.bf16.mxu0 %v2723
  %3760 = vmatpush1.bf16.msra.mxu0 %v2722
  %3761 = vmatprep.subr.bf16.mxu0 %v2727
  %3762 = vmatpush1.bf16.msra.mxu0 %v2726
  %3763 = vmatprep.subr.bf16.mxu0 %v2731
  %3764 = vmatpush1.bf16.msra.mxu0 %v2730
  %3765 = vmatprep.subr.bf16.mxu0 %v2735
  %3766 = vmatpush1.bf16.msra.mxu0 %v2734
  %3767 = vmatprep.subr.bf16.mxu0 %v2739
  %3768 = vmatpush1.bf16.msra.mxu0 %v2738
  %3769 = vmatprep.subr.bf16.mxu0 %v2743
  %3770 = vmatpush1.bf16.msra.mxu0 %v2742
  %3771 = vmatprep.subr.bf16.mxu0 %v2747
  %3772 = vmatpush1.bf16.msra.mxu0 %v2746
  %3773 = vmatprep.subr.bf16.mxu0 %v2751
  %3774 = vmatpush1.bf16.msra.mxu0 %v2750
  %3775 = vmatprep.subr.bf16.mxu0 %v2755
  %3776 = vmatpush1.bf16.msra.mxu0 %v2754
  %3777 = vmatprep.subr.bf16.mxu0 %v2759
  %3778 = vmatpush1.bf16.msra.mxu0 %v2758
  %3779 = vmatprep.subr.bf16.mxu0 %v2763
  %3780 = vmatpush1.bf16.msra.mxu0 %v2762
  %3781 = vmatprep.subr.bf16.mxu0 %v2767
  %3782 = vmatpush1.bf16.msra.mxu0 %v2766
  %3783 = vmatprep.subr.bf16.mxu0 %v2771
  %3784 = vmatpush1.bf16.msra.mxu0 %v2770
  %3785 = vmatprep.subr.bf16.mxu0 %v2775
  %3786 = vmatpush1.bf16.msra.mxu0 %v2774
  %3787 = vmatprep.subr.bf16.mxu0 %v2779
  %3788 = vmatpush1.bf16.msra.mxu0 %v2778
  %3789 = vmatprep.subr.bf16.mxu0 %v2783
  %3790 = vmatpush1.bf16.msra.mxu0 %v2782
  %3791 = vmatprep.mubr.bf16.mxu0 %v649
  %3792 = vmatmul.mubr.bf16.gmra.mrb[0].mxu0 %v648
  %v3793 = vpop.f32.mrb[0].mxu0
  %v3794 = vadd.f32 %v3753, %v3793
  %v3795 = vpop.f32.mrb[0].mxu0
  %v3796 = vadd.f32 %v3755, %v3795
  %v3797 = vpop.f32.mrb[0].mxu0
  %v3798 = vpop.f32.mrb[0].mxu0
  %3799 = vdwg.mxu0
  %3800 = vmatprep.subr.bf16.mxu0 %v2787
  %3801 = vmatpush1.bf16.msra.mxu0 %v2786
  %3802 = vmatprep.subr.bf16.mxu0 %v2791
  %3803 = vmatpush1.bf16.msra.mxu0 %v2790
  %3804 = vmatprep.subr.bf16.mxu0 %v2795
  %3805 = vmatpush1.bf16.msra.mxu0 %v2794
  %3806 = vmatprep.subr.bf16.mxu0 %v2799
  %3807 = vmatpush1.bf16.msra.mxu0 %v2798
  %3808 = vmatprep.subr.bf16.mxu0 %v2803
  %3809 = vmatpush1.bf16.msra.mxu0 %v2802
  %3810 = vmatprep.subr.bf16.mxu0 %v2807
  %3811 = vmatpush1.bf16.msra.mxu0 %v2806
  %3812 = vmatprep.subr.bf16.mxu0 %v2811
  %3813 = vmatpush1.bf16.msra.mxu0 %v2810
  %3814 = vmatprep.subr.bf16.mxu0 %v2815
  %3815 = vmatpush1.bf16.msra.mxu0 %v2814
  %3816 = vmatprep.subr.bf16.mxu0 %v2819
  %3817 = vmatpush1.bf16.msra.mxu0 %v2818
  %3818 = vmatprep.subr.bf16.mxu0 %v2823
  %3819 = vmatpush1.bf16.msra.mxu0 %v2822
  %3820 = vmatprep.subr.bf16.mxu0 %v2827
  %3821 = vmatpush1.bf16.msra.mxu0 %v2826
  %3822 = vmatprep.subr.bf16.mxu0 %v2831
  %3823 = vmatpush1.bf16.msra.mxu0 %v2830
  %3824 = vmatprep.subr.bf16.mxu0 %v2835
  %3825 = vmatpush1.bf16.msra.mxu0 %v2834
  %3826 = vmatprep.subr.bf16.mxu0 %v2839
  %3827 = vmatpush1.bf16.msra.mxu0 %v2838
  %3828 = vmatprep.subr.bf16.mxu0 %v2843
  %3829 = vmatpush1.bf16.msra.mxu0 %v2842
  %3830 = vmatprep.subr.bf16.mxu0 %v2847
  %3831 = vmatpush1.bf16.msra.mxu0 %v2846
  %3832 = vmatprep.mubr.bf16.mxu0 %v651
  %3833 = vmatmul.mubr.bf16.gmra.mrb[0].mxu0 %v650
  %v3834 = vpop.f32.mrb[0].mxu0
  %v3835 = vadd.f32 %v3794, %v3834
  %v3836 = vpop.f32.mrb[0].mxu0
  %v3837 = vadd.f32 %v3796, %v3836
  %v3838 = vpop.f32.mrb[0].mxu0
  %v3839 = vpop.f32.mrb[0].mxu0
  %3840 = vdwg.mxu0
  %3841 = vmatprep.subr.bf16.mxu0 %v2851
  %3842 = vmatpush1.bf16.msra.mxu0 %v2850
  %3843 = vmatprep.subr.bf16.mxu0 %v2855
  %3844 = vmatpush1.bf16.msra.mxu0 %v2854
  %3845 = vmatprep.subr.bf16.mxu0 %v2859
  %3846 = vmatpush1.bf16.msra.mxu0 %v2858
  %3847 = vmatprep.subr.bf16.mxu0 %v2863
  %3848 = vmatpush1.bf16.msra.mxu0 %v2862
  %3849 = vmatprep.subr.bf16.mxu0 %v2867
  %3850 = vmatpush1.bf16.msra.mxu0 %v2866
  %3851 = vmatprep.subr.bf16.mxu0 %v2871
  %3852 = vmatpush1.bf16.msra.mxu0 %v2870
  %3853 = vmatprep.subr.bf16.mxu0 %v2875
  %3854 = vmatpush1.bf16.msra.mxu0 %v2874
  %3855 = vmatprep.subr.bf16.mxu0 %v2879
  %3856 = vmatpush1.bf16.msra.mxu0 %v2878
  %3857 = vmatprep.subr.bf16.mxu0 %v2883
  %3858 = vmatpush1.bf16.msra.mxu0 %v2882
  %3859 = vmatprep.subr.bf16.mxu0 %v2887
  %3860 = vmatpush1.bf16.msra.mxu0 %v2886
  %3861 = vmatprep.subr.bf16.mxu0 %v2891
  %3862 = vmatpush1.bf16.msra.mxu0 %v2890
  %3863 = vmatprep.subr.bf16.mxu0 %v2895
  %3864 = vmatpush1.bf16.msra.mxu0 %v2894
  %3865 = vmatprep.subr.bf16.mxu0 %v2899
  %3866 = vmatpush1.bf16.msra.mxu0 %v2898
  %3867 = vmatprep.subr.bf16.mxu0 %v2903
  %3868 = vmatpush1.bf16.msra.mxu0 %v2902
  %3869 = vmatprep.subr.bf16.mxu0 %v2907
  %3870 = vmatpush1.bf16.msra.mxu0 %v2906
  %3871 = vmatprep.subr.bf16.mxu0 %v2911
  %3872 = vmatpush1.bf16.msra.mxu0 %v2910
  %3873 = vmatprep.mubr.bf16.mxu0 %v653
  %3874 = vmatmul.mubr.bf16.gmra.mrb[0].mxu0 %v652
  %v3875 = vpop.f32.mrb[0].mxu0
  %v3876 = vadd.f32 %v3835, %v3875
  %v3877 = vpop.f32.mrb[0].mxu0
  %v3878 = vadd.f32 %v3837, %v3877
  %v3879 = vpop.f32.mrb[0].mxu0
  %v3880 = vpop.f32.mrb[0].mxu0
  %3881 = vdwg.mxu0
  %3882 = vmatprep.subr.bf16.mxu0 %v2915
  %3883 = vmatpush1.bf16.msra.mxu0 %v2914
  %3884 = vmatprep.subr.bf16.mxu0 %v2919
  %3885 = vmatpush1.bf16.msra.mxu0 %v2918
  %3886 = vmatprep.subr.bf16.mxu0 %v2923
  %3887 = vmatpush1.bf16.msra.mxu0 %v2922
  %3888 = vmatprep.subr.bf16.mxu0 %v2927
  %3889 = vmatpush1.bf16.msra.mxu0 %v2926
  %3890 = vmatprep.subr.bf16.mxu0 %v2931
  %3891 = vmatpush1.bf16.msra.mxu0 %v2930
  %3892 = vmatprep.subr.bf16.mxu0 %v2935
  %3893 = vmatpush1.bf16.msra.mxu0 %v2934
  %3894 = vmatprep.subr.bf16.mxu0 %v2939
  %3895 = vmatpush1.bf16.msra.mxu0 %v2938
  %3896 = vmatprep.subr.bf16.mxu0 %v2943
  %3897 = vmatpush1.bf16.msra.mxu0 %v2942
  %3898 = vmatprep.subr.bf16.mxu0 %v2947
  %3899 = vmatpush1.bf16.msra.mxu0 %v2946
  %3900 = vmatprep.subr.bf16.mxu0 %v2951
  %3901 = vmatpush1.bf16.msra.mxu0 %v2950
  %3902 = vmatprep.subr.bf16.mxu0 %v2955
  %3903 = vmatpush1.bf16.msra.mxu0 %v2954
  %3904 = vmatprep.subr.bf16.mxu0 %v2959
  %3905 = vmatpush1.bf16.msra.mxu0 %v2958
  %3906 = vmatprep.subr.bf16.mxu0 %v2963
  %3907 = vmatpush1.bf16.msra.mxu0 %v2962
  %3908 = vmatprep.subr.bf16.mxu0 %v2967
  %3909 = vmatpush1.bf16.msra.mxu0 %v2966
  %3910 = vmatprep.subr.bf16.mxu0 %v2971
  %3911 = vmatpush1.bf16.msra.mxu0 %v2970
  %3912 = vmatprep.subr.bf16.mxu0 %v2975
  %3913 = vmatpush1.bf16.msra.mxu0 %v2974
  %3914 = vmatprep.mubr.bf16.mxu0 %v655
  %3915 = vmatmul.mubr.bf16.gmra.mrb[0].mxu0 %v654
  %v3916 = vpop.f32.mrb[0].mxu0
  %v3917 = vadd.f32 %v3876, %v3916
  %v3918 = vpop.f32.mrb[0].mxu0
  %v3919 = vadd.f32 %v3878, %v3918
  %v3920 = vpop.f32.mrb[0].mxu0
  %v3921 = vpop.f32.mrb[0].mxu0
  %3922 = vdwg.mxu0
  %3923 = vmatprep.subr.bf16.mxu0 %v2405
  %3924 = vmatpush1.bf16.msra.mxu0 %v2404
  %3925 = vmatprep.subr.bf16.mxu0 %v2409
  %3926 = vmatpush1.bf16.msra.mxu0 %v2408
  %3927 = vmatprep.subr.bf16.mxu0 %v2413
  %3928 = vmatpush1.bf16.msra.mxu0 %v2412
  %3929 = vmatprep.subr.bf16.mxu0 %v2417
  %3930 = vmatpush1.bf16.msra.mxu0 %v2416
  %3931 = vmatprep.subr.bf16.mxu0 %v2421
  %3932 = vmatpush1.bf16.msra.mxu0 %v2420
  %3933 = vmatprep.subr.bf16.mxu0 %v2425
  %3934 = vmatpush1.bf16.msra.mxu0 %v2424
  %3935 = vmatprep.subr.bf16.mxu0 %v2429
  %3936 = vmatpush1.bf16.msra.mxu0 %v2428
  %3937 = vmatprep.subr.bf16.mxu0 %v2433
  %3938 = vmatpush1.bf16.msra.mxu0 %v2432
  %3939 = vmatprep.subr.bf16.mxu0 %v2437
  %3940 = vmatpush1.bf16.msra.mxu0 %v2436
  %3941 = vmatprep.subr.bf16.mxu0 %v2441
  %3942 = vmatpush1.bf16.msra.mxu0 %v2440
  %3943 = vmatprep.subr.bf16.mxu0 %v2445
  %3944 = vmatpush1.bf16.msra.mxu0 %v2444
  %3945 = vmatprep.subr.bf16.mxu0 %v2449
  %3946 = vmatpush1.bf16.msra.mxu0 %v2448
  %3947 = vmatprep.subr.bf16.mxu0 %v2453
  %3948 = vmatpush1.bf16.msra.mxu0 %v2452
  %3949 = vmatprep.subr.bf16.mxu0 %v2457
  %3950 = vmatpush1.bf16.msra.mxu0 %v2456
  %3951 = vmatprep.subr.bf16.mxu0 %v2461
  %3952 = vmatpush1.bf16.msra.mxu0 %v2460
  %3953 = vmatprep.subr.bf16.mxu0 %v2465
  %3954 = vmatpush1.bf16.msra.mxu0 %v2464
  %3955 = vmatprep.mubr.bf16.mxu0 %v639
  %3956 = vmatmul.mubr.bf16.gmra.mrb[0].mxu0 %v638
  %v3957 = vpop.f32.mrb[0].mxu0
  %v3958 = vadd.f32 0.0, %v3957
  %v3959 = vpop.f32.mrb[0].mxu0
  %v3960 = vadd.f32 0.0, %v3959
  %v3961 = vpop.f32.mrb[0].mxu0
  %v3962 = vpop.f32.mrb[0].mxu0
  %3963 = vdwg.mxu0
  %3964 = vmatprep.subr.bf16.mxu0 %v2469
  %3965 = vmatpush1.bf16.msra.mxu0 %v2468
  %3966 = vmatprep.subr.bf16.mxu0 %v2473
  %3967 = vmatpush1.bf16.msra.mxu0 %v2472
  %3968 = vmatprep.subr.bf16.mxu0 %v2477
  %3969 = vmatpush1.bf16.msra.mxu0 %v2476
  %3970 = vmatprep.subr.bf16.mxu0 %v2481
  %3971 = vmatpush1.bf16.msra.mxu0 %v2480
  %3972 = vmatprep.subr.bf16.mxu0 %v2485
  %3973 = vmatpush1.bf16.msra.mxu0 %v2484
  %3974 = vmatprep.subr.bf16.mxu0 %v2489
  %3975 = vmatpush1.bf16.msra.mxu0 %v2488
  %3976 = vmatprep.subr.bf16.mxu0 %v2493
  %3977 = vmatpush1.bf16.msra.mxu0 %v2492
  %3978 = vmatprep.subr.bf16.mxu0 %v2497
  %3979 = vmatpush1.bf16.msra.mxu0 %v2496
  %3980 = vmatprep.subr.bf16.mxu0 %v2501
  %3981 = vmatpush1.bf16.msra.mxu0 %v2500
  %3982 = vmatprep.subr.bf16.mxu0 %v2505
  %3983 = vmatpush1.bf16.msra.mxu0 %v2504
  %3984 = vmatprep.subr.bf16.mxu0 %v2509
  %3985 = vmatpush1.bf16.msra.mxu0 %v2508
  %3986 = vmatprep.subr.bf16.mxu0 %v2513
  %3987 = vmatpush1.bf16.msra.mxu0 %v2512
  %3988 = vmatprep.subr.bf16.mxu0 %v2517
  %3989 = vmatpush1.bf16.msra.mxu0 %v2516
  %3990 = vmatprep.subr.bf16.mxu0 %v2521
  %3991 = vmatpush1.bf16.msra.mxu0 %v2520
  %3992 = vmatprep.subr.bf16.mxu0 %v2525
  %3993 = vmatpush1.bf16.msra.mxu0 %v2524
  %3994 = vmatprep.subr.bf16.mxu0 %v2529
  %3995 = vmatpush1.bf16.msra.mxu0 %v2528
  %3996 = vmatprep.mubr.bf16.mxu0 %v641
  %3997 = vmatmul.mubr.bf16.gmra.mrb[0].mxu0 %v640
  %v3998 = vpop.f32.mrb[0].mxu0
  %v3999 = vadd.f32 %v3958, %v3998
  %v4000 = vpop.f32.mrb[0].mxu0
  %v4001 = vadd.f32 %v3960, %v4000
  %v4002 = vpop.f32.mrb[0].mxu0
  %v4003 = vpop.f32.mrb[0].mxu0
  %4004 = vdwg.mxu0
  %4005 = vmatprep.subr.bf16.mxu0 %v2533
  %4006 = vmatpush1.bf16.msra.mxu0 %v2532
  %4007 = vmatprep.subr.bf16.mxu0 %v2537
  %4008 = vmatpush1.bf16.msra.mxu0 %v2536
  %4009 = vmatprep.subr.bf16.mxu0 %v2541
  %4010 = vmatpush1.bf16.msra.mxu0 %v2540
  %4011 = vmatprep.subr.bf16.mxu0 %v2545
  %4012 = vmatpush1.bf16.msra.mxu0 %v2544
  %4013 = vmatprep.subr.bf16.mxu0 %v2549
  %4014 = vmatpush1.bf16.msra.mxu0 %v2548
  %4015 = vmatprep.subr.bf16.mxu0 %v2553
  %4016 = vmatpush1.bf16.msra.mxu0 %v2552
  %4017 = vmatprep.subr.bf16.mxu0 %v2557
  %4018 = vmatpush1.bf16.msra.mxu0 %v2556
  %4019 = vmatprep.subr.bf16.mxu0 %v2561
  %4020 = vmatpush1.bf16.msra.mxu0 %v2560
  %4021 = vmatprep.subr.bf16.mxu0 %v2565
  %4022 = vmatpush1.bf16.msra.mxu0 %v2564
  %4023 = vmatprep.subr.bf16.mxu0 %v2569
  %4024 = vmatpush1.bf16.msra.mxu0 %v2568
  %4025 = vmatprep.subr.bf16.mxu0 %v2573
  %4026 = vmatpush1.bf16.msra.mxu0 %v2572
  %4027 = vmatprep.subr.bf16.mxu0 %v2577
  %4028 = vmatpush1.bf16.msra.mxu0 %v2576
  %4029 = vmatprep.subr.bf16.mxu0 %v2581
  %4030 = vmatpush1.bf16.msra.mxu0 %v2580
  %4031 = vmatprep.subr.bf16.mxu0 %v2585
  %4032 = vmatpush1.bf16.msra.mxu0 %v2584
  %4033 = vmatprep.subr.bf16.mxu0 %v2589
  %4034 = vmatpush1.bf16.msra.mxu0 %v2588
  %4035 = vmatprep.subr.bf16.mxu0 %v2593
  %4036 = vmatpush1.bf16.msra.mxu0 %v2592
  %4037 = vmatprep.mubr.bf16.mxu0 %v643
  %4038 = vmatmul.mubr.bf16.gmra.mrb[0].mxu0 %v642
  %v4039 = vpop.f32.mrb[0].mxu0
  %v4040 = vadd.f32 %v3999, %v4039
  %v4041 = vpop.f32.mrb[0].mxu0
  %v4042 = vadd.f32 %v4001, %v4041
  %v4043 = vpop.f32.mrb[0].mxu0
  %v4044 = vpop.f32.mrb[0].mxu0
  %4045 = vdwg.mxu0
  %4046 = vmatprep.subr.bf16.mxu0 %v2597
  %4047 = vmatpush1.bf16.msra.mxu0 %v2596
  %4048 = vmatprep.subr.bf16.mxu0 %v2601
  %4049 = vmatpush1.bf16.msra.mxu0 %v2600
  %4050 = vmatprep.subr.bf16.mxu0 %v2605
  %4051 = vmatpush1.bf16.msra.mxu0 %v2604
  %4052 = vmatprep.subr.bf16.mxu0 %v2609
  %4053 = vmatpush1.bf16.msra.mxu0 %v2608
  %4054 = vmatprep.subr.bf16.mxu0 %v2613
  %4055 = vmatpush1.bf16.msra.mxu0 %v2612
  %4056 = vmatprep.subr.bf16.mxu0 %v2617
  %4057 = vmatpush1.bf16.msra.mxu0 %v2616
  %4058 = vmatprep.subr.bf16.mxu0 %v2621
  %4059 = vmatpush1.bf16.msra.mxu0 %v2620
  %4060 = vmatprep.subr.bf16.mxu0 %v2625
  %4061 = vmatpush1.bf16.msra.mxu0 %v2624
  %4062 = vmatprep.subr.bf16.mxu0 %v2629
  %4063 = vmatpush1.bf16.msra.mxu0 %v2628
  %4064 = vmatprep.subr.bf16.mxu0 %v2633
  %4065 = vmatpush1.bf16.msra.mxu0 %v2632
  %4066 = vmatprep.subr.bf16.mxu0 %v2637
  %4067 = vmatpush1.bf16.msra.mxu0 %v2636
  %4068 = vmatprep.subr.bf16.mxu0 %v2641
  %4069 = vmatpush1.bf16.msra.mxu0 %v2640
  %4070 = vmatprep.subr.bf16.mxu0 %v2645
  %4071 = vmatpush1.bf16.msra.mxu0 %v2644
  %4072 = vmatprep.subr.bf16.mxu0 %v2649
  %4073 = vmatpush1.bf16.msra.mxu0 %v2648
  %4074 = vmatprep.subr.bf16.mxu0 %v2653
  %4075 = vmatpush1.bf16.msra.mxu0 %v2652
  %4076 = vmatprep.subr.bf16.mxu0 %v2657
  %4077 = vmatpush1.bf16.msra.mxu0 %v2656
  %4078 = vmatprep.mubr.bf16.mxu0 %v645
  %4079 = vmatmul.mubr.bf16.gmra.mrb[0].mxu0 %v644
  %v4080 = vpop.f32.mrb[0].mxu0
  %v4081 = vadd.f32 %v4040, %v4080
  %v4082 = vpop.f32.mrb[0].mxu0
  %v4083 = vadd.f32 %v4042, %v4082
  %v4084 = vpop.f32.mrb[0].mxu0
  %v4085 = vpop.f32.mrb[0].mxu0
  %4086 = vdwg.mxu0
  %4087 = vmatprep.subr.bf16.mxu0 %v2661
  %4088 = vmatpush1.bf16.msra.mxu0 %v2660
  %4089 = vmatprep.subr.bf16.mxu0 %v2665
  %4090 = vmatpush1.bf16.msra.mxu0 %v2664
  %4091 = vmatprep.subr.bf16.mxu0 %v2669
  %4092 = vmatpush1.bf16.msra.mxu0 %v2668
  %4093 = vmatprep.subr.bf16.mxu0 %v2673
  %4094 = vmatpush1.bf16.msra.mxu0 %v2672
  %4095 = vmatprep.subr.bf16.mxu0 %v2677
  %4096 = vmatpush1.bf16.msra.mxu0 %v2676
  %4097 = vmatprep.subr.bf16.mxu0 %v2681
  %4098 = vmatpush1.bf16.msra.mxu0 %v2680
  %4099 = vmatprep.subr.bf16.mxu0 %v2685
  %4100 = vmatpush1.bf16.msra.mxu0 %v2684
  %4101 = vmatprep.subr.bf16.mxu0 %v2689
  %4102 = vmatpush1.bf16.msra.mxu0 %v2688
  %4103 = vmatprep.subr.bf16.mxu0 %v2693
  %4104 = vmatpush1.bf16.msra.mxu0 %v2692
  %4105 = vmatprep.subr.bf16.mxu0 %v2697
  %4106 = vmatpush1.bf16.msra.mxu0 %v2696
  %4107 = vmatprep.subr.bf16.mxu0 %v2701
  %4108 = vmatpush1.bf16.msra.mxu0 %v2700
  %4109 = vmatprep.subr.bf16.mxu0 %v2705
  %4110 = vmatpush1.bf16.msra.mxu0 %v2704
  %4111 = vmatprep.subr.bf16.mxu0 %v2709
  %4112 = vmatpush1.bf16.msra.mxu0 %v2708
  %4113 = vmatprep.subr.bf16.mxu0 %v2713
  %4114 = vmatpush1.bf16.msra.mxu0 %v2712
  %4115 = vmatprep.subr.bf16.mxu0 %v2717
  %4116 = vmatpush1.bf16.msra.mxu0 %v2716
  %4117 = vmatprep.subr.bf16.mxu0 %v2721
  %4118 = vmatpush1.bf16.msra.mxu0 %v2720
  %4119 = vmatprep.mubr.bf16.mxu0 %v647
  %4120 = vmatmul.mubr.bf16.gmra.mrb[0].mxu0 %v646
  %v4121 = vpop.f32.mrb[0].mxu0
  %v4122 = vadd.f32 %v4081, %v4121
  %v4123 = vpop.f32.mrb[0].mxu0
  %v4124 = vadd.f32 %v4083, %v4123
  %v4125 = vpop.f32.mrb[0].mxu0
  %v4126 = vpop.f32.mrb[0].mxu0
  %4127 = vdwg.mxu0
  %4128 = vmatprep.subr.bf16.mxu0 %v2725
  %4129 = vmatpush1.bf16.msra.mxu0 %v2724
  %4130 = vmatprep.subr.bf16.mxu0 %v2729
  %4131 = vmatpush1.bf16.msra.mxu0 %v2728
  %4132 = vmatprep.subr.bf16.mxu0 %v2733
  %4133 = vmatpush1.bf16.msra.mxu0 %v2732
  %4134 = vmatprep.subr.bf16.mxu0 %v2737
  %4135 = vmatpush1.bf16.msra.mxu0 %v2736
  %4136 = vmatprep.subr.bf16.mxu0 %v2741
  %4137 = vmatpush1.bf16.msra.mxu0 %v2740
  %4138 = vmatprep.subr.bf16.mxu0 %v2745
  %4139 = vmatpush1.bf16.msra.mxu0 %v2744
  %4140 = vmatprep.subr.bf16.mxu0 %v2749
  %4141 = vmatpush1.bf16.msra.mxu0 %v2748
  %4142 = vmatprep.subr.bf16.mxu0 %v2753
  %4143 = vmatpush1.bf16.msra.mxu0 %v2752
  %4144 = vmatprep.subr.bf16.mxu0 %v2757
  %4145 = vmatpush1.bf16.msra.mxu0 %v2756
  %4146 = vmatprep.subr.bf16.mxu0 %v2761
  %4147 = vmatpush1.bf16.msra.mxu0 %v2760
  %4148 = vmatprep.subr.bf16.mxu0 %v2765
  %4149 = vmatpush1.bf16.msra.mxu0 %v2764
  %4150 = vmatprep.subr.bf16.mxu0 %v2769
  %4151 = vmatpush1.bf16.msra.mxu0 %v2768
  %4152 = vmatprep.subr.bf16.mxu0 %v2773
  %4153 = vmatpush1.bf16.msra.mxu0 %v2772
  %4154 = vmatprep.subr.bf16.mxu0 %v2777
  %4155 = vmatpush1.bf16.msra.mxu0 %v2776
  %4156 = vmatprep.subr.bf16.mxu0 %v2781
  %4157 = vmatpush1.bf16.msra.mxu0 %v2780
  %4158 = vmatprep.subr.bf16.mxu0 %v2785
  %4159 = vmatpush1.bf16.msra.mxu0 %v2784
  %4160 = vmatprep.mubr.bf16.mxu0 %v649
  %4161 = vmatmul.mubr.bf16.gmra.mrb[0].mxu0 %v648
  %v4162 = vpop.f32.mrb[0].mxu0
  %v4163 = vadd.f32 %v4122, %v4162
  %v4164 = vpop.f32.mrb[0].mxu0
  %v4165 = vadd.f32 %v4124, %v4164
  %v4166 = vpop.f32.mrb[0].mxu0
  %v4167 = vpop.f32.mrb[0].mxu0
  %4168 = vdwg.mxu0
  %4169 = vmatprep.subr.bf16.mxu0 %v2789
  %4170 = vmatpush1.bf16.msra.mxu0 %v2788
  %4171 = vmatprep.subr.bf16.mxu0 %v2793
  %4172 = vmatpush1.bf16.msra.mxu0 %v2792
  %4173 = vmatprep.subr.bf16.mxu0 %v2797
  %4174 = vmatpush1.bf16.msra.mxu0 %v2796
  %4175 = vmatprep.subr.bf16.mxu0 %v2801
  %4176 = vmatpush1.bf16.msra.mxu0 %v2800
  %4177 = vmatprep.subr.bf16.mxu0 %v2805
  %4178 = vmatpush1.bf16.msra.mxu0 %v2804
  %4179 = vmatprep.subr.bf16.mxu0 %v2809
  %4180 = vmatpush1.bf16.msra.mxu0 %v2808
  %4181 = vmatprep.subr.bf16.mxu0 %v2813
  %4182 = vmatpush1.bf16.msra.mxu0 %v2812
  %4183 = vmatprep.subr.bf16.mxu0 %v2817
  %4184 = vmatpush1.bf16.msra.mxu0 %v2816
  %4185 = vmatprep.subr.bf16.mxu0 %v2821
  %4186 = vmatpush1.bf16.msra.mxu0 %v2820
  %4187 = vmatprep.subr.bf16.mxu0 %v2825
  %4188 = vmatpush1.bf16.msra.mxu0 %v2824
  %4189 = vmatprep.subr.bf16.mxu0 %v2829
  %4190 = vmatpush1.bf16.msra.mxu0 %v2828
  %4191 = vmatprep.subr.bf16.mxu0 %v2833
  %4192 = vmatpush1.bf16.msra.mxu0 %v2832
  %4193 = vmatprep.subr.bf16.mxu0 %v2837
  %4194 = vmatpush1.bf16.msra.mxu0 %v2836
  %4195 = vmatprep.subr.bf16.mxu0 %v2841
  %4196 = vmatpush1.bf16.msra.mxu0 %v2840
  %4197 = vmatprep.subr.bf16.mxu0 %v2845
  %4198 = vmatpush1.bf16.msra.mxu0 %v2844
  %4199 = vmatprep.subr.bf16.mxu0 %v2849
  %4200 = vmatpush1.bf16.msra.mxu0 %v2848
  %4201 = vmatprep.mubr.bf16.mxu0 %v651
  %4202 = vmatmul.mubr.bf16.gmra.mrb[0].mxu0 %v650
  %v4203 = vpop.f32.mrb[0].mxu0
  %v4204 = vadd.f32 %v4163, %v4203
  %v4205 = vpop.f32.mrb[0].mxu0
  %v4206 = vadd.f32 %v4165, %v4205
  %v4207 = vpop.f32.mrb[0].mxu0
  %v4208 = vpop.f32.mrb[0].mxu0
  %4209 = vdwg.mxu0
  %4210 = vmatprep.subr.bf16.mxu0 %v2853
  %4211 = vmatpush1.bf16.msra.mxu0 %v2852
  %4212 = vmatprep.subr.bf16.mxu0 %v2857
  %4213 = vmatpush1.bf16.msra.mxu0 %v2856
  %4214 = vmatprep.subr.bf16.mxu0 %v2861
  %4215 = vmatpush1.bf16.msra.mxu0 %v2860
  %4216 = vmatprep.subr.bf16.mxu0 %v2865
  %4217 = vmatpush1.bf16.msra.mxu0 %v2864
  %4218 = vmatprep.subr.bf16.mxu0 %v2869
  %4219 = vmatpush1.bf16.msra.mxu0 %v2868
  %4220 = vmatprep.subr.bf16.mxu0 %v2873
  %4221 = vmatpush1.bf16.msra.mxu0 %v2872
  %4222 = vmatprep.subr.bf16.mxu0 %v2877
  %4223 = vmatpush1.bf16.msra.mxu0 %v2876
  %4224 = vmatprep.subr.bf16.mxu0 %v2881
  %4225 = vmatpush1.bf16.msra.mxu0 %v2880
  %4226 = vmatprep.subr.bf16.mxu0 %v2885
  %4227 = vmatpush1.bf16.msra.mxu0 %v2884
  %4228 = vmatprep.subr.bf16.mxu0 %v2889
  %4229 = vmatpush1.bf16.msra.mxu0 %v2888
  %4230 = vmatprep.subr.bf16.mxu0 %v2893
  %4231 = vmatpush1.bf16.msra.mxu0 %v2892
  %4232 = vmatprep.subr.bf16.mxu0 %v2897
  %4233 = vmatpush1.bf16.msra.mxu0 %v2896
  %4234 = vmatprep.subr.bf16.mxu0 %v2901
  %4235 = vmatpush1.bf16.msra.mxu0 %v2900
  %4236 = vmatprep.subr.bf16.mxu0 %v2905
  %4237 = vmatpush1.bf16.msra.mxu0 %v2904
  %4238 = vmatprep.subr.bf16.mxu0 %v2909
  %4239 = vmatpush1.bf16.msra.mxu0 %v2908
  %4240 = vmatprep.subr.bf16.mxu0 %v2913
  %4241 = vmatpush1.bf16.msra.mxu0 %v2912
  %4242 = vmatprep.mubr.bf16.mxu0 %v653
  %4243 = vmatmul.mubr.bf16.gmra.mrb[0].mxu0 %v652
  %v4244 = vpop.f32.mrb[0].mxu0
  %v4245 = vadd.f32 %v4204, %v4244
  %v4246 = vpop.f32.mrb[0].mxu0
  %v4247 = vadd.f32 %v4206, %v4246
  %v4248 = vpop.f32.mrb[0].mxu0
  %v4249 = vpop.f32.mrb[0].mxu0
  %4250 = vdwg.mxu0
  %4251 = vmatprep.subr.bf16.mxu0 %v2917
  %4252 = vmatpush1.bf16.msra.mxu0 %v2916
  %4253 = vmatprep.subr.bf16.mxu0 %v2921
  %4254 = vmatpush1.bf16.msra.mxu0 %v2920
  %4255 = vmatprep.subr.bf16.mxu0 %v2925
  %4256 = vmatpush1.bf16.msra.mxu0 %v2924
  %4257 = vmatprep.subr.bf16.mxu0 %v2929
  %4258 = vmatpush1.bf16.msra.mxu0 %v2928
  %4259 = vmatprep.subr.bf16.mxu0 %v2933
  %4260 = vmatpush1.bf16.msra.mxu0 %v2932
  %4261 = vmatprep.subr.bf16.mxu0 %v2937
  %4262 = vmatpush1.bf16.msra.mxu0 %v2936
  %4263 = vmatprep.subr.bf16.mxu0 %v2941
  %4264 = vmatpush1.bf16.msra.mxu0 %v2940
  %4265 = vmatprep.subr.bf16.mxu0 %v2945
  %4266 = vmatpush1.bf16.msra.mxu0 %v2944
  %4267 = vmatprep.subr.bf16.mxu0 %v2949
  %4268 = vmatpush1.bf16.msra.mxu0 %v2948
  %4269 = vmatprep.subr.bf16.mxu0 %v2953
  %4270 = vmatpush1.bf16.msra.mxu0 %v2952
  %4271 = vmatprep.subr.bf16.mxu0 %v2957
  %4272 = vmatpush1.bf16.msra.mxu0 %v2956
  %4273 = vmatprep.subr.bf16.mxu0 %v2961
  %4274 = vmatpush1.bf16.msra.mxu0 %v2960
  %4275 = vmatprep.subr.bf16.mxu0 %v2965
  %4276 = vmatpush1.bf16.msra.mxu0 %v2964
  %4277 = vmatprep.subr.bf16.mxu0 %v2969
  %4278 = vmatpush1.bf16.msra.mxu0 %v2968
  %4279 = vmatprep.subr.bf16.mxu0 %v2973
  %4280 = vmatpush1.bf16.msra.mxu0 %v2972
  %4281 = vmatprep.subr.bf16.mxu0 %v2977
  %4282 = vmatpush1.bf16.msra.mxu0 %v2976
  %4283 = vmatprep.mubr.bf16.mxu0 %v655
  %4284 = vmatmul.mubr.bf16.gmra.mrb[0].mxu0 %v654
  %v4285 = vpop.f32.mrb[0].mxu0
  %v4286 = vadd.f32 %v4245, %v4285
  %v4287 = vpop.f32.mrb[0].mxu0
  %v4288 = vadd.f32 %v4247, %v4287
  %v4289 = vpop.f32.mrb[0].mxu0
  %v4290 = vpop.f32.mrb[0].mxu0
  %4291 = vdwg.mxu0
  %v4292 = vadd.f32 %v22, %v3917
  %v4293 = vadd.f32 %v23, %v3919
  %v4294 = vadd.f32 %v24, %v4286
  %v4295 = vadd.f32 %v25, %v4288
  %4296 = vst [vmem:[#allocation2] sm:$0xff] %v4292
  %4297 = vst [vmem:[#allocation2 + $0x8] sm:$0xff] %v4293
  %4298 = vst [vmem:[#allocation2 + $0x10] sm:$0xff] %v4294
  %4299 = vst [vmem:[#allocation2 + $0x18] sm:$0xff] %v4295
  // Predicated region
  $region18: #{discriminator_forward.13} parent=0 // pred_check
    %p4300 = pneg %p14
  $region19: #{discriminator_forward.13} parent=0 // pred_check_branch
    %4302 = sbr.rel (%p4300) target = $region21
  $region20: #{discriminator_forward.13} parent=0 // pred_region
    %v4303 = vld [vmem:[#allocation2] sm:$0xff]
    %v4304 = vld [vmem:[#allocation2 + $0x8] sm:$0xff]
    %v4305 = vld [vmem:[#allocation2 + $0x10] sm:$0xff]
    %v4306 = vld [vmem:[#allocation2 + $0x18] sm:$0xff]
    %v4307 = vld [vmem:[%s2] sm:$0xf]
    %v4309 = vlaneseq
    %v4310 = vshrl.u32 %v4309, 7
    %v4311 = vsub.s32 0, %v4310
    %v4312 = vrot.slane %v4307, %v4311
    %v4313 = vlaneseq
    %v4314 = vshrl.u32 %v4313, 7
    %v4315 = vsub.s32 1, %v4314
    %v4316 = vrot.slane %v4307, %v4315
    %v4317 = vlaneseq
    %v4318 = vshrl.u32 %v4317, 7
    %v4319 = vsub.s32 2, %v4318
    %v4320 = vrot.slane %v4307, %v4319
    %v4321 = vlaneseq
    %v4322 = vshrl.u32 %v4321, 7
    %v4323 = vsub.s32 3, %v4322
    %v4324 = vrot.slane %v4307, %v4323
    %v4329 = vadd.f32 %v4303, %v4312
    %v4330 = vadd.f32 %v4304, %v4316
    %v4331 = vadd.f32 %v4305, %v4320
    %v4332 = vadd.f32 %v4306, %v4324
    %4333 = vst [vmem:[%s3] sm:$0xff] %v4329
    %4334 = vst [vmem:[%s3 + $0x8] sm:$0xff] %v4330
    %4335 = vst [vmem:[%s3 + $0x10] sm:$0xff] %v4331
    %4336 = vst [vmem:[%s3 + $0x18] sm:$0xff] %v4332
  $region21: #{discriminator_forward.13} parent=0 // pred_fallthru
    _
  // Predicated region
  $region22: #{discriminator_forward.13} parent=0 // pred_check
    _
  $region23: #{discriminator_forward.13} parent=0 // pred_check_branch
    %4338 = sbr.rel (0) target = $region25
  $region24: #{discriminator_forward.13} parent=0 // pred_region
    _
  $region25: #{discriminator_forward.13} parent=0 // pred_fallthru
    _
  // Predicated region
  $region26: #{discriminator_forward.13} parent=0 // pred_check
    _
  $region27: #{discriminator_forward.13} parent=0 // pred_check_branch
    %4340 = sbr.rel (0) target = $region29
  $region28: #{discriminator_forward.13} parent=0 // pred_region
    _
  $region29: #{discriminator_forward.13} parent=0 // pred_fallthru
    _

// kernel: discriminator_forward.15
$region0: #{discriminator_forward.15}
  #allocation0 [shape = 'u32[]', space=smem, size = 0x4, offset = 0x4, fixed_abs, tag = 'smem constant byte address 0x4 - core index']
  #allocation1 [shape = 'u32[144,128]{1,0:T(1,128)}', space=vmem, size = 0x12000, scoped, tag = 'internal scratch']
  #allocation2 [shape = 'f32[8,128]{1,0:T(8,128)}', space=vmem, size = 0x1000, scoped, tag = 'scratch operand']
  %s0 = inlined_call_operand.vmem [shape: bf16[8,4608], index: 0, kind: input, shape index: {}]
  %s1 = inlined_call_operand.vmem [shape: bf16[4608,128], index: 1, kind: input, shape index: {}]
  %s2 = inlined_call_operand.vmem [shape: f32[1,128], index: 2, kind: input, shape index: {}]
  %s3 = inlined_call_operand.vmem [shape: f32[8,128], index: 3, kind: output, shape index: {}]
  %s4 = sld [smem:[#allocation0]]
  $region30: #{discriminator_forward.15} parent=0
    _
  %s6 = ssub.s32 1, %s4
  %s7 = scalar_select 0, %s6, %s4
  // Predicated region
  $region2: #{discriminator_forward.15} parent=0 // pred_check
    _
  $region3: #{discriminator_forward.15} parent=0 // pred_check_branch
    %9 = sbr.rel (0) target = $region5
  $region4: #{discriminator_forward.15} parent=0 // pred_region
    _
  $region5: #{discriminator_forward.15} parent=0 // pred_fallthru
    _
  // Predicated region
  $region6: #{discriminator_forward.15} parent=0 // pred_check
    _
  $region7: #{discriminator_forward.15} parent=0 // pred_check_branch
    %11 = sbr.rel (0) target = $region9
  $region8: #{discriminator_forward.15} parent=0 // pred_region
    _
  $region9: #{discriminator_forward.15} parent=0 // pred_fallthru
    _
  // Predicated region
  $region10: #{discriminator_forward.15} parent=0 // pred_check
    _
  $region11: #{discriminator_forward.15} parent=0 // pred_check_branch
    %13 = sbr.rel (0) target = $region13
  $region12: #{discriminator_forward.15} parent=0 // pred_region
    _
  $region13: #{discriminator_forward.15} parent=0 // pred_fallthru
    _
  %p15 = scmp.eq.s32.totalorder 0, 0
  // Predicated region
  $region14: #{discriminator_forward.15} parent=0 // pred_check
    %p16 = pneg %p15
  $region15: #{discriminator_forward.15} parent=0 // pred_check_branch
    %18 = sbr.rel (%p16) target = $region17
  $region16: #{discriminator_forward.15} parent=0 // pred_region
    %19 = vst [vmem:[#allocation2] sm:$0xff] 0.0
  $region17: #{discriminator_forward.15} parent=0 // pred_fallthru
    _
  %v20 = vld [vmem:[#allocation2] sm:$0xff]
  %v21 = vld [vmem:[%s0] sm:$0xff]
  %v22 = vld [vmem:[%s0 + $0x8] sm:$0xff]
  %v23 = vld [vmem:[%s0 + $0x10] sm:$0xff]
  %v24 = vld [vmem:[%s0 + $0x18] sm:$0xff]
  %v25 = vld [vmem:[%s0 + $0x20] sm:$0xff]
  %v26 = vld [vmem:[%s0 + $0x28] sm:$0xff]
  %v27 = vld [vmem:[%s0 + $0x30] sm:$0xff]
  %v28 = vld [vmem:[%s0 + $0x38] sm:$0xff]
  %v29 = vld [vmem:[%s0 + $0x40] sm:$0xff]
  %v30 = vld [vmem:[%s0 + $0x48] sm:$0xff]
  %v31 = vld [vmem:[%s0 + $0x50] sm:$0xff]
  %v32 = vld [vmem:[%s0 + $0x58] sm:$0xff]
  %v33 = vld [vmem:[%s0 + $0x60] sm:$0xff]
  %v34 = vld [vmem:[%s0 + $0x68] sm:$0xff]
  %v35 = vld [vmem:[%s0 + $0x70] sm:$0xff]
  %v36 = vld [vmem:[%s0 + $0x78] sm:$0xff]
  %v37 = vld [vmem:[%s0 + $0x80] sm:$0xff]
  %v38 = vld [vmem:[%s0 + $0x88] sm:$0xff]
  %v39 = vld [vmem:[%s1] sm:$0xf]
  %v40 = vld [vmem:[%s1 + $0x4] sm:$0xf]
  %v41 = vld [vmem:[%s1 + $0x8] sm:$0xf]
  %v42 = vld [vmem:[%s1 + $0xc] sm:$0xf]
  %v43 = vld [vmem:[%s1 + $0x10] sm:$0xf]
  %v44 = vld [vmem:[%s1 + $0x14] sm:$0xf]
  %v45 = vld [vmem:[%s1 + $0x18] sm:$0xf]
  %v46 = vld [vmem:[%s1 + $0x1c] sm:$0xf]
  %v47 = vld [vmem:[%s1 + $0x20] sm:$0xf]
  %v48 = vld [vmem:[%s1 + $0x24] sm:$0xf]
  %v49 = vld [vmem:[%s1 + $0x28] sm:$0xf]
  %v50 = vld [vmem:[%s1 + $0x2c] sm:$0xf]
  %v51 = vld [vmem:[%s1 + $0x30] sm:$0xf]
  %v52 = vld [vmem:[%s1 + $0x34] sm:$0xf]
  %v53 = vld [vmem:[%s1 + $0x38] sm:$0xf]
  %v54 = vld [vmem:[%s1 + $0x3c] sm:$0xf]
  %v55 = vld [vmem:[%s1 + $0x40] sm:$0xf]
  %v56 = vld [vmem:[%s1 + $0x44] sm:$0xf]
  %v57 = vld [vmem:[%s1 + $0x48] sm:$0xf]
  %v58 = vld [vmem:[%s1 + $0x4c] sm:$0xf]
  %v59 = vld [vmem:[%s1 + $0x50] sm:$0xf]
  %v60 = vld [vmem:[%s1 + $0x54] sm:$0xf]
  %v61 = vld [vmem:[%s1 + $0x58] sm:$0xf]
  %v62 = vld [vmem:[%s1 + $0x5c] sm:$0xf]
  %v63 = vld [vmem:[%s1 + $0x60] sm:$0xf]
  %v64 = vld [vmem:[%s1 + $0x64] sm:$0xf]
  %v65 = vld [vmem:[%s1 + $0x68] sm:$0xf]
  %v66 = vld [vmem:[%s1 + $0x6c] sm:$0xf]
  %v67 = vld [vmem:[%s1 + $0x70] sm:$0xf]
  %v68 = vld [vmem:[%s1 + $0x74] sm:$0xf]
  %v69 = vld [vmem:[%s1 + $0x78] sm:$0xf]
  %v70 = vld [vmem:[%s1 + $0x7c] sm:$0xf]
  %v71 = vld [vmem:[%s1 + $0x80] sm:$0xf]
  %v72 = vld [vmem:[%s1 + $0x84] sm:$0xf]
  %v73 = vld [vmem:[%s1 + $0x88] sm:$0xf]
  %v74 = vld [vmem:[%s1 + $0x8c] sm:$0xf]
  %v75 = vld [vmem:[%s1 + $0x90] sm:$0xf]
  %v76 = vld [vmem:[%s1 + $0x94] sm:$0xf]
  %v77 = vld [vmem:[%s1 + $0x98] sm:$0xf]
  %v78 = vld [vmem:[%s1 + $0x9c] sm:$0xf]
  %v79 = vld [vmem:[%s1 + $0xa0] sm:$0xf]
  %v80 = vld [vmem:[%s1 + $0xa4] sm:$0xf]
  %v81 = vld [vmem:[%s1 + $0xa8] sm:$0xf]
  %v82 = vld [vmem:[%s1 + $0xac] sm:$0xf]
  %v83 = vld [vmem:[%s1 + $0xb0] sm:$0xf]
  %v84 = vld [vmem:[%s1 + $0xb4] sm:$0xf]
  %v85 = vld [vmem:[%s1 + $0xb8] sm:$0xf]
  %v86 = vld [vmem:[%s1 + $0xbc] sm:$0xf]
  %v87 = vld [vmem:[%s1 + $0xc0] sm:$0xf]
  %v88 = vld [vmem:[%s1 + $0xc4] sm:$0xf]
  %v89 = vld [vmem:[%s1 + $0xc8] sm:$0xf]
  %v90 = vld [vmem:[%s1 + $0xcc] sm:$0xf]
  %v91 = vld [vmem:[%s1 + $0xd0] sm:$0xf]
  %v92 = vld [vmem:[%s1 + $0xd4] sm:$0xf]
  %v93 = vld [vmem:[%s1 + $0xd8] sm:$0xf]
  %v94 = vld [vmem:[%s1 + $0xdc] sm:$0xf]
  %v95 = vld [vmem:[%s1 + $0xe0] sm:$0xf]
  %v96 = vld [vmem:[%s1 + $0xe4] sm:$0xf]
  %v97 = vld [vmem:[%s1 + $0xe8] sm:$0xf]
  %v98 = vld [vmem:[%s1 + $0xec] sm:$0xf]
  %v99 = vld [vmem:[%s1 + $0xf0] sm:$0xf]
  %v100 = vld [vmem:[%s1 + $0xf4] sm:$0xf]
  %v101 = vld [vmem:[%s1 + $0xf8] sm:$0xf]
  %v102 = vld [vmem:[%s1 + $0xfc] sm:$0xf]
  %v103 = vld [vmem:[%s1 + $0x100] sm:$0xf]
  %v104 = vld [vmem:[%s1 + $0x104] sm:$0xf]
  %v105 = vld [vmem:[%s1 + $0x108] sm:$0xf]
  %v106 = vld [vmem:[%s1 + $0x10c] sm:$0xf]
  %v107 = vld [vmem:[%s1 + $0x110] sm:$0xf]
  %v108 = vld [vmem:[%s1 + $0x114] sm:$0xf]
  %v109 = vld [vmem:[%s1 + $0x118] sm:$0xf]
  %v110 = vld [vmem:[%s1 + $0x11c] sm:$0xf]
  %v111 = vld [vmem:[%s1 + $0x120] sm:$0xf]
  %v112 = vld [vmem:[%s1 + $0x124] sm:$0xf]
  %v113 = vld [vmem:[%s1 + $0x128] sm:$0xf]
  %v114 = vld [vmem:[%s1 + $0x12c] sm:$0xf]
  %v115 = vld [vmem:[%s1 + $0x130] sm:$0xf]
  %v116 = vld [vmem:[%s1 + $0x134] sm:$0xf]
  %v117 = vld [vmem:[%s1 + $0x138] sm:$0xf]
  %v118 = vld [vmem:[%s1 + $0x13c] sm:$0xf]
  %v119 = vld [vmem:[%s1 + $0x140] sm:$0xf]
  %v120 = vld [vmem:[%s1 + $0x144] sm:$0xf]
  %v121 = vld [vmem:[%s1 + $0x148] sm:$0xf]
  %v122 = vld [vmem:[%s1 + $0x14c] sm:$0xf]
  %v123 = vld [vmem:[%s1 + $0x150] sm:$0xf]
  %v124 = vld [vmem:[%s1 + $0x154] sm:$0xf]
  %v125 = vld [vmem:[%s1 + $0x158] sm:$0xf]
  %v126 = vld [vmem:[%s1 + $0x15c] sm:$0xf]
  %v127 = vld [vmem:[%s1 + $0x160] sm:$0xf]
  %v128 = vld [vmem:[%s1 + $0x164] sm:$0xf]
  %v129 = vld [vmem:[%s1 + $0x168] sm:$0xf]
  %v130 = vld [vmem:[%s1 + $0x16c] sm:$0xf]
  %v131 = vld [vmem:[%s1 + $0x170] sm:$0xf]
  %v132 = vld [vmem:[%s1 + $0x174] sm:$0xf]
  %v133 = vld [vmem:[%s1 + $0x178] sm:$0xf]
  %v134 = vld [vmem:[%s1 + $0x17c] sm:$0xf]
  %v135 = vld [vmem:[%s1 + $0x180] sm:$0xf]
  %v136 = vld [vmem:[%s1 + $0x184] sm:$0xf]
  %v137 = vld [vmem:[%s1 + $0x188] sm:$0xf]
  %v138 = vld [vmem:[%s1 + $0x18c] sm:$0xf]
  %v139 = vld [vmem:[%s1 + $0x190] sm:$0xf]
  %v140 = vld [vmem:[%s1 + $0x194] sm:$0xf]
  %v141 = vld [vmem:[%s1 + $0x198] sm:$0xf]
  %v142 = vld [vmem:[%s1 + $0x19c] sm:$0xf]
  %v143 = vld [vmem:[%s1 + $0x1a0] sm:$0xf]
  %v144 = vld [vmem:[%s1 + $0x1a4] sm:$0xf]
  %v145 = vld [vmem:[%s1 + $0x1a8] sm:$0xf]
  %v146 = vld [vmem:[%s1 + $0x1ac] sm:$0xf]
  %v147 = vld [vmem:[%s1 + $0x1b0] sm:$0xf]
  %v148 = vld [vmem:[%s1 + $0x1b4] sm:$0xf]
  %v149 = vld [vmem:[%s1 + $0x1b8] sm:$0xf]
  %v150 = vld [vmem:[%s1 + $0x1bc] sm:$0xf]
  %v151 = vld [vmem:[%s1 + $0x1c0] sm:$0xf]
  %v152 = vld [vmem:[%s1 + $0x1c4] sm:$0xf]
  %v153 = vld [vmem:[%s1 + $0x1c8] sm:$0xf]
  %v154 = vld [vmem:[%s1 + $0x1cc] sm:$0xf]
  %v155 = vld [vmem:[%s1 + $0x1d0] sm:$0xf]
  %v156 = vld [vmem:[%s1 + $0x1d4] sm:$0xf]
  %v157 = vld [vmem:[%s1 + $0x1d8] sm:$0xf]
  %v158 = vld [vmem:[%s1 + $0x1dc] sm:$0xf]
  %v159 = vld [vmem:[%s1 + $0x1e0] sm:$0xf]
  %v160 = vld [vmem:[%s1 + $0x1e4] sm:$0xf]
  %v161 = vld [vmem:[%s1 + $0x1e8] sm:$0xf]
  %v162 = vld [vmem:[%s1 + $0x1ec] sm:$0xf]
  %v163 = vld [vmem:[%s1 + $0x1f0] sm:$0xf]
  %v164 = vld [vmem:[%s1 + $0x1f4] sm:$0xf]
  %v165 = vld [vmem:[%s1 + $0x1f8] sm:$0xf]
  %v166 = vld [vmem:[%s1 + $0x1fc] sm:$0xf]
  %v167 = vld [vmem:[%s1 + $0x200] sm:$0xf]
  %v168 = vld [vmem:[%s1 + $0x204] sm:$0xf]
  %v169 = vld [vmem:[%s1 + $0x208] sm:$0xf]
  %v170 = vld [vmem:[%s1 + $0x20c] sm:$0xf]
  %v171 = vld [vmem:[%s1 + $0x210] sm:$0xf]
  %v172 = vld [vmem:[%s1 + $0x214] sm:$0xf]
  %v173 = vld [vmem:[%s1 + $0x218] sm:$0xf]
  %v174 = vld [vmem:[%s1 + $0x21c] sm:$0xf]
  %v175 = vld [vmem:[%s1 + $0x220] sm:$0xf]
  %v176 = vld [vmem:[%s1 + $0x224] sm:$0xf]
  %v177 = vld [vmem:[%s1 + $0x228] sm:$0xf]
  %v178 = vld [vmem:[%s1 + $0x22c] sm:$0xf]
  %v179 = vld [vmem:[%s1 + $0x230] sm:$0xf]
  %v180 = vld [vmem:[%s1 + $0x234] sm:$0xf]
  %v181 = vld [vmem:[%s1 + $0x238] sm:$0xf]
  %v182 = vld [vmem:[%s1 + $0x23c] sm:$0xf]
  %v183 = vld [vmem:[%s1 + $0x240] sm:$0xf]
  %v184 = vld [vmem:[%s1 + $0x244] sm:$0xf]
  %v185 = vld [vmem:[%s1 + $0x248] sm:$0xf]
  %v186 = vld [vmem:[%s1 + $0x24c] sm:$0xf]
  %v187 = vld [vmem:[%s1 + $0x250] sm:$0xf]
  %v188 = vld [vmem:[%s1 + $0x254] sm:$0xf]
  %v189 = vld [vmem:[%s1 + $0x258] sm:$0xf]
  %v190 = vld [vmem:[%s1 + $0x25c] sm:$0xf]
  %v191 = vld [vmem:[%s1 + $0x260] sm:$0xf]
  %v192 = vld [vmem:[%s1 + $0x264] sm:$0xf]
  %v193 = vld [vmem:[%s1 + $0x268] sm:$0xf]
  %v194 = vld [vmem:[%s1 + $0x26c] sm:$0xf]
  %v195 = vld [vmem:[%s1 + $0x270] sm:$0xf]
  %v196 = vld [vmem:[%s1 + $0x274] sm:$0xf]
  %v197 = vld [vmem:[%s1 + $0x278] sm:$0xf]
  %v198 = vld [vmem:[%s1 + $0x27c] sm:$0xf]
  %v199 = vld [vmem:[%s1 + $0x280] sm:$0xf]
  %v200 = vld [vmem:[%s1 + $0x284] sm:$0xf]
  %v201 = vld [vmem:[%s1 + $0x288] sm:$0xf]
  %v202 = vld [vmem:[%s1 + $0x28c] sm:$0xf]
  %v203 = vld [vmem:[%s1 + $0x290] sm:$0xf]
  %v204 = vld [vmem:[%s1 + $0x294] sm:$0xf]
  %v205 = vld [vmem:[%s1 + $0x298] sm:$0xf]
  %v206 = vld [vmem:[%s1 + $0x29c] sm:$0xf]
  %v207 = vld [vmem:[%s1 + $0x2a0] sm:$0xf]
  %v208 = vld [vmem:[%s1 + $0x2a4] sm:$0xf]
  %v209 = vld [vmem:[%s1 + $0x2a8] sm:$0xf]
  %v210 = vld [vmem:[%s1 + $0x2ac] sm:$0xf]
  %v211 = vld [vmem:[%s1 + $0x2b0] sm:$0xf]
  %v212 = vld [vmem:[%s1 + $0x2b4] sm:$0xf]
  %v213 = vld [vmem:[%s1 + $0x2b8] sm:$0xf]
  %v214 = vld [vmem:[%s1 + $0x2bc] sm:$0xf]
  %v215 = vld [vmem:[%s1 + $0x2c0] sm:$0xf]
  %v216 = vld [vmem:[%s1 + $0x2c4] sm:$0xf]
  %v217 = vld [vmem:[%s1 + $0x2c8] sm:$0xf]
  %v218 = vld [vmem:[%s1 + $0x2cc] sm:$0xf]
  %v219 = vld [vmem:[%s1 + $0x2d0] sm:$0xf]
  %v220 = vld [vmem:[%s1 + $0x2d4] sm:$0xf]
  %v221 = vld [vmem:[%s1 + $0x2d8] sm:$0xf]
  %v222 = vld [vmem:[%s1 + $0x2dc] sm:$0xf]
  %v223 = vld [vmem:[%s1 + $0x2e0] sm:$0xf]
  %v224 = vld [vmem:[%s1 + $0x2e4] sm:$0xf]
  %v225 = vld [vmem:[%s1 + $0x2e8] sm:$0xf]
  %v226 = vld [vmem:[%s1 + $0x2ec] sm:$0xf]
  %v227 = vld [vmem:[%s1 + $0x2f0] sm:$0xf]
  %v228 = vld [vmem:[%s1 + $0x2f4] sm:$0xf]
  %v229 = vld [vmem:[%s1 + $0x2f8] sm:$0xf]
  %v230 = vld [vmem:[%s1 + $0x2fc] sm:$0xf]
  %v231 = vld [vmem:[%s1 + $0x300] sm:$0xf]
  %v232 = vld [vmem:[%s1 + $0x304] sm:$0xf]
  %v233 = vld [vmem:[%s1 + $0x308] sm:$0xf]
  %v234 = vld [vmem:[%s1 + $0x30c] sm:$0xf]
  %v235 = vld [vmem:[%s1 + $0x310] sm:$0xf]
  %v236 = vld [vmem:[%s1 + $0x314] sm:$0xf]
  %v237 = vld [vmem:[%s1 + $0x318] sm:$0xf]
  %v238 = vld [vmem:[%s1 + $0x31c] sm:$0xf]
  %v239 = vld [vmem:[%s1 + $0x320] sm:$0xf]
  %v240 = vld [vmem:[%s1 + $0x324] sm:$0xf]
  %v241 = vld [vmem:[%s1 + $0x328] sm:$0xf]
  %v242 = vld [vmem:[%s1 + $0x32c] sm:$0xf]
  %v243 = vld [vmem:[%s1 + $0x330] sm:$0xf]
  %v244 = vld [vmem:[%s1 + $0x334] sm:$0xf]
  %v245 = vld [vmem:[%s1 + $0x338] sm:$0xf]
  %v246 = vld [vmem:[%s1 + $0x33c] sm:$0xf]
  %v247 = vld [vmem:[%s1 + $0x340] sm:$0xf]
  %v248 = vld [vmem:[%s1 + $0x344] sm:$0xf]
  %v249 = vld [vmem:[%s1 + $0x348] sm:$0xf]
  %v250 = vld [vmem:[%s1 + $0x34c] sm:$0xf]
  %v251 = vld [vmem:[%s1 + $0x350] sm:$0xf]
  %v252 = vld [vmem:[%s1 + $0x354] sm:$0xf]
  %v253 = vld [vmem:[%s1 + $0x358] sm:$0xf]
  %v254 = vld [vmem:[%s1 + $0x35c] sm:$0xf]
  %v255 = vld [vmem:[%s1 + $0x360] sm:$0xf]
  %v256 = vld [vmem:[%s1 + $0x364] sm:$0xf]
  %v257 = vld [vmem:[%s1 + $0x368] sm:$0xf]
  %v258 = vld [vmem:[%s1 + $0x36c] sm:$0xf]
  %v259 = vld [vmem:[%s1 + $0x370] sm:$0xf]
  %v260 = vld [vmem:[%s1 + $0x374] sm:$0xf]
  %v261 = vld [vmem:[%s1 + $0x378] sm:$0xf]
  %v262 = vld [vmem:[%s1 + $0x37c] sm:$0xf]
  %v263 = vld [vmem:[%s1 + $0x380] sm:$0xf]
  %v264 = vld [vmem:[%s1 + $0x384] sm:$0xf]
  %v265 = vld [vmem:[%s1 + $0x388] sm:$0xf]
  %v266 = vld [vmem:[%s1 + $0x38c] sm:$0xf]
  %v267 = vld [vmem:[%s1 + $0x390] sm:$0xf]
  %v268 = vld [vmem:[%s1 + $0x394] sm:$0xf]
  %v269 = vld [vmem:[%s1 + $0x398] sm:$0xf]
  %v270 = vld [vmem:[%s1 + $0x39c] sm:$0xf]
  %v271 = vld [vmem:[%s1 + $0x3a0] sm:$0xf]
  %v272 = vld [vmem:[%s1 + $0x3a4] sm:$0xf]
  %v273 = vld [vmem:[%s1 + $0x3a8] sm:$0xf]
  %v274 = vld [vmem:[%s1 + $0x3ac] sm:$0xf]
  %v275 = vld [vmem:[%s1 + $0x3b0] sm:$0xf]
  %v276 = vld [vmem:[%s1 + $0x3b4] sm:$0xf]
  %v277 = vld [vmem:[%s1 + $0x3b8] sm:$0xf]
  %v278 = vld [vmem:[%s1 + $0x3bc] sm:$0xf]
  %v279 = vld [vmem:[%s1 + $0x3c0] sm:$0xf]
  %v280 = vld [vmem:[%s1 + $0x3c4] sm:$0xf]
  %v281 = vld [vmem:[%s1 + $0x3c8] sm:$0xf]
  %v282 = vld [vmem:[%s1 + $0x3cc] sm:$0xf]
  %v283 = vld [vmem:[%s1 + $0x3d0] sm:$0xf]
  %v284 = vld [vmem:[%s1 + $0x3d4] sm:$0xf]
  %v285 = vld [vmem:[%s1 + $0x3d8] sm:$0xf]
  %v286 = vld [vmem:[%s1 + $0x3dc] sm:$0xf]
  %v287 = vld [vmem:[%s1 + $0x3e0] sm:$0xf]
  %v288 = vld [vmem:[%s1 + $0x3e4] sm:$0xf]
  %v289 = vld [vmem:[%s1 + $0x3e8] sm:$0xf]
  %v290 = vld [vmem:[%s1 + $0x3ec] sm:$0xf]
  %v291 = vld [vmem:[%s1 + $0x3f0] sm:$0xf]
  %v292 = vld [vmem:[%s1 + $0x3f4] sm:$0xf]
  %v293 = vld [vmem:[%s1 + $0x3f8] sm:$0xf]
  %v294 = vld [vmem:[%s1 + $0x3fc] sm:$0xf]
  %v295 = vld [vmem:[%s1 + $0x400] sm:$0xf]
  %v296 = vld [vmem:[%s1 + $0x404] sm:$0xf]
  %v297 = vld [vmem:[%s1 + $0x408] sm:$0xf]
  %v298 = vld [vmem:[%s1 + $0x40c] sm:$0xf]
  %v299 = vld [vmem:[%s1 + $0x410] sm:$0xf]
  %v300 = vld [vmem:[%s1 + $0x414] sm:$0xf]
  %v301 = vld [vmem:[%s1 + $0x418] sm:$0xf]
  %v302 = vld [vmem:[%s1 + $0x41c] sm:$0xf]
  %v303 = vld [vmem:[%s1 + $0x420] sm:$0xf]
  %v304 = vld [vmem:[%s1 + $0x424] sm:$0xf]
  %v305 = vld [vmem:[%s1 + $0x428] sm:$0xf]
  %v306 = vld [vmem:[%s1 + $0x42c] sm:$0xf]
  %v307 = vld [vmem:[%s1 + $0x430] sm:$0xf]
  %v308 = vld [vmem:[%s1 + $0x434] sm:$0xf]
  %v309 = vld [vmem:[%s1 + $0x438] sm:$0xf]
  %v310 = vld [vmem:[%s1 + $0x43c] sm:$0xf]
  %v311 = vld [vmem:[%s1 + $0x440] sm:$0xf]
  %v312 = vld [vmem:[%s1 + $0x444] sm:$0xf]
  %v313 = vld [vmem:[%s1 + $0x448] sm:$0xf]
  %v314 = vld [vmem:[%s1 + $0x44c] sm:$0xf]
  %v315 = vld [vmem:[%s1 + $0x450] sm:$0xf]
  %v316 = vld [vmem:[%s1 + $0x454] sm:$0xf]
  %v317 = vld [vmem:[%s1 + $0x458] sm:$0xf]
  %v318 = vld [vmem:[%s1 + $0x45c] sm:$0xf]
  %v319 = vld [vmem:[%s1 + $0x460] sm:$0xf]
  %v320 = vld [vmem:[%s1 + $0x464] sm:$0xf]
  %v321 = vld [vmem:[%s1 + $0x468] sm:$0xf]
  %v322 = vld [vmem:[%s1 + $0x46c] sm:$0xf]
  %v323 = vld [vmem:[%s1 + $0x470] sm:$0xf]
  %v324 = vld [vmem:[%s1 + $0x474] sm:$0xf]
  %v325 = vld [vmem:[%s1 + $0x478] sm:$0xf]
  %v326 = vld [vmem:[%s1 + $0x47c] sm:$0xf]
  %v327 = vld [vmem:[%s1 + $0x480] sm:$0xf]
  %v328 = vld [vmem:[%s1 + $0x484] sm:$0xf]
  %v329 = vld [vmem:[%s1 + $0x488] sm:$0xf]
  %v330 = vld [vmem:[%s1 + $0x48c] sm:$0xf]
  %v331 = vld [vmem:[%s1 + $0x490] sm:$0xf]
  %v332 = vld [vmem:[%s1 + $0x494] sm:$0xf]
  %v333 = vld [vmem:[%s1 + $0x498] sm:$0xf]
  %v334 = vld [vmem:[%s1 + $0x49c] sm:$0xf]
  %v335 = vld [vmem:[%s1 + $0x4a0] sm:$0xf]
  %v336 = vld [vmem:[%s1 + $0x4a4] sm:$0xf]
  %v337 = vld [vmem:[%s1 + $0x4a8] sm:$0xf]
  %v338 = vld [vmem:[%s1 + $0x4ac] sm:$0xf]
  %v339 = vld [vmem:[%s1 + $0x4b0] sm:$0xf]
  %v340 = vld [vmem:[%s1 + $0x4b4] sm:$0xf]
  %v341 = vld [vmem:[%s1 + $0x4b8] sm:$0xf]
  %v342 = vld [vmem:[%s1 + $0x4bc] sm:$0xf]
  %v343 = vld [vmem:[%s1 + $0x4c0] sm:$0xf]
  %v344 = vld [vmem:[%s1 + $0x4c4] sm:$0xf]
  %v345 = vld [vmem:[%s1 + $0x4c8] sm:$0xf]
  %v346 = vld [vmem:[%s1 + $0x4cc] sm:$0xf]
  %v347 = vld [vmem:[%s1 + $0x4d0] sm:$0xf]
  %v348 = vld [vmem:[%s1 + $0x4d4] sm:$0xf]
  %v349 = vld [vmem:[%s1 + $0x4d8] sm:$0xf]
  %v350 = vld [vmem:[%s1 + $0x4dc] sm:$0xf]
  %v351 = vld [vmem:[%s1 + $0x4e0] sm:$0xf]
  %v352 = vld [vmem:[%s1 + $0x4e4] sm:$0xf]
  %v353 = vld [vmem:[%s1 + $0x4e8] sm:$0xf]
  %v354 = vld [vmem:[%s1 + $0x4ec] sm:$0xf]
  %v355 = vld [vmem:[%s1 + $0x4f0] sm:$0xf]
  %v356 = vld [vmem:[%s1 + $0x4f4] sm:$0xf]
  %v357 = vld [vmem:[%s1 + $0x4f8] sm:$0xf]
  %v358 = vld [vmem:[%s1 + $0x4fc] sm:$0xf]
  %v359 = vld [vmem:[%s1 + $0x500] sm:$0xf]
  %v360 = vld [vmem:[%s1 + $0x504] sm:$0xf]
  %v361 = vld [vmem:[%s1 + $0x508] sm:$0xf]
  %v362 = vld [vmem:[%s1 + $0x50c] sm:$0xf]
  %v363 = vld [vmem:[%s1 + $0x510] sm:$0xf]
  %v364 = vld [vmem:[%s1 + $0x514] sm:$0xf]
  %v365 = vld [vmem:[%s1 + $0x518] sm:$0xf]
  %v366 = vld [vmem:[%s1 + $0x51c] sm:$0xf]
  %v367 = vld [vmem:[%s1 + $0x520] sm:$0xf]
  %v368 = vld [vmem:[%s1 + $0x524] sm:$0xf]
  %v369 = vld [vmem:[%s1 + $0x528] sm:$0xf]
  %v370 = vld [vmem:[%s1 + $0x52c] sm:$0xf]
  %v371 = vld [vmem:[%s1 + $0x530] sm:$0xf]
  %v372 = vld [vmem:[%s1 + $0x534] sm:$0xf]
  %v373 = vld [vmem:[%s1 + $0x538] sm:$0xf]
  %v374 = vld [vmem:[%s1 + $0x53c] sm:$0xf]
  %v375 = vld [vmem:[%s1 + $0x540] sm:$0xf]
  %v376 = vld [vmem:[%s1 + $0x544] sm:$0xf]
  %v377 = vld [vmem:[%s1 + $0x548] sm:$0xf]
  %v378 = vld [vmem:[%s1 + $0x54c] sm:$0xf]
  %v379 = vld [vmem:[%s1 + $0x550] sm:$0xf]
  %v380 = vld [vmem:[%s1 + $0x554] sm:$0xf]
  %v381 = vld [vmem:[%s1 + $0x558] sm:$0xf]
  %v382 = vld [vmem:[%s1 + $0x55c] sm:$0xf]
  %v383 = vld [vmem:[%s1 + $0x560] sm:$0xf]
  %v384 = vld [vmem:[%s1 + $0x564] sm:$0xf]
  %v385 = vld [vmem:[%s1 + $0x568] sm:$0xf]
  %v386 = vld [vmem:[%s1 + $0x56c] sm:$0xf]
  %v387 = vld [vmem:[%s1 + $0x570] sm:$0xf]
  %v388 = vld [vmem:[%s1 + $0x574] sm:$0xf]
  %v389 = vld [vmem:[%s1 + $0x578] sm:$0xf]
  %v390 = vld [vmem:[%s1 + $0x57c] sm:$0xf]
  %v391 = vld [vmem:[%s1 + $0x580] sm:$0xf]
  %v392 = vld [vmem:[%s1 + $0x584] sm:$0xf]
  %v393 = vld [vmem:[%s1 + $0x588] sm:$0xf]
  %v394 = vld [vmem:[%s1 + $0x58c] sm:$0xf]
  %v395 = vld [vmem:[%s1 + $0x590] sm:$0xf]
  %v396 = vld [vmem:[%s1 + $0x594] sm:$0xf]
  %v397 = vld [vmem:[%s1 + $0x598] sm:$0xf]
  %v398 = vld [vmem:[%s1 + $0x59c] sm:$0xf]
  %v399 = vld [vmem:[%s1 + $0x5a0] sm:$0xf]
  %v400 = vld [vmem:[%s1 + $0x5a4] sm:$0xf]
  %v401 = vld [vmem:[%s1 + $0x5a8] sm:$0xf]
  %v402 = vld [vmem:[%s1 + $0x5ac] sm:$0xf]
  %v403 = vld [vmem:[%s1 + $0x5b0] sm:$0xf]
  %v404 = vld [vmem:[%s1 + $0x5b4] sm:$0xf]
  %v405 = vld [vmem:[%s1 + $0x5b8] sm:$0xf]
  %v406 = vld [vmem:[%s1 + $0x5bc] sm:$0xf]
  %v407 = vld [vmem:[%s1 + $0x5c0] sm:$0xf]
  %v408 = vld [vmem:[%s1 + $0x5c4] sm:$0xf]
  %v409 = vld [vmem:[%s1 + $0x5c8] sm:$0xf]
  %v410 = vld [vmem:[%s1 + $0x5cc] sm:$0xf]
  %v411 = vld [vmem:[%s1 + $0x5d0] sm:$0xf]
  %v412 = vld [vmem:[%s1 + $0x5d4] sm:$0xf]
  %v413 = vld [vmem:[%s1 + $0x5d8] sm:$0xf]
  %v414 = vld [vmem:[%s1 + $0x5dc] sm:$0xf]
  %v415 = vld [vmem:[%s1 + $0x5e0] sm:$0xf]
  %v416 = vld [vmem:[%s1 + $0x5e4] sm:$0xf]
  %v417 = vld [vmem:[%s1 + $0x5e8] sm:$0xf]
  %v418 = vld [vmem:[%s1 + $0x5ec] sm:$0xf]
  %v419 = vld [vmem:[%s1 + $0x5f0] sm:$0xf]
  %v420 = vld [vmem:[%s1 + $0x5f4] sm:$0xf]
  %v421 = vld [vmem:[%s1 + $0x5f8] sm:$0xf]
  %v422 = vld [vmem:[%s1 + $0x5fc] sm:$0xf]
  %v423 = vld [vmem:[%s1 + $0x600] sm:$0xf]
  %v424 = vld [vmem:[%s1 + $0x604] sm:$0xf]
  %v425 = vld [vmem:[%s1 + $0x608] sm:$0xf]
  %v426 = vld [vmem:[%s1 + $0x60c] sm:$0xf]
  %v427 = vld [vmem:[%s1 + $0x610] sm:$0xf]
  %v428 = vld [vmem:[%s1 + $0x614] sm:$0xf]
  %v429 = vld [vmem:[%s1 + $0x618] sm:$0xf]
  %v430 = vld [vmem:[%s1 + $0x61c] sm:$0xf]
  %v431 = vld [vmem:[%s1 + $0x620] sm:$0xf]
  %v432 = vld [vmem:[%s1 + $0x624] sm:$0xf]
  %v433 = vld [vmem:[%s1 + $0x628] sm:$0xf]
  %v434 = vld [vmem:[%s1 + $0x62c] sm:$0xf]
  %v435 = vld [vmem:[%s1 + $0x630] sm:$0xf]
  %v436 = vld [vmem:[%s1 + $0x634] sm:$0xf]
  %v437 = vld [vmem:[%s1 + $0x638] sm:$0xf]
  %v438 = vld [vmem:[%s1 + $0x63c] sm:$0xf]
  %v439 = vld [vmem:[%s1 + $0x640] sm:$0xf]
  %v440 = vld [vmem:[%s1 + $0x644] sm:$0xf]
  %v441 = vld [vmem:[%s1 + $0x648] sm:$0xf]
  %v442 = vld [vmem:[%s1 + $0x64c] sm:$0xf]
  %v443 = vld [vmem:[%s1 + $0x650] sm:$0xf]
  %v444 = vld [vmem:[%s1 + $0x654] sm:$0xf]
  %v445 = vld [vmem:[%s1 + $0x658] sm:$0xf]
  %v446 = vld [vmem:[%s1 + $0x65c] sm:$0xf]
  %v447 = vld [vmem:[%s1 + $0x660] sm:$0xf]
  %v448 = vld [vmem:[%s1 + $0x664] sm:$0xf]
  %v449 = vld [vmem:[%s1 + $0x668] sm:$0xf]
  %v450 = vld [vmem:[%s1 + $0x66c] sm:$0xf]
  %v451 = vld [vmem:[%s1 + $0x670] sm:$0xf]
  %v452 = vld [vmem:[%s1 + $0x674] sm:$0xf]
  %v453 = vld [vmem:[%s1 + $0x678] sm:$0xf]
  %v454 = vld [vmem:[%s1 + $0x67c] sm:$0xf]
  %v455 = vld [vmem:[%s1 + $0x680] sm:$0xf]
  %v456 = vld [vmem:[%s1 + $0x684] sm:$0xf]
  %v457 = vld [vmem:[%s1 + $0x688] sm:$0xf]
  %v458 = vld [vmem:[%s1 + $0x68c] sm:$0xf]
  %v459 = vld [vmem:[%s1 + $0x690] sm:$0xf]
  %v460 = vld [vmem:[%s1 + $0x694] sm:$0xf]
  %v461 = vld [vmem:[%s1 + $0x698] sm:$0xf]
  %v462 = vld [vmem:[%s1 + $0x69c] sm:$0xf]
  %v463 = vld [vmem:[%s1 + $0x6a0] sm:$0xf]
  %v464 = vld [vmem:[%s1 + $0x6a4] sm:$0xf]
  %v465 = vld [vmem:[%s1 + $0x6a8] sm:$0xf]
  %v466 = vld [vmem:[%s1 + $0x6ac] sm:$0xf]
  %v467 = vld [vmem:[%s1 + $0x6b0] sm:$0xf]
  %v468 = vld [vmem:[%s1 + $0x6b4] sm:$0xf]
  %v469 = vld [vmem:[%s1 + $0x6b8] sm:$0xf]
  %v470 = vld [vmem:[%s1 + $0x6bc] sm:$0xf]
  %v471 = vld [vmem:[%s1 + $0x6c0] sm:$0xf]
  %v472 = vld [vmem:[%s1 + $0x6c4] sm:$0xf]
  %v473 = vld [vmem:[%s1 + $0x6c8] sm:$0xf]
  %v474 = vld [vmem:[%s1 + $0x6cc] sm:$0xf]
  %v475 = vld [vmem:[%s1 + $0x6d0] sm:$0xf]
  %v476 = vld [vmem:[%s1 + $0x6d4] sm:$0xf]
  %v477 = vld [vmem:[%s1 + $0x6d8] sm:$0xf]
  %v478 = vld [vmem:[%s1 + $0x6dc] sm:$0xf]
  %v479 = vld [vmem:[%s1 + $0x6e0] sm:$0xf]
  %v480 = vld [vmem:[%s1 + $0x6e4] sm:$0xf]
  %v481 = vld [vmem:[%s1 + $0x6e8] sm:$0xf]
  %v482 = vld [vmem:[%s1 + $0x6ec] sm:$0xf]
  %v483 = vld [vmem:[%s1 + $0x6f0] sm:$0xf]
  %v484 = vld [vmem:[%s1 + $0x6f4] sm:$0xf]
  %v485 = vld [vmem:[%s1 + $0x6f8] sm:$0xf]
  %v486 = vld [vmem:[%s1 + $0x6fc] sm:$0xf]
  %v487 = vld [vmem:[%s1 + $0x700] sm:$0xf]
  %v488 = vld [vmem:[%s1 + $0x704] sm:$0xf]
  %v489 = vld [vmem:[%s1 + $0x708] sm:$0xf]
  %v490 = vld [vmem:[%s1 + $0x70c] sm:$0xf]
  %v491 = vld [vmem:[%s1 + $0x710] sm:$0xf]
  %v492 = vld [vmem:[%s1 + $0x714] sm:$0xf]
  %v493 = vld [vmem:[%s1 + $0x718] sm:$0xf]
  %v494 = vld [vmem:[%s1 + $0x71c] sm:$0xf]
  %v495 = vld [vmem:[%s1 + $0x720] sm:$0xf]
  %v496 = vld [vmem:[%s1 + $0x724] sm:$0xf]
  %v497 = vld [vmem:[%s1 + $0x728] sm:$0xf]
  %v498 = vld [vmem:[%s1 + $0x72c] sm:$0xf]
  %v499 = vld [vmem:[%s1 + $0x730] sm:$0xf]
  %v500 = vld [vmem:[%s1 + $0x734] sm:$0xf]
  %v501 = vld [vmem:[%s1 + $0x738] sm:$0xf]
  %v502 = vld [vmem:[%s1 + $0x73c] sm:$0xf]
  %v503 = vld [vmem:[%s1 + $0x740] sm:$0xf]
  %v504 = vld [vmem:[%s1 + $0x744] sm:$0xf]
  %v505 = vld [vmem:[%s1 + $0x748] sm:$0xf]
  %v506 = vld [vmem:[%s1 + $0x74c] sm:$0xf]
  %v507 = vld [vmem:[%s1 + $0x750] sm:$0xf]
  %v508 = vld [vmem:[%s1 + $0x754] sm:$0xf]
  %v509 = vld [vmem:[%s1 + $0x758] sm:$0xf]
  %v510 = vld [vmem:[%s1 + $0x75c] sm:$0xf]
  %v511 = vld [vmem:[%s1 + $0x760] sm:$0xf]
  %v512 = vld [vmem:[%s1 + $0x764] sm:$0xf]
  %v513 = vld [vmem:[%s1 + $0x768] sm:$0xf]
  %v514 = vld [vmem:[%s1 + $0x76c] sm:$0xf]
  %v515 = vld [vmem:[%s1 + $0x770] sm:$0xf]
  %v516 = vld [vmem:[%s1 + $0x774] sm:$0xf]
  %v517 = vld [vmem:[%s1 + $0x778] sm:$0xf]
  %v518 = vld [vmem:[%s1 + $0x77c] sm:$0xf]
  %v519 = vld [vmem:[%s1 + $0x780] sm:$0xf]
  %v520 = vld [vmem:[%s1 + $0x784] sm:$0xf]
  %v521 = vld [vmem:[%s1 + $0x788] sm:$0xf]
  %v522 = vld [vmem:[%s1 + $0x78c] sm:$0xf]
  %v523 = vld [vmem:[%s1 + $0x790] sm:$0xf]
  %v524 = vld [vmem:[%s1 + $0x794] sm:$0xf]
  %v525 = vld [vmem:[%s1 + $0x798] sm:$0xf]
  %v526 = vld [vmem:[%s1 + $0x79c] sm:$0xf]
  %v527 = vld [vmem:[%s1 + $0x7a0] sm:$0xf]
  %v528 = vld [vmem:[%s1 + $0x7a4] sm:$0xf]
  %v529 = vld [vmem:[%s1 + $0x7a8] sm:$0xf]
  %v530 = vld [vmem:[%s1 + $0x7ac] sm:$0xf]
  %v531 = vld [vmem:[%s1 + $0x7b0] sm:$0xf]
  %v532 = vld [vmem:[%s1 + $0x7b4] sm:$0xf]
  %v533 = vld [vmem:[%s1 + $0x7b8] sm:$0xf]
  %v534 = vld [vmem:[%s1 + $0x7bc] sm:$0xf]
  %v535 = vld [vmem:[%s1 + $0x7c0] sm:$0xf]
  %v536 = vld [vmem:[%s1 + $0x7c4] sm:$0xf]
  %v537 = vld [vmem:[%s1 + $0x7c8] sm:$0xf]
  %v538 = vld [vmem:[%s1 + $0x7cc] sm:$0xf]
  %v539 = vld [vmem:[%s1 + $0x7d0] sm:$0xf]
  %v540 = vld [vmem:[%s1 + $0x7d4] sm:$0xf]
  %v541 = vld [vmem:[%s1 + $0x7d8] sm:$0xf]
  %v542 = vld [vmem:[%s1 + $0x7dc] sm:$0xf]
  %v543 = vld [vmem:[%s1 + $0x7e0] sm:$0xf]
  %v544 = vld [vmem:[%s1 + $0x7e4] sm:$0xf]
  %v545 = vld [vmem:[%s1 + $0x7e8] sm:$0xf]
  %v546 = vld [vmem:[%s1 + $0x7ec] sm:$0xf]
  %v547 = vld [vmem:[%s1 + $0x7f0] sm:$0xf]
  %v548 = vld [vmem:[%s1 + $0x7f4] sm:$0xf]
  %v549 = vld [vmem:[%s1 + $0x7f8] sm:$0xf]
  %v550 = vld [vmem:[%s1 + $0x7fc] sm:$0xf]
  %v551 = vld [vmem:[%s1 + $0x800] sm:$0xf]
  %v552 = vld [vmem:[%s1 + $0x804] sm:$0xf]
  %v553 = vld [vmem:[%s1 + $0x808] sm:$0xf]
  %v554 = vld [vmem:[%s1 + $0x80c] sm:$0xf]
  %v555 = vld [vmem:[%s1 + $0x810] sm:$0xf]
  %v556 = vld [vmem:[%s1 + $0x814] sm:$0xf]
  %v557 = vld [vmem:[%s1 + $0x818] sm:$0xf]
  %v558 = vld [vmem:[%s1 + $0x81c] sm:$0xf]
  %v559 = vld [vmem:[%s1 + $0x820] sm:$0xf]
  %v560 = vld [vmem:[%s1 + $0x824] sm:$0xf]
  %v561 = vld [vmem:[%s1 + $0x828] sm:$0xf]
  %v562 = vld [vmem:[%s1 + $0x82c] sm:$0xf]
  %v563 = vld [vmem:[%s1 + $0x830] sm:$0xf]
  %v564 = vld [vmem:[%s1 + $0x834] sm:$0xf]
  %v565 = vld [vmem:[%s1 + $0x838] sm:$0xf]
  %v566 = vld [vmem:[%s1 + $0x83c] sm:$0xf]
  %v567 = vld [vmem:[%s1 + $0x840] sm:$0xf]
  %v568 = vld [vmem:[%s1 + $0x844] sm:$0xf]
  %v569 = vld [vmem:[%s1 + $0x848] sm:$0xf]
  %v570 = vld [vmem:[%s1 + $0x84c] sm:$0xf]
  %v571 = vld [vmem:[%s1 + $0x850] sm:$0xf]
  %v572 = vld [vmem:[%s1 + $0x854] sm:$0xf]
  %v573 = vld [vmem:[%s1 + $0x858] sm:$0xf]
  %v574 = vld [vmem:[%s1 + $0x85c] sm:$0xf]
  %v575 = vld [vmem:[%s1 + $0x860] sm:$0xf]
  %v576 = vld [vmem:[%s1 + $0x864] sm:$0xf]
  %v577 = vld [vmem:[%s1 + $0x868] sm:$0xf]
  %v578 = vld [vmem:[%s1 + $0x86c] sm:$0xf]
  %v579 = vld [vmem:[%s1 + $0x870] sm:$0xf]
  %v580 = vld [vmem:[%s1 + $0x874] sm:$0xf]
  %v581 = vld [vmem:[%s1 + $0x878] sm:$0xf]
  %v582 = vld [vmem:[%s1 + $0x87c] sm:$0xf]
  %v583 = vld [vmem:[%s1 + $0x880] sm:$0xf]
  %v584 = vld [vmem:[%s1 + $0x884] sm:$0xf]
  %v585 = vld [vmem:[%s1 + $0x888] sm:$0xf]
  %v586 = vld [vmem:[%s1 + $0x88c] sm:$0xf]
  %v587 = vld [vmem:[%s1 + $0x890] sm:$0xf]
  %v588 = vld [vmem:[%s1 + $0x894] sm:$0xf]
  %v589 = vld [vmem:[%s1 + $0x898] sm:$0xf]
  %v590 = vld [vmem:[%s1 + $0x89c] sm:$0xf]
  %v591 = vld [vmem:[%s1 + $0x8a0] sm:$0xf]
  %v592 = vld [vmem:[%s1 + $0x8a4] sm:$0xf]
  %v593 = vld [vmem:[%s1 + $0x8a8] sm:$0xf]
  %v594 = vld [vmem:[%s1 + $0x8ac] sm:$0xf]
  %v595 = vld [vmem:[%s1 + $0x8b0] sm:$0xf]
  %v596 = vld [vmem:[%s1 + $0x8b4] sm:$0xf]
  %v597 = vld [vmem:[%s1 + $0x8b8] sm:$0xf]
  %v598 = vld [vmem:[%s1 + $0x8bc] sm:$0xf]
  %v599 = vld [vmem:[%s1 + $0x8c0] sm:$0xf]
  %v600 = vld [vmem:[%s1 + $0x8c4] sm:$0xf]
  %v601 = vld [vmem:[%s1 + $0x8c8] sm:$0xf]
  %v602 = vld [vmem:[%s1 + $0x8cc] sm:$0xf]
  %v603 = vld [vmem:[%s1 + $0x8d0] sm:$0xf]
  %v604 = vld [vmem:[%s1 + $0x8d4] sm:$0xf]
  %v605 = vld [vmem:[%s1 + $0x8d8] sm:$0xf]
  %v606 = vld [vmem:[%s1 + $0x8dc] sm:$0xf]
  %v607 = vld [vmem:[%s1 + $0x8e0] sm:$0xf]
  %v608 = vld [vmem:[%s1 + $0x8e4] sm:$0xf]
  %v609 = vld [vmem:[%s1 + $0x8e8] sm:$0xf]
  %v610 = vld [vmem:[%s1 + $0x8ec] sm:$0xf]
  %v611 = vld [vmem:[%s1 + $0x8f0] sm:$0xf]
  %v612 = vld [vmem:[%s1 + $0x8f4] sm:$0xf]
  %v613 = vld [vmem:[%s1 + $0x8f8] sm:$0xf]
  %v614 = vld [vmem:[%s1 + $0x8fc] sm:$0xf]
  %v633 = vunpack.c.l.b16 %v21
  %v634 = vunpack.c.h.b16 %v21
  %v635 = vunpack.c.l.b16 %v22
  %v636 = vunpack.c.h.b16 %v22
  %v637 = vunpack.c.l.b16 %v23
  %v638 = vunpack.c.h.b16 %v23
  %v639 = vunpack.c.l.b16 %v24
  %v640 = vunpack.c.h.b16 %v24
  %v641 = vunpack.c.l.b16 %v25
  %v642 = vunpack.c.h.b16 %v25
  %v643 = vunpack.c.l.b16 %v26
  %v644 = vunpack.c.h.b16 %v26
  %v645 = vunpack.c.l.b16 %v27
  %v646 = vunpack.c.h.b16 %v27
  %v647 = vunpack.c.l.b16 %v28
  %v648 = vunpack.c.h.b16 %v28
  %v649 = vunpack.c.l.b16 %v29
  %v650 = vunpack.c.h.b16 %v29
  %v651 = vunpack.c.l.b16 %v30
  %v652 = vunpack.c.h.b16 %v30
  %v653 = vunpack.c.l.b16 %v31
  %v654 = vunpack.c.h.b16 %v31
  %v655 = vunpack.c.l.b16 %v32
  %v656 = vunpack.c.h.b16 %v32
  %v657 = vunpack.c.l.b16 %v33
  %v658 = vunpack.c.h.b16 %v33
  %v659 = vunpack.c.l.b16 %v34
  %v660 = vunpack.c.h.b16 %v34
  %v661 = vunpack.c.l.b16 %v35
  %v662 = vunpack.c.h.b16 %v35
  %v663 = vunpack.c.l.b16 %v36
  %v664 = vunpack.c.h.b16 %v36
  %v665 = vunpack.c.l.b16 %v37
  %v666 = vunpack.c.h.b16 %v37
  %v667 = vunpack.c.l.b16 %v38
  %v668 = vunpack.c.h.b16 %v38
  %v669 = vpack.c.b16 %v633, %v633
  %v670 = vpack.c.b16 %v634, %v634
  %v671 = vpack.c.b16 %v635, %v635
  %v672 = vpack.c.b16 %v636, %v636
  %v673 = vpack.c.b16 %v637, %v637
  %v674 = vpack.c.b16 %v638, %v638
  %v675 = vpack.c.b16 %v639, %v639
  %v676 = vpack.c.b16 %v640, %v640
  %v677 = vpack.c.b16 %v641, %v641
  %v678 = vpack.c.b16 %v642, %v642
  %v679 = vpack.c.b16 %v643, %v643
  %v680 = vpack.c.b16 %v644, %v644
  %v681 = vpack.c.b16 %v645, %v645
  %v682 = vpack.c.b16 %v646, %v646
  %v683 = vpack.c.b16 %v647, %v647
  %v684 = vpack.c.b16 %v648, %v648
  %v685 = vpack.c.b16 %v649, %v649
  %v686 = vpack.c.b16 %v650, %v650
  %v687 = vpack.c.b16 %v651, %v651
  %v688 = vpack.c.b16 %v652, %v652
  %v689 = vpack.c.b16 %v653, %v653
  %v690 = vpack.c.b16 %v654, %v654
  %v691 = vpack.c.b16 %v655, %v655
  %v692 = vpack.c.b16 %v656, %v656
  %v693 = vpack.c.b16 %v657, %v657
  %v694 = vpack.c.b16 %v658, %v658
  %v695 = vpack.c.b16 %v659, %v659
  %v696 = vpack.c.b16 %v660, %v660
  %v697 = vpack.c.b16 %v661, %v661
  %v698 = vpack.c.b16 %v662, %v662
  %v699 = vpack.c.b16 %v663, %v663
  %v700 = vpack.c.b16 %v664, %v664
  %v701 = vpack.c.b16 %v665, %v665
  %v702 = vpack.c.b16 %v666, %v666
  %v703 = vpack.c.b16 %v667, %v667
  %v704 = vpack.c.b16 %v668, %v668
  %v1317 = vunpack.c.l.b16 %v39
  %v1318 = vunpack.c.l.b16 %v40
  %v1319 = vunpack.c.l.b16 %v41
  %v1320 = vunpack.c.l.b16 %v42
  %v1321 = vunpack.c.l.b16 %v43
  %v1322 = vunpack.c.l.b16 %v44
  %v1323 = vunpack.c.l.b16 %v45
  %v1324 = vunpack.c.l.b16 %v46
  %v1325 = vunpack.c.l.b16 %v47
  %v1326 = vunpack.c.l.b16 %v48
  %v1327 = vunpack.c.l.b16 %v49
  %v1328 = vunpack.c.l.b16 %v50
  %v1329 = vunpack.c.l.b16 %v51
  %v1330 = vunpack.c.l.b16 %v52
  %v1331 = vunpack.c.l.b16 %v53
  %v1332 = vunpack.c.l.b16 %v54
  %v1333 = vunpack.c.l.b16 %v55
  %v1334 = vunpack.c.l.b16 %v56
  %v1335 = vunpack.c.l.b16 %v57
  %v1336 = vunpack.c.l.b16 %v58
  %v1337 = vunpack.c.l.b16 %v59
  %v1338 = vunpack.c.l.b16 %v60
  %v1339 = vunpack.c.l.b16 %v61
  %v1340 = vunpack.c.l.b16 %v62
  %v1341 = vunpack.c.l.b16 %v63
  %v1342 = vunpack.c.l.b16 %v64
  %v1343 = vunpack.c.l.b16 %v65
  %v1344 = vunpack.c.l.b16 %v66
  %v1345 = vunpack.c.l.b16 %v67
  %v1346 = vunpack.c.l.b16 %v68
  %v1347 = vunpack.c.l.b16 %v69
  %v1348 = vunpack.c.l.b16 %v70
  %v1349 = vunpack.c.l.b16 %v71
  %v1350 = vunpack.c.l.b16 %v72
  %v1351 = vunpack.c.l.b16 %v73
  %v1352 = vunpack.c.l.b16 %v74
  %v1353 = vunpack.c.l.b16 %v75
  %v1354 = vunpack.c.l.b16 %v76
  %v1355 = vunpack.c.l.b16 %v77
  %v1356 = vunpack.c.l.b16 %v78
  %v1357 = vunpack.c.l.b16 %v79
  %v1358 = vunpack.c.l.b16 %v80
  %v1359 = vunpack.c.l.b16 %v81
  %v1360 = vunpack.c.l.b16 %v82
  %v1361 = vunpack.c.l.b16 %v83
  %v1362 = vunpack.c.l.b16 %v84
  %v1363 = vunpack.c.l.b16 %v85
  %v1364 = vunpack.c.l.b16 %v86
  %v1365 = vunpack.c.l.b16 %v87
  %v1366 = vunpack.c.l.b16 %v88
  %v1367 = vunpack.c.l.b16 %v89
  %v1368 = vunpack.c.l.b16 %v90
  %v1369 = vunpack.c.l.b16 %v91
  %v1370 = vunpack.c.l.b16 %v92
  %v1371 = vunpack.c.l.b16 %v93
  %v1372 = vunpack.c.l.b16 %v94
  %v1373 = vunpack.c.l.b16 %v95
  %v1374 = vunpack.c.l.b16 %v96
  %v1375 = vunpack.c.l.b16 %v97
  %v1376 = vunpack.c.l.b16 %v98
  %v1377 = vunpack.c.l.b16 %v99
  %v1378 = vunpack.c.l.b16 %v100
  %v1379 = vunpack.c.l.b16 %v101
  %v1380 = vunpack.c.l.b16 %v102
  %v1381 = vunpack.c.l.b16 %v103
  %v1382 = vunpack.c.l.b16 %v104
  %v1383 = vunpack.c.l.b16 %v105
  %v1384 = vunpack.c.l.b16 %v106
  %v1385 = vunpack.c.l.b16 %v107
  %v1386 = vunpack.c.l.b16 %v108
  %v1387 = vunpack.c.l.b16 %v109
  %v1388 = vunpack.c.l.b16 %v110
  %v1389 = vunpack.c.l.b16 %v111
  %v1390 = vunpack.c.l.b16 %v112
  %v1391 = vunpack.c.l.b16 %v113
  %v1392 = vunpack.c.l.b16 %v114
  %v1393 = vunpack.c.l.b16 %v115
  %v1394 = vunpack.c.l.b16 %v116
  %v1395 = vunpack.c.l.b16 %v117
  %v1396 = vunpack.c.l.b16 %v118
  %v1397 = vunpack.c.l.b16 %v119
  %v1398 = vunpack.c.l.b16 %v120
  %v1399 = vunpack.c.l.b16 %v121
  %v1400 = vunpack.c.l.b16 %v122
  %v1401 = vunpack.c.l.b16 %v123
  %v1402 = vunpack.c.l.b16 %v124
  %v1403 = vunpack.c.l.b16 %v125
  %v1404 = vunpack.c.l.b16 %v126
  %v1405 = vunpack.c.l.b16 %v127
  %v1406 = vunpack.c.l.b16 %v128
  %v1407 = vunpack.c.l.b16 %v129
  %v1408 = vunpack.c.l.b16 %v130
  %v1409 = vunpack.c.l.b16 %v131
  %v1410 = vunpack.c.l.b16 %v132
  %v1411 = vunpack.c.l.b16 %v133
  %v1412 = vunpack.c.l.b16 %v134
  %v1413 = vunpack.c.l.b16 %v135
  %v1414 = vunpack.c.l.b16 %v136
  %v1415 = vunpack.c.l.b16 %v137
  %v1416 = vunpack.c.l.b16 %v138
  %v1417 = vunpack.c.l.b16 %v139
  %v1418 = vunpack.c.l.b16 %v140
  %v1419 = vunpack.c.l.b16 %v141
  %v1420 = vunpack.c.l.b16 %v142
  %v1421 = vunpack.c.l.b16 %v143
  %v1422 = vunpack.c.l.b16 %v144
  %v1423 = vunpack.c.l.b16 %v145
  %v1424 = vunpack.c.l.b16 %v146
  %v1425 = vunpack.c.l.b16 %v147
  %v1426 = vunpack.c.l.b16 %v148
  %v1427 = vunpack.c.l.b16 %v149
  %v1428 = vunpack.c.l.b16 %v150
  %v1429 = vunpack.c.l.b16 %v151
  %v1430 = vunpack.c.l.b16 %v152
  %v1431 = vunpack.c.l.b16 %v153
  %v1432 = vunpack.c.l.b16 %v154
  %v1433 = vunpack.c.l.b16 %v155
  %v1434 = vunpack.c.l.b16 %v156
  %v1435 = vunpack.c.l.b16 %v157
  %v1436 = vunpack.c.l.b16 %v158
  %v1437 = vunpack.c.l.b16 %v159
  %v1438 = vunpack.c.l.b16 %v160
  %v1439 = vunpack.c.l.b16 %v161
  %v1440 = vunpack.c.l.b16 %v162
  %v1441 = vunpack.c.l.b16 %v163
  %v1442 = vunpack.c.l.b16 %v164
  %v1443 = vunpack.c.l.b16 %v165
  %v1444 = vunpack.c.l.b16 %v166
  %v1445 = vunpack.c.l.b16 %v167
  %v1446 = vunpack.c.l.b16 %v168
  %v1447 = vunpack.c.l.b16 %v169
  %v1448 = vunpack.c.l.b16 %v170
  %v1449 = vunpack.c.l.b16 %v171
  %v1450 = vunpack.c.l.b16 %v172
  %v1451 = vunpack.c.l.b16 %v173
  %v1452 = vunpack.c.l.b16 %v174
  %v1453 = vunpack.c.l.b16 %v175
  %v1454 = vunpack.c.l.b16 %v176
  %v1455 = vunpack.c.l.b16 %v177
  %v1456 = vunpack.c.l.b16 %v178
  %v1457 = vunpack.c.l.b16 %v179
  %v1458 = vunpack.c.l.b16 %v180
  %v1459 = vunpack.c.l.b16 %v181
  %v1460 = vunpack.c.l.b16 %v182
  %v1461 = vunpack.c.l.b16 %v183
  %v1462 = vunpack.c.l.b16 %v184
  %v1463 = vunpack.c.l.b16 %v185
  %v1464 = vunpack.c.l.b16 %v186
  %v1465 = vunpack.c.l.b16 %v187
  %v1466 = vunpack.c.l.b16 %v188
  %v1467 = vunpack.c.l.b16 %v189
  %v1468 = vunpack.c.l.b16 %v190
  %v1469 = vunpack.c.l.b16 %v191
  %v1470 = vunpack.c.l.b16 %v192
  %v1471 = vunpack.c.l.b16 %v193
  %v1472 = vunpack.c.l.b16 %v194
  %v1473 = vunpack.c.l.b16 %v195
  %v1474 = vunpack.c.l.b16 %v196
  %v1475 = vunpack.c.l.b16 %v197
  %v1476 = vunpack.c.l.b16 %v198
  %v1477 = vunpack.c.l.b16 %v199
  %v1478 = vunpack.c.l.b16 %v200
  %v1479 = vunpack.c.l.b16 %v201
  %v1480 = vunpack.c.l.b16 %v202
  %v1481 = vunpack.c.l.b16 %v203
  %v1482 = vunpack.c.l.b16 %v204
  %v1483 = vunpack.c.l.b16 %v205
  %v1484 = vunpack.c.l.b16 %v206
  %v1485 = vunpack.c.l.b16 %v207
  %v1486 = vunpack.c.l.b16 %v208
  %v1487 = vunpack.c.l.b16 %v209
  %v1488 = vunpack.c.l.b16 %v210
  %v1489 = vunpack.c.l.b16 %v211
  %v1490 = vunpack.c.l.b16 %v212
  %v1491 = vunpack.c.l.b16 %v213
  %v1492 = vunpack.c.l.b16 %v214
  %v1493 = vunpack.c.l.b16 %v215
  %v1494 = vunpack.c.l.b16 %v216
  %v1495 = vunpack.c.l.b16 %v217
  %v1496 = vunpack.c.l.b16 %v218
  %v1497 = vunpack.c.l.b16 %v219
  %v1498 = vunpack.c.l.b16 %v220
  %v1499 = vunpack.c.l.b16 %v221
  %v1500 = vunpack.c.l.b16 %v222
  %v1501 = vunpack.c.l.b16 %v223
  %v1502 = vunpack.c.l.b16 %v224
  %v1503 = vunpack.c.l.b16 %v225
  %v1504 = vunpack.c.l.b16 %v226
  %v1505 = vunpack.c.l.b16 %v227
  %v1506 = vunpack.c.l.b16 %v228
  %v1507 = vunpack.c.l.b16 %v229
  %v1508 = vunpack.c.l.b16 %v230
  %v1509 = vunpack.c.l.b16 %v231
  %v1510 = vunpack.c.l.b16 %v232
  %v1511 = vunpack.c.l.b16 %v233
  %v1512 = vunpack.c.l.b16 %v234
  %v1513 = vunpack.c.l.b16 %v235
  %v1514 = vunpack.c.l.b16 %v236
  %v1515 = vunpack.c.l.b16 %v237
  %v1516 = vunpack.c.l.b16 %v238
  %v1517 = vunpack.c.l.b16 %v239
  %v1518 = vunpack.c.l.b16 %v240
  %v1519 = vunpack.c.l.b16 %v241
  %v1520 = vunpack.c.l.b16 %v242
  %v1521 = vunpack.c.l.b16 %v243
  %v1522 = vunpack.c.l.b16 %v244
  %v1523 = vunpack.c.l.b16 %v245
  %v1524 = vunpack.c.l.b16 %v246
  %v1525 = vunpack.c.l.b16 %v247
  %v1526 = vunpack.c.l.b16 %v248
  %v1527 = vunpack.c.l.b16 %v249
  %v1528 = vunpack.c.l.b16 %v250
  %v1529 = vunpack.c.l.b16 %v251
  %v1530 = vunpack.c.l.b16 %v252
  %v1531 = vunpack.c.l.b16 %v253
  %v1532 = vunpack.c.l.b16 %v254
  %v1533 = vunpack.c.l.b16 %v255
  %v1534 = vunpack.c.l.b16 %v256
  %v1535 = vunpack.c.l.b16 %v257
  %v1536 = vunpack.c.l.b16 %v258
  %v1537 = vunpack.c.l.b16 %v259
  %v1538 = vunpack.c.l.b16 %v260
  %v1539 = vunpack.c.l.b16 %v261
  %v1540 = vunpack.c.l.b16 %v262
  %v1541 = vunpack.c.l.b16 %v263
  %v1542 = vunpack.c.l.b16 %v264
  %v1543 = vunpack.c.l.b16 %v265
  %v1544 = vunpack.c.l.b16 %v266
  %v1545 = vunpack.c.l.b16 %v267
  %v1546 = vunpack.c.l.b16 %v268
  %v1547 = vunpack.c.l.b16 %v269
  %v1548 = vunpack.c.l.b16 %v270
  %v1549 = vunpack.c.l.b16 %v271
  %v1550 = vunpack.c.l.b16 %v272
  %v1551 = vunpack.c.l.b16 %v273
  %v1552 = vunpack.c.l.b16 %v274
  %v1553 = vunpack.c.l.b16 %v275
  %v1554 = vunpack.c.l.b16 %v276
  %v1555 = vunpack.c.l.b16 %v277
  %v1556 = vunpack.c.l.b16 %v278
  %v1557 = vunpack.c.l.b16 %v279
  %v1558 = vunpack.c.l.b16 %v280
  %v1559 = vunpack.c.l.b16 %v281
  %v1560 = vunpack.c.l.b16 %v282
  %v1561 = vunpack.c.l.b16 %v283
  %v1562 = vunpack.c.l.b16 %v284
  %v1563 = vunpack.c.l.b16 %v285
  %v1564 = vunpack.c.l.b16 %v286
  %v1565 = vunpack.c.l.b16 %v287
  %v1566 = vunpack.c.l.b16 %v288
  %v1567 = vunpack.c.l.b16 %v289
  %v1568 = vunpack.c.l.b16 %v290
  %v1569 = vunpack.c.l.b16 %v291
  %v1570 = vunpack.c.l.b16 %v292
  %v1571 = vunpack.c.l.b16 %v293
  %v1572 = vunpack.c.l.b16 %v294
  %v1573 = vunpack.c.l.b16 %v295
  %v1574 = vunpack.c.l.b16 %v296
  %v1575 = vunpack.c.l.b16 %v297
  %v1576 = vunpack.c.l.b16 %v298
  %v1577 = vunpack.c.l.b16 %v299
  %v1578 = vunpack.c.l.b16 %v300
  %v1579 = vunpack.c.l.b16 %v301
  %v1580 = vunpack.c.l.b16 %v302
  %v1581 = vunpack.c.l.b16 %v303
  %v1582 = vunpack.c.l.b16 %v304
  %v1583 = vunpack.c.l.b16 %v305
  %v1584 = vunpack.c.l.b16 %v306
  %v1585 = vunpack.c.l.b16 %v307
  %v1586 = vunpack.c.l.b16 %v308
  %v1587 = vunpack.c.l.b16 %v309
  %v1588 = vunpack.c.l.b16 %v310
  %v1589 = vunpack.c.l.b16 %v311
  %v1590 = vunpack.c.l.b16 %v312
  %v1591 = vunpack.c.l.b16 %v313
  %v1592 = vunpack.c.l.b16 %v314
  %v1593 = vunpack.c.l.b16 %v315
  %v1594 = vunpack.c.l.b16 %v316
  %v1595 = vunpack.c.l.b16 %v317
  %v1596 = vunpack.c.l.b16 %v318
  %v1597 = vunpack.c.l.b16 %v319
  %v1598 = vunpack.c.l.b16 %v320
  %v1599 = vunpack.c.l.b16 %v321
  %v1600 = vunpack.c.l.b16 %v322
  %v1601 = vunpack.c.l.b16 %v323
  %v1602 = vunpack.c.l.b16 %v324
  %v1603 = vunpack.c.l.b16 %v325
  %v1604 = vunpack.c.l.b16 %v326
  %v1605 = vunpack.c.l.b16 %v327
  %v1606 = vunpack.c.l.b16 %v328
  %v1607 = vunpack.c.l.b16 %v329
  %v1608 = vunpack.c.l.b16 %v330
  %v1609 = vunpack.c.l.b16 %v331
  %v1610 = vunpack.c.l.b16 %v332
  %v1611 = vunpack.c.l.b16 %v333
  %v1612 = vunpack.c.l.b16 %v334
  %v1613 = vunpack.c.l.b16 %v335
  %v1614 = vunpack.c.l.b16 %v336
  %v1615 = vunpack.c.l.b16 %v337
  %v1616 = vunpack.c.l.b16 %v338
  %v1617 = vunpack.c.l.b16 %v339
  %v1618 = vunpack.c.l.b16 %v340
  %v1619 = vunpack.c.l.b16 %v341
  %v1620 = vunpack.c.l.b16 %v342
  %v1621 = vunpack.c.l.b16 %v343
  %v1622 = vunpack.c.l.b16 %v344
  %v1623 = vunpack.c.l.b16 %v345
  %v1624 = vunpack.c.l.b16 %v346
  %v1625 = vunpack.c.l.b16 %v347
  %v1626 = vunpack.c.l.b16 %v348
  %v1627 = vunpack.c.l.b16 %v349
  %v1628 = vunpack.c.l.b16 %v350
  %v1629 = vunpack.c.l.b16 %v351
  %v1630 = vunpack.c.l.b16 %v352
  %v1631 = vunpack.c.l.b16 %v353
  %v1632 = vunpack.c.l.b16 %v354
  %v1633 = vunpack.c.l.b16 %v355
  %v1634 = vunpack.c.l.b16 %v356
  %v1635 = vunpack.c.l.b16 %v357
  %v1636 = vunpack.c.l.b16 %v358
  %v1637 = vunpack.c.l.b16 %v359
  %v1638 = vunpack.c.l.b16 %v360
  %v1639 = vunpack.c.l.b16 %v361
  %v1640 = vunpack.c.l.b16 %v362
  %v1641 = vunpack.c.l.b16 %v363
  %v1642 = vunpack.c.l.b16 %v364
  %v1643 = vunpack.c.l.b16 %v365
  %v1644 = vunpack.c.l.b16 %v366
  %v1645 = vunpack.c.l.b16 %v367
  %v1646 = vunpack.c.l.b16 %v368
  %v1647 = vunpack.c.l.b16 %v369
  %v1648 = vunpack.c.l.b16 %v370
  %v1649 = vunpack.c.l.b16 %v371
  %v1650 = vunpack.c.l.b16 %v372
  %v1651 = vunpack.c.l.b16 %v373
  %v1652 = vunpack.c.l.b16 %v374
  %v1653 = vunpack.c.l.b16 %v375
  %v1654 = vunpack.c.l.b16 %v376
  %v1655 = vunpack.c.l.b16 %v377
  %v1656 = vunpack.c.l.b16 %v378
  %v1657 = vunpack.c.l.b16 %v379
  %v1658 = vunpack.c.l.b16 %v380
  %v1659 = vunpack.c.l.b16 %v381
  %v1660 = vunpack.c.l.b16 %v382
  %v1661 = vunpack.c.l.b16 %v383
  %v1662 = vunpack.c.l.b16 %v384
  %v1663 = vunpack.c.l.b16 %v385
  %v1664 = vunpack.c.l.b16 %v386
  %v1665 = vunpack.c.l.b16 %v387
  %v1666 = vunpack.c.l.b16 %v388
  %v1667 = vunpack.c.l.b16 %v389
  %v1668 = vunpack.c.l.b16 %v390
  %v1669 = vunpack.c.l.b16 %v391
  %v1670 = vunpack.c.l.b16 %v392
  %v1671 = vunpack.c.l.b16 %v393
  %v1672 = vunpack.c.l.b16 %v394
  %v1673 = vunpack.c.l.b16 %v395
  %v1674 = vunpack.c.l.b16 %v396
  %v1675 = vunpack.c.l.b16 %v397
  %v1676 = vunpack.c.l.b16 %v398
  %v1677 = vunpack.c.l.b16 %v399
  %v1678 = vunpack.c.l.b16 %v400
  %v1679 = vunpack.c.l.b16 %v401
  %v1680 = vunpack.c.l.b16 %v402
  %v1681 = vunpack.c.l.b16 %v403
  %v1682 = vunpack.c.l.b16 %v404
  %v1683 = vunpack.c.l.b16 %v405
  %v1684 = vunpack.c.l.b16 %v406
  %v1685 = vunpack.c.l.b16 %v407
  %v1686 = vunpack.c.l.b16 %v408
  %v1687 = vunpack.c.l.b16 %v409
  %v1688 = vunpack.c.l.b16 %v410
  %v1689 = vunpack.c.l.b16 %v411
  %v1690 = vunpack.c.l.b16 %v412
  %v1691 = vunpack.c.l.b16 %v413
  %v1692 = vunpack.c.l.b16 %v414
  %v1693 = vunpack.c.l.b16 %v415
  %v1694 = vunpack.c.l.b16 %v416
  %v1695 = vunpack.c.l.b16 %v417
  %v1696 = vunpack.c.l.b16 %v418
  %v1697 = vunpack.c.l.b16 %v419
  %v1698 = vunpack.c.l.b16 %v420
  %v1699 = vunpack.c.l.b16 %v421
  %v1700 = vunpack.c.l.b16 %v422
  %v1701 = vunpack.c.l.b16 %v423
  %v1702 = vunpack.c.l.b16 %v424
  %v1703 = vunpack.c.l.b16 %v425
  %v1704 = vunpack.c.l.b16 %v426
  %v1705 = vunpack.c.l.b16 %v427
  %v1706 = vunpack.c.l.b16 %v428
  %v1707 = vunpack.c.l.b16 %v429
  %v1708 = vunpack.c.l.b16 %v430
  %v1709 = vunpack.c.l.b16 %v431
  %v1710 = vunpack.c.l.b16 %v432
  %v1711 = vunpack.c.l.b16 %v433
  %v1712 = vunpack.c.l.b16 %v434
  %v1713 = vunpack.c.l.b16 %v435
  %v1714 = vunpack.c.l.b16 %v436
  %v1715 = vunpack.c.l.b16 %v437
  %v1716 = vunpack.c.l.b16 %v438
  %v1717 = vunpack.c.l.b16 %v439
  %v1718 = vunpack.c.l.b16 %v440
  %v1719 = vunpack.c.l.b16 %v441
  %v1720 = vunpack.c.l.b16 %v442
  %v1721 = vunpack.c.l.b16 %v443
  %v1722 = vunpack.c.l.b16 %v444
  %v1723 = vunpack.c.l.b16 %v445
  %v1724 = vunpack.c.l.b16 %v446
  %v1725 = vunpack.c.l.b16 %v447
  %v1726 = vunpack.c.l.b16 %v448
  %v1727 = vunpack.c.l.b16 %v449
  %v1728 = vunpack.c.l.b16 %v450
  %v1729 = vunpack.c.l.b16 %v451
  %v1730 = vunpack.c.l.b16 %v452
  %v1731 = vunpack.c.l.b16 %v453
  %v1732 = vunpack.c.l.b16 %v454
  %v1733 = vunpack.c.l.b16 %v455
  %v1734 = vunpack.c.l.b16 %v456
  %v1735 = vunpack.c.l.b16 %v457
  %v1736 = vunpack.c.l.b16 %v458
  %v1737 = vunpack.c.l.b16 %v459
  %v1738 = vunpack.c.l.b16 %v460
  %v1739 = vunpack.c.l.b16 %v461
  %v1740 = vunpack.c.l.b16 %v462
  %v1741 = vunpack.c.l.b16 %v463
  %v1742 = vunpack.c.l.b16 %v464
  %v1743 = vunpack.c.l.b16 %v465
  %v1744 = vunpack.c.l.b16 %v466
  %v1745 = vunpack.c.l.b16 %v467
  %v1746 = vunpack.c.l.b16 %v468
  %v1747 = vunpack.c.l.b16 %v469
  %v1748 = vunpack.c.l.b16 %v470
  %v1749 = vunpack.c.l.b16 %v471
  %v1750 = vunpack.c.l.b16 %v472
  %v1751 = vunpack.c.l.b16 %v473
  %v1752 = vunpack.c.l.b16 %v474
  %v1753 = vunpack.c.l.b16 %v475
  %v1754 = vunpack.c.l.b16 %v476
  %v1755 = vunpack.c.l.b16 %v477
  %v1756 = vunpack.c.l.b16 %v478
  %v1757 = vunpack.c.l.b16 %v479
  %v1758 = vunpack.c.l.b16 %v480
  %v1759 = vunpack.c.l.b16 %v481
  %v1760 = vunpack.c.l.b16 %v482
  %v1761 = vunpack.c.l.b16 %v483
  %v1762 = vunpack.c.l.b16 %v484
  %v1763 = vunpack.c.l.b16 %v485
  %v1764 = vunpack.c.l.b16 %v486
  %v1765 = vunpack.c.l.b16 %v487
  %v1766 = vunpack.c.l.b16 %v488
  %v1767 = vunpack.c.l.b16 %v489
  %v1768 = vunpack.c.l.b16 %v490
  %v1769 = vunpack.c.l.b16 %v491
  %v1770 = vunpack.c.l.b16 %v492
  %v1771 = vunpack.c.l.b16 %v493
  %v1772 = vunpack.c.l.b16 %v494
  %v1773 = vunpack.c.l.b16 %v495
  %v1774 = vunpack.c.l.b16 %v496
  %v1775 = vunpack.c.l.b16 %v497
  %v1776 = vunpack.c.l.b16 %v498
  %v1777 = vunpack.c.l.b16 %v499
  %v1778 = vunpack.c.l.b16 %v500
  %v1779 = vunpack.c.l.b16 %v501
  %v1780 = vunpack.c.l.b16 %v502
  %v1781 = vunpack.c.l.b16 %v503
  %v1782 = vunpack.c.l.b16 %v504
  %v1783 = vunpack.c.l.b16 %v505
  %v1784 = vunpack.c.l.b16 %v506
  %v1785 = vunpack.c.l.b16 %v507
  %v1786 = vunpack.c.l.b16 %v508
  %v1787 = vunpack.c.l.b16 %v509
  %v1788 = vunpack.c.l.b16 %v510
  %v1789 = vunpack.c.l.b16 %v511
  %v1790 = vunpack.c.l.b16 %v512
  %v1791 = vunpack.c.l.b16 %v513
  %v1792 = vunpack.c.l.b16 %v514
  %v1793 = vunpack.c.l.b16 %v515
  %v1794 = vunpack.c.l.b16 %v516
  %v1795 = vunpack.c.l.b16 %v517
  %v1796 = vunpack.c.l.b16 %v518
  %v1797 = vunpack.c.l.b16 %v519
  %v1798 = vunpack.c.l.b16 %v520
  %v1799 = vunpack.c.l.b16 %v521
  %v1800 = vunpack.c.l.b16 %v522
  %v1801 = vunpack.c.l.b16 %v523
  %v1802 = vunpack.c.l.b16 %v524
  %v1803 = vunpack.c.l.b16 %v525
  %v1804 = vunpack.c.l.b16 %v526
  %v1805 = vunpack.c.l.b16 %v527
  %v1806 = vunpack.c.l.b16 %v528
  %v1807 = vunpack.c.l.b16 %v529
  %v1808 = vunpack.c.l.b16 %v530
  %v1809 = vunpack.c.l.b16 %v531
  %v1810 = vunpack.c.l.b16 %v532
  %v1811 = vunpack.c.l.b16 %v533
  %v1812 = vunpack.c.l.b16 %v534
  %v1813 = vunpack.c.l.b16 %v535
  %v1814 = vunpack.c.l.b16 %v536
  %v1815 = vunpack.c.l.b16 %v537
  %v1816 = vunpack.c.l.b16 %v538
  %v1817 = vunpack.c.l.b16 %v539
  %v1818 = vunpack.c.l.b16 %v540
  %v1819 = vunpack.c.l.b16 %v541
  %v1820 = vunpack.c.l.b16 %v542
  %v1821 = vunpack.c.l.b16 %v543
  %v1822 = vunpack.c.l.b16 %v544
  %v1823 = vunpack.c.l.b16 %v545
  %v1824 = vunpack.c.l.b16 %v546
  %v1825 = vunpack.c.l.b16 %v547
  %v1826 = vunpack.c.l.b16 %v548
  %v1827 = vunpack.c.l.b16 %v549
  %v1828 = vunpack.c.l.b16 %v550
  %v1829 = vunpack.c.l.b16 %v551
  %v1830 = vunpack.c.l.b16 %v552
  %v1831 = vunpack.c.l.b16 %v553
  %v1832 = vunpack.c.l.b16 %v554
  %v1833 = vunpack.c.l.b16 %v555
  %v1834 = vunpack.c.l.b16 %v556
  %v1835 = vunpack.c.l.b16 %v557
  %v1836 = vunpack.c.l.b16 %v558
  %v1837 = vunpack.c.l.b16 %v559
  %v1838 = vunpack.c.l.b16 %v560
  %v1839 = vunpack.c.l.b16 %v561
  %v1840 = vunpack.c.l.b16 %v562
  %v1841 = vunpack.c.l.b16 %v563
  %v1842 = vunpack.c.l.b16 %v564
  %v1843 = vunpack.c.l.b16 %v565
  %v1844 = vunpack.c.l.b16 %v566
  %v1845 = vunpack.c.l.b16 %v567
  %v1846 = vunpack.c.l.b16 %v568
  %v1847 = vunpack.c.l.b16 %v569
  %v1848 = vunpack.c.l.b16 %v570
  %v1849 = vunpack.c.l.b16 %v571
  %v1850 = vunpack.c.l.b16 %v572
  %v1851 = vunpack.c.l.b16 %v573
  %v1852 = vunpack.c.l.b16 %v574
  %v1853 = vunpack.c.l.b16 %v575
  %v1854 = vunpack.c.l.b16 %v576
  %v1855 = vunpack.c.l.b16 %v577
  %v1856 = vunpack.c.l.b16 %v578
  %v1857 = vunpack.c.l.b16 %v579
  %v1858 = vunpack.c.l.b16 %v580
  %v1859 = vunpack.c.l.b16 %v581
  %v1860 = vunpack.c.l.b16 %v582
  %v1861 = vunpack.c.l.b16 %v583
  %v1862 = vunpack.c.l.b16 %v584
  %v1863 = vunpack.c.l.b16 %v585
  %v1864 = vunpack.c.l.b16 %v586
  %v1865 = vunpack.c.l.b16 %v587
  %v1866 = vunpack.c.l.b16 %v588
  %v1867 = vunpack.c.l.b16 %v589
  %v1868 = vunpack.c.l.b16 %v590
  %v1869 = vunpack.c.l.b16 %v591
  %v1870 = vunpack.c.l.b16 %v592
  %v1871 = vunpack.c.l.b16 %v593
  %v1872 = vunpack.c.l.b16 %v594
  %v1873 = vunpack.c.l.b16 %v595
  %v1874 = vunpack.c.l.b16 %v596
  %v1875 = vunpack.c.l.b16 %v597
  %v1876 = vunpack.c.l.b16 %v598
  %v1877 = vunpack.c.l.b16 %v599
  %v1878 = vunpack.c.l.b16 %v600
  %v1879 = vunpack.c.l.b16 %v601
  %v1880 = vunpack.c.l.b16 %v602
  %v1881 = vunpack.c.l.b16 %v603
  %v1882 = vunpack.c.l.b16 %v604
  %v1883 = vunpack.c.l.b16 %v605
  %v1884 = vunpack.c.l.b16 %v606
  %v1885 = vunpack.c.l.b16 %v607
  %v1886 = vunpack.c.l.b16 %v608
  %v1887 = vunpack.c.l.b16 %v609
  %v1888 = vunpack.c.l.b16 %v610
  %v1889 = vunpack.c.l.b16 %v611
  %v1890 = vunpack.c.l.b16 %v612
  %v1891 = vunpack.c.l.b16 %v613
  %v1892 = vunpack.c.l.b16 %v614
  %v1893 = vpack.c.b16 %v1318, %v1317
  %v1894 = vpack.c.b16 %v1320, %v1319
  %v1895 = vpack.c.b16 %v1322, %v1321
  %v1896 = vpack.c.b16 %v1324, %v1323
  %v1897 = vpack.c.b16 %v1326, %v1325
  %v1898 = vpack.c.b16 %v1328, %v1327
  %v1899 = vpack.c.b16 %v1330, %v1329
  %v1900 = vpack.c.b16 %v1332, %v1331
  %v1901 = vpack.c.b16 %v1334, %v1333
  %v1902 = vpack.c.b16 %v1336, %v1335
  %v1903 = vpack.c.b16 %v1338, %v1337
  %v1904 = vpack.c.b16 %v1340, %v1339
  %v1905 = vpack.c.b16 %v1342, %v1341
  %v1906 = vpack.c.b16 %v1344, %v1343
  %v1907 = vpack.c.b16 %v1346, %v1345
  %v1908 = vpack.c.b16 %v1348, %v1347
  %v1909 = vpack.c.b16 %v1350, %v1349
  %v1910 = vpack.c.b16 %v1352, %v1351
  %v1911 = vpack.c.b16 %v1354, %v1353
  %v1912 = vpack.c.b16 %v1356, %v1355
  %v1913 = vpack.c.b16 %v1358, %v1357
  %v1914 = vpack.c.b16 %v1360, %v1359
  %v1915 = vpack.c.b16 %v1362, %v1361
  %v1916 = vpack.c.b16 %v1364, %v1363
  %v1917 = vpack.c.b16 %v1366, %v1365
  %v1918 = vpack.c.b16 %v1368, %v1367
  %v1919 = vpack.c.b16 %v1370, %v1369
  %v1920 = vpack.c.b16 %v1372, %v1371
  %v1921 = vpack.c.b16 %v1374, %v1373
  %v1922 = vpack.c.b16 %v1376, %v1375
  %v1923 = vpack.c.b16 %v1378, %v1377
  %v1924 = vpack.c.b16 %v1380, %v1379
  %v1925 = vpack.c.b16 %v1382, %v1381
  %v1926 = vpack.c.b16 %v1384, %v1383
  %v1927 = vpack.c.b16 %v1386, %v1385
  %v1928 = vpack.c.b16 %v1388, %v1387
  %v1929 = vpack.c.b16 %v1390, %v1389
  %v1930 = vpack.c.b16 %v1392, %v1391
  %v1931 = vpack.c.b16 %v1394, %v1393
  %v1932 = vpack.c.b16 %v1396, %v1395
  %v1933 = vpack.c.b16 %v1398, %v1397
  %v1934 = vpack.c.b16 %v1400, %v1399
  %v1935 = vpack.c.b16 %v1402, %v1401
  %v1936 = vpack.c.b16 %v1404, %v1403
  %v1937 = vpack.c.b16 %v1406, %v1405
  %v1938 = vpack.c.b16 %v1408, %v1407
  %v1939 = vpack.c.b16 %v1410, %v1409
  %v1940 = vpack.c.b16 %v1412, %v1411
  %v1941 = vpack.c.b16 %v1414, %v1413
  %v1942 = vpack.c.b16 %v1416, %v1415
  %v1943 = vpack.c.b16 %v1418, %v1417
  %v1944 = vpack.c.b16 %v1420, %v1419
  %v1945 = vpack.c.b16 %v1422, %v1421
  %v1946 = vpack.c.b16 %v1424, %v1423
  %v1947 = vpack.c.b16 %v1426, %v1425
  %v1948 = vpack.c.b16 %v1428, %v1427
  %v1949 = vpack.c.b16 %v1430, %v1429
  %v1950 = vpack.c.b16 %v1432, %v1431
  %v1951 = vpack.c.b16 %v1434, %v1433
  %v1952 = vpack.c.b16 %v1436, %v1435
  %v1953 = vpack.c.b16 %v1438, %v1437
  %v1954 = vpack.c.b16 %v1440, %v1439
  %v1955 = vpack.c.b16 %v1442, %v1441
  %v1956 = vpack.c.b16 %v1444, %v1443
  %v1957 = vpack.c.b16 %v1446, %v1445
  %v1958 = vpack.c.b16 %v1448, %v1447
  %v1959 = vpack.c.b16 %v1450, %v1449
  %v1960 = vpack.c.b16 %v1452, %v1451
  %v1961 = vpack.c.b16 %v1454, %v1453
  %v1962 = vpack.c.b16 %v1456, %v1455
  %v1963 = vpack.c.b16 %v1458, %v1457
  %v1964 = vpack.c.b16 %v1460, %v1459
  %v1965 = vpack.c.b16 %v1462, %v1461
  %v1966 = vpack.c.b16 %v1464, %v1463
  %v1967 = vpack.c.b16 %v1466, %v1465
  %v1968 = vpack.c.b16 %v1468, %v1467
  %v1969 = vpack.c.b16 %v1470, %v1469
  %v1970 = vpack.c.b16 %v1472, %v1471
  %v1971 = vpack.c.b16 %v1474, %v1473
  %v1972 = vpack.c.b16 %v1476, %v1475
  %v1973 = vpack.c.b16 %v1478, %v1477
  %v1974 = vpack.c.b16 %v1480, %v1479
  %v1975 = vpack.c.b16 %v1482, %v1481
  %v1976 = vpack.c.b16 %v1484, %v1483
  %v1977 = vpack.c.b16 %v1486, %v1485
  %v1978 = vpack.c.b16 %v1488, %v1487
  %v1979 = vpack.c.b16 %v1490, %v1489
  %v1980 = vpack.c.b16 %v1492, %v1491
  %v1981 = vpack.c.b16 %v1494, %v1493
  %v1982 = vpack.c.b16 %v1496, %v1495
  %v1983 = vpack.c.b16 %v1498, %v1497
  %v1984 = vpack.c.b16 %v1500, %v1499
  %v1985 = vpack.c.b16 %v1502, %v1501
  %v1986 = vpack.c.b16 %v1504, %v1503
  %v1987 = vpack.c.b16 %v1506, %v1505
  %v1988 = vpack.c.b16 %v1508, %v1507
  %v1989 = vpack.c.b16 %v1510, %v1509
  %v1990 = vpack.c.b16 %v1512, %v1511
  %v1991 = vpack.c.b16 %v1514, %v1513
  %v1992 = vpack.c.b16 %v1516, %v1515
  %v1993 = vpack.c.b16 %v1518, %v1517
  %v1994 = vpack.c.b16 %v1520, %v1519
  %v1995 = vpack.c.b16 %v1522, %v1521
  %v1996 = vpack.c.b16 %v1524, %v1523
  %v1997 = vpack.c.b16 %v1526, %v1525
  %v1998 = vpack.c.b16 %v1528, %v1527
  %v1999 = vpack.c.b16 %v1530, %v1529
  %v2000 = vpack.c.b16 %v1532, %v1531
  %v2001 = vpack.c.b16 %v1534, %v1533
  %v2002 = vpack.c.b16 %v1536, %v1535
  %v2003 = vpack.c.b16 %v1538, %v1537
  %v2004 = vpack.c.b16 %v1540, %v1539
  %v2005 = vpack.c.b16 %v1542, %v1541
  %v2006 = vpack.c.b16 %v1544, %v1543
  %v2007 = vpack.c.b16 %v1546, %v1545
  %v2008 = vpack.c.b16 %v1548, %v1547
  %v2009 = vpack.c.b16 %v1550, %v1549
  %v2010 = vpack.c.b16 %v1552, %v1551
  %v2011 = vpack.c.b16 %v1554, %v1553
  %v2012 = vpack.c.b16 %v1556, %v1555
  %v2013 = vpack.c.b16 %v1558, %v1557
  %v2014 = vpack.c.b16 %v1560, %v1559
  %v2015 = vpack.c.b16 %v1562, %v1561
  %v2016 = vpack.c.b16 %v1564, %v1563
  %v2017 = vpack.c.b16 %v1566, %v1565
  %v2018 = vpack.c.b16 %v1568, %v1567
  %v2019 = vpack.c.b16 %v1570, %v1569
  %v2020 = vpack.c.b16 %v1572, %v1571
  %v2021 = vpack.c.b16 %v1574, %v1573
  %v2022 = vpack.c.b16 %v1576, %v1575
  %v2023 = vpack.c.b16 %v1578, %v1577
  %v2024 = vpack.c.b16 %v1580, %v1579
  %v2025 = vpack.c.b16 %v1582, %v1581
  %v2026 = vpack.c.b16 %v1584, %v1583
  %v2027 = vpack.c.b16 %v1586, %v1585
  %v2028 = vpack.c.b16 %v1588, %v1587
  %v2029 = vpack.c.b16 %v1590, %v1589
  %v2030 = vpack.c.b16 %v1592, %v1591
  %v2031 = vpack.c.b16 %v1594, %v1593
  %v2032 = vpack.c.b16 %v1596, %v1595
  %v2033 = vpack.c.b16 %v1598, %v1597
  %v2034 = vpack.c.b16 %v1600, %v1599
  %v2035 = vpack.c.b16 %v1602, %v1601
  %v2036 = vpack.c.b16 %v1604, %v1603
  %v2037 = vpack.c.b16 %v1606, %v1605
  %v2038 = vpack.c.b16 %v1608, %v1607
  %v2039 = vpack.c.b16 %v1610, %v1609
  %v2040 = vpack.c.b16 %v1612, %v1611
  %v2041 = vpack.c.b16 %v1614, %v1613
  %v2042 = vpack.c.b16 %v1616, %v1615
  %v2043 = vpack.c.b16 %v1618, %v1617
  %v2044 = vpack.c.b16 %v1620, %v1619
  %v2045 = vpack.c.b16 %v1622, %v1621
  %v2046 = vpack.c.b16 %v1624, %v1623
  %v2047 = vpack.c.b16 %v1626, %v1625
  %v2048 = vpack.c.b16 %v1628, %v1627
  %v2049 = vpack.c.b16 %v1630, %v1629
  %v2050 = vpack.c.b16 %v1632, %v1631
  %v2051 = vpack.c.b16 %v1634, %v1633
  %v2052 = vpack.c.b16 %v1636, %v1635
  %v2053 = vpack.c.b16 %v1638, %v1637
  %v2054 = vpack.c.b16 %v1640, %v1639
  %v2055 = vpack.c.b16 %v1642, %v1641
  %v2056 = vpack.c.b16 %v1644, %v1643
  %v2057 = vpack.c.b16 %v1646, %v1645
  %v2058 = vpack.c.b16 %v1648, %v1647
  %v2059 = vpack.c.b16 %v1650, %v1649
  %v2060 = vpack.c.b16 %v1652, %v1651
  %v2061 = vpack.c.b16 %v1654, %v1653
  %v2062 = vpack.c.b16 %v1656, %v1655
  %v2063 = vpack.c.b16 %v1658, %v1657
  %v2064 = vpack.c.b16 %v1660, %v1659
  %v2065 = vpack.c.b16 %v1662, %v1661
  %v2066 = vpack.c.b16 %v1664, %v1663
  %v2067 = vpack.c.b16 %v1666, %v1665
  %v2068 = vpack.c.b16 %v1668, %v1667
  %v2069 = vpack.c.b16 %v1670, %v1669
  %v2070 = vpack.c.b16 %v1672, %v1671
  %v2071 = vpack.c.b16 %v1674, %v1673
  %v2072 = vpack.c.b16 %v1676, %v1675
  %v2073 = vpack.c.b16 %v1678, %v1677
  %v2074 = vpack.c.b16 %v1680, %v1679
  %v2075 = vpack.c.b16 %v1682, %v1681
  %v2076 = vpack.c.b16 %v1684, %v1683
  %v2077 = vpack.c.b16 %v1686, %v1685
  %v2078 = vpack.c.b16 %v1688, %v1687
  %v2079 = vpack.c.b16 %v1690, %v1689
  %v2080 = vpack.c.b16 %v1692, %v1691
  %v2081 = vpack.c.b16 %v1694, %v1693
  %v2082 = vpack.c.b16 %v1696, %v1695
  %v2083 = vpack.c.b16 %v1698, %v1697
  %v2084 = vpack.c.b16 %v1700, %v1699
  %v2085 = vpack.c.b16 %v1702, %v1701
  %v2086 = vpack.c.b16 %v1704, %v1703
  %v2087 = vpack.c.b16 %v1706, %v1705
  %v2088 = vpack.c.b16 %v1708, %v1707
  %v2089 = vpack.c.b16 %v1710, %v1709
  %v2090 = vpack.c.b16 %v1712, %v1711
  %v2091 = vpack.c.b16 %v1714, %v1713
  %v2092 = vpack.c.b16 %v1716, %v1715
  %v2093 = vpack.c.b16 %v1718, %v1717
  %v2094 = vpack.c.b16 %v1720, %v1719
  %v2095 = vpack.c.b16 %v1722, %v1721
  %v2096 = vpack.c.b16 %v1724, %v1723
  %v2097 = vpack.c.b16 %v1726, %v1725
  %v2098 = vpack.c.b16 %v1728, %v1727
  %v2099 = vpack.c.b16 %v1730, %v1729
  %v2100 = vpack.c.b16 %v1732, %v1731
  %v2101 = vpack.c.b16 %v1734, %v1733
  %v2102 = vpack.c.b16 %v1736, %v1735
  %v2103 = vpack.c.b16 %v1738, %v1737
  %v2104 = vpack.c.b16 %v1740, %v1739
  %v2105 = vpack.c.b16 %v1742, %v1741
  %v2106 = vpack.c.b16 %v1744, %v1743
  %v2107 = vpack.c.b16 %v1746, %v1745
  %v2108 = vpack.c.b16 %v1748, %v1747
  %v2109 = vpack.c.b16 %v1750, %v1749
  %v2110 = vpack.c.b16 %v1752, %v1751
  %v2111 = vpack.c.b16 %v1754, %v1753
  %v2112 = vpack.c.b16 %v1756, %v1755
  %v2113 = vpack.c.b16 %v1758, %v1757
  %v2114 = vpack.c.b16 %v1760, %v1759
  %v2115 = vpack.c.b16 %v1762, %v1761
  %v2116 = vpack.c.b16 %v1764, %v1763
  %v2117 = vpack.c.b16 %v1766, %v1765
  %v2118 = vpack.c.b16 %v1768, %v1767
  %v2119 = vpack.c.b16 %v1770, %v1769
  %v2120 = vpack.c.b16 %v1772, %v1771
  %v2121 = vpack.c.b16 %v1774, %v1773
  %v2122 = vpack.c.b16 %v1776, %v1775
  %v2123 = vpack.c.b16 %v1778, %v1777
  %v2124 = vpack.c.b16 %v1780, %v1779
  %v2125 = vpack.c.b16 %v1782, %v1781
  %v2126 = vpack.c.b16 %v1784, %v1783
  %v2127 = vpack.c.b16 %v1786, %v1785
  %v2128 = vpack.c.b16 %v1788, %v1787
  %v2129 = vpack.c.b16 %v1790, %v1789
  %v2130 = vpack.c.b16 %v1792, %v1791
  %v2131 = vpack.c.b16 %v1794, %v1793
  %v2132 = vpack.c.b16 %v1796, %v1795
  %v2133 = vpack.c.b16 %v1798, %v1797
  %v2134 = vpack.c.b16 %v1800, %v1799
  %v2135 = vpack.c.b16 %v1802, %v1801
  %v2136 = vpack.c.b16 %v1804, %v1803
  %v2137 = vpack.c.b16 %v1806, %v1805
  %v2138 = vpack.c.b16 %v1808, %v1807
  %v2139 = vpack.c.b16 %v1810, %v1809
  %v2140 = vpack.c.b16 %v1812, %v1811
  %v2141 = vpack.c.b16 %v1814, %v1813
  %v2142 = vpack.c.b16 %v1816, %v1815
  %v2143 = vpack.c.b16 %v1818, %v1817
  %v2144 = vpack.c.b16 %v1820, %v1819
  %v2145 = vpack.c.b16 %v1822, %v1821
  %v2146 = vpack.c.b16 %v1824, %v1823
  %v2147 = vpack.c.b16 %v1826, %v1825
  %v2148 = vpack.c.b16 %v1828, %v1827
  %v2149 = vpack.c.b16 %v1830, %v1829
  %v2150 = vpack.c.b16 %v1832, %v1831
  %v2151 = vpack.c.b16 %v1834, %v1833
  %v2152 = vpack.c.b16 %v1836, %v1835
  %v2153 = vpack.c.b16 %v1838, %v1837
  %v2154 = vpack.c.b16 %v1840, %v1839
  %v2155 = vpack.c.b16 %v1842, %v1841
  %v2156 = vpack.c.b16 %v1844, %v1843
  %v2157 = vpack.c.b16 %v1846, %v1845
  %v2158 = vpack.c.b16 %v1848, %v1847
  %v2159 = vpack.c.b16 %v1850, %v1849
  %v2160 = vpack.c.b16 %v1852, %v1851
  %v2161 = vpack.c.b16 %v1854, %v1853
  %v2162 = vpack.c.b16 %v1856, %v1855
  %v2163 = vpack.c.b16 %v1858, %v1857
  %v2164 = vpack.c.b16 %v1860, %v1859
  %v2165 = vpack.c.b16 %v1862, %v1861
  %v2166 = vpack.c.b16 %v1864, %v1863
  %v2167 = vpack.c.b16 %v1866, %v1865
  %v2168 = vpack.c.b16 %v1868, %v1867
  %v2169 = vpack.c.b16 %v1870, %v1869
  %v2170 = vpack.c.b16 %v1872, %v1871
  %v2171 = vpack.c.b16 %v1874, %v1873
  %v2172 = vpack.c.b16 %v1876, %v1875
  %v2173 = vpack.c.b16 %v1878, %v1877
  %v2174 = vpack.c.b16 %v1880, %v1879
  %v2175 = vpack.c.b16 %v1882, %v1881
  %v2176 = vpack.c.b16 %v1884, %v1883
  %v2177 = vpack.c.b16 %v1886, %v1885
  %v2178 = vpack.c.b16 %v1888, %v1887
  %v2179 = vpack.c.b16 %v1890, %v1889
  %v2180 = vpack.c.b16 %v1892, %v1891
  %2469 = vmatprep.subr.bf16.mxu0 0
  %2470 = vmatpush1.bf16.msra.mxu0 %v1893
  %2471 = vmatprep.subr.bf16.mxu0 0
  %2472 = vmatpush1.bf16.msra.mxu0 %v1894
  %2473 = vmatprep.subr.bf16.mxu0 0
  %2474 = vmatpush1.bf16.msra.mxu0 %v1895
  %2475 = vmatprep.subr.bf16.mxu0 0
  %2476 = vmatpush1.bf16.msra.mxu0 %v1896
  %2477 = vmatprep.subr.bf16.mxu0 0
  %2478 = vmatpush1.bf16.msra.mxu0 %v1897
  %2479 = vmatprep.subr.bf16.mxu0 0
  %2480 = vmatpush1.bf16.msra.mxu0 %v1898
  %2481 = vmatprep.subr.bf16.mxu0 0
  %2482 = vmatpush1.bf16.msra.mxu0 %v1899
  %2483 = vmatprep.subr.bf16.mxu0 0
  %2484 = vmatpush1.bf16.msra.mxu0 %v1900
  %2485 = vmatprep.subr.bf16.mxu0 0
  %2486 = vmatpush1.bf16.msra.mxu0 %v1901
  %2487 = vmatprep.subr.bf16.mxu0 0
  %2488 = vmatpush1.bf16.msra.mxu0 %v1902
  %2489 = vmatprep.subr.bf16.mxu0 0
  %2490 = vmatpush1.bf16.msra.mxu0 %v1903
  %2491 = vmatprep.subr.bf16.mxu0 0
  %2492 = vmatpush1.bf16.msra.mxu0 %v1904
  %2493 = vmatprep.subr.bf16.mxu0 0
  %2494 = vmatpush1.bf16.msra.mxu0 %v1905
  %2495 = vmatprep.subr.bf16.mxu0 0
  %2496 = vmatpush1.bf16.msra.mxu0 %v1906
  %2497 = vmatprep.subr.bf16.mxu0 0
  %2498 = vmatpush1.bf16.msra.mxu0 %v1907
  %2499 = vmatprep.subr.bf16.mxu0 0
  %2500 = vmatpush1.bf16.msra.mxu0 %v1908
  %2501 = vmatprep.mubr.bf16.mxu0 %v670
  %2502 = vmatmul.mubr.bf16.gmra.mrb[0].mxu0 %v669
  %v2503 = vpop.f32.mrb[0].mxu0
  %v2504 = vadd.f32 0.0, %v2503
  %v2505 = vpop.f32.mrb[0].mxu0
  %v2506 = vpop.f32.mrb[0].mxu0
  %v2507 = vpop.f32.mrb[0].mxu0
  %2508 = vdwg.mxu0
  %2509 = vmatprep.subr.bf16.mxu0 0
  %2510 = vmatpush1.bf16.msra.mxu0 %v1909
  %2511 = vmatprep.subr.bf16.mxu0 0
  %2512 = vmatpush1.bf16.msra.mxu0 %v1910
  %2513 = vmatprep.subr.bf16.mxu0 0
  %2514 = vmatpush1.bf16.msra.mxu0 %v1911
  %2515 = vmatprep.subr.bf16.mxu0 0
  %2516 = vmatpush1.bf16.msra.mxu0 %v1912
  %2517 = vmatprep.subr.bf16.mxu0 0
  %2518 = vmatpush1.bf16.msra.mxu0 %v1913
  %2519 = vmatprep.subr.bf16.mxu0 0
  %2520 = vmatpush1.bf16.msra.mxu0 %v1914
  %2521 = vmatprep.subr.bf16.mxu0 0
  %2522 = vmatpush1.bf16.msra.mxu0 %v1915
  %2523 = vmatprep.subr.bf16.mxu0 0
  %2524 = vmatpush1.bf16.msra.mxu0 %v1916
  %2525 = vmatprep.subr.bf16.mxu0 0
  %2526 = vmatpush1.bf16.msra.mxu0 %v1917
  %2527 = vmatprep.subr.bf16.mxu0 0
  %2528 = vmatpush1.bf16.msra.mxu0 %v1918
  %2529 = vmatprep.subr.bf16.mxu0 0
  %2530 = vmatpush1.bf16.msra.mxu0 %v1919
  %2531 = vmatprep.subr.bf16.mxu0 0
  %2532 = vmatpush1.bf16.msra.mxu0 %v1920
  %2533 = vmatprep.subr.bf16.mxu0 0
  %2534 = vmatpush1.bf16.msra.mxu0 %v1921
  %2535 = vmatprep.subr.bf16.mxu0 0
  %2536 = vmatpush1.bf16.msra.mxu0 %v1922
  %2537 = vmatprep.subr.bf16.mxu0 0
  %2538 = vmatpush1.bf16.msra.mxu0 %v1923
  %2539 = vmatprep.subr.bf16.mxu0 0
  %2540 = vmatpush1.bf16.msra.mxu0 %v1924
  %2541 = vmatprep.mubr.bf16.mxu0 %v672
  %2542 = vmatmul.mubr.bf16.gmra.mrb[0].mxu0 %v671
  %v2543 = vpop.f32.mrb[0].mxu0
  %v2544 = vadd.f32 %v2504, %v2543
  %v2545 = vpop.f32.mrb[0].mxu0
  %v2546 = vpop.f32.mrb[0].mxu0
  %v2547 = vpop.f32.mrb[0].mxu0
  %2548 = vdwg.mxu0
  %2549 = vmatprep.subr.bf16.mxu0 0
  %2550 = vmatpush1.bf16.msra.mxu0 %v1925
  %2551 = vmatprep.subr.bf16.mxu0 0
  %2552 = vmatpush1.bf16.msra.mxu0 %v1926
  %2553 = vmatprep.subr.bf16.mxu0 0
  %2554 = vmatpush1.bf16.msra.mxu0 %v1927
  %2555 = vmatprep.subr.bf16.mxu0 0
  %2556 = vmatpush1.bf16.msra.mxu0 %v1928
  %2557 = vmatprep.subr.bf16.mxu0 0
  %2558 = vmatpush1.bf16.msra.mxu0 %v1929
  %2559 = vmatprep.subr.bf16.mxu0 0
  %2560 = vmatpush1.bf16.msra.mxu0 %v1930
  %2561 = vmatprep.subr.bf16.mxu0 0
  %2562 = vmatpush1.bf16.msra.mxu0 %v1931
  %2563 = vmatprep.subr.bf16.mxu0 0
  %2564 = vmatpush1.bf16.msra.mxu0 %v1932
  %2565 = vmatprep.subr.bf16.mxu0 0
  %2566 = vmatpush1.bf16.msra.mxu0 %v1933
  %2567 = vmatprep.subr.bf16.mxu0 0
  %2568 = vmatpush1.bf16.msra.mxu0 %v1934
  %2569 = vmatprep.subr.bf16.mxu0 0
  %2570 = vmatpush1.bf16.msra.mxu0 %v1935
  %2571 = vmatprep.subr.bf16.mxu0 0
  %2572 = vmatpush1.bf16.msra.mxu0 %v1936
  %2573 = vmatprep.subr.bf16.mxu0 0
  %2574 = vmatpush1.bf16.msra.mxu0 %v1937
  %2575 = vmatprep.subr.bf16.mxu0 0
  %2576 = vmatpush1.bf16.msra.mxu0 %v1938
  %2577 = vmatprep.subr.bf16.mxu0 0
  %2578 = vmatpush1.bf16.msra.mxu0 %v1939
  %2579 = vmatprep.subr.bf16.mxu0 0
  %2580 = vmatpush1.bf16.msra.mxu0 %v1940
  %2581 = vmatprep.mubr.bf16.mxu0 %v674
  %2582 = vmatmul.mubr.bf16.gmra.mrb[0].mxu0 %v673
  %v2583 = vpop.f32.mrb[0].mxu0
  %v2584 = vadd.f32 %v2544, %v2583
  %v2585 = vpop.f32.mrb[0].mxu0
  %v2586 = vpop.f32.mrb[0].mxu0
  %v2587 = vpop.f32.mrb[0].mxu0
  %2588 = vdwg.mxu0
  %2589 = vmatprep.subr.bf16.mxu0 0
  %2590 = vmatpush1.bf16.msra.mxu0 %v1941
  %2591 = vmatprep.subr.bf16.mxu0 0
  %2592 = vmatpush1.bf16.msra.mxu0 %v1942
  %2593 = vmatprep.subr.bf16.mxu0 0
  %2594 = vmatpush1.bf16.msra.mxu0 %v1943
  %2595 = vmatprep.subr.bf16.mxu0 0
  %2596 = vmatpush1.bf16.msra.mxu0 %v1944
  %2597 = vmatprep.subr.bf16.mxu0 0
  %2598 = vmatpush1.bf16.msra.mxu0 %v1945
  %2599 = vmatprep.subr.bf16.mxu0 0
  %2600 = vmatpush1.bf16.msra.mxu0 %v1946
  %2601 = vmatprep.subr.bf16.mxu0 0
  %2602 = vmatpush1.bf16.msra.mxu0 %v1947
  %2603 = vmatprep.subr.bf16.mxu0 0
  %2604 = vmatpush1.bf16.msra.mxu0 %v1948
  %2605 = vmatprep.subr.bf16.mxu0 0
  %2606 = vmatpush1.bf16.msra.mxu0 %v1949
  %2607 = vmatprep.subr.bf16.mxu0 0
  %2608 = vmatpush1.bf16.msra.mxu0 %v1950
  %2609 = vmatprep.subr.bf16.mxu0 0
  %2610 = vmatpush1.bf16.msra.mxu0 %v1951
  %2611 = vmatprep.subr.bf16.mxu0 0
  %2612 = vmatpush1.bf16.msra.mxu0 %v1952
  %2613 = vmatprep.subr.bf16.mxu0 0
  %2614 = vmatpush1.bf16.msra.mxu0 %v1953
  %2615 = vmatprep.subr.bf16.mxu0 0
  %2616 = vmatpush1.bf16.msra.mxu0 %v1954
  %2617 = vmatprep.subr.bf16.mxu0 0
  %2618 = vmatpush1.bf16.msra.mxu0 %v1955
  %2619 = vmatprep.subr.bf16.mxu0 0
  %2620 = vmatpush1.bf16.msra.mxu0 %v1956
  %2621 = vmatprep.mubr.bf16.mxu0 %v676
  %2622 = vmatmul.mubr.bf16.gmra.mrb[0].mxu0 %v675
  %v2623 = vpop.f32.mrb[0].mxu0
  %v2624 = vadd.f32 %v2584, %v2623
  %v2625 = vpop.f32.mrb[0].mxu0
  %v2626 = vpop.f32.mrb[0].mxu0
  %v2627 = vpop.f32.mrb[0].mxu0
  %2628 = vdwg.mxu0
  %2629 = vmatprep.subr.bf16.mxu0 0
  %2630 = vmatpush1.bf16.msra.mxu0 %v1957
  %2631 = vmatprep.subr.bf16.mxu0 0
  %2632 = vmatpush1.bf16.msra.mxu0 %v1958
  %2633 = vmatprep.subr.bf16.mxu0 0
  %2634 = vmatpush1.bf16.msra.mxu0 %v1959
  %2635 = vmatprep.subr.bf16.mxu0 0
  %2636 = vmatpush1.bf16.msra.mxu0 %v1960
  %2637 = vmatprep.subr.bf16.mxu0 0
  %2638 = vmatpush1.bf16.msra.mxu0 %v1961
  %2639 = vmatprep.subr.bf16.mxu0 0
  %2640 = vmatpush1.bf16.msra.mxu0 %v1962
  %2641 = vmatprep.subr.bf16.mxu0 0
  %2642 = vmatpush1.bf16.msra.mxu0 %v1963
  %2643 = vmatprep.subr.bf16.mxu0 0
  %2644 = vmatpush1.bf16.msra.mxu0 %v1964
  %2645 = vmatprep.subr.bf16.mxu0 0
  %2646 = vmatpush1.bf16.msra.mxu0 %v1965
  %2647 = vmatprep.subr.bf16.mxu0 0
  %2648 = vmatpush1.bf16.msra.mxu0 %v1966
  %2649 = vmatprep.subr.bf16.mxu0 0
  %2650 = vmatpush1.bf16.msra.mxu0 %v1967
  %2651 = vmatprep.subr.bf16.mxu0 0
  %2652 = vmatpush1.bf16.msra.mxu0 %v1968
  %2653 = vmatprep.subr.bf16.mxu0 0
  %2654 = vmatpush1.bf16.msra.mxu0 %v1969
  %2655 = vmatprep.subr.bf16.mxu0 0
  %2656 = vmatpush1.bf16.msra.mxu0 %v1970
  %2657 = vmatprep.subr.bf16.mxu0 0
  %2658 = vmatpush1.bf16.msra.mxu0 %v1971
  %2659 = vmatprep.subr.bf16.mxu0 0
  %2660 = vmatpush1.bf16.msra.mxu0 %v1972
  %2661 = vmatprep.mubr.bf16.mxu0 %v678
  %2662 = vmatmul.mubr.bf16.gmra.mrb[0].mxu0 %v677
  %v2663 = vpop.f32.mrb[0].mxu0
  %v2664 = vadd.f32 %v2624, %v2663
  %v2665 = vpop.f32.mrb[0].mxu0
  %v2666 = vpop.f32.mrb[0].mxu0
  %v2667 = vpop.f32.mrb[0].mxu0
  %2668 = vdwg.mxu0
  %2669 = vmatprep.subr.bf16.mxu0 0
  %2670 = vmatpush1.bf16.msra.mxu0 %v1973
  %2671 = vmatprep.subr.bf16.mxu0 0
  %2672 = vmatpush1.bf16.msra.mxu0 %v1974
  %2673 = vmatprep.subr.bf16.mxu0 0
  %2674 = vmatpush1.bf16.msra.mxu0 %v1975
  %2675 = vmatprep.subr.bf16.mxu0 0
  %2676 = vmatpush1.bf16.msra.mxu0 %v1976
  %2677 = vmatprep.subr.bf16.mxu0 0
  %2678 = vmatpush1.bf16.msra.mxu0 %v1977
  %2679 = vmatprep.subr.bf16.mxu0 0
  %2680 = vmatpush1.bf16.msra.mxu0 %v1978
  %2681 = vmatprep.subr.bf16.mxu0 0
  %2682 = vmatpush1.bf16.msra.mxu0 %v1979
  %2683 = vmatprep.subr.bf16.mxu0 0
  %2684 = vmatpush1.bf16.msra.mxu0 %v1980
  %2685 = vmatprep.subr.bf16.mxu0 0
  %2686 = vmatpush1.bf16.msra.mxu0 %v1981
  %2687 = vmatprep.subr.bf16.mxu0 0
  %2688 = vmatpush1.bf16.msra.mxu0 %v1982
  %2689 = vmatprep.subr.bf16.mxu0 0
  %2690 = vmatpush1.bf16.msra.mxu0 %v1983
  %2691 = vmatprep.subr.bf16.mxu0 0
  %2692 = vmatpush1.bf16.msra.mxu0 %v1984
  %2693 = vmatprep.subr.bf16.mxu0 0
  %2694 = vmatpush1.bf16.msra.mxu0 %v1985
  %2695 = vmatprep.subr.bf16.mxu0 0
  %2696 = vmatpush1.bf16.msra.mxu0 %v1986
  %2697 = vmatprep.subr.bf16.mxu0 0
  %2698 = vmatpush1.bf16.msra.mxu0 %v1987
  %2699 = vmatprep.subr.bf16.mxu0 0
  %2700 = vmatpush1.bf16.msra.mxu0 %v1988
  %2701 = vmatprep.mubr.bf16.mxu0 %v680
  %2702 = vmatmul.mubr.bf16.gmra.mrb[0].mxu0 %v679
  %v2703 = vpop.f32.mrb[0].mxu0
  %v2704 = vadd.f32 %v2664, %v2703
  %v2705 = vpop.f32.mrb[0].mxu0
  %v2706 = vpop.f32.mrb[0].mxu0
  %v2707 = vpop.f32.mrb[0].mxu0
  %2708 = vdwg.mxu0
  %2709 = vmatprep.subr.bf16.mxu0 0
  %2710 = vmatpush1.bf16.msra.mxu0 %v1989
  %2711 = vmatprep.subr.bf16.mxu0 0
  %2712 = vmatpush1.bf16.msra.mxu0 %v1990
  %2713 = vmatprep.subr.bf16.mxu0 0
  %2714 = vmatpush1.bf16.msra.mxu0 %v1991
  %2715 = vmatprep.subr.bf16.mxu0 0
  %2716 = vmatpush1.bf16.msra.mxu0 %v1992
  %2717 = vmatprep.subr.bf16.mxu0 0
  %2718 = vmatpush1.bf16.msra.mxu0 %v1993
  %2719 = vmatprep.subr.bf16.mxu0 0
  %2720 = vmatpush1.bf16.msra.mxu0 %v1994
  %2721 = vmatprep.subr.bf16.mxu0 0
  %2722 = vmatpush1.bf16.msra.mxu0 %v1995
  %2723 = vmatprep.subr.bf16.mxu0 0
  %2724 = vmatpush1.bf16.msra.mxu0 %v1996
  %2725 = vmatprep.subr.bf16.mxu0 0
  %2726 = vmatpush1.bf16.msra.mxu0 %v1997
  %2727 = vmatprep.subr.bf16.mxu0 0
  %2728 = vmatpush1.bf16.msra.mxu0 %v1998
  %2729 = vmatprep.subr.bf16.mxu0 0
  %2730 = vmatpush1.bf16.msra.mxu0 %v1999
  %2731 = vmatprep.subr.bf16.mxu0 0
  %2732 = vmatpush1.bf16.msra.mxu0 %v2000
  %2733 = vmatprep.subr.bf16.mxu0 0
  %2734 = vmatpush1.bf16.msra.mxu0 %v2001
  %2735 = vmatprep.subr.bf16.mxu0 0
  %2736 = vmatpush1.bf16.msra.mxu0 %v2002
  %2737 = vmatprep.subr.bf16.mxu0 0
  %2738 = vmatpush1.bf16.msra.mxu0 %v2003
  %2739 = vmatprep.subr.bf16.mxu0 0
  %2740 = vmatpush1.bf16.msra.mxu0 %v2004
  %2741 = vmatprep.mubr.bf16.mxu0 %v682
  %2742 = vmatmul.mubr.bf16.gmra.mrb[0].mxu0 %v681
  %v2743 = vpop.f32.mrb[0].mxu0
  %v2744 = vadd.f32 %v2704, %v2743
  %v2745 = vpop.f32.mrb[0].mxu0
  %v2746 = vpop.f32.mrb[0].mxu0
  %v2747 = vpop.f32.mrb[0].mxu0
  %2748 = vdwg.mxu0
  %2749 = vmatprep.subr.bf16.mxu0 0
  %2750 = vmatpush1.bf16.msra.mxu0 %v2005
  %2751 = vmatprep.subr.bf16.mxu0 0
  %2752 = vmatpush1.bf16.msra.mxu0 %v2006
  %2753 = vmatprep.subr.bf16.mxu0 0
  %2754 = vmatpush1.bf16.msra.mxu0 %v2007
  %2755 = vmatprep.subr.bf16.mxu0 0
  %2756 = vmatpush1.bf16.msra.mxu0 %v2008
  %2757 = vmatprep.subr.bf16.mxu0 0
  %2758 = vmatpush1.bf16.msra.mxu0 %v2009
  %2759 = vmatprep.subr.bf16.mxu0 0
  %2760 = vmatpush1.bf16.msra.mxu0 %v2010
  %2761 = vmatprep.subr.bf16.mxu0 0
  %2762 = vmatpush1.bf16.msra.mxu0 %v2011
  %2763 = vmatprep.subr.bf16.mxu0 0
  %2764 = vmatpush1.bf16.msra.mxu0 %v2012
  %2765 = vmatprep.subr.bf16.mxu0 0
  %2766 = vmatpush1.bf16.msra.mxu0 %v2013
  %2767 = vmatprep.subr.bf16.mxu0 0
  %2768 = vmatpush1.bf16.msra.mxu0 %v2014
  %2769 = vmatprep.subr.bf16.mxu0 0
  %2770 = vmatpush1.bf16.msra.mxu0 %v2015
  %2771 = vmatprep.subr.bf16.mxu0 0
  %2772 = vmatpush1.bf16.msra.mxu0 %v2016
  %2773 = vmatprep.subr.bf16.mxu0 0
  %2774 = vmatpush1.bf16.msra.mxu0 %v2017
  %2775 = vmatprep.subr.bf16.mxu0 0
  %2776 = vmatpush1.bf16.msra.mxu0 %v2018
  %2777 = vmatprep.subr.bf16.mxu0 0
  %2778 = vmatpush1.bf16.msra.mxu0 %v2019
  %2779 = vmatprep.subr.bf16.mxu0 0
  %2780 = vmatpush1.bf16.msra.mxu0 %v2020
  %2781 = vmatprep.mubr.bf16.mxu0 %v684
  %2782 = vmatmul.mubr.bf16.gmra.mrb[0].mxu0 %v683
  %v2783 = vpop.f32.mrb[0].mxu0
  %v2784 = vadd.f32 %v2744, %v2783
  %v2785 = vpop.f32.mrb[0].mxu0
  %v2786 = vpop.f32.mrb[0].mxu0
  %v2787 = vpop.f32.mrb[0].mxu0
  %2788 = vdwg.mxu0
  %2789 = vmatprep.subr.bf16.mxu0 0
  %2790 = vmatpush1.bf16.msra.mxu0 %v2021
  %2791 = vmatprep.subr.bf16.mxu0 0
  %2792 = vmatpush1.bf16.msra.mxu0 %v2022
  %2793 = vmatprep.subr.bf16.mxu0 0
  %2794 = vmatpush1.bf16.msra.mxu0 %v2023
  %2795 = vmatprep.subr.bf16.mxu0 0
  %2796 = vmatpush1.bf16.msra.mxu0 %v2024
  %2797 = vmatprep.subr.bf16.mxu0 0
  %2798 = vmatpush1.bf16.msra.mxu0 %v2025
  %2799 = vmatprep.subr.bf16.mxu0 0
  %2800 = vmatpush1.bf16.msra.mxu0 %v2026
  %2801 = vmatprep.subr.bf16.mxu0 0
  %2802 = vmatpush1.bf16.msra.mxu0 %v2027
  %2803 = vmatprep.subr.bf16.mxu0 0
  %2804 = vmatpush1.bf16.msra.mxu0 %v2028
  %2805 = vmatprep.subr.bf16.mxu0 0
  %2806 = vmatpush1.bf16.msra.mxu0 %v2029
  %2807 = vmatprep.subr.bf16.mxu0 0
  %2808 = vmatpush1.bf16.msra.mxu0 %v2030
  %2809 = vmatprep.subr.bf16.mxu0 0
  %2810 = vmatpush1.bf16.msra.mxu0 %v2031
  %2811 = vmatprep.subr.bf16.mxu0 0
  %2812 = vmatpush1.bf16.msra.mxu0 %v2032
  %2813 = vmatprep.subr.bf16.mxu0 0
  %2814 = vmatpush1.bf16.msra.mxu0 %v2033
  %2815 = vmatprep.subr.bf16.mxu0 0
  %2816 = vmatpush1.bf16.msra.mxu0 %v2034
  %2817 = vmatprep.subr.bf16.mxu0 0
  %2818 = vmatpush1.bf16.msra.mxu0 %v2035
  %2819 = vmatprep.subr.bf16.mxu0 0
  %2820 = vmatpush1.bf16.msra.mxu0 %v2036
  %2821 = vmatprep.mubr.bf16.mxu0 %v686
  %2822 = vmatmul.mubr.bf16.gmra.mrb[0].mxu0 %v685
  %v2823 = vpop.f32.mrb[0].mxu0
  %v2824 = vadd.f32 %v2784, %v2823
  %v2825 = vpop.f32.mrb[0].mxu0
  %v2826 = vpop.f32.mrb[0].mxu0
  %v2827 = vpop.f32.mrb[0].mxu0
  %2828 = vdwg.mxu0
  %2829 = vmatprep.subr.bf16.mxu0 0
  %2830 = vmatpush1.bf16.msra.mxu0 %v2037
  %2831 = vmatprep.subr.bf16.mxu0 0
  %2832 = vmatpush1.bf16.msra.mxu0 %v2038
  %2833 = vmatprep.subr.bf16.mxu0 0
  %2834 = vmatpush1.bf16.msra.mxu0 %v2039
  %2835 = vmatprep.subr.bf16.mxu0 0
  %2836 = vmatpush1.bf16.msra.mxu0 %v2040
  %2837 = vmatprep.subr.bf16.mxu0 0
  %2838 = vmatpush1.bf16.msra.mxu0 %v2041
  %2839 = vmatprep.subr.bf16.mxu0 0
  %2840 = vmatpush1.bf16.msra.mxu0 %v2042
  %2841 = vmatprep.subr.bf16.mxu0 0
  %2842 = vmatpush1.bf16.msra.mxu0 %v2043
  %2843 = vmatprep.subr.bf16.mxu0 0
  %2844 = vmatpush1.bf16.msra.mxu0 %v2044
  %2845 = vmatprep.subr.bf16.mxu0 0
  %2846 = vmatpush1.bf16.msra.mxu0 %v2045
  %2847 = vmatprep.subr.bf16.mxu0 0
  %2848 = vmatpush1.bf16.msra.mxu0 %v2046
  %2849 = vmatprep.subr.bf16.mxu0 0
  %2850 = vmatpush1.bf16.msra.mxu0 %v2047
  %2851 = vmatprep.subr.bf16.mxu0 0
  %2852 = vmatpush1.bf16.msra.mxu0 %v2048
  %2853 = vmatprep.subr.bf16.mxu0 0
  %2854 = vmatpush1.bf16.msra.mxu0 %v2049
  %2855 = vmatprep.subr.bf16.mxu0 0
  %2856 = vmatpush1.bf16.msra.mxu0 %v2050
  %2857 = vmatprep.subr.bf16.mxu0 0
  %2858 = vmatpush1.bf16.msra.mxu0 %v2051
  %2859 = vmatprep.subr.bf16.mxu0 0
  %2860 = vmatpush1.bf16.msra.mxu0 %v2052
  %2861 = vmatprep.mubr.bf16.mxu0 %v688
  %2862 = vmatmul.mubr.bf16.gmra.mrb[0].mxu0 %v687
  %v2863 = vpop.f32.mrb[0].mxu0
  %v2864 = vadd.f32 %v2824, %v2863
  %v2865 = vpop.f32.mrb[0].mxu0
  %v2866 = vpop.f32.mrb[0].mxu0
  %v2867 = vpop.f32.mrb[0].mxu0
  %2868 = vdwg.mxu0
  %2869 = vmatprep.subr.bf16.mxu0 0
  %2870 = vmatpush1.bf16.msra.mxu0 %v2053
  %2871 = vmatprep.subr.bf16.mxu0 0
  %2872 = vmatpush1.bf16.msra.mxu0 %v2054
  %2873 = vmatprep.subr.bf16.mxu0 0
  %2874 = vmatpush1.bf16.msra.mxu0 %v2055
  %2875 = vmatprep.subr.bf16.mxu0 0
  %2876 = vmatpush1.bf16.msra.mxu0 %v2056
  %2877 = vmatprep.subr.bf16.mxu0 0
  %2878 = vmatpush1.bf16.msra.mxu0 %v2057
  %2879 = vmatprep.subr.bf16.mxu0 0
  %2880 = vmatpush1.bf16.msra.mxu0 %v2058
  %2881 = vmatprep.subr.bf16.mxu0 0
  %2882 = vmatpush1.bf16.msra.mxu0 %v2059
  %2883 = vmatprep.subr.bf16.mxu0 0
  %2884 = vmatpush1.bf16.msra.mxu0 %v2060
  %2885 = vmatprep.subr.bf16.mxu0 0
  %2886 = vmatpush1.bf16.msra.mxu0 %v2061
  %2887 = vmatprep.subr.bf16.mxu0 0
  %2888 = vmatpush1.bf16.msra.mxu0 %v2062
  %2889 = vmatprep.subr.bf16.mxu0 0
  %2890 = vmatpush1.bf16.msra.mxu0 %v2063
  %2891 = vmatprep.subr.bf16.mxu0 0
  %2892 = vmatpush1.bf16.msra.mxu0 %v2064
  %2893 = vmatprep.subr.bf16.mxu0 0
  %2894 = vmatpush1.bf16.msra.mxu0 %v2065
  %2895 = vmatprep.subr.bf16.mxu0 0
  %2896 = vmatpush1.bf16.msra.mxu0 %v2066
  %2897 = vmatprep.subr.bf16.mxu0 0
  %2898 = vmatpush1.bf16.msra.mxu0 %v2067
  %2899 = vmatprep.subr.bf16.mxu0 0
  %2900 = vmatpush1.bf16.msra.mxu0 %v2068
  %2901 = vmatprep.mubr.bf16.mxu0 %v690
  %2902 = vmatmul.mubr.bf16.gmra.mrb[0].mxu0 %v689
  %v2903 = vpop.f32.mrb[0].mxu0
  %v2904 = vadd.f32 %v2864, %v2903
  %v2905 = vpop.f32.mrb[0].mxu0
  %v2906 = vpop.f32.mrb[0].mxu0
  %v2907 = vpop.f32.mrb[0].mxu0
  %2908 = vdwg.mxu0
  %2909 = vmatprep.subr.bf16.mxu0 0
  %2910 = vmatpush1.bf16.msra.mxu0 %v2069
  %2911 = vmatprep.subr.bf16.mxu0 0
  %2912 = vmatpush1.bf16.msra.mxu0 %v2070
  %2913 = vmatprep.subr.bf16.mxu0 0
  %2914 = vmatpush1.bf16.msra.mxu0 %v2071
  %2915 = vmatprep.subr.bf16.mxu0 0
  %2916 = vmatpush1.bf16.msra.mxu0 %v2072
  %2917 = vmatprep.subr.bf16.mxu0 0
  %2918 = vmatpush1.bf16.msra.mxu0 %v2073
  %2919 = vmatprep.subr.bf16.mxu0 0
  %2920 = vmatpush1.bf16.msra.mxu0 %v2074
  %2921 = vmatprep.subr.bf16.mxu0 0
  %2922 = vmatpush1.bf16.msra.mxu0 %v2075
  %2923 = vmatprep.subr.bf16.mxu0 0
  %2924 = vmatpush1.bf16.msra.mxu0 %v2076
  %2925 = vmatprep.subr.bf16.mxu0 0
  %2926 = vmatpush1.bf16.msra.mxu0 %v2077
  %2927 = vmatprep.subr.bf16.mxu0 0
  %2928 = vmatpush1.bf16.msra.mxu0 %v2078
  %2929 = vmatprep.subr.bf16.mxu0 0
  %2930 = vmatpush1.bf16.msra.mxu0 %v2079
  %2931 = vmatprep.subr.bf16.mxu0 0
  %2932 = vmatpush1.bf16.msra.mxu0 %v2080
  %2933 = vmatprep.subr.bf16.mxu0 0
  %2934 = vmatpush1.bf16.msra.mxu0 %v2081
  %2935 = vmatprep.subr.bf16.mxu0 0
  %2936 = vmatpush1.bf16.msra.mxu0 %v2082
  %2937 = vmatprep.subr.bf16.mxu0 0
  %2938 = vmatpush1.bf16.msra.mxu0 %v2083
  %2939 = vmatprep.subr.bf16.mxu0 0
  %2940 = vmatpush1.bf16.msra.mxu0 %v2084
  %2941 = vmatprep.mubr.bf16.mxu0 %v692
  %2942 = vmatmul.mubr.bf16.gmra.mrb[0].mxu0 %v691
  %v2943 = vpop.f32.mrb[0].mxu0
  %v2944 = vadd.f32 %v2904, %v2943
  %v2945 = vpop.f32.mrb[0].mxu0
  %v2946 = vpop.f32.mrb[0].mxu0
  %v2947 = vpop.f32.mrb[0].mxu0
  %2948 = vdwg.mxu0
  %2949 = vmatprep.subr.bf16.mxu0 0
  %2950 = vmatpush1.bf16.msra.mxu0 %v2085
  %2951 = vmatprep.subr.bf16.mxu0 0
  %2952 = vmatpush1.bf16.msra.mxu0 %v2086
  %2953 = vmatprep.subr.bf16.mxu0 0
  %2954 = vmatpush1.bf16.msra.mxu0 %v2087
  %2955 = vmatprep.subr.bf16.mxu0 0
  %2956 = vmatpush1.bf16.msra.mxu0 %v2088
  %2957 = vmatprep.subr.bf16.mxu0 0
  %2958 = vmatpush1.bf16.msra.mxu0 %v2089
  %2959 = vmatprep.subr.bf16.mxu0 0
  %2960 = vmatpush1.bf16.msra.mxu0 %v2090
  %2961 = vmatprep.subr.bf16.mxu0 0
  %2962 = vmatpush1.bf16.msra.mxu0 %v2091
  %2963 = vmatprep.subr.bf16.mxu0 0
  %2964 = vmatpush1.bf16.msra.mxu0 %v2092
  %2965 = vmatprep.subr.bf16.mxu0 0
  %2966 = vmatpush1.bf16.msra.mxu0 %v2093
  %2967 = vmatprep.subr.bf16.mxu0 0
  %2968 = vmatpush1.bf16.msra.mxu0 %v2094
  %2969 = vmatprep.subr.bf16.mxu0 0
  %2970 = vmatpush1.bf16.msra.mxu0 %v2095
  %2971 = vmatprep.subr.bf16.mxu0 0
  %2972 = vmatpush1.bf16.msra.mxu0 %v2096
  %2973 = vmatprep.subr.bf16.mxu0 0
  %2974 = vmatpush1.bf16.msra.mxu0 %v2097
  %2975 = vmatprep.subr.bf16.mxu0 0
  %2976 = vmatpush1.bf16.msra.mxu0 %v2098
  %2977 = vmatprep.subr.bf16.mxu0 0
  %2978 = vmatpush1.bf16.msra.mxu0 %v2099
  %2979 = vmatprep.subr.bf16.mxu0 0
  %2980 = vmatpush1.bf16.msra.mxu0 %v2100
  %2981 = vmatprep.mubr.bf16.mxu0 %v694
  %2982 = vmatmul.mubr.bf16.gmra.mrb[0].mxu0 %v693
  %v2983 = vpop.f32.mrb[0].mxu0
  %v2984 = vadd.f32 %v2944, %v2983
  %v2985 = vpop.f32.mrb[0].mxu0
  %v2986 = vpop.f32.mrb[0].mxu0
  %v2987 = vpop.f32.mrb[0].mxu0
  %2988 = vdwg.mxu0
  %2989 = vmatprep.subr.bf16.mxu0 0
  %2990 = vmatpush1.bf16.msra.mxu0 %v2101
  %2991 = vmatprep.subr.bf16.mxu0 0
  %2992 = vmatpush1.bf16.msra.mxu0 %v2102
  %2993 = vmatprep.subr.bf16.mxu0 0
  %2994 = vmatpush1.bf16.msra.mxu0 %v2103
  %2995 = vmatprep.subr.bf16.mxu0 0
  %2996 = vmatpush1.bf16.msra.mxu0 %v2104
  %2997 = vmatprep.subr.bf16.mxu0 0
  %2998 = vmatpush1.bf16.msra.mxu0 %v2105
  %2999 = vmatprep.subr.bf16.mxu0 0
  %3000 = vmatpush1.bf16.msra.mxu0 %v2106
  %3001 = vmatprep.subr.bf16.mxu0 0
  %3002 = vmatpush1.bf16.msra.mxu0 %v2107
  %3003 = vmatprep.subr.bf16.mxu0 0
  %3004 = vmatpush1.bf16.msra.mxu0 %v2108
  %3005 = vmatprep.subr.bf16.mxu0 0
  %3006 = vmatpush1.bf16.msra.mxu0 %v2109
  %3007 = vmatprep.subr.bf16.mxu0 0
  %3008 = vmatpush1.bf16.msra.mxu0 %v2110
  %3009 = vmatprep.subr.bf16.mxu0 0
  %3010 = vmatpush1.bf16.msra.mxu0 %v2111
  %3011 = vmatprep.subr.bf16.mxu0 0
  %3012 = vmatpush1.bf16.msra.mxu0 %v2112
  %3013 = vmatprep.subr.bf16.mxu0 0
  %3014 = vmatpush1.bf16.msra.mxu0 %v2113
  %3015 = vmatprep.subr.bf16.mxu0 0
  %3016 = vmatpush1.bf16.msra.mxu0 %v2114
  %3017 = vmatprep.subr.bf16.mxu0 0
  %3018 = vmatpush1.bf16.msra.mxu0 %v2115
  %3019 = vmatprep.subr.bf16.mxu0 0
  %3020 = vmatpush1.bf16.msra.mxu0 %v2116
  %3021 = vmatprep.mubr.bf16.mxu0 %v696
  %3022 = vmatmul.mubr.bf16.gmra.mrb[0].mxu0 %v695
  %v3023 = vpop.f32.mrb[0].mxu0
  %v3024 = vadd.f32 %v2984, %v3023
  %v3025 = vpop.f32.mrb[0].mxu0
  %v3026 = vpop.f32.mrb[0].mxu0
  %v3027 = vpop.f32.mrb[0].mxu0
  %3028 = vdwg.mxu0
  %3029 = vmatprep.subr.bf16.mxu0 0
  %3030 = vmatpush1.bf16.msra.mxu0 %v2117
  %3031 = vmatprep.subr.bf16.mxu0 0
  %3032 = vmatpush1.bf16.msra.mxu0 %v2118
  %3033 = vmatprep.subr.bf16.mxu0 0
  %3034 = vmatpush1.bf16.msra.mxu0 %v2119
  %3035 = vmatprep.subr.bf16.mxu0 0
  %3036 = vmatpush1.bf16.msra.mxu0 %v2120
  %3037 = vmatprep.subr.bf16.mxu0 0
  %3038 = vmatpush1.bf16.msra.mxu0 %v2121
  %3039 = vmatprep.subr.bf16.mxu0 0
  %3040 = vmatpush1.bf16.msra.mxu0 %v2122
  %3041 = vmatprep.subr.bf16.mxu0 0
  %3042 = vmatpush1.bf16.msra.mxu0 %v2123
  %3043 = vmatprep.subr.bf16.mxu0 0
  %3044 = vmatpush1.bf16.msra.mxu0 %v2124
  %3045 = vmatprep.subr.bf16.mxu0 0
  %3046 = vmatpush1.bf16.msra.mxu0 %v2125
  %3047 = vmatprep.subr.bf16.mxu0 0
  %3048 = vmatpush1.bf16.msra.mxu0 %v2126
  %3049 = vmatprep.subr.bf16.mxu0 0
  %3050 = vmatpush1.bf16.msra.mxu0 %v2127
  %3051 = vmatprep.subr.bf16.mxu0 0
  %3052 = vmatpush1.bf16.msra.mxu0 %v2128
  %3053 = vmatprep.subr.bf16.mxu0 0
  %3054 = vmatpush1.bf16.msra.mxu0 %v2129
  %3055 = vmatprep.subr.bf16.mxu0 0
  %3056 = vmatpush1.bf16.msra.mxu0 %v2130
  %3057 = vmatprep.subr.bf16.mxu0 0
  %3058 = vmatpush1.bf16.msra.mxu0 %v2131
  %3059 = vmatprep.subr.bf16.mxu0 0
  %3060 = vmatpush1.bf16.msra.mxu0 %v2132
  %3061 = vmatprep.mubr.bf16.mxu0 %v698
  %3062 = vmatmul.mubr.bf16.gmra.mrb[0].mxu0 %v697
  %v3063 = vpop.f32.mrb[0].mxu0
  %v3064 = vadd.f32 %v3024, %v3063
  %v3065 = vpop.f32.mrb[0].mxu0
  %v3066 = vpop.f32.mrb[0].mxu0
  %v3067 = vpop.f32.mrb[0].mxu0
  %3068 = vdwg.mxu0
  %3069 = vmatprep.subr.bf16.mxu0 0
  %3070 = vmatpush1.bf16.msra.mxu0 %v2133
  %3071 = vmatprep.subr.bf16.mxu0 0
  %3072 = vmatpush1.bf16.msra.mxu0 %v2134
  %3073 = vmatprep.subr.bf16.mxu0 0
  %3074 = vmatpush1.bf16.msra.mxu0 %v2135
  %3075 = vmatprep.subr.bf16.mxu0 0
  %3076 = vmatpush1.bf16.msra.mxu0 %v2136
  %3077 = vmatprep.subr.bf16.mxu0 0
  %3078 = vmatpush1.bf16.msra.mxu0 %v2137
  %3079 = vmatprep.subr.bf16.mxu0 0
  %3080 = vmatpush1.bf16.msra.mxu0 %v2138
  %3081 = vmatprep.subr.bf16.mxu0 0
  %3082 = vmatpush1.bf16.msra.mxu0 %v2139
  %3083 = vmatprep.subr.bf16.mxu0 0
  %3084 = vmatpush1.bf16.msra.mxu0 %v2140
  %3085 = vmatprep.subr.bf16.mxu0 0
  %3086 = vmatpush1.bf16.msra.mxu0 %v2141
  %3087 = vmatprep.subr.bf16.mxu0 0
  %3088 = vmatpush1.bf16.msra.mxu0 %v2142
  %3089 = vmatprep.subr.bf16.mxu0 0
  %3090 = vmatpush1.bf16.msra.mxu0 %v2143
  %3091 = vmatprep.subr.bf16.mxu0 0
  %3092 = vmatpush1.bf16.msra.mxu0 %v2144
  %3093 = vmatprep.subr.bf16.mxu0 0
  %3094 = vmatpush1.bf16.msra.mxu0 %v2145
  %3095 = vmatprep.subr.bf16.mxu0 0
  %3096 = vmatpush1.bf16.msra.mxu0 %v2146
  %3097 = vmatprep.subr.bf16.mxu0 0
  %3098 = vmatpush1.bf16.msra.mxu0 %v2147
  %3099 = vmatprep.subr.bf16.mxu0 0
  %3100 = vmatpush1.bf16.msra.mxu0 %v2148
  %3101 = vmatprep.mubr.bf16.mxu0 %v700
  %3102 = vmatmul.mubr.bf16.gmra.mrb[0].mxu0 %v699
  %v3103 = vpop.f32.mrb[0].mxu0
  %v3104 = vadd.f32 %v3064, %v3103
  %v3105 = vpop.f32.mrb[0].mxu0
  %v3106 = vpop.f32.mrb[0].mxu0
  %v3107 = vpop.f32.mrb[0].mxu0
  %3108 = vdwg.mxu0
  %3109 = vmatprep.subr.bf16.mxu0 0
  %3110 = vmatpush1.bf16.msra.mxu0 %v2149
  %3111 = vmatprep.subr.bf16.mxu0 0
  %3112 = vmatpush1.bf16.msra.mxu0 %v2150
  %3113 = vmatprep.subr.bf16.mxu0 0
  %3114 = vmatpush1.bf16.msra.mxu0 %v2151
  %3115 = vmatprep.subr.bf16.mxu0 0
  %3116 = vmatpush1.bf16.msra.mxu0 %v2152
  %3117 = vmatprep.subr.bf16.mxu0 0
  %3118 = vmatpush1.bf16.msra.mxu0 %v2153
  %3119 = vmatprep.subr.bf16.mxu0 0
  %3120 = vmatpush1.bf16.msra.mxu0 %v2154
  %3121 = vmatprep.subr.bf16.mxu0 0
  %3122 = vmatpush1.bf16.msra.mxu0 %v2155
  %3123 = vmatprep.subr.bf16.mxu0 0
  %3124 = vmatpush1.bf16.msra.mxu0 %v2156
  %3125 = vmatprep.subr.bf16.mxu0 0
  %3126 = vmatpush1.bf16.msra.mxu0 %v2157
  %3127 = vmatprep.subr.bf16.mxu0 0
  %3128 = vmatpush1.bf16.msra.mxu0 %v2158
  %3129 = vmatprep.subr.bf16.mxu0 0
  %3130 = vmatpush1.bf16.msra.mxu0 %v2159
  %3131 = vmatprep.subr.bf16.mxu0 0
  %3132 = vmatpush1.bf16.msra.mxu0 %v2160
  %3133 = vmatprep.subr.bf16.mxu0 0
  %3134 = vmatpush1.bf16.msra.mxu0 %v2161
  %3135 = vmatprep.subr.bf16.mxu0 0
  %3136 = vmatpush1.bf16.msra.mxu0 %v2162
  %3137 = vmatprep.subr.bf16.mxu0 0
  %3138 = vmatpush1.bf16.msra.mxu0 %v2163
  %3139 = vmatprep.subr.bf16.mxu0 0
  %3140 = vmatpush1.bf16.msra.mxu0 %v2164
  %3141 = vmatprep.mubr.bf16.mxu0 %v702
  %3142 = vmatmul.mubr.bf16.gmra.mrb[0].mxu0 %v701
  %v3143 = vpop.f32.mrb[0].mxu0
  %v3144 = vadd.f32 %v3104, %v3143
  %v3145 = vpop.f32.mrb[0].mxu0
  %v3146 = vpop.f32.mrb[0].mxu0
  %v3147 = vpop.f32.mrb[0].mxu0
  %3148 = vdwg.mxu0
  %3149 = vmatprep.subr.bf16.mxu0 0
  %3150 = vmatpush1.bf16.msra.mxu0 %v2165
  %3151 = vmatprep.subr.bf16.mxu0 0
  %3152 = vmatpush1.bf16.msra.mxu0 %v2166
  %3153 = vmatprep.subr.bf16.mxu0 0
  %3154 = vmatpush1.bf16.msra.mxu0 %v2167
  %3155 = vmatprep.subr.bf16.mxu0 0
  %3156 = vmatpush1.bf16.msra.mxu0 %v2168
  %3157 = vmatprep.subr.bf16.mxu0 0
  %3158 = vmatpush1.bf16.msra.mxu0 %v2169
  %3159 = vmatprep.subr.bf16.mxu0 0
  %3160 = vmatpush1.bf16.msra.mxu0 %v2170
  %3161 = vmatprep.subr.bf16.mxu0 0
  %3162 = vmatpush1.bf16.msra.mxu0 %v2171
  %3163 = vmatprep.subr.bf16.mxu0 0
  %3164 = vmatpush1.bf16.msra.mxu0 %v2172
  %3165 = vmatprep.subr.bf16.mxu0 0
  %3166 = vmatpush1.bf16.msra.mxu0 %v2173
  %3167 = vmatprep.subr.bf16.mxu0 0
  %3168 = vmatpush1.bf16.msra.mxu0 %v2174
  %3169 = vmatprep.subr.bf16.mxu0 0
  %3170 = vmatpush1.bf16.msra.mxu0 %v2175
  %3171 = vmatprep.subr.bf16.mxu0 0
  %3172 = vmatpush1.bf16.msra.mxu0 %v2176
  %3173 = vmatprep.subr.bf16.mxu0 0
  %3174 = vmatpush1.bf16.msra.mxu0 %v2177
  %3175 = vmatprep.subr.bf16.mxu0 0
  %3176 = vmatpush1.bf16.msra.mxu0 %v2178
  %3177 = vmatprep.subr.bf16.mxu0 0
  %3178 = vmatpush1.bf16.msra.mxu0 %v2179
  %3179 = vmatprep.subr.bf16.mxu0 0
  %3180 = vmatpush1.bf16.msra.mxu0 %v2180
  %3181 = vmatprep.mubr.bf16.mxu0 %v704
  %3182 = vmatmul.mubr.bf16.gmra.mrb[0].mxu0 %v703
  %v3183 = vpop.f32.mrb[0].mxu0
  %v3184 = vadd.f32 %v3144, %v3183
  %v3185 = vpop.f32.mrb[0].mxu0
  %v3186 = vpop.f32.mrb[0].mxu0
  %v3187 = vpop.f32.mrb[0].mxu0
  %3188 = vdwg.mxu0
  %v3189 = vadd.f32 %v20, %v3184
  %3190 = vst [vmem:[#allocation2] sm:$0xff] %v3189
  // Predicated region
  $region18: #{discriminator_forward.15} parent=0 // pred_check
    %p3191 = pneg %p15
  $region19: #{discriminator_forward.15} parent=0 // pred_check_branch
    %3193 = sbr.rel (%p3191) target = $region21
  $region20: #{discriminator_forward.15} parent=0 // pred_region
    %v3194 = vld [vmem:[#allocation2] sm:$0xff]
    %v3195 = vld [vmem:[%s2] sm:$0x1]
    %v3197 = vlaneseq
    %v3198 = vshrl.u32 %v3197, 7
    %v3199 = vsub.s32 0, %v3198
    %v3200 = vrot.slane %v3195, %v3199
    %v3202 = vadd.f32 %v3194, %v3200
    %3203 = vst [vmem:[%s3] sm:$0xff] %v3202
  $region21: #{discriminator_forward.15} parent=0 // pred_fallthru
    _
  // Predicated region
  $region22: #{discriminator_forward.15} parent=0 // pred_check
    _
  $region23: #{discriminator_forward.15} parent=0 // pred_check_branch
    %3205 = sbr.rel (0) target = $region25
  $region24: #{discriminator_forward.15} parent=0 // pred_region
    _
  $region25: #{discriminator_forward.15} parent=0 // pred_fallthru
    _
  // Predicated region
  $region26: #{discriminator_forward.15} parent=0 // pred_check
    _
  $region27: #{discriminator_forward.15} parent=0 // pred_check_branch
    %3207 = sbr.rel (0) target = $region29
  $region28: #{discriminator_forward.15} parent=0 // pred_region
    _
  $region29: #{discriminator_forward.15} parent=0 // pred_fallthru
    _

</llo_original>
